<compile_context>
chip_gen: v6e
topology: v6e:2x2x1
jax: 0.10.0
libtpu: 0.0.40
codegen_flags: <defaults>
</compile_context>

<pallas_src>
import functools

import jax
import jax.numpy as jnp
from jax.experimental import pallas as pl
from jax.experimental.pallas import tpu as pltpu


# ----------------------------------------------------------------------------
# Fused CatRes kernel: one grid step per batch element, everything in VMEM.
# ----------------------------------------------------------------------------
def _catres_kernel(x_ref,
                   w0_ref, s0_ref, b0_ref,
                   w1_ref, s1_ref, b1_ref,
                   w2_ref, s2_ref, b2_ref,
                   w3_ref, s3_ref, b3_ref,
                   wsc_ref, ssc_ref, bsc_ref,
                   o_ref,
                   xpad_ref,
                   *, H, W, Ccat, Cout, k):
    p = k // 2

    # Concatenated input for this batch element: (H, W, Ccat) f32.
    x = x_ref[0]

    # ---- shortcut: 1x1 conv + folded BN (kept resident in VMEM) -----------
    sc = jnp.dot(x.reshape(H * W, Ccat).astype(jnp.bfloat16), wsc_ref[...],
                 preferred_element_type=jnp.float32)
    sc = sc * ssc_ref[...] + bsc_ref[...]                    # (H*W, Cout) f32

    # Zero the padded scratch once; the halo stays zero for every layer.
    xpad_ref[...] = jnp.zeros(xpad_ref.shape, xpad_ref.dtype)

    def conv_bn(act_hwc, cin, w_ref, s_ref, b_ref, relu):
        # Write the interior of the padded plane (halo already zero).
        xpad_ref[p:p + H, p:p + W, 0:cin] = act_hwc
        # im2col: build one (H*W, k*k*cin) slab -> single MXU matmul.
        taps = []
        for dy in range(k):
            for dx in range(k):
                taps.append(
                    xpad_ref[dy:dy + H, dx:dx + W, 0:cin].reshape(H * W, cin))
        patches = jnp.concatenate(taps, axis=1).astype(jnp.bfloat16)
        acc = jnp.dot(patches, w_ref[...],
                      preferred_element_type=jnp.float32)    # bf16 in, f32 acc
        out = acc * s_ref[...] + b_ref[...]                   # folded BN (f32)
        if relu:
            out = jnp.maximum(out, 0.0)
        return out                                            # (H*W, Cout) f32

    h = conv_bn(x, Ccat, w0_ref, s0_ref, b0_ref, True)
    h = conv_bn(h.reshape(H, W, Cout), Cout, w1_ref, s1_ref, b1_ref, True)
    h = conv_bn(h.reshape(H, W, Cout), Cout, w2_ref, s2_ref, b2_ref, True)
    h = conv_bn(h.reshape(H, W, Cout), Cout, w3_ref, s3_ref, b3_ref, False)

    # Residual add + final ReLU fused; single HBM store for this batch element.
    o_ref[...] = jnp.maximum(h + sc, 0.0).reshape(1, H * W, Cout)


# ----------------------------------------------------------------------------
# Wrapper: NCHW in / NCHW out (like the PyTorch module).
# ----------------------------------------------------------------------------
def cat_res_forward(x1, x2, params):
    x = jnp.concatenate([x2, x1], axis=1)          # (N, Ccat, H, W)
    x = jnp.transpose(x, (0, 2, 3, 1))             # NHWC
    N, H, W, Ccat = x.shape

    k = params["conv0"][0].shape[0]
    Cout = params["conv0"][0].shape[-1]
    p = k // 2
    Cmax = max(Ccat, Cout)

    # Flatten conv weights to (k*k*Cin, Cout) for the im2col matmul; cast bf16.
    flat = []
    for i in range(4):
        w, s, b = params[f"conv{i}"]
        cin = w.shape[2]
        flat += [w.reshape(k * k * cin, Cout).astype(jnp.bfloat16), s, b]

    if params["shortcut"] is not None:
        wsc, ssc, bsc = params["shortcut"]
        wsc = wsc.reshape(Ccat, Cout).astype(jnp.bfloat16)
    else:
        # Identity shortcut expressed as a 1x1 identity conv (Ccat == Cout).
        wsc = jnp.eye(Ccat, Cout, dtype=jnp.bfloat16)
        ssc = jnp.ones((1, Cout), jnp.float32)
        bsc = jnp.zeros((1, Cout), jnp.float32)
    flat += [wsc, ssc, bsc]

    kernel = functools.partial(_catres_kernel,
                               H=H, W=W, Ccat=Ccat, Cout=Cout, k=k)

    full = lambda n: (0, 0)
    in_specs = [pl.BlockSpec((1, H, W, Ccat), lambda n: (n, 0, 0, 0))]
    for j in range(5):                               # 4 convs + shortcut
        w_j = flat[3 * j]
        in_specs += [pl.BlockSpec(w_j.shape, full),
                     pl.BlockSpec((1, Cout), full),
                     pl.BlockSpec((1, Cout), full)]

    out = pl.pallas_call(
        kernel,
        out_shape=jax.ShapeDtypeStruct((N, H * W, Cout), jnp.float32),
        grid=(N,),
        in_specs=in_specs,
        out_specs=pl.BlockSpec((1, H * W, Cout), lambda n: (n, 0, 0)),
        scratch_shapes=[pltpu.VMEM((H + 2 * p, W + 2 * p, Cmax), jnp.float32)],
        compiler_params=pltpu.CompilerParams(
            dimension_semantics=("parallel",)),      # batch -> megacore TCs
    )(x, *flat)

    out = out.reshape(N, H, W, Cout)
    return jnp.transpose(out, (0, 3, 1, 2))          # back to NCHW


# ----------------------------------------------------------------------------
# Parameter construction (deterministic, synthetic) and BN folding (eval mode).
# ----------------------------------------------------------------------------
def _fold_bn(gamma, beta, mean, var, conv_bias, eps=1e-5):
    scale = gamma / jnp.sqrt(var + eps)
    bias = beta + scale * (conv_bias - mean)
    return scale[None, :], bias[None, :]             # (1, Cout)


def make_params(key, in_channels, out_channels, k_size):
    params = {}
    cin = in_channels
    for i in range(4):
        key, kw, kb, kg, kbe, km, kv = jax.random.split(key, 7)
        w = jax.random.normal(kw, (k_size, k_size, cin, out_channels),
                              jnp.float32) * 0.1
        cb = jax.random.normal(kb, (out_channels,), jnp.float32) * 0.05
        gamma = 1.0 + 0.1 * jax.random.normal(kg, (out_channels,), jnp.float32)
        beta = 0.05 * jax.random.normal(kbe, (out_channels,), jnp.float32)
        mean = 0.05 * jax.random.normal(km, (out_channels,), jnp.float32)
        var = 0.5 + jax.random.uniform(kv, (out_channels,), jnp.float32)
        s, b = _fold_bn(gamma, beta, mean, var, cb)
        params[f"conv{i}"] = (w, s, b)
        cin = out_channels

    if in_channels != out_channels:
        key, kw, kg, kbe, km, kv = jax.random.split(key, 6)
        w = jax.random.normal(kw, (1, 1, in_channels, out_channels),
                              jnp.float32) * 0.1
        gamma = 1.0 + 0.1 * jax.random.normal(kg, (out_channels,), jnp.float32)
        beta = 0.05 * jax.random.normal(kbe, (out_channels,), jnp.float32)
        mean = 0.05 * jax.random.normal(km, (out_channels,), jnp.float32)
        var = 0.5 + jax.random.uniform(kv, (out_channels,), jnp.float32)
        s, b = _fold_bn(gamma, beta, mean, var, jnp.zeros((out_channels,)))
        params["shortcut"] = (w, s, b)
    else:
        params["shortcut"] = None
    return params


# ----------------------------------------------------------------------------
# Pure-JAX reference (bf16-input convs, f32 accumulation — mirrors the kernel).
# ----------------------------------------------------------------------------
def _ref_conv_bn(x_nhwc, w_hwio, scale, bias, apply_relu):
    kk = w_hwio.shape[0]
    p = kk // 2
    y = jax.lax.conv_general_dilated(
        x_nhwc.astype(jnp.bfloat16), w_hwio.astype(jnp.bfloat16),
        window_strides=(1, 1), padding=[(p, p), (p, p)],
        dimension_numbers=("NHWC", "HWIO", "NHWC"),
        preferred_element_type=jnp.float32)
    y = y * scale[0] + bias[0]
    return jnp.maximum(y, 0.0) if apply_relu else y


def cat_res_reference(x1, x2, params):
    x = jnp.transpose(jnp.concatenate([x2, x1], axis=1), (0, 2, 3, 1))
    h = x
    for i in range(4):
        w, s, b = params[f"conv{i}"]
        h = _ref_conv_bn(h, w, s, b, i < 3)
    if params["shortcut"] is not None:
        w, s, b = params["shortcut"]
        sc = _ref_conv_bn(x, w, s, b, False)
    else:
        sc = x
    out = jnp.maximum(h + sc, 0.0)
    return jnp.transpose(out, (0, 3, 1, 2))


if __name__ == "__main__":
    # x1, x2: (N=2, C=4, H=16, W=16) NCHW -> concatenated channels = 8.
    key = jax.random.PRNGKey(0)
    k1, k2, kp = jax.random.split(key, 3)
    x1 = jax.random.normal(k1, (2, 4, 16, 16), jnp.float32)
    x2 = jax.random.normal(k2, (2, 4, 16, 16), jnp.float32)

    in_channels, out_channels, k_size = 8, 16, 3
    params = make_params(kp, in_channels, out_channels, k_size)

    fwd = jax.jit(cat_res_forward)
    out = jax.block_until_ready(fwd(x1, x2, params))

    ref = jax.block_until_ready(cat_res_reference(x1, x2, params))
    assert out.shape == (2, out_channels, 16, 16)
    max_err = float(jnp.max(jnp.abs(out - ref)))
    assert jnp.allclose(out, ref, atol=3e-2, rtol=3e-2), max_err

    print("KERNEL_OK")
</pallas_src>

<mosaic_0001>
module attributes {stable_mosaic.version = 11 : i64} {
  func.func @_catres_kernel(%arg0: i32, %arg1: memref<1x16x16x8xf32, #tpu.memory_space<vmem>>, %arg2: memref<72x16xbf16, #tpu.memory_space<vmem>>, %arg3: memref<1x16xf32, #tpu.memory_space<vmem>>, %arg4: memref<1x16xf32, #tpu.memory_space<vmem>>, %arg5: memref<144x16xbf16, #tpu.memory_space<vmem>>, %arg6: memref<1x16xf32, #tpu.memory_space<vmem>>, %arg7: memref<1x16xf32, #tpu.memory_space<vmem>>, %arg8: memref<144x16xbf16, #tpu.memory_space<vmem>>, %arg9: memref<1x16xf32, #tpu.memory_space<vmem>>, %arg10: memref<1x16xf32, #tpu.memory_space<vmem>>, %arg11: memref<144x16xbf16, #tpu.memory_space<vmem>>, %arg12: memref<1x16xf32, #tpu.memory_space<vmem>>, %arg13: memref<1x16xf32, #tpu.memory_space<vmem>>, %arg14: memref<8x16xbf16, #tpu.memory_space<vmem>>, %arg15: memref<1x16xf32, #tpu.memory_space<vmem>>, %arg16: memref<1x16xf32, #tpu.memory_space<vmem>>, %arg17: memref<1x256x16xf32, #tpu.memory_space<vmem>>, %arg18: memref<18x18x16xf32, #tpu.memory_space<vmem>>) attributes {dimension_semantics = [#tpu.dimension_semantics<parallel>], iteration_bounds = array<i64: 2>, scalar_prefetch = 0 : i64, scratch_operands = 1 : i64, tpu.core_type = #tpu.core_type<tc>, window_params = [{transform_indices = @transform_0, window_bounds = array<i64: 1, 16, 16, 8>}, {pipeline_mode = #tpu.pipeline_mode<synchronous>, transform_indices = @transform_1, window_bounds = array<i64: 72, 16>}, {pipeline_mode = #tpu.pipeline_mode<synchronous>, transform_indices = @transform_2, window_bounds = array<i64: 1, 16>}, {pipeline_mode = #tpu.pipeline_mode<synchronous>, transform_indices = @transform_3, window_bounds = array<i64: 1, 16>}, {pipeline_mode = #tpu.pipeline_mode<synchronous>, transform_indices = @transform_4, window_bounds = array<i64: 144, 16>}, {pipeline_mode = #tpu.pipeline_mode<synchronous>, transform_indices = @transform_5, window_bounds = array<i64: 1, 16>}, {pipeline_mode = #tpu.pipeline_mode<synchronous>, transform_indices = @transform_6, window_bounds = array<i64: 1, 16>}, {pipeline_mode = #tpu.pipeline_mode<synchronous>, transform_indices = @transform_7, window_bounds = array<i64: 144, 16>}, {pipeline_mode = #tpu.pipeline_mode<synchronous>, transform_indices = @transform_8, window_bounds = array<i64: 1, 16>}, {pipeline_mode = #tpu.pipeline_mode<synchronous>, transform_indices = @transform_9, window_bounds = array<i64: 1, 16>}, {pipeline_mode = #tpu.pipeline_mode<synchronous>, transform_indices = @transform_10, window_bounds = array<i64: 144, 16>}, {pipeline_mode = #tpu.pipeline_mode<synchronous>, transform_indices = @transform_11, window_bounds = array<i64: 1, 16>}, {pipeline_mode = #tpu.pipeline_mode<synchronous>, transform_indices = @transform_12, window_bounds = array<i64: 1, 16>}, {pipeline_mode = #tpu.pipeline_mode<synchronous>, transform_indices = @transform_13, window_bounds = array<i64: 8, 16>}, {pipeline_mode = #tpu.pipeline_mode<synchronous>, transform_indices = @transform_14, window_bounds = array<i64: 1, 16>}, {pipeline_mode = #tpu.pipeline_mode<synchronous>, transform_indices = @transform_15, window_bounds = array<i64: 1, 16>}, {transform_indices = @transform_16, window_bounds = array<i64: 1, 256, 16>}]} {
    %c0 = arith.constant 0 : index
    %c0_0 = arith.constant 0 : index
    %c0_1 = arith.constant 0 : index
    %c0_2 = arith.constant 0 : index
    %0 = vector.load %arg1[%c0, %c0_0, %c0_1, %c0_2] : memref<1x16x16x8xf32, #tpu.memory_space<vmem>>, vector<1x16x16x8xf32>
    %1 = vector.shape_cast %0 : vector<1x16x16x8xf32> to vector<16x16x8xf32>
    %2 = vector.shape_cast %1 : vector<16x16x8xf32> to vector<256x8xf32>
    %3 = arith.truncf %2 : vector<256x8xf32> to vector<256x8xbf16>
    %c0_3 = arith.constant 0 : index
    %c0_4 = arith.constant 0 : index
    %4 = vector.load %arg14[%c0_3, %c0_4] : memref<8x16xbf16, #tpu.memory_space<vmem>>, vector<8x16xbf16>
    %cst = arith.constant dense<0.000000e+00> : vector<256x16xf32>
    %5 = tpu.matmul %3, %4, %cst {dimension_numbers = #tpu.dot_dimension_numbers<[1], [0], [0], [1], [0, 0, 1, 1], [], []>} : vector<256x8xbf16>, vector<8x16xbf16>, vector<256x16xf32> -> vector<256x16xf32>
    %c0_5 = arith.constant 0 : index
    %c0_6 = arith.constant 0 : index
    %6 = vector.load %arg15[%c0_5, %c0_6] : memref<1x16xf32, #tpu.memory_space<vmem>>, vector<1x16xf32>
    %7 = vector.broadcast %6 : vector<1x16xf32> to vector<256x16xf32>
    %8 = arith.mulf %5, %7 : vector<256x16xf32>
    %c0_7 = arith.constant 0 : index
    %c0_8 = arith.constant 0 : index
    %9 = vector.load %arg16[%c0_7, %c0_8] : memref<1x16xf32, #tpu.memory_space<vmem>>, vector<1x16xf32>
    %10 = vector.broadcast %9 : vector<1x16xf32> to vector<256x16xf32>
    %11 = arith.addf %8, %10 : vector<256x16xf32>
    %cst_9 = arith.constant 0.000000e+00 : f32
    %12 = vector.broadcast %cst_9 : f32 to vector<18x18x16xf32>
    %c0_10 = arith.constant 0 : index
    %c0_11 = arith.constant 0 : index
    %c0_12 = arith.constant 0 : index
    %13 = vector.load %arg18[%c0_10, %c0_11, %c0_12] : memref<18x18x16xf32, #tpu.memory_space<vmem>>, vector<18x18x16xf32>
    tpu.vector_store %arg18[%c0_10, %c0_11, %c0_12], %12 {strides = array<i32>} : memref<18x18x16xf32, #tpu.memory_space<vmem>>, vector<18x18x16xf32>,
    %c1 = arith.constant 1 : index
    %c1_13 = arith.constant 1 : index
    %c0_14 = arith.constant 0 : index
    %14 = vector.load %arg18[%c1, %c1_13, %c0_14] : memref<18x18x16xf32, #tpu.memory_space<vmem>>, vector<16x16x8xf32>
    tpu.vector_store %arg18[%c1, %c1_13, %c0_14], %1 {strides = array<i32>} : memref<18x18x16xf32, #tpu.memory_space<vmem>>, vector<16x16x8xf32>,
    %c0_15 = arith.constant 0 : index
    %c0_16 = arith.constant 0 : index
    %c0_17 = arith.constant 0 : index
    %15 = vector.load %arg18[%c0_15, %c0_16, %c0_17] : memref<18x18x16xf32, #tpu.memory_space<vmem>>, vector<16x16x8xf32>
    %16 = vector.shape_cast %15 : vector<16x16x8xf32> to vector<256x8xf32>
    %c0_18 = arith.constant 0 : index
    %c1_19 = arith.constant 1 : index
    %c0_20 = arith.constant 0 : index
    %17 = vector.load %arg18[%c0_18, %c1_19, %c0_20] : memref<18x18x16xf32, #tpu.memory_space<vmem>>, vector<16x16x8xf32>
    %18 = vector.shape_cast %17 : vector<16x16x8xf32> to vector<256x8xf32>
    %c0_21 = arith.constant 0 : index
    %c2 = arith.constant 2 : index
    %c0_22 = arith.constant 0 : index
    %19 = vector.load %arg18[%c0_21, %c2, %c0_22] : memref<18x18x16xf32, #tpu.memory_space<vmem>>, vector<16x16x8xf32>
    %20 = vector.shape_cast %19 : vector<16x16x8xf32> to vector<256x8xf32>
    %c1_23 = arith.constant 1 : index
    %c0_24 = arith.constant 0 : index
    %c0_25 = arith.constant 0 : index
    %21 = vector.load %arg18[%c1_23, %c0_24, %c0_25] : memref<18x18x16xf32, #tpu.memory_space<vmem>>, vector<16x16x8xf32>
    %22 = vector.shape_cast %21 : vector<16x16x8xf32> to vector<256x8xf32>
    %c1_26 = arith.constant 1 : index
    %c1_27 = arith.constant 1 : index
    %c0_28 = arith.constant 0 : index
    %23 = vector.load %arg18[%c1_26, %c1_27, %c0_28] : memref<18x18x16xf32, #tpu.memory_space<vmem>>, vector<16x16x8xf32>
    %24 = vector.shape_cast %23 : vector<16x16x8xf32> to vector<256x8xf32>
    %c1_29 = arith.constant 1 : index
    %c2_30 = arith.constant 2 : index
    %c0_31 = arith.constant 0 : index
    %25 = vector.load %arg18[%c1_29, %c2_30, %c0_31] : memref<18x18x16xf32, #tpu.memory_space<vmem>>, vector<16x16x8xf32>
    %26 = vector.shape_cast %25 : vector<16x16x8xf32> to vector<256x8xf32>
    %c2_32 = arith.constant 2 : index
    %c0_33 = arith.constant 0 : index
    %c0_34 = arith.constant 0 : index
    %27 = vector.load %arg18[%c2_32, %c0_33, %c0_34] : memref<18x18x16xf32, #tpu.memory_space<vmem>>, vector<16x16x8xf32>
    %28 = vector.shape_cast %27 : vector<16x16x8xf32> to vector<256x8xf32>
    %c2_35 = arith.constant 2 : index
    %c1_36 = arith.constant 1 : index
    %c0_37 = arith.constant 0 : index
    %29 = vector.load %arg18[%c2_35, %c1_36, %c0_37] : memref<18x18x16xf32, #tpu.memory_space<vmem>>, vector<16x16x8xf32>
    %30 = vector.shape_cast %29 : vector<16x16x8xf32> to vector<256x8xf32>
    %c2_38 = arith.constant 2 : index
    %c2_39 = arith.constant 2 : index
    %c0_40 = arith.constant 0 : index
    %31 = vector.load %arg18[%c2_38, %c2_39, %c0_40] : memref<18x18x16xf32, #tpu.memory_space<vmem>>, vector<16x16x8xf32>
    %32 = vector.shape_cast %31 : vector<16x16x8xf32> to vector<256x8xf32>
    %33 = tpu.concatenate %16, %18, %20, %22, %24, %26, %28, %30, %32 in 1 : vector<256x8xf32>, vector<256x8xf32>, vector<256x8xf32>, vector<256x8xf32>, vector<256x8xf32>, vector<256x8xf32>, vector<256x8xf32>, vector<256x8xf32>, vector<256x8xf32> -> vector<256x72xf32>
    %34 = arith.truncf %33 : vector<256x72xf32> to vector<256x72xbf16>
    %c0_41 = arith.constant 0 : index
    %c0_42 = arith.constant 0 : index
    %35 = vector.load %arg2[%c0_41, %c0_42] : memref<72x16xbf16, #tpu.memory_space<vmem>>, vector<72x16xbf16>
    %cst_43 = arith.constant dense<0.000000e+00> : vector<256x16xf32>
    %36 = tpu.matmul %34, %35, %cst_43 {dimension_numbers = #tpu.dot_dimension_numbers<[1], [0], [0], [1], [0, 0, 1, 1], [], []>} : vector<256x72xbf16>, vector<72x16xbf16>, vector<256x16xf32> -> vector<256x16xf32>
    %c0_44 = arith.constant 0 : index
    %c0_45 = arith.constant 0 : index
    %37 = vector.load %arg3[%c0_44, %c0_45] : memref<1x16xf32, #tpu.memory_space<vmem>>, vector<1x16xf32>
    %38 = vector.broadcast %37 : vector<1x16xf32> to vector<256x16xf32>
    %39 = arith.mulf %36, %38 : vector<256x16xf32>
    %c0_46 = arith.constant 0 : index
    %c0_47 = arith.constant 0 : index
    %40 = vector.load %arg4[%c0_46, %c0_47] : memref<1x16xf32, #tpu.memory_space<vmem>>, vector<1x16xf32>
    %41 = vector.broadcast %40 : vector<1x16xf32> to vector<256x16xf32>
    %42 = arith.addf %39, %41 : vector<256x16xf32>
    %cst_48 = arith.constant 0.000000e+00 : f32
    %43 = vector.broadcast %cst_48 : f32 to vector<256x16xf32>
    %44 = arith.maximumf %42, %43 : vector<256x16xf32>
    %45 = vector.shape_cast %44 : vector<256x16xf32> to vector<16x16x16xf32>
    %c1_49 = arith.constant 1 : index
    %c1_50 = arith.constant 1 : index
    %c0_51 = arith.constant 0 : index
    %46 = vector.load %arg18[%c1_49, %c1_50, %c0_51] : memref<18x18x16xf32, #tpu.memory_space<vmem>>, vector<16x16x16xf32>
    tpu.vector_store %arg18[%c1_49, %c1_50, %c0_51], %45 {strides = array<i32>} : memref<18x18x16xf32, #tpu.memory_space<vmem>>, vector<16x16x16xf32>,
    %c0_52 = arith.constant 0 : index
    %c0_53 = arith.constant 0 : index
    %c0_54 = arith.constant 0 : index
    %47 = vector.load %arg18[%c0_52, %c0_53, %c0_54] : memref<18x18x16xf32, #tpu.memory_space<vmem>>, vector<16x16x16xf32>
    %48 = vector.shape_cast %47 : vector<16x16x16xf32> to vector<256x16xf32>
    %c0_55 = arith.constant 0 : index
    %c1_56 = arith.constant 1 : index
    %c0_57 = arith.constant 0 : index
    %49 = vector.load %arg18[%c0_55, %c1_56, %c0_57] : memref<18x18x16xf32, #tpu.memory_space<vmem>>, vector<16x16x16xf32>
    %50 = vector.shape_cast %49 : vector<16x16x16xf32> to vector<256x16xf32>
    %c0_58 = arith.constant 0 : index
    %c2_59 = arith.constant 2 : index
    %c0_60 = arith.constant 0 : index
    %51 = vector.load %arg18[%c0_58, %c2_59, %c0_60] : memref<18x18x16xf32, #tpu.memory_space<vmem>>, vector<16x16x16xf32>
    %52 = vector.shape_cast %51 : vector<16x16x16xf32> to vector<256x16xf32>
    %c1_61 = arith.constant 1 : index
    %c0_62 = arith.constant 0 : index
    %c0_63 = arith.constant 0 : index
    %53 = vector.load %arg18[%c1_61, %c0_62, %c0_63] : memref<18x18x16xf32, #tpu.memory_space<vmem>>, vector<16x16x16xf32>
    %54 = vector.shape_cast %53 : vector<16x16x16xf32> to vector<256x16xf32>
    %c1_64 = arith.constant 1 : index
    %c1_65 = arith.constant 1 : index
    %c0_66 = arith.constant 0 : index
    %55 = vector.load %arg18[%c1_64, %c1_65, %c0_66] : memref<18x18x16xf32, #tpu.memory_space<vmem>>, vector<16x16x16xf32>
    %56 = vector.shape_cast %55 : vector<16x16x16xf32> to vector<256x16xf32>
    %c1_67 = arith.constant 1 : index
    %c2_68 = arith.constant 2 : index
    %c0_69 = arith.constant 0 : index
    %57 = vector.load %arg18[%c1_67, %c2_68, %c0_69] : memref<18x18x16xf32, #tpu.memory_space<vmem>>, vector<16x16x16xf32>
    %58 = vector.shape_cast %57 : vector<16x16x16xf32> to vector<256x16xf32>
    %c2_70 = arith.constant 2 : index
    %c0_71 = arith.constant 0 : index
    %c0_72 = arith.constant 0 : index
    %59 = vector.load %arg18[%c2_70, %c0_71, %c0_72] : memref<18x18x16xf32, #tpu.memory_space<vmem>>, vector<16x16x16xf32>
    %60 = vector.shape_cast %59 : vector<16x16x16xf32> to vector<256x16xf32>
    %c2_73 = arith.constant 2 : index
    %c1_74 = arith.constant 1 : index
    %c0_75 = arith.constant 0 : index
    %61 = vector.load %arg18[%c2_73, %c1_74, %c0_75] : memref<18x18x16xf32, #tpu.memory_space<vmem>>, vector<16x16x16xf32>
    %62 = vector.shape_cast %61 : vector<16x16x16xf32> to vector<256x16xf32>
    %c2_76 = arith.constant 2 : index
    %c2_77 = arith.constant 2 : index
    %c0_78 = arith.constant 0 : index
    %63 = vector.load %arg18[%c2_76, %c2_77, %c0_78] : memref<18x18x16xf32, #tpu.memory_space<vmem>>, vector<16x16x16xf32>
    %64 = vector.shape_cast %63 : vector<16x16x16xf32> to vector<256x16xf32>
    %65 = tpu.concatenate %48, %50, %52, %54, %56, %58, %60, %62, %64 in 1 : vector<256x16xf32>, vector<256x16xf32>, vector<256x16xf32>, vector<256x16xf32>, vector<256x16xf32>, vector<256x16xf32>, vector<256x16xf32>, vector<256x16xf32>, vector<256x16xf32> -> vector<256x144xf32>
    %66 = arith.truncf %65 : vector<256x144xf32> to vector<256x144xbf16>
    %c0_79 = arith.constant 0 : index
    %c0_80 = arith.constant 0 : index
    %67 = vector.load %arg5[%c0_79, %c0_80] : memref<144x16xbf16, #tpu.memory_space<vmem>>, vector<144x16xbf16>
    %cst_81 = arith.constant dense<0.000000e+00> : vector<256x16xf32>
    %68 = tpu.matmul %66, %67, %cst_81 {dimension_numbers = #tpu.dot_dimension_numbers<[1], [0], [0], [1], [0, 0, 1, 1], [], []>} : vector<256x144xbf16>, vector<144x16xbf16>, vector<256x16xf32> -> vector<256x16xf32>
    %c0_82 = arith.constant 0 : index
    %c0_83 = arith.constant 0 : index
    %69 = vector.load %arg6[%c0_82, %c0_83] : memref<1x16xf32, #tpu.memory_space<vmem>>, vector<1x16xf32>
    %70 = vector.broadcast %69 : vector<1x16xf32> to vector<256x16xf32>
    %71 = arith.mulf %68, %70 : vector<256x16xf32>
    %c0_84 = arith.constant 0 : index
    %c0_85 = arith.constant 0 : index
    %72 = vector.load %arg7[%c0_84, %c0_85] : memref<1x16xf32, #tpu.memory_space<vmem>>, vector<1x16xf32>
    %73 = vector.broadcast %72 : vector<1x16xf32> to vector<256x16xf32>
    %74 = arith.addf %71, %73 : vector<256x16xf32>
    %cst_86 = arith.constant 0.000000e+00 : f32
    %75 = vector.broadcast %cst_86 : f32 to vector<256x16xf32>
    %76 = arith.maximumf %74, %75 : vector<256x16xf32>
    %77 = vector.shape_cast %76 : vector<256x16xf32> to vector<16x16x16xf32>
    %c1_87 = arith.constant 1 : index
    %c1_88 = arith.constant 1 : index
    %c0_89 = arith.constant 0 : index
    %78 = vector.load %arg18[%c1_87, %c1_88, %c0_89] : memref<18x18x16xf32, #tpu.memory_space<vmem>>, vector<16x16x16xf32>
    tpu.vector_store %arg18[%c1_87, %c1_88, %c0_89], %77 {strides = array<i32>} : memref<18x18x16xf32, #tpu.memory_space<vmem>>, vector<16x16x16xf32>,
    %c0_90 = arith.constant 0 : index
    %c0_91 = arith.constant 0 : index
    %c0_92 = arith.constant 0 : index
    %79 = vector.load %arg18[%c0_90, %c0_91, %c0_92] : memref<18x18x16xf32, #tpu.memory_space<vmem>>, vector<16x16x16xf32>
    %80 = vector.shape_cast %79 : vector<16x16x16xf32> to vector<256x16xf32>
    %c0_93 = arith.constant 0 : index
    %c1_94 = arith.constant 1 : index
    %c0_95 = arith.constant 0 : index
    %81 = vector.load %arg18[%c0_93, %c1_94, %c0_95] : memref<18x18x16xf32, #tpu.memory_space<vmem>>, vector<16x16x16xf32>
    %82 = vector.shape_cast %81 : vector<16x16x16xf32> to vector<256x16xf32>
    %c0_96 = arith.constant 0 : index
    %c2_97 = arith.constant 2 : index
    %c0_98 = arith.constant 0 : index
    %83 = vector.load %arg18[%c0_96, %c2_97, %c0_98] : memref<18x18x16xf32, #tpu.memory_space<vmem>>, vector<16x16x16xf32>
    %84 = vector.shape_cast %83 : vector<16x16x16xf32> to vector<256x16xf32>
    %c1_99 = arith.constant 1 : index
    %c0_100 = arith.constant 0 : index
    %c0_101 = arith.constant 0 : index
    %85 = vector.load %arg18[%c1_99, %c0_100, %c0_101] : memref<18x18x16xf32, #tpu.memory_space<vmem>>, vector<16x16x16xf32>
    %86 = vector.shape_cast %85 : vector<16x16x16xf32> to vector<256x16xf32>
    %c1_102 = arith.constant 1 : index
    %c1_103 = arith.constant 1 : index
    %c0_104 = arith.constant 0 : index
    %87 = vector.load %arg18[%c1_102, %c1_103, %c0_104] : memref<18x18x16xf32, #tpu.memory_space<vmem>>, vector<16x16x16xf32>
    %88 = vector.shape_cast %87 : vector<16x16x16xf32> to vector<256x16xf32>
    %c1_105 = arith.constant 1 : index
    %c2_106 = arith.constant 2 : index
    %c0_107 = arith.constant 0 : index
    %89 = vector.load %arg18[%c1_105, %c2_106, %c0_107] : memref<18x18x16xf32, #tpu.memory_space<vmem>>, vector<16x16x16xf32>
    %90 = vector.shape_cast %89 : vector<16x16x16xf32> to vector<256x16xf32>
    %c2_108 = arith.constant 2 : index
    %c0_109 = arith.constant 0 : index
    %c0_110 = arith.constant 0 : index
    %91 = vector.load %arg18[%c2_108, %c0_109, %c0_110] : memref<18x18x16xf32, #tpu.memory_space<vmem>>, vector<16x16x16xf32>
    %92 = vector.shape_cast %91 : vector<16x16x16xf32> to vector<256x16xf32>
    %c2_111 = arith.constant 2 : index
    %c1_112 = arith.constant 1 : index
    %c0_113 = arith.constant 0 : index
    %93 = vector.load %arg18[%c2_111, %c1_112, %c0_113] : memref<18x18x16xf32, #tpu.memory_space<vmem>>, vector<16x16x16xf32>
    %94 = vector.shape_cast %93 : vector<16x16x16xf32> to vector<256x16xf32>
    %c2_114 = arith.constant 2 : index
    %c2_115 = arith.constant 2 : index
    %c0_116 = arith.constant 0 : index
    %95 = vector.load %arg18[%c2_114, %c2_115, %c0_116] : memref<18x18x16xf32, #tpu.memory_space<vmem>>, vector<16x16x16xf32>
    %96 = vector.shape_cast %95 : vector<16x16x16xf32> to vector<256x16xf32>
    %97 = tpu.concatenate %80, %82, %84, %86, %88, %90, %92, %94, %96 in 1 : vector<256x16xf32>, vector<256x16xf32>, vector<256x16xf32>, vector<256x16xf32>, vector<256x16xf32>, vector<256x16xf32>, vector<256x16xf32>, vector<256x16xf32>, vector<256x16xf32> -> vector<256x144xf32>
    %98 = arith.truncf %97 : vector<256x144xf32> to vector<256x144xbf16>
    %c0_117 = arith.constant 0 : index
    %c0_118 = arith.constant 0 : index
    %99 = vector.load %arg8[%c0_117, %c0_118] : memref<144x16xbf16, #tpu.memory_space<vmem>>, vector<144x16xbf16>
    %cst_119 = arith.constant dense<0.000000e+00> : vector<256x16xf32>
    %100 = tpu.matmul %98, %99, %cst_119 {dimension_numbers = #tpu.dot_dimension_numbers<[1], [0], [0], [1], [0, 0, 1, 1], [], []>} : vector<256x144xbf16>, vector<144x16xbf16>, vector<256x16xf32> -> vector<256x16xf32>
    %c0_120 = arith.constant 0 : index
    %c0_121 = arith.constant 0 : index
    %101 = vector.load %arg9[%c0_120, %c0_121] : memref<1x16xf32, #tpu.memory_space<vmem>>, vector<1x16xf32>
    %102 = vector.broadcast %101 : vector<1x16xf32> to vector<256x16xf32>
    %103 = arith.mulf %100, %102 : vector<256x16xf32>
    %c0_122 = arith.constant 0 : index
    %c0_123 = arith.constant 0 : index
    %104 = vector.load %arg10[%c0_122, %c0_123] : memref<1x16xf32, #tpu.memory_space<vmem>>, vector<1x16xf32>
    %105 = vector.broadcast %104 : vector<1x16xf32> to vector<256x16xf32>
    %106 = arith.addf %103, %105 : vector<256x16xf32>
    %cst_124 = arith.constant 0.000000e+00 : f32
    %107 = vector.broadcast %cst_124 : f32 to vector<256x16xf32>
    %108 = arith.maximumf %106, %107 : vector<256x16xf32>
    %109 = vector.shape_cast %108 : vector<256x16xf32> to vector<16x16x16xf32>
    %c1_125 = arith.constant 1 : index
    %c1_126 = arith.constant 1 : index
    %c0_127 = arith.constant 0 : index
    %110 = vector.load %arg18[%c1_125, %c1_126, %c0_127] : memref<18x18x16xf32, #tpu.memory_space<vmem>>, vector<16x16x16xf32>
    tpu.vector_store %arg18[%c1_125, %c1_126, %c0_127], %109 {strides = array<i32>} : memref<18x18x16xf32, #tpu.memory_space<vmem>>, vector<16x16x16xf32>,
    %c0_128 = arith.constant 0 : index
    %c0_129 = arith.constant 0 : index
    %c0_130 = arith.constant 0 : index
    %111 = vector.load %arg18[%c0_128, %c0_129, %c0_130] : memref<18x18x16xf32, #tpu.memory_space<vmem>>, vector<16x16x16xf32>
    %112 = vector.shape_cast %111 : vector<16x16x16xf32> to vector<256x16xf32>
    %c0_131 = arith.constant 0 : index
    %c1_132 = arith.constant 1 : index
    %c0_133 = arith.constant 0 : index
    %113 = vector.load %arg18[%c0_131, %c1_132, %c0_133] : memref<18x18x16xf32, #tpu.memory_space<vmem>>, vector<16x16x16xf32>
    %114 = vector.shape_cast %113 : vector<16x16x16xf32> to vector<256x16xf32>
    %c0_134 = arith.constant 0 : index
    %c2_135 = arith.constant 2 : index
    %c0_136 = arith.constant 0 : index
    %115 = vector.load %arg18[%c0_134, %c2_135, %c0_136] : memref<18x18x16xf32, #tpu.memory_space<vmem>>, vector<16x16x16xf32>
    %116 = vector.shape_cast %115 : vector<16x16x16xf32> to vector<256x16xf32>
    %c1_137 = arith.constant 1 : index
    %c0_138 = arith.constant 0 : index
    %c0_139 = arith.constant 0 : index
    %117 = vector.load %arg18[%c1_137, %c0_138, %c0_139] : memref<18x18x16xf32, #tpu.memory_space<vmem>>, vector<16x16x16xf32>
    %118 = vector.shape_cast %117 : vector<16x16x16xf32> to vector<256x16xf32>
    %c1_140 = arith.constant 1 : index
    %c1_141 = arith.constant 1 : index
    %c0_142 = arith.constant 0 : index
    %119 = vector.load %arg18[%c1_140, %c1_141, %c0_142] : memref<18x18x16xf32, #tpu.memory_space<vmem>>, vector<16x16x16xf32>
    %120 = vector.shape_cast %119 : vector<16x16x16xf32> to vector<256x16xf32>
    %c1_143 = arith.constant 1 : index
    %c2_144 = arith.constant 2 : index
    %c0_145 = arith.constant 0 : index
    %121 = vector.load %arg18[%c1_143, %c2_144, %c0_145] : memref<18x18x16xf32, #tpu.memory_space<vmem>>, vector<16x16x16xf32>
    %122 = vector.shape_cast %121 : vector<16x16x16xf32> to vector<256x16xf32>
    %c2_146 = arith.constant 2 : index
    %c0_147 = arith.constant 0 : index
    %c0_148 = arith.constant 0 : index
    %123 = vector.load %arg18[%c2_146, %c0_147, %c0_148] : memref<18x18x16xf32, #tpu.memory_space<vmem>>, vector<16x16x16xf32>
    %124 = vector.shape_cast %123 : vector<16x16x16xf32> to vector<256x16xf32>
    %c2_149 = arith.constant 2 : index
    %c1_150 = arith.constant 1 : index
    %c0_151 = arith.constant 0 : index
    %125 = vector.load %arg18[%c2_149, %c1_150, %c0_151] : memref<18x18x16xf32, #tpu.memory_space<vmem>>, vector<16x16x16xf32>
    %126 = vector.shape_cast %125 : vector<16x16x16xf32> to vector<256x16xf32>
    %c2_152 = arith.constant 2 : index
    %c2_153 = arith.constant 2 : index
    %c0_154 = arith.constant 0 : index
    %127 = vector.load %arg18[%c2_152, %c2_153, %c0_154] : memref<18x18x16xf32, #tpu.memory_space<vmem>>, vector<16x16x16xf32>
    %128 = vector.shape_cast %127 : vector<16x16x16xf32> to vector<256x16xf32>
    %129 = tpu.concatenate %112, %114, %116, %118, %120, %122, %124, %126, %128 in 1 : vector<256x16xf32>, vector<256x16xf32>, vector<256x16xf32>, vector<256x16xf32>, vector<256x16xf32>, vector<256x16xf32>, vector<256x16xf32>, vector<256x16xf32>, vector<256x16xf32> -> vector<256x144xf32>
    %130 = arith.truncf %129 : vector<256x144xf32> to vector<256x144xbf16>
    %c0_155 = arith.constant 0 : index
    %c0_156 = arith.constant 0 : index
    %131 = vector.load %arg11[%c0_155, %c0_156] : memref<144x16xbf16, #tpu.memory_space<vmem>>, vector<144x16xbf16>
    %cst_157 = arith.constant dense<0.000000e+00> : vector<256x16xf32>
    %132 = tpu.matmul %130, %131, %cst_157 {dimension_numbers = #tpu.dot_dimension_numbers<[1], [0], [0], [1], [0, 0, 1, 1], [], []>} : vector<256x144xbf16>, vector<144x16xbf16>, vector<256x16xf32> -> vector<256x16xf32>
    %c0_158 = arith.constant 0 : index
    %c0_159 = arith.constant 0 : index
    %133 = vector.load %arg12[%c0_158, %c0_159] : memref<1x16xf32, #tpu.memory_space<vmem>>, vector<1x16xf32>
    %134 = vector.broadcast %133 : vector<1x16xf32> to vector<256x16xf32>
    %135 = arith.mulf %132, %134 : vector<256x16xf32>
    %c0_160 = arith.constant 0 : index
    %c0_161 = arith.constant 0 : index
    %136 = vector.load %arg13[%c0_160, %c0_161] : memref<1x16xf32, #tpu.memory_space<vmem>>, vector<1x16xf32>
    %137 = vector.broadcast %136 : vector<1x16xf32> to vector<256x16xf32>
    %138 = arith.addf %135, %137 : vector<256x16xf32>
    %139 = arith.addf %138, %11 : vector<256x16xf32>
    %cst_162 = arith.constant 0.000000e+00 : f32
    %140 = vector.broadcast %cst_162 : f32 to vector<256x16xf32>
    %141 = arith.maximumf %139, %140 : vector<256x16xf32>
    %142 = vector.shape_cast %141 : vector<256x16xf32> to vector<1x256x16xf32>
    %c0_163 = arith.constant 0 : index
    %c0_164 = arith.constant 0 : index
    %c0_165 = arith.constant 0 : index
    %143 = vector.load %arg17[%c0_163, %c0_164, %c0_165] : memref<1x256x16xf32, #tpu.memory_space<vmem>>, vector<1x256x16xf32>
    tpu.vector_store %arg17[%c0_163, %c0_164, %c0_165], %142 {strides = array<i32>} : memref<1x256x16xf32, #tpu.memory_space<vmem>>, vector<1x256x16xf32>,
    return
  }
  func.func @transform_0(%arg0: i32) -> (i32, i32, i32, i32) {
    %c0_i32 = arith.constant 0 : i32
    %c0_i32_0 = arith.constant 0 : i32
    %c0_i32_1 = arith.constant 0 : i32
    %c0_i32_2 = arith.constant 0 : i32
    return %arg0, %c0_i32, %c0_i32_0, %c0_i32_1 : i32, i32, i32, i32
  }
  func.func @transform_1(%arg0: i32) -> (i32, i32) {
    %c0_i32 = arith.constant 0 : i32
    %c0_i32_0 = arith.constant 0 : i32
    %c0_i32_1 = arith.constant 0 : i32
    return %c0_i32, %c0_i32_0 : i32, i32
  }
  func.func @transform_2(%arg0: i32) -> (i32, i32) {
    %c0_i32 = arith.constant 0 : i32
    %c0_i32_0 = arith.constant 0 : i32
    %c0_i32_1 = arith.constant 0 : i32
    return %c0_i32, %c0_i32_0 : i32, i32
  }
  func.func @transform_3(%arg0: i32) -> (i32, i32) {
    %c0_i32 = arith.constant 0 : i32
    %c0_i32_0 = arith.constant 0 : i32
    %c0_i32_1 = arith.constant 0 : i32
    return %c0_i32, %c0_i32_0 : i32, i32
  }
  func.func @transform_4(%arg0: i32) -> (i32, i32) {
    %c0_i32 = arith.constant 0 : i32
    %c0_i32_0 = arith.constant 0 : i32
    %c0_i32_1 = arith.constant 0 : i32
    return %c0_i32, %c0_i32_0 : i32, i32
  }
  func.func @transform_5(%arg0: i32) -> (i32, i32) {
    %c0_i32 = arith.constant 0 : i32
    %c0_i32_0 = arith.constant 0 : i32
    %c0_i32_1 = arith.constant 0 : i32
    return %c0_i32, %c0_i32_0 : i32, i32
  }
  func.func @transform_6(%arg0: i32) -> (i32, i32) {
    %c0_i32 = arith.constant 0 : i32
    %c0_i32_0 = arith.constant 0 : i32
    %c0_i32_1 = arith.constant 0 : i32
    return %c0_i32, %c0_i32_0 : i32, i32
  }
  func.func @transform_7(%arg0: i32) -> (i32, i32) {
    %c0_i32 = arith.constant 0 : i32
    %c0_i32_0 = arith.constant 0 : i32
    %c0_i32_1 = arith.constant 0 : i32
    return %c0_i32, %c0_i32_0 : i32, i32
  }
  func.func @transform_8(%arg0: i32) -> (i32, i32) {
    %c0_i32 = arith.constant 0 : i32
    %c0_i32_0 = arith.constant 0 : i32
    %c0_i32_1 = arith.constant 0 : i32
    return %c0_i32, %c0_i32_0 : i32, i32
  }
  func.func @transform_9(%arg0: i32) -> (i32, i32) {
    %c0_i32 = arith.constant 0 : i32
    %c0_i32_0 = arith.constant 0 : i32
    %c0_i32_1 = arith.constant 0 : i32
    return %c0_i32, %c0_i32_0 : i32, i32
  }
  func.func @transform_10(%arg0: i32) -> (i32, i32) {
    %c0_i32 = arith.constant 0 : i32
    %c0_i32_0 = arith.constant 0 : i32
    %c0_i32_1 = arith.constant 0 : i32
    return %c0_i32, %c0_i32_0 : i32, i32
  }
  func.func @transform_11(%arg0: i32) -> (i32, i32) {
    %c0_i32 = arith.constant 0 : i32
    %c0_i32_0 = arith.constant 0 : i32
    %c0_i32_1 = arith.constant 0 : i32
    return %c0_i32, %c0_i32_0 : i32, i32
  }
  func.func @transform_12(%arg0: i32) -> (i32, i32) {
    %c0_i32 = arith.constant 0 : i32
    %c0_i32_0 = arith.constant 0 : i32
    %c0_i32_1 = arith.constant 0 : i32
    return %c0_i32, %c0_i32_0 : i32, i32
  }
  func.func @transform_13(%arg0: i32) -> (i32, i32) {
    %c0_i32 = arith.constant 0 : i32
    %c0_i32_0 = arith.constant 0 : i32
    %c0_i32_1 = arith.constant 0 : i32
    return %c0_i32, %c0_i32_0 : i32, i32
  }
  func.func @transform_14(%arg0: i32) -> (i32, i32) {
    %c0_i32 = arith.constant 0 : i32
    %c0_i32_0 = arith.constant 0 : i32
    %c0_i32_1 = arith.constant 0 : i32
    return %c0_i32, %c0_i32_0 : i32, i32
  }
  func.func @transform_15(%arg0: i32) -> (i32, i32) {
    %c0_i32 = arith.constant 0 : i32
    %c0_i32_0 = arith.constant 0 : i32
    %c0_i32_1 = arith.constant 0 : i32
    return %c0_i32, %c0_i32_0 : i32, i32
  }
  func.func @transform_16(%arg0: i32) -> (i32, i32, i32) {
    %c0_i32 = arith.constant 0 : i32
    %c0_i32_0 = arith.constant 0 : i32
    %c0_i32_1 = arith.constant 0 : i32
    return %arg0, %c0_i32, %c0_i32_0 : i32, i32, i32
  }
}

</mosaic_0001>

<llo_original>
// kernel: cat_res_forward.1
$region0: #{cat_res_forward.1}
  #allocation0 [shape = 'u32[]', space=smem, size = 0x4, offset = 0x4, fixed_abs, tag = 'smem constant byte address 0x4 - core index']
  #allocation1 [shape = 'u32[144,128]{1,0:T(1,128)}', space=vmem, size = 0x12000, scoped, tag = 'internal scratch']
  #allocation2 [shape = 'f32[18,18,16]{2,1,0:T(8,128)}', space=vmem, size = 0x36000, scoped, tag = 'scratch operand']
  %s0 = inlined_call_operand.vmem [shape: f32[2,16,16,8], index: 0, kind: input, shape index: {}]
  %s1 = inlined_call_operand.vmem [shape: bf16[72,16], index: 1, kind: input, shape index: {}]
  %s2 = inlined_call_operand.vmem [shape: f32[1,16], index: 2, kind: input, shape index: {}]
  %s3 = inlined_call_operand.vmem [shape: f32[1,16], index: 3, kind: input, shape index: {}]
  %s4 = inlined_call_operand.vmem [shape: bf16[144,16], index: 4, kind: input, shape index: {}]
  %s5 = inlined_call_operand.vmem [shape: f32[1,16], index: 5, kind: input, shape index: {}]
  %s6 = inlined_call_operand.vmem [shape: f32[1,16], index: 6, kind: input, shape index: {}]
  %s7 = inlined_call_operand.vmem [shape: bf16[144,16], index: 7, kind: input, shape index: {}]
  %s8 = inlined_call_operand.vmem [shape: f32[1,16], index: 8, kind: input, shape index: {}]
  %s9 = inlined_call_operand.vmem [shape: f32[1,16], index: 9, kind: input, shape index: {}]
  %s10 = inlined_call_operand.vmem [shape: bf16[144,16], index: 10, kind: input, shape index: {}]
  %s11 = inlined_call_operand.vmem [shape: f32[1,16], index: 11, kind: input, shape index: {}]
  %s12 = inlined_call_operand.vmem [shape: f32[1,16], index: 12, kind: input, shape index: {}]
  %s13 = inlined_call_operand.vmem [shape: bf16[8,16], index: 13, kind: input, shape index: {}]
  %s14 = inlined_call_operand.vmem [shape: f32[1,16], index: 14, kind: input, shape index: {}]
  %s15 = inlined_call_operand.vmem [shape: f32[1,16], index: 15, kind: input, shape index: {}]
  %s16 = inlined_call_operand.vmem [shape: f32[2,256,16], index: 16, kind: output, shape index: {}]
  %s17 = sld [smem:[#allocation0]]
  $region97: #{cat_res_forward.1} parent=0
    _
  %s19 = ssub.s32 1, %s17
  %s20 = scalar_select 0, %s19, %s17
  loop: start=0, step=1, limit=4
  $region2: #{cat_res_forward.1} parent=0 // loop_pre_header
    _
  $region3: #{cat_res_forward.1} parent=0 // loop_header
    %s22 = sphi 0, %s26
    %p23 = scmp.ge.s32.totalorder %s22, 4
    %s32 = sphi 0, %s34
    %s35 = sphi 0, %s32
    %s36 = sphi 0, %s35
    %s52 = sphi 0, %s36
    %s56 = sphi 0, %s56
    %s58 = sphi 0, %s56
    %s59 = sphi 0, %s58
    %s73 = sphi 0, %s59
    %s77 = sphi 0, %s77
    %s79 = sphi 0, %s77
    %s80 = sphi 0, %s79
    %s94 = sphi 0, %s80
    %s98 = sphi 0, %s98
    %s100 = sphi 0, %s98
    %s101 = sphi 0, %s100
    %s115 = sphi 0, %s101
    %s119 = sphi 0, %s119
    %s121 = sphi 0, %s119
    %s122 = sphi 0, %s121
    %s136 = sphi 0, %s122
    %s140 = sphi 0, %s140
    %s142 = sphi 0, %s140
    %s143 = sphi 0, %s142
    %s157 = sphi 0, %s143
    %s161 = sphi 0, %s161
    %s163 = sphi 0, %s161
    %s164 = sphi 0, %s163
    %s178 = sphi 0, %s164
    %s182 = sphi 0, %s182
    %s184 = sphi 0, %s182
    %s185 = sphi 0, %s184
    %s199 = sphi 0, %s185
    %s203 = sphi 0, %s203
    %s205 = sphi 0, %s203
    %s206 = sphi 0, %s205
    %s220 = sphi 0, %s206
    %s224 = sphi 0, %s224
    %s226 = sphi 0, %s224
    %s227 = sphi 0, %s226
    %s241 = sphi 0, %s227
    %s245 = sphi 0, %s245
    %s247 = sphi 0, %s245
    %s248 = sphi 0, %s247
    %s262 = sphi 0, %s248
    %s266 = sphi 0, %s266
    %s268 = sphi 0, %s266
    %s269 = sphi 0, %s268
    %s283 = sphi 0, %s269
    %s287 = sphi 0, %s287
    %s289 = sphi 0, %s287
    %s290 = sphi 0, %s289
    %s304 = sphi 0, %s290
    %s308 = sphi 0, %s308
    %s310 = sphi 0, %s308
    %s311 = sphi 0, %s310
    %s325 = sphi 0, %s311
    %s329 = sphi 0, %s329
    %s331 = sphi 0, %s329
    %s332 = sphi 0, %s331
    %s346 = sphi 0, %s332
    %s350 = sphi 0, %s350
    %s352 = sphi 0, %s350
    %s353 = sphi 0, %s352
    %s367 = sphi 0, %s353
    %s373 = sphi 0, %s375
    %s376 = sphi 0, %s373
    %s377 = sphi 0, %s376
    %s393 = sphi 0, %s377
  $region4: #{cat_res_forward.1} parent=0 // loop_header_branch
    %25 = sbr.rel (%p23) target = $region8
  $region5: #{cat_res_forward.1} parent=0 // loop_body
    %s27 = ssub.s32 %s22, 1
    %s28 = ssub.s32 %s22, 2
    %s29 = sadd.s32 %s22, 1
    %s30 = ssub.s32 %s22, %s29
    %p31 = scmp.eq.s32.totalorder %s30, 0
    %s33 = sadd.s32 %s32, 1
    %s34 = scalar_select %p31, %s32, %s33
    %p37 = pneg %p31
    %p38 = scmp.eq.s32.totalorder %s22, 1
    %p39 = por %p37, %p38
    %p40 = scmp.ne.s32.totalorder %s32, %s35
    %p41 = scmp.eq.s32.totalorder %s22, 0
    %p42 = por %p40, %p41
    %p43 = scmp.ne.s32.totalorder %s32, %s35
    %p44 = scmp.eq.s32.totalorder %s27, 1
    %p45 = por %p43, %p44
    %p46 = scmp.ne.s32.totalorder %s35, %s36
    %p47 = scmp.eq.s32.totalorder %s27, 0
    %p48 = por %p46, %p47
    %p49 = scmp.ne.s32.totalorder %s35, %s36
    %p50 = scmp.eq.s32.totalorder %s28, 1
    %p51 = por %p49, %p50
    %p53 = scmp.ne.s32.totalorder %s36, %s52
    %p54 = scmp.eq.s32.totalorder %s28, 0
    %p55 = por %p53, %p54
    %s57 = sadd.s32 %s56, 1
    %p60 = scmp.eq.s32.totalorder %s22, 1
    %p61 = scmp.ne.s32.totalorder %s56, %s58
    %p62 = scmp.eq.s32.totalorder %s22, 0
    %p63 = por %p61, %p62
    %p64 = scmp.ne.s32.totalorder %s56, %s58
    %p65 = scmp.eq.s32.totalorder %s27, 1
    %p66 = por %p64, %p65
    %p67 = scmp.ne.s32.totalorder %s58, %s59
    %p68 = scmp.eq.s32.totalorder %s27, 0
    %p69 = por %p67, %p68
    %p70 = scmp.ne.s32.totalorder %s58, %s59
    %p71 = scmp.eq.s32.totalorder %s28, 1
    %p72 = por %p70, %p71
    %p74 = scmp.ne.s32.totalorder %s59, %s73
    %p75 = scmp.eq.s32.totalorder %s28, 0
    %p76 = por %p74, %p75
    %s78 = sadd.s32 %s77, 1
    %p81 = scmp.eq.s32.totalorder %s22, 1
    %p82 = scmp.ne.s32.totalorder %s77, %s79
    %p83 = scmp.eq.s32.totalorder %s22, 0
    %p84 = por %p82, %p83
    %p85 = scmp.ne.s32.totalorder %s77, %s79
    %p86 = scmp.eq.s32.totalorder %s27, 1
    %p87 = por %p85, %p86
    %p88 = scmp.ne.s32.totalorder %s79, %s80
    %p89 = scmp.eq.s32.totalorder %s27, 0
    %p90 = por %p88, %p89
    %p91 = scmp.ne.s32.totalorder %s79, %s80
    %p92 = scmp.eq.s32.totalorder %s28, 1
    %p93 = por %p91, %p92
    %p95 = scmp.ne.s32.totalorder %s80, %s94
    %p96 = scmp.eq.s32.totalorder %s28, 0
    %p97 = por %p95, %p96
    %s99 = sadd.s32 %s98, 1
    %p102 = scmp.eq.s32.totalorder %s22, 1
    %p103 = scmp.ne.s32.totalorder %s98, %s100
    %p104 = scmp.eq.s32.totalorder %s22, 0
    %p105 = por %p103, %p104
    %p106 = scmp.ne.s32.totalorder %s98, %s100
    %p107 = scmp.eq.s32.totalorder %s27, 1
    %p108 = por %p106, %p107
    %p109 = scmp.ne.s32.totalorder %s100, %s101
    %p110 = scmp.eq.s32.totalorder %s27, 0
    %p111 = por %p109, %p110
    %p112 = scmp.ne.s32.totalorder %s100, %s101
    %p113 = scmp.eq.s32.totalorder %s28, 1
    %p114 = por %p112, %p113
    %p116 = scmp.ne.s32.totalorder %s101, %s115
    %p117 = scmp.eq.s32.totalorder %s28, 0
    %p118 = por %p116, %p117
    %s120 = sadd.s32 %s119, 1
    %p123 = scmp.eq.s32.totalorder %s22, 1
    %p124 = scmp.ne.s32.totalorder %s119, %s121
    %p125 = scmp.eq.s32.totalorder %s22, 0
    %p126 = por %p124, %p125
    %p127 = scmp.ne.s32.totalorder %s119, %s121
    %p128 = scmp.eq.s32.totalorder %s27, 1
    %p129 = por %p127, %p128
    %p130 = scmp.ne.s32.totalorder %s121, %s122
    %p131 = scmp.eq.s32.totalorder %s27, 0
    %p132 = por %p130, %p131
    %p133 = scmp.ne.s32.totalorder %s121, %s122
    %p134 = scmp.eq.s32.totalorder %s28, 1
    %p135 = por %p133, %p134
    %p137 = scmp.ne.s32.totalorder %s122, %s136
    %p138 = scmp.eq.s32.totalorder %s28, 0
    %p139 = por %p137, %p138
    %s141 = sadd.s32 %s140, 1
    %p144 = scmp.eq.s32.totalorder %s22, 1
    %p145 = scmp.ne.s32.totalorder %s140, %s142
    %p146 = scmp.eq.s32.totalorder %s22, 0
    %p147 = por %p145, %p146
    %p148 = scmp.ne.s32.totalorder %s140, %s142
    %p149 = scmp.eq.s32.totalorder %s27, 1
    %p150 = por %p148, %p149
    %p151 = scmp.ne.s32.totalorder %s142, %s143
    %p152 = scmp.eq.s32.totalorder %s27, 0
    %p153 = por %p151, %p152
    %p154 = scmp.ne.s32.totalorder %s142, %s143
    %p155 = scmp.eq.s32.totalorder %s28, 1
    %p156 = por %p154, %p155
    %p158 = scmp.ne.s32.totalorder %s143, %s157
    %p159 = scmp.eq.s32.totalorder %s28, 0
    %p160 = por %p158, %p159
    %s162 = sadd.s32 %s161, 1
    %p165 = scmp.eq.s32.totalorder %s22, 1
    %p166 = scmp.ne.s32.totalorder %s161, %s163
    %p167 = scmp.eq.s32.totalorder %s22, 0
    %p168 = por %p166, %p167
    %p169 = scmp.ne.s32.totalorder %s161, %s163
    %p170 = scmp.eq.s32.totalorder %s27, 1
    %p171 = por %p169, %p170
    %p172 = scmp.ne.s32.totalorder %s163, %s164
    %p173 = scmp.eq.s32.totalorder %s27, 0
    %p174 = por %p172, %p173
    %p175 = scmp.ne.s32.totalorder %s163, %s164
    %p176 = scmp.eq.s32.totalorder %s28, 1
    %p177 = por %p175, %p176
    %p179 = scmp.ne.s32.totalorder %s164, %s178
    %p180 = scmp.eq.s32.totalorder %s28, 0
    %p181 = por %p179, %p180
    %s183 = sadd.s32 %s182, 1
    %p186 = scmp.eq.s32.totalorder %s22, 1
    %p187 = scmp.ne.s32.totalorder %s182, %s184
    %p188 = scmp.eq.s32.totalorder %s22, 0
    %p189 = por %p187, %p188
    %p190 = scmp.ne.s32.totalorder %s182, %s184
    %p191 = scmp.eq.s32.totalorder %s27, 1
    %p192 = por %p190, %p191
    %p193 = scmp.ne.s32.totalorder %s184, %s185
    %p194 = scmp.eq.s32.totalorder %s27, 0
    %p195 = por %p193, %p194
    %p196 = scmp.ne.s32.totalorder %s184, %s185
    %p197 = scmp.eq.s32.totalorder %s28, 1
    %p198 = por %p196, %p197
    %p200 = scmp.ne.s32.totalorder %s185, %s199
    %p201 = scmp.eq.s32.totalorder %s28, 0
    %p202 = por %p200, %p201
    %s204 = sadd.s32 %s203, 1
    %p207 = scmp.eq.s32.totalorder %s22, 1
    %p208 = scmp.ne.s32.totalorder %s203, %s205
    %p209 = scmp.eq.s32.totalorder %s22, 0
    %p210 = por %p208, %p209
    %p211 = scmp.ne.s32.totalorder %s203, %s205
    %p212 = scmp.eq.s32.totalorder %s27, 1
    %p213 = por %p211, %p212
    %p214 = scmp.ne.s32.totalorder %s205, %s206
    %p215 = scmp.eq.s32.totalorder %s27, 0
    %p216 = por %p214, %p215
    %p217 = scmp.ne.s32.totalorder %s205, %s206
    %p218 = scmp.eq.s32.totalorder %s28, 1
    %p219 = por %p217, %p218
    %p221 = scmp.ne.s32.totalorder %s206, %s220
    %p222 = scmp.eq.s32.totalorder %s28, 0
    %p223 = por %p221, %p222
    %s225 = sadd.s32 %s224, 1
    %p228 = scmp.eq.s32.totalorder %s22, 1
    %p229 = scmp.ne.s32.totalorder %s224, %s226
    %p230 = scmp.eq.s32.totalorder %s22, 0
    %p231 = por %p229, %p230
    %p232 = scmp.ne.s32.totalorder %s224, %s226
    %p233 = scmp.eq.s32.totalorder %s27, 1
    %p234 = por %p232, %p233
    %p235 = scmp.ne.s32.totalorder %s226, %s227
    %p236 = scmp.eq.s32.totalorder %s27, 0
    %p237 = por %p235, %p236
    %p238 = scmp.ne.s32.totalorder %s226, %s227
    %p239 = scmp.eq.s32.totalorder %s28, 1
    %p240 = por %p238, %p239
    %p242 = scmp.ne.s32.totalorder %s227, %s241
    %p243 = scmp.eq.s32.totalorder %s28, 0
    %p244 = por %p242, %p243
    %s246 = sadd.s32 %s245, 1
    %p249 = scmp.eq.s32.totalorder %s22, 1
    %p250 = scmp.ne.s32.totalorder %s245, %s247
    %p251 = scmp.eq.s32.totalorder %s22, 0
    %p252 = por %p250, %p251
    %p253 = scmp.ne.s32.totalorder %s245, %s247
    %p254 = scmp.eq.s32.totalorder %s27, 1
    %p255 = por %p253, %p254
    %p256 = scmp.ne.s32.totalorder %s247, %s248
    %p257 = scmp.eq.s32.totalorder %s27, 0
    %p258 = por %p256, %p257
    %p259 = scmp.ne.s32.totalorder %s247, %s248
    %p260 = scmp.eq.s32.totalorder %s28, 1
    %p261 = por %p259, %p260
    %p263 = scmp.ne.s32.totalorder %s248, %s262
    %p264 = scmp.eq.s32.totalorder %s28, 0
    %p265 = por %p263, %p264
    %s267 = sadd.s32 %s266, 1
    %p270 = scmp.eq.s32.totalorder %s22, 1
    %p271 = scmp.ne.s32.totalorder %s266, %s268
    %p272 = scmp.eq.s32.totalorder %s22, 0
    %p273 = por %p271, %p272
    %p274 = scmp.ne.s32.totalorder %s266, %s268
    %p275 = scmp.eq.s32.totalorder %s27, 1
    %p276 = por %p274, %p275
    %p277 = scmp.ne.s32.totalorder %s268, %s269
    %p278 = scmp.eq.s32.totalorder %s27, 0
    %p279 = por %p277, %p278
    %p280 = scmp.ne.s32.totalorder %s268, %s269
    %p281 = scmp.eq.s32.totalorder %s28, 1
    %p282 = por %p280, %p281
    %p284 = scmp.ne.s32.totalorder %s269, %s283
    %p285 = scmp.eq.s32.totalorder %s28, 0
    %p286 = por %p284, %p285
    %s288 = sadd.s32 %s287, 1
    %p291 = scmp.eq.s32.totalorder %s22, 1
    %p292 = scmp.ne.s32.totalorder %s287, %s289
    %p293 = scmp.eq.s32.totalorder %s22, 0
    %p294 = por %p292, %p293
    %p295 = scmp.ne.s32.totalorder %s287, %s289
    %p296 = scmp.eq.s32.totalorder %s27, 1
    %p297 = por %p295, %p296
    %p298 = scmp.ne.s32.totalorder %s289, %s290
    %p299 = scmp.eq.s32.totalorder %s27, 0
    %p300 = por %p298, %p299
    %p301 = scmp.ne.s32.totalorder %s289, %s290
    %p302 = scmp.eq.s32.totalorder %s28, 1
    %p303 = por %p301, %p302
    %p305 = scmp.ne.s32.totalorder %s290, %s304
    %p306 = scmp.eq.s32.totalorder %s28, 0
    %p307 = por %p305, %p306
    %s309 = sadd.s32 %s308, 1
    %p312 = scmp.eq.s32.totalorder %s22, 1
    %p313 = scmp.ne.s32.totalorder %s308, %s310
    %p314 = scmp.eq.s32.totalorder %s22, 0
    %p315 = por %p313, %p314
    %p316 = scmp.ne.s32.totalorder %s308, %s310
    %p317 = scmp.eq.s32.totalorder %s27, 1
    %p318 = por %p316, %p317
    %p319 = scmp.ne.s32.totalorder %s310, %s311
    %p320 = scmp.eq.s32.totalorder %s27, 0
    %p321 = por %p319, %p320
    %p322 = scmp.ne.s32.totalorder %s310, %s311
    %p323 = scmp.eq.s32.totalorder %s28, 1
    %p324 = por %p322, %p323
    %p326 = scmp.ne.s32.totalorder %s311, %s325
    %p327 = scmp.eq.s32.totalorder %s28, 0
    %p328 = por %p326, %p327
    %s330 = sadd.s32 %s329, 1
    %p333 = scmp.eq.s32.totalorder %s22, 1
    %p334 = scmp.ne.s32.totalorder %s329, %s331
    %p335 = scmp.eq.s32.totalorder %s22, 0
    %p336 = por %p334, %p335
    %p337 = scmp.ne.s32.totalorder %s329, %s331
    %p338 = scmp.eq.s32.totalorder %s27, 1
    %p339 = por %p337, %p338
    %p340 = scmp.ne.s32.totalorder %s331, %s332
    %p341 = scmp.eq.s32.totalorder %s27, 0
    %p342 = por %p340, %p341
    %p343 = scmp.ne.s32.totalorder %s331, %s332
    %p344 = scmp.eq.s32.totalorder %s28, 1
    %p345 = por %p343, %p344
    %p347 = scmp.ne.s32.totalorder %s332, %s346
    %p348 = scmp.eq.s32.totalorder %s28, 0
    %p349 = por %p347, %p348
    %s351 = sadd.s32 %s350, 1
    %p354 = scmp.eq.s32.totalorder %s22, 1
    %p355 = scmp.ne.s32.totalorder %s350, %s352
    %p356 = scmp.eq.s32.totalorder %s22, 0
    %p357 = por %p355, %p356
    %p358 = scmp.ne.s32.totalorder %s350, %s352
    %p359 = scmp.eq.s32.totalorder %s27, 1
    %p360 = por %p358, %p359
    %p361 = scmp.ne.s32.totalorder %s352, %s353
    %p362 = scmp.eq.s32.totalorder %s27, 0
    %p363 = por %p361, %p362
    %p364 = scmp.ne.s32.totalorder %s352, %s353
    %p365 = scmp.eq.s32.totalorder %s28, 1
    %p366 = por %p364, %p365
    %p368 = scmp.ne.s32.totalorder %s353, %s367
    %p369 = scmp.eq.s32.totalorder %s28, 0
    %p370 = por %p368, %p369
    %s371 = ssub.s32 %s22, %s29
    %p372 = scmp.eq.s32.totalorder %s371, 0
    %s374 = sadd.s32 %s373, 1
    %s375 = scalar_select %p372, %s373, %s374
    %p378 = pneg %p372
    %p379 = scmp.eq.s32.totalorder %s22, 1
    %p380 = por %p378, %p379
    %p381 = scmp.ne.s32.totalorder %s373, %s376
    %p382 = scmp.eq.s32.totalorder %s22, 0
    %p383 = por %p381, %p382
    %p384 = scmp.ne.s32.totalorder %s373, %s376
    %p385 = scmp.eq.s32.totalorder %s27, 1
    %p386 = por %p384, %p385
    %p387 = scmp.ne.s32.totalorder %s376, %s377
    %p388 = scmp.eq.s32.totalorder %s27, 0
    %p389 = por %p387, %p388
    %p390 = scmp.ne.s32.totalorder %s376, %s377
    %p391 = scmp.eq.s32.totalorder %s28, 1
    %p392 = por %p390, %p391
    %p394 = scmp.ne.s32.totalorder %s377, %s393
    %p395 = scmp.eq.s32.totalorder %s28, 0
    %p396 = por %p394, %p395
    %p397 = scmp.le.s32.totalorder 1, %s22
    %p398 = scmp.lt.s32.totalorder %s22, 3
    %p399 = pnand %p397, %p398
    %p400 = pneg %p399
    // Predicated region
    $region9: #{cat_res_forward.1} parent=5 // pred_check
      _
    $region10: #{cat_res_forward.1} parent=5 // pred_check_branch
      %402 = sbr.rel (%p399) target = $region12
    $region11: #{cat_res_forward.1} parent=5 // pred_region
      %s403 = ssub.s32 %s22, 1
      // Predicated region
      $region13: #{cat_res_forward.1} parent=11 // pred_check
        %p404 = pneg %p69
      $region14: #{cat_res_forward.1} parent=11 // pred_check_branch
        %406 = sbr.rel (%p404) target = $region16
      $region15: #{cat_res_forward.1} parent=11 // pred_region
        _
      $region16: #{cat_res_forward.1} parent=11 // pred_fallthru
        _
      // Predicated region
      $region17: #{cat_res_forward.1} parent=11 // pred_check
        %p407 = pneg %p90
      $region18: #{cat_res_forward.1} parent=11 // pred_check_branch
        %409 = sbr.rel (%p407) target = $region20
      $region19: #{cat_res_forward.1} parent=11 // pred_region
        _
      $region20: #{cat_res_forward.1} parent=11 // pred_fallthru
        _
      // Predicated region
      $region21: #{cat_res_forward.1} parent=11 // pred_check
        %p410 = pneg %p111
      $region22: #{cat_res_forward.1} parent=11 // pred_check_branch
        %412 = sbr.rel (%p410) target = $region24
      $region23: #{cat_res_forward.1} parent=11 // pred_region
        _
      $region24: #{cat_res_forward.1} parent=11 // pred_fallthru
        _
      // Predicated region
      $region25: #{cat_res_forward.1} parent=11 // pred_check
        %p413 = pneg %p132
      $region26: #{cat_res_forward.1} parent=11 // pred_check_branch
        %415 = sbr.rel (%p413) target = $region28
      $region27: #{cat_res_forward.1} parent=11 // pred_region
        _
      $region28: #{cat_res_forward.1} parent=11 // pred_fallthru
        _
      // Predicated region
      $region29: #{cat_res_forward.1} parent=11 // pred_check
        %p416 = pneg %p153
      $region30: #{cat_res_forward.1} parent=11 // pred_check_branch
        %418 = sbr.rel (%p416) target = $region32
      $region31: #{cat_res_forward.1} parent=11 // pred_region
        _
      $region32: #{cat_res_forward.1} parent=11 // pred_fallthru
        _
      // Predicated region
      $region33: #{cat_res_forward.1} parent=11 // pred_check
        %p419 = pneg %p174
      $region34: #{cat_res_forward.1} parent=11 // pred_check_branch
        %421 = sbr.rel (%p419) target = $region36
      $region35: #{cat_res_forward.1} parent=11 // pred_region
        _
      $region36: #{cat_res_forward.1} parent=11 // pred_fallthru
        _
      // Predicated region
      $region37: #{cat_res_forward.1} parent=11 // pred_check
        %p422 = pneg %p195
      $region38: #{cat_res_forward.1} parent=11 // pred_check_branch
        %424 = sbr.rel (%p422) target = $region40
      $region39: #{cat_res_forward.1} parent=11 // pred_region
        _
      $region40: #{cat_res_forward.1} parent=11 // pred_fallthru
        _
      // Predicated region
      $region41: #{cat_res_forward.1} parent=11 // pred_check
        %p425 = pneg %p216
      $region42: #{cat_res_forward.1} parent=11 // pred_check_branch
        %427 = sbr.rel (%p425) target = $region44
      $region43: #{cat_res_forward.1} parent=11 // pred_region
        _
      $region44: #{cat_res_forward.1} parent=11 // pred_fallthru
        _
      // Predicated region
      $region45: #{cat_res_forward.1} parent=11 // pred_check
        %p428 = pneg %p237
      $region46: #{cat_res_forward.1} parent=11 // pred_check_branch
        %430 = sbr.rel (%p428) target = $region48
      $region47: #{cat_res_forward.1} parent=11 // pred_region
        _
      $region48: #{cat_res_forward.1} parent=11 // pred_fallthru
        _
      // Predicated region
      $region49: #{cat_res_forward.1} parent=11 // pred_check
        %p431 = pneg %p258
      $region50: #{cat_res_forward.1} parent=11 // pred_check_branch
        %433 = sbr.rel (%p431) target = $region52
      $region51: #{cat_res_forward.1} parent=11 // pred_region
        _
      $region52: #{cat_res_forward.1} parent=11 // pred_fallthru
        _
      // Predicated region
      $region53: #{cat_res_forward.1} parent=11 // pred_check
        %p434 = pneg %p279
      $region54: #{cat_res_forward.1} parent=11 // pred_check_branch
        %436 = sbr.rel (%p434) target = $region56
      $region55: #{cat_res_forward.1} parent=11 // pred_region
        _
      $region56: #{cat_res_forward.1} parent=11 // pred_fallthru
        _
      // Predicated region
      $region57: #{cat_res_forward.1} parent=11 // pred_check
        %p437 = pneg %p300
      $region58: #{cat_res_forward.1} parent=11 // pred_check_branch
        %439 = sbr.rel (%p437) target = $region60
      $region59: #{cat_res_forward.1} parent=11 // pred_region
        _
      $region60: #{cat_res_forward.1} parent=11 // pred_fallthru
        _
      // Predicated region
      $region61: #{cat_res_forward.1} parent=11 // pred_check
        %p440 = pneg %p321
      $region62: #{cat_res_forward.1} parent=11 // pred_check_branch
        %442 = sbr.rel (%p440) target = $region64
      $region63: #{cat_res_forward.1} parent=11 // pred_region
        _
      $region64: #{cat_res_forward.1} parent=11 // pred_fallthru
        _
      // Predicated region
      $region65: #{cat_res_forward.1} parent=11 // pred_check
        %p443 = pneg %p342
      $region66: #{cat_res_forward.1} parent=11 // pred_check_branch
        %445 = sbr.rel (%p443) target = $region68
      $region67: #{cat_res_forward.1} parent=11 // pred_region
        _
      $region68: #{cat_res_forward.1} parent=11 // pred_fallthru
        _
      // Predicated region
      $region69: #{cat_res_forward.1} parent=11 // pred_check
        %p446 = pneg %p363
      $region70: #{cat_res_forward.1} parent=11 // pred_check_branch
        %448 = sbr.rel (%p446) target = $region72
      $region71: #{cat_res_forward.1} parent=11 // pred_region
        _
      $region72: #{cat_res_forward.1} parent=11 // pred_fallthru
        _
    $region12: #{cat_res_forward.1} parent=5 // pred_fallthru
      _
    %p449 = scmp.lt.s32.totalorder %s22, 2
    // Predicated region
    $region73: #{cat_res_forward.1} parent=5 // pred_check
      %p450 = pneg %p449
    $region74: #{cat_res_forward.1} parent=5 // pred_check_branch
      %452 = sbr.rel (%p450) target = $region76
    $region75: #{cat_res_forward.1} parent=5 // pred_region
      // Predicated region
      $region77: #{cat_res_forward.1} parent=75 // pred_check
        %p453 = pneg %p42
      $region78: #{cat_res_forward.1} parent=75 // pred_check_branch
        %455 = sbr.rel (%p453) target = $region80
      $region79: #{cat_res_forward.1} parent=75 // pred_region
        %p456 = scmp.lt.s32.totalorder %s22, 1
        %s457 = scalar_select %p456, %s22, 1
        %s458 = smul.addr %s457, 32
        %s459 = smul.addr %s458, 8
        %s460 = scalar_lea.vmem %s0, %s459
      $region80: #{cat_res_forward.1} parent=75 // pred_fallthru
        _
    $region76: #{cat_res_forward.1} parent=5 // pred_fallthru
      _
    %p461 = scmp.le.s32.totalorder 1, %s22
    %p462 = scmp.lt.s32.totalorder %s22, 3
    %p463 = pnand %p461, %p462
    %p464 = pneg %p463
    // Predicated region
    $region81: #{cat_res_forward.1} parent=5 // pred_check
      _
    $region82: #{cat_res_forward.1} parent=5 // pred_check_branch
      %466 = sbr.rel (%p463) target = $region84
    $region83: #{cat_res_forward.1} parent=5 // pred_region
      %s467 = ssub.s32 %s22, 1
      %p468 = scmp.lt.s32.totalorder %s27, 1
      %s469 = scalar_select %p468, %s27, 1
      %s470 = smul.addr %s469, 32
      %s471 = smul.addr %s470, 8
      %s472 = scalar_lea.vmem %s0, %s471
      %p473 = pneg %p48
      %p474 = pneg %p45
      %p475 = pneg %p69
      %p476 = pneg %p66
      %p477 = pneg %p90
      %p478 = pneg %p87
      %p479 = pneg %p111
      %p480 = pneg %p108
      %p481 = pneg %p132
      %p482 = pneg %p129
      %p483 = pneg %p153
      %p484 = pneg %p150
      %p485 = pneg %p174
      %p486 = pneg %p171
      %p487 = pneg %p195
      %p488 = pneg %p192
      %p489 = pneg %p216
      %p490 = pneg %p213
      %p491 = pneg %p237
      %p492 = pneg %p234
      %p493 = pneg %p258
      %p494 = pneg %p255
      %p495 = pneg %p279
      %p496 = pneg %p276
      %p497 = pneg %p300
      %p498 = pneg %p297
      %p499 = pneg %p321
      %p500 = pneg %p318
      %p501 = pneg %p342
      %p502 = pneg %p339
      %p503 = pneg %p363
      %p504 = pneg %p360
      %p505 = pneg %p389
      %p506 = pneg %p386
      %p507 = scmp.lt.s32.totalorder %s27, 1
      %s508 = scalar_select %p507, %s27, 1
      %s509 = smul.addr %s508, 32
      %s510 = smul.addr %s509, 8
      %s511 = scalar_lea.vmem %s16, %s510
      %p512 = scmp.lt.s32.totalorder %s27, 1
      %s513 = scalar_select %p512, %s27, 1
      %s514 = smul.addr %s513, 32
      %s515 = smul.addr %s514, 8
      %s516 = scalar_lea.vmem %s0, %s515
      %p517 = scmp.lt.s32.totalorder %s27, 1
      %s518 = scalar_select %p517, %s27, 1
      %s519 = smul.addr %s518, 32
      %s520 = smul.addr %s519, 8
      %s521 = scalar_lea.vmem %s16, %s520
      %v523 = vld [vmem:[%s516] sm:$0xff]
      %v524 = vld [vmem:[%s516 + $0x8] sm:$0xff]
      %v525 = vld [vmem:[%s516 + $0x10] sm:$0xff]
      %v526 = vld [vmem:[%s516 + $0x18] sm:$0xff]
      %v527 = vld [vmem:[%s516 + $0x20] sm:$0xff]
      %v528 = vld [vmem:[%s516 + $0x28] sm:$0xff]
      %v529 = vld [vmem:[%s516 + $0x30] sm:$0xff]
      %v530 = vld [vmem:[%s516 + $0x38] sm:$0xff]
      %v531 = vld [vmem:[%s516 + $0x40] sm:$0xff]
      %v532 = vld [vmem:[%s516 + $0x48] sm:$0xff]
      %v533 = vld [vmem:[%s516 + $0x50] sm:$0xff]
      %v534 = vld [vmem:[%s516 + $0x58] sm:$0xff]
      %v535 = vld [vmem:[%s516 + $0x60] sm:$0xff]
      %v536 = vld [vmem:[%s516 + $0x68] sm:$0xff]
      %v537 = vld [vmem:[%s516 + $0x70] sm:$0xff]
      %v538 = vld [vmem:[%s516 + $0x78] sm:$0xff]
      %v539 = vld [vmem:[%s516 + $0x80] sm:$0xff]
      %v540 = vld [vmem:[%s516 + $0x88] sm:$0xff]
      %v541 = vld [vmem:[%s516 + $0x90] sm:$0xff]
      %v542 = vld [vmem:[%s516 + $0x98] sm:$0xff]
      %v543 = vld [vmem:[%s516 + $0xa0] sm:$0xff]
      %v544 = vld [vmem:[%s516 + $0xa8] sm:$0xff]
      %v545 = vld [vmem:[%s516 + $0xb0] sm:$0xff]
      %v546 = vld [vmem:[%s516 + $0xb8] sm:$0xff]
      %v547 = vld [vmem:[%s516 + $0xc0] sm:$0xff]
      %v548 = vld [vmem:[%s516 + $0xc8] sm:$0xff]
      %v549 = vld [vmem:[%s516 + $0xd0] sm:$0xff]
      %v550 = vld [vmem:[%s516 + $0xd8] sm:$0xff]
      %v551 = vld [vmem:[%s516 + $0xe0] sm:$0xff]
      %v552 = vld [vmem:[%s516 + $0xe8] sm:$0xff]
      %v553 = vld [vmem:[%s516 + $0xf0] sm:$0xff]
      %v554 = vld [vmem:[%s516 + $0xf8] sm:$0xff]
      %v555 = vpack.c.bf16 %v524, %v523
      %v556 = vpack.c.bf16 %v526, %v525
      %v557 = vpack.c.bf16 %v528, %v527
      %v558 = vpack.c.bf16 %v530, %v529
      %v559 = vpack.c.bf16 %v532, %v531
      %v560 = vpack.c.bf16 %v534, %v533
      %v561 = vpack.c.bf16 %v536, %v535
      %v562 = vpack.c.bf16 %v538, %v537
      %v563 = vpack.c.bf16 %v540, %v539
      %v564 = vpack.c.bf16 %v542, %v541
      %v565 = vpack.c.bf16 %v544, %v543
      %v566 = vpack.c.bf16 %v546, %v545
      %v567 = vpack.c.bf16 %v548, %v547
      %v568 = vpack.c.bf16 %v550, %v549
      %v569 = vpack.c.bf16 %v552, %v551
      %v570 = vpack.c.bf16 %v554, %v553
      %v571 = vld [vmem:[%s13] sm:$0xf]
      %vm572 = vcmask 64512
      %v574 = vsel %vm572, %v555, 0
      %v577 = vsel %vm572, %v556, 0
      %v580 = vsel %vm572, %v557, 0
      %v583 = vsel %vm572, %v558, 0
      %v586 = vsel %vm572, %v559, 0
      %v589 = vsel %vm572, %v560, 0
      %v592 = vsel %vm572, %v561, 0
      %v595 = vsel %vm572, %v562, 0
      %v598 = vsel %vm572, %v563, 0
      %v601 = vsel %vm572, %v564, 0
      %v604 = vsel %vm572, %v565, 0
      %v607 = vsel %vm572, %v566, 0
      %v610 = vsel %vm572, %v567, 0
      %v613 = vsel %vm572, %v568, 0
      %v616 = vsel %vm572, %v569, 0
      %v619 = vsel %vm572, %v570, 0
      %vm621 = vcmask 1043456
      %v623 = vsel %vm621, %v571, 0
      %625 = vmatprep.subr.bf16.mxu0 0
      %626 = vmatpush1.bf16.msra.mxu0 0
      %627 = vmatprep.subr.bf16.mxu0 0
      %628 = vmatpush1.bf16.msra.mxu0 0
      %629 = vmatprep.subr.bf16.mxu0 0
      %630 = vmatpush1.bf16.msra.mxu0 0
      %631 = vmatprep.subr.bf16.mxu0 0
      %632 = vmatpush1.bf16.msra.mxu0 0
      %633 = vmatprep.subr.bf16.mxu0 0
      %634 = vmatpush1.bf16.msra.mxu0 0
      %635 = vmatprep.subr.bf16.mxu0 0
      %636 = vmatpush1.bf16.msra.mxu0 0
      %637 = vmatprep.subr.bf16.mxu0 0
      %638 = vmatpush1.bf16.msra.mxu0 0
      %639 = vmatprep.subr.bf16.mxu0 0
      %640 = vmatpush1.bf16.msra.mxu0 %v623
      %641 = vmatprep.subr.bf16.mxu0 0
      %642 = vmatpush2.bf16.msra.mxu0 0
      %643 = vmatprep.subr.bf16.mxu0 0
      %644 = vmatpush2.bf16.msra.mxu0 0
      %645 = vmatprep.subr.bf16.mxu0 0
      %646 = vmatpush2.bf16.msra.mxu0 0
      %647 = vmatprep.subr.bf16.mxu0 0
      %648 = vmatpush2.bf16.msra.mxu0 0
      %649 = vmatprep.subr.bf16.mxu0 0
      %650 = vmatpush2.bf16.msra.mxu0 0
      %651 = vmatprep.subr.bf16.mxu0 0
      %652 = vmatpush2.bf16.msra.mxu0 0
      %653 = vmatprep.subr.bf16.mxu0 0
      %654 = vmatpush2.bf16.msra.mxu0 0
      %655 = vmatprep.subr.bf16.mxu0 0
      %656 = vmatpush2.bf16.msra.mxu0 0
      %657 = vmatprep.mubr.bf16.mxu0 0
      %658 = vmatmul.mubr.bf16.gmra.mxu0 %v574
      %v659 = vpop.f32.mrf.mxu0
      %v660 = vadd.f32 0.0, %v659
      %v661 = vpop.f32.mrf.mxu0
      %v662 = vpop.f32.mrf.mxu0
      %v663 = vadd.f32 0.0, %v662
      %v664 = vpop.f32.mrf.mxu0
      %665 = vmatprep.mubr.bf16.mxu0 0
      %666 = vmatmul.mubr.bf16.gmra.mxu0 %v577
      %v667 = vpop.f32.mrf.mxu0
      %v668 = vadd.f32 0.0, %v667
      %v669 = vpop.f32.mrf.mxu0
      %v670 = vpop.f32.mrf.mxu0
      %v671 = vadd.f32 0.0, %v670
      %v672 = vpop.f32.mrf.mxu0
      %673 = vmatprep.mubr.bf16.mxu0 0
      %674 = vmatmul.mubr.bf16.gmra.mxu0 %v580
      %v675 = vpop.f32.mrf.mxu0
      %v676 = vadd.f32 0.0, %v675
      %v677 = vpop.f32.mrf.mxu0
      %v678 = vpop.f32.mrf.mxu0
      %v679 = vadd.f32 0.0, %v678
      %v680 = vpop.f32.mrf.mxu0
      %681 = vmatprep.mubr.bf16.mxu0 0
      %682 = vmatmul.mubr.bf16.gmra.mxu0 %v583
      %v683 = vpop.f32.mrf.mxu0
      %v684 = vadd.f32 0.0, %v683
      %v685 = vpop.f32.mrf.mxu0
      %v686 = vpop.f32.mrf.mxu0
      %v687 = vadd.f32 0.0, %v686
      %v688 = vpop.f32.mrf.mxu0
      %689 = vmatprep.mubr.bf16.mxu0 0
      %690 = vmatmul.mubr.bf16.gmra.mxu0 %v586
      %v691 = vpop.f32.mrf.mxu0
      %v692 = vadd.f32 0.0, %v691
      %v693 = vpop.f32.mrf.mxu0
      %v694 = vpop.f32.mrf.mxu0
      %v695 = vadd.f32 0.0, %v694
      %v696 = vpop.f32.mrf.mxu0
      %697 = vmatprep.mubr.bf16.mxu0 0
      %698 = vmatmul.mubr.bf16.gmra.mxu0 %v589
      %v699 = vpop.f32.mrf.mxu0
      %v700 = vadd.f32 0.0, %v699
      %v701 = vpop.f32.mrf.mxu0
      %v702 = vpop.f32.mrf.mxu0
      %v703 = vadd.f32 0.0, %v702
      %v704 = vpop.f32.mrf.mxu0
      %705 = vmatprep.mubr.bf16.mxu0 0
      %706 = vmatmul.mubr.bf16.gmra.mxu0 %v592
      %v707 = vpop.f32.mrf.mxu0
      %v708 = vadd.f32 0.0, %v707
      %v709 = vpop.f32.mrf.mxu0
      %v710 = vpop.f32.mrf.mxu0
      %v711 = vadd.f32 0.0, %v710
      %v712 = vpop.f32.mrf.mxu0
      %713 = vmatprep.mubr.bf16.mxu0 0
      %714 = vmatmul.mubr.bf16.gmra.mxu0 %v595
      %v715 = vpop.f32.mrf.mxu0
      %v716 = vadd.f32 0.0, %v715
      %v717 = vpop.f32.mrf.mxu0
      %v718 = vpop.f32.mrf.mxu0
      %v719 = vadd.f32 0.0, %v718
      %v720 = vpop.f32.mrf.mxu0
      %721 = vmatprep.mubr.bf16.mxu0 0
      %722 = vmatmul.mubr.bf16.gmra.mxu0 %v598
      %v723 = vpop.f32.mrf.mxu0
      %v724 = vadd.f32 0.0, %v723
      %v725 = vpop.f32.mrf.mxu0
      %v726 = vpop.f32.mrf.mxu0
      %v727 = vadd.f32 0.0, %v726
      %v728 = vpop.f32.mrf.mxu0
      %729 = vmatprep.mubr.bf16.mxu0 0
      %730 = vmatmul.mubr.bf16.gmra.mxu0 %v601
      %v731 = vpop.f32.mrf.mxu0
      %v732 = vadd.f32 0.0, %v731
      %v733 = vpop.f32.mrf.mxu0
      %v734 = vpop.f32.mrf.mxu0
      %v735 = vadd.f32 0.0, %v734
      %v736 = vpop.f32.mrf.mxu0
      %737 = vmatprep.mubr.bf16.mxu0 0
      %738 = vmatmul.mubr.bf16.gmra.mxu0 %v604
      %v739 = vpop.f32.mrf.mxu0
      %v740 = vadd.f32 0.0, %v739
      %v741 = vpop.f32.mrf.mxu0
      %v742 = vpop.f32.mrf.mxu0
      %v743 = vadd.f32 0.0, %v742
      %v744 = vpop.f32.mrf.mxu0
      %745 = vmatprep.mubr.bf16.mxu0 0
      %746 = vmatmul.mubr.bf16.gmra.mxu0 %v607
      %v747 = vpop.f32.mrf.mxu0
      %v748 = vadd.f32 0.0, %v747
      %v749 = vpop.f32.mrf.mxu0
      %v750 = vpop.f32.mrf.mxu0
      %v751 = vadd.f32 0.0, %v750
      %v752 = vpop.f32.mrf.mxu0
      %753 = vmatprep.mubr.bf16.mxu0 0
      %754 = vmatmul.mubr.bf16.gmra.mxu0 %v610
      %v755 = vpop.f32.mrf.mxu0
      %v756 = vadd.f32 0.0, %v755
      %v757 = vpop.f32.mrf.mxu0
      %v758 = vpop.f32.mrf.mxu0
      %v759 = vadd.f32 0.0, %v758
      %v760 = vpop.f32.mrf.mxu0
      %761 = vmatprep.mubr.bf16.mxu0 0
      %762 = vmatmul.mubr.bf16.gmra.mxu0 %v613
      %v763 = vpop.f32.mrf.mxu0
      %v764 = vadd.f32 0.0, %v763
      %v765 = vpop.f32.mrf.mxu0
      %v766 = vpop.f32.mrf.mxu0
      %v767 = vadd.f32 0.0, %v766
      %v768 = vpop.f32.mrf.mxu0
      %769 = vmatprep.mubr.bf16.mxu0 0
      %770 = vmatmul.mubr.bf16.gmra.mxu0 %v616
      %v771 = vpop.f32.mrf.mxu0
      %v772 = vadd.f32 0.0, %v771
      %v773 = vpop.f32.mrf.mxu0
      %v774 = vpop.f32.mrf.mxu0
      %v775 = vadd.f32 0.0, %v774
      %v776 = vpop.f32.mrf.mxu0
      %777 = vmatprep.mubr.bf16.mxu0 0
      %778 = vmatmul.mubr.bf16.gmra.mxu0 %v619
      %v779 = vpop.f32.mrf.mxu0
      %v780 = vadd.f32 0.0, %v779
      %v781 = vpop.f32.mrf.mxu0
      %v782 = vpop.f32.mrf.mxu0
      %v783 = vadd.f32 0.0, %v782
      %v784 = vpop.f32.mrf.mxu0
      %785 = vdwg.mxu0
      %v786 = vld [vmem:[%s14] sm:$0x1]
      %v788 = vlaneseq
      %v789 = vshrl.u32 %v788, 7
      %v790 = vsub.s32 0, %v789
      %v791 = vrot.slane %v786, %v790
      %v793 = vmul.f32 %v660, %v791
      %v794 = vmul.f32 %v663, %v791
      %v795 = vmul.f32 %v668, %v791
      %v796 = vmul.f32 %v671, %v791
      %v797 = vmul.f32 %v676, %v791
      %v798 = vmul.f32 %v679, %v791
      %v799 = vmul.f32 %v684, %v791
      %v800 = vmul.f32 %v687, %v791
      %v801 = vmul.f32 %v692, %v791
      %v802 = vmul.f32 %v695, %v791
      %v803 = vmul.f32 %v700, %v791
      %v804 = vmul.f32 %v703, %v791
      %v805 = vmul.f32 %v708, %v791
      %v806 = vmul.f32 %v711, %v791
      %v807 = vmul.f32 %v716, %v791
      %v808 = vmul.f32 %v719, %v791
      %v809 = vmul.f32 %v724, %v791
      %v810 = vmul.f32 %v727, %v791
      %v811 = vmul.f32 %v732, %v791
      %v812 = vmul.f32 %v735, %v791
      %v813 = vmul.f32 %v740, %v791
      %v814 = vmul.f32 %v743, %v791
      %v815 = vmul.f32 %v748, %v791
      %v816 = vmul.f32 %v751, %v791
      %v817 = vmul.f32 %v756, %v791
      %v818 = vmul.f32 %v759, %v791
      %v819 = vmul.f32 %v764, %v791
      %v820 = vmul.f32 %v767, %v791
      %v821 = vmul.f32 %v772, %v791
      %v822 = vmul.f32 %v775, %v791
      %v823 = vmul.f32 %v780, %v791
      %v824 = vmul.f32 %v783, %v791
      %v825 = vld [vmem:[%s15] sm:$0x1]
      %v827 = vlaneseq
      %v828 = vshrl.u32 %v827, 7
      %v829 = vsub.s32 0, %v828
      %v830 = vrot.slane %v825, %v829
      %v832 = vadd.f32 %v793, %v830
      %v833 = vadd.f32 %v794, %v830
      %v834 = vadd.f32 %v795, %v830
      %v835 = vadd.f32 %v796, %v830
      %v836 = vadd.f32 %v797, %v830
      %v837 = vadd.f32 %v798, %v830
      %v838 = vadd.f32 %v799, %v830
      %v839 = vadd.f32 %v800, %v830
      %v840 = vadd.f32 %v801, %v830
      %v841 = vadd.f32 %v802, %v830
      %v842 = vadd.f32 %v803, %v830
      %v843 = vadd.f32 %v804, %v830
      %v844 = vadd.f32 %v805, %v830
      %v845 = vadd.f32 %v806, %v830
      %v846 = vadd.f32 %v807, %v830
      %v847 = vadd.f32 %v808, %v830
      %v848 = vadd.f32 %v809, %v830
      %v849 = vadd.f32 %v810, %v830
      %v850 = vadd.f32 %v811, %v830
      %v851 = vadd.f32 %v812, %v830
      %v852 = vadd.f32 %v813, %v830
      %v853 = vadd.f32 %v814, %v830
      %v854 = vadd.f32 %v815, %v830
      %v855 = vadd.f32 %v816, %v830
      %v856 = vadd.f32 %v817, %v830
      %v857 = vadd.f32 %v818, %v830
      %v858 = vadd.f32 %v819, %v830
      %v859 = vadd.f32 %v820, %v830
      %v860 = vadd.f32 %v821, %v830
      %v861 = vadd.f32 %v822, %v830
      %v862 = vadd.f32 %v823, %v830
      %v863 = vadd.f32 %v824, %v830
      %vm864 = vcmask 130048
      %865 = vst.msk [vmem:[#allocation2] sm:$0xff] %vm864, 0.0
      %866 = vst.msk [vmem:[#allocation2 + $0x8] sm:$0xff] %vm864, 0.0
      %vm867 = vcmask 123904
      %868 = vst.msk [vmem:[#allocation2 + $0x10] sm:$0x3] %vm867, 0.0
      %869 = vst.msk [vmem:[#allocation2 + $0x18] sm:$0xff] %vm864, 0.0
      %870 = vst.msk [vmem:[#allocation2 + $0x20] sm:$0xff] %vm864, 0.0
      %871 = vst.msk [vmem:[#allocation2 + $0x28] sm:$0x3] %vm867, 0.0
      %872 = vst.msk [vmem:[#allocation2 + $0x30] sm:$0xff] %vm864, 0.0
      %873 = vst.msk [vmem:[#allocation2 + $0x38] sm:$0xff] %vm864, 0.0
      %874 = vst.msk [vmem:[#allocation2 + $0x40] sm:$0x3] %vm867, 0.0
      %875 = vst.msk [vmem:[#allocation2 + $0x48] sm:$0xff] %vm864, 0.0
      %876 = vst.msk [vmem:[#allocation2 + $0x50] sm:$0xff] %vm864, 0.0
      %877 = vst.msk [vmem:[#allocation2 + $0x58] sm:$0x3] %vm867, 0.0
      %878 = vst.msk [vmem:[#allocation2 + $0x60] sm:$0xff] %vm864, 0.0
      %879 = vst.msk [vmem:[#allocation2 + $0x68] sm:$0xff] %vm864, 0.0
      %880 = vst.msk [vmem:[#allocation2 + $0x70] sm:$0x3] %vm867, 0.0
      %881 = vst.msk [vmem:[#allocation2 + $0x78] sm:$0xff] %vm864, 0.0
      %882 = vst.msk [vmem:[#allocation2 + $0x80] sm:$0xff] %vm864, 0.0
      %883 = vst.msk [vmem:[#allocation2 + $0x88] sm:$0x3] %vm867, 0.0
      %884 = vst.msk [vmem:[#allocation2 + $0x90] sm:$0xff] %vm864, 0.0
      %885 = vst.msk [vmem:[#allocation2 + $0x98] sm:$0xff] %vm864, 0.0
      %886 = vst.msk [vmem:[#allocation2 + $0xa0] sm:$0x3] %vm867, 0.0
      %887 = vst.msk [vmem:[#allocation2 + $0xa8] sm:$0xff] %vm864, 0.0
      %888 = vst.msk [vmem:[#allocation2 + $0xb0] sm:$0xff] %vm864, 0.0
      %889 = vst.msk [vmem:[#allocation2 + $0xb8] sm:$0x3] %vm867, 0.0
      %890 = vst.msk [vmem:[#allocation2 + $0xc0] sm:$0xff] %vm864, 0.0
      %891 = vst.msk [vmem:[#allocation2 + $0xc8] sm:$0xff] %vm864, 0.0
      %892 = vst.msk [vmem:[#allocation2 + $0xd0] sm:$0x3] %vm867, 0.0
      %893 = vst.msk [vmem:[#allocation2 + $0xd8] sm:$0xff] %vm864, 0.0
      %894 = vst.msk [vmem:[#allocation2 + $0xe0] sm:$0xff] %vm864, 0.0
      %895 = vst.msk [vmem:[#allocation2 + $0xe8] sm:$0x3] %vm867, 0.0
      %896 = vst.msk [vmem:[#allocation2 + $0xf0] sm:$0xff] %vm864, 0.0
      %897 = vst.msk [vmem:[#allocation2 + $0xf8] sm:$0xff] %vm864, 0.0
      %898 = vst.msk [vmem:[#allocation2 + $0x100] sm:$0x3] %vm867, 0.0
      %899 = vst.msk [vmem:[#allocation2 + $0x108] sm:$0xff] %vm864, 0.0
      %900 = vst.msk [vmem:[#allocation2 + $0x110] sm:$0xff] %vm864, 0.0
      %901 = vst.msk [vmem:[#allocation2 + $0x118] sm:$0x3] %vm867, 0.0
      %902 = vst.msk [vmem:[#allocation2 + $0x120] sm:$0xff] %vm864, 0.0
      %903 = vst.msk [vmem:[#allocation2 + $0x128] sm:$0xff] %vm864, 0.0
      %904 = vst.msk [vmem:[#allocation2 + $0x130] sm:$0x3] %vm867, 0.0
      %905 = vst.msk [vmem:[#allocation2 + $0x138] sm:$0xff] %vm864, 0.0
      %906 = vst.msk [vmem:[#allocation2 + $0x140] sm:$0xff] %vm864, 0.0
      %907 = vst.msk [vmem:[#allocation2 + $0x148] sm:$0x3] %vm867, 0.0
      %908 = vst.msk [vmem:[#allocation2 + $0x150] sm:$0xff] %vm864, 0.0
      %909 = vst.msk [vmem:[#allocation2 + $0x158] sm:$0xff] %vm864, 0.0
      %910 = vst.msk [vmem:[#allocation2 + $0x160] sm:$0x3] %vm867, 0.0
      %911 = vst.msk [vmem:[#allocation2 + $0x168] sm:$0xff] %vm864, 0.0
      %912 = vst.msk [vmem:[#allocation2 + $0x170] sm:$0xff] %vm864, 0.0
      %913 = vst.msk [vmem:[#allocation2 + $0x178] sm:$0x3] %vm867, 0.0
      %914 = vst.msk [vmem:[#allocation2 + $0x180] sm:$0xff] %vm864, 0.0
      %915 = vst.msk [vmem:[#allocation2 + $0x188] sm:$0xff] %vm864, 0.0
      %916 = vst.msk [vmem:[#allocation2 + $0x190] sm:$0x3] %vm867, 0.0
      %917 = vst.msk [vmem:[#allocation2 + $0x198] sm:$0xff] %vm864, 0.0
      %918 = vst.msk [vmem:[#allocation2 + $0x1a0] sm:$0xff] %vm864, 0.0
      %919 = vst.msk [vmem:[#allocation2 + $0x1a8] sm:$0x3] %vm867, 0.0
      %s920 = scalar_lea.vmem [#allocation2], 24
      %921 = vst.msk [vmem:[%s920 + $0x1] sm:$0xff] %vm572, %v523
      %922 = vst.msk [vmem:[%s920 + $0x9] sm:$0xff] %vm572, %v524
      %923 = vst.msk [vmem:[%s920 + $0x19] sm:$0xff] %vm572, %v525
      %924 = vst.msk [vmem:[%s920 + $0x21] sm:$0xff] %vm572, %v526
      %925 = vst.msk [vmem:[%s920 + $0x31] sm:$0xff] %vm572, %v527
      %926 = vst.msk [vmem:[%s920 + $0x39] sm:$0xff] %vm572, %v528
      %927 = vst.msk [vmem:[%s920 + $0x49] sm:$0xff] %vm572, %v529
      %928 = vst.msk [vmem:[%s920 + $0x51] sm:$0xff] %vm572, %v530
      %929 = vst.msk [vmem:[%s920 + $0x61] sm:$0xff] %vm572, %v531
      %930 = vst.msk [vmem:[%s920 + $0x69] sm:$0xff] %vm572, %v532
      %931 = vst.msk [vmem:[%s920 + $0x79] sm:$0xff] %vm572, %v533
      %932 = vst.msk [vmem:[%s920 + $0x81] sm:$0xff] %vm572, %v534
      %933 = vst.msk [vmem:[%s920 + $0x91] sm:$0xff] %vm572, %v535
      %934 = vst.msk [vmem:[%s920 + $0x99] sm:$0xff] %vm572, %v536
      %935 = vst.msk [vmem:[%s920 + $0xa9] sm:$0xff] %vm572, %v537
      %936 = vst.msk [vmem:[%s920 + $0xb1] sm:$0xff] %vm572, %v538
      %937 = vst.msk [vmem:[%s920 + $0xc1] sm:$0xff] %vm572, %v539
      %938 = vst.msk [vmem:[%s920 + $0xc9] sm:$0xff] %vm572, %v540
      %939 = vst.msk [vmem:[%s920 + $0xd9] sm:$0xff] %vm572, %v541
      %940 = vst.msk [vmem:[%s920 + $0xe1] sm:$0xff] %vm572, %v542
      %941 = vst.msk [vmem:[%s920 + $0xf1] sm:$0xff] %vm572, %v543
      %942 = vst.msk [vmem:[%s920 + $0xf9] sm:$0xff] %vm572, %v544
      %943 = vst.msk [vmem:[%s920 + $0x109] sm:$0xff] %vm572, %v545
      %944 = vst.msk [vmem:[%s920 + $0x111] sm:$0xff] %vm572, %v546
      %945 = vst.msk [vmem:[%s920 + $0x121] sm:$0xff] %vm572, %v547
      %946 = vst.msk [vmem:[%s920 + $0x129] sm:$0xff] %vm572, %v548
      %947 = vst.msk [vmem:[%s920 + $0x139] sm:$0xff] %vm572, %v549
      %948 = vst.msk [vmem:[%s920 + $0x141] sm:$0xff] %vm572, %v550
      %949 = vst.msk [vmem:[%s920 + $0x151] sm:$0xff] %vm572, %v551
      %950 = vst.msk [vmem:[%s920 + $0x159] sm:$0xff] %vm572, %v552
      %951 = vst.msk [vmem:[%s920 + $0x169] sm:$0xff] %vm572, %v553
      %952 = vst.msk [vmem:[%s920 + $0x171] sm:$0xff] %vm572, %v554
      %v953 = vld [vmem:[#allocation2] sm:$0xff]
      %v954 = vld [vmem:[#allocation2 + $0x8] sm:$0xff]
      %v955 = vld [vmem:[#allocation2 + $0x18] sm:$0xff]
      %v956 = vld [vmem:[#allocation2 + $0x20] sm:$0xff]
      %v957 = vld [vmem:[#allocation2 + $0x30] sm:$0xff]
      %v958 = vld [vmem:[#allocation2 + $0x38] sm:$0xff]
      %v959 = vld [vmem:[#allocation2 + $0x48] sm:$0xff]
      %v960 = vld [vmem:[#allocation2 + $0x50] sm:$0xff]
      %v961 = vld [vmem:[#allocation2 + $0x60] sm:$0xff]
      %v962 = vld [vmem:[#allocation2 + $0x68] sm:$0xff]
      %v963 = vld [vmem:[#allocation2 + $0x78] sm:$0xff]
      %v964 = vld [vmem:[#allocation2 + $0x80] sm:$0xff]
      %v965 = vld [vmem:[#allocation2 + $0x90] sm:$0xff]
      %v966 = vld [vmem:[#allocation2 + $0x98] sm:$0xff]
      %v967 = vld [vmem:[#allocation2 + $0xa8] sm:$0xff]
      %v968 = vld [vmem:[#allocation2 + $0xb0] sm:$0xff]
      %v969 = vld [vmem:[#allocation2 + $0xc0] sm:$0xff]
      %v970 = vld [vmem:[#allocation2 + $0xc8] sm:$0xff]
      %v971 = vld [vmem:[#allocation2 + $0xd8] sm:$0xff]
      %v972 = vld [vmem:[#allocation2 + $0xe0] sm:$0xff]
      %v973 = vld [vmem:[#allocation2 + $0xf0] sm:$0xff]
      %v974 = vld [vmem:[#allocation2 + $0xf8] sm:$0xff]
      %v975 = vld [vmem:[#allocation2 + $0x108] sm:$0xff]
      %v976 = vld [vmem:[#allocation2 + $0x110] sm:$0xff]
      %v977 = vld [vmem:[#allocation2 + $0x120] sm:$0xff]
      %v978 = vld [vmem:[#allocation2 + $0x128] sm:$0xff]
      %v979 = vld [vmem:[#allocation2 + $0x138] sm:$0xff]
      %v980 = vld [vmem:[#allocation2 + $0x140] sm:$0xff]
      %v981 = vld [vmem:[#allocation2 + $0x150] sm:$0xff]
      %v982 = vld [vmem:[#allocation2 + $0x158] sm:$0xff]
      %v983 = vld [vmem:[#allocation2 + $0x168] sm:$0xff]
      %v984 = vld [vmem:[#allocation2 + $0x170] sm:$0xff]
      %v985 = vld [vmem:[#allocation2 + $0x1] sm:$0xff]
      %v986 = vld [vmem:[#allocation2 + $0x9] sm:$0xff]
      %v987 = vld [vmem:[#allocation2 + $0x19] sm:$0xff]
      %v988 = vld [vmem:[#allocation2 + $0x21] sm:$0xff]
      %v989 = vld [vmem:[#allocation2 + $0x31] sm:$0xff]
      %v990 = vld [vmem:[#allocation2 + $0x39] sm:$0xff]
      %v991 = vld [vmem:[#allocation2 + $0x49] sm:$0xff]
      %v992 = vld [vmem:[#allocation2 + $0x51] sm:$0xff]
      %v993 = vld [vmem:[#allocation2 + $0x61] sm:$0xff]
      %v994 = vld [vmem:[#allocation2 + $0x69] sm:$0xff]
      %v995 = vld [vmem:[#allocation2 + $0x79] sm:$0xff]
      %v996 = vld [vmem:[#allocation2 + $0x81] sm:$0xff]
      %v997 = vld [vmem:[#allocation2 + $0x91] sm:$0xff]
      %v998 = vld [vmem:[#allocation2 + $0x99] sm:$0xff]
      %v999 = vld [vmem:[#allocation2 + $0xa9] sm:$0xff]
      %v1000 = vld [vmem:[#allocation2 + $0xb1] sm:$0xff]
      %v1001 = vld [vmem:[#allocation2 + $0xc1] sm:$0xff]
      %v1002 = vld [vmem:[#allocation2 + $0xc9] sm:$0xff]
      %v1003 = vld [vmem:[#allocation2 + $0xd9] sm:$0xff]
      %v1004 = vld [vmem:[#allocation2 + $0xe1] sm:$0xff]
      %v1005 = vld [vmem:[#allocation2 + $0xf1] sm:$0xff]
      %v1006 = vld [vmem:[#allocation2 + $0xf9] sm:$0xff]
      %v1007 = vld [vmem:[#allocation2 + $0x109] sm:$0xff]
      %v1008 = vld [vmem:[#allocation2 + $0x111] sm:$0xff]
      %v1009 = vld [vmem:[#allocation2 + $0x121] sm:$0xff]
      %v1010 = vld [vmem:[#allocation2 + $0x129] sm:$0xff]
      %v1011 = vld [vmem:[#allocation2 + $0x139] sm:$0xff]
      %v1012 = vld [vmem:[#allocation2 + $0x141] sm:$0xff]
      %v1013 = vld [vmem:[#allocation2 + $0x151] sm:$0xff]
      %v1014 = vld [vmem:[#allocation2 + $0x159] sm:$0xff]
      %v1015 = vld [vmem:[#allocation2 + $0x169] sm:$0xff]
      %v1016 = vld [vmem:[#allocation2 + $0x171] sm:$0xff]
      %v1017 = vld [vmem:[#allocation2 + $0x2] sm:$0xff]
      %v1018 = vld [vmem:[#allocation2 + $0xa] sm:$0xff]
      %v1019 = vld [vmem:[#allocation2 + $0x1a] sm:$0xff]
      %v1020 = vld [vmem:[#allocation2 + $0x22] sm:$0xff]
      %v1021 = vld [vmem:[#allocation2 + $0x32] sm:$0xff]
      %v1022 = vld [vmem:[#allocation2 + $0x3a] sm:$0xff]
      %v1023 = vld [vmem:[#allocation2 + $0x4a] sm:$0xff]
      %v1024 = vld [vmem:[#allocation2 + $0x52] sm:$0xff]
      %v1025 = vld [vmem:[#allocation2 + $0x62] sm:$0xff]
      %v1026 = vld [vmem:[#allocation2 + $0x6a] sm:$0xff]
      %v1027 = vld [vmem:[#allocation2 + $0x7a] sm:$0xff]
      %v1028 = vld [vmem:[#allocation2 + $0x82] sm:$0xff]
      %v1029 = vld [vmem:[#allocation2 + $0x92] sm:$0xff]
      %v1030 = vld [vmem:[#allocation2 + $0x9a] sm:$0xff]
      %v1031 = vld [vmem:[#allocation2 + $0xaa] sm:$0xff]
      %v1032 = vld [vmem:[#allocation2 + $0xb2] sm:$0xff]
      %v1033 = vld [vmem:[#allocation2 + $0xc2] sm:$0xff]
      %v1034 = vld [vmem:[#allocation2 + $0xca] sm:$0xff]
      %v1035 = vld [vmem:[#allocation2 + $0xda] sm:$0xff]
      %v1036 = vld [vmem:[#allocation2 + $0xe2] sm:$0xff]
      %v1037 = vld [vmem:[#allocation2 + $0xf2] sm:$0xff]
      %v1038 = vld [vmem:[#allocation2 + $0xfa] sm:$0xff]
      %v1039 = vld [vmem:[#allocation2 + $0x10a] sm:$0xff]
      %v1040 = vld [vmem:[#allocation2 + $0x112] sm:$0xff]
      %v1041 = vld [vmem:[#allocation2 + $0x122] sm:$0xff]
      %v1042 = vld [vmem:[#allocation2 + $0x12a] sm:$0xff]
      %v1043 = vld [vmem:[#allocation2 + $0x13a] sm:$0xff]
      %v1044 = vld [vmem:[#allocation2 + $0x142] sm:$0xff]
      %v1045 = vld [vmem:[#allocation2 + $0x152] sm:$0xff]
      %v1046 = vld [vmem:[#allocation2 + $0x15a] sm:$0xff]
      %v1047 = vld [vmem:[#allocation2 + $0x16a] sm:$0xff]
      %v1048 = vld [vmem:[#allocation2 + $0x172] sm:$0xff]
      %v1049 = vld [vmem:[%s920] sm:$0xff]
      %v1050 = vld [vmem:[%s920 + $0x8] sm:$0xff]
      %v1051 = vld [vmem:[%s920 + $0x18] sm:$0xff]
      %v1052 = vld [vmem:[%s920 + $0x20] sm:$0xff]
      %v1053 = vld [vmem:[%s920 + $0x30] sm:$0xff]
      %v1054 = vld [vmem:[%s920 + $0x38] sm:$0xff]
      %v1055 = vld [vmem:[%s920 + $0x48] sm:$0xff]
      %v1056 = vld [vmem:[%s920 + $0x50] sm:$0xff]
      %v1057 = vld [vmem:[%s920 + $0x60] sm:$0xff]
      %v1058 = vld [vmem:[%s920 + $0x68] sm:$0xff]
      %v1059 = vld [vmem:[%s920 + $0x78] sm:$0xff]
      %v1060 = vld [vmem:[%s920 + $0x80] sm:$0xff]
      %v1061 = vld [vmem:[%s920 + $0x90] sm:$0xff]
      %v1062 = vld [vmem:[%s920 + $0x98] sm:$0xff]
      %v1063 = vld [vmem:[%s920 + $0xa8] sm:$0xff]
      %v1064 = vld [vmem:[%s920 + $0xb0] sm:$0xff]
      %v1065 = vld [vmem:[%s920 + $0xc0] sm:$0xff]
      %v1066 = vld [vmem:[%s920 + $0xc8] sm:$0xff]
      %v1067 = vld [vmem:[%s920 + $0xd8] sm:$0xff]
      %v1068 = vld [vmem:[%s920 + $0xe0] sm:$0xff]
      %v1069 = vld [vmem:[%s920 + $0xf0] sm:$0xff]
      %v1070 = vld [vmem:[%s920 + $0xf8] sm:$0xff]
      %v1071 = vld [vmem:[%s920 + $0x108] sm:$0xff]
      %v1072 = vld [vmem:[%s920 + $0x110] sm:$0xff]
      %v1073 = vld [vmem:[%s920 + $0x120] sm:$0xff]
      %v1074 = vld [vmem:[%s920 + $0x128] sm:$0xff]
      %v1075 = vld [vmem:[%s920 + $0x138] sm:$0xff]
      %v1076 = vld [vmem:[%s920 + $0x140] sm:$0xff]
      %v1077 = vld [vmem:[%s920 + $0x150] sm:$0xff]
      %v1078 = vld [vmem:[%s920 + $0x158] sm:$0xff]
      %v1079 = vld [vmem:[%s920 + $0x168] sm:$0xff]
      %v1080 = vld [vmem:[%s920 + $0x170] sm:$0xff]
      %v1081 = vld [vmem:[%s920 + $0x1] sm:$0xff]
      %v1082 = vld [vmem:[%s920 + $0x9] sm:$0xff]
      %v1083 = vld [vmem:[%s920 + $0x19] sm:$0xff]
      %v1084 = vld [vmem:[%s920 + $0x21] sm:$0xff]
      %v1085 = vld [vmem:[%s920 + $0x31] sm:$0xff]
      %v1086 = vld [vmem:[%s920 + $0x39] sm:$0xff]
      %v1087 = vld [vmem:[%s920 + $0x49] sm:$0xff]
      %v1088 = vld [vmem:[%s920 + $0x51] sm:$0xff]
      %v1089 = vld [vmem:[%s920 + $0x61] sm:$0xff]
      %v1090 = vld [vmem:[%s920 + $0x69] sm:$0xff]
      %v1091 = vld [vmem:[%s920 + $0x79] sm:$0xff]
      %v1092 = vld [vmem:[%s920 + $0x81] sm:$0xff]
      %v1093 = vld [vmem:[%s920 + $0x91] sm:$0xff]
      %v1094 = vld [vmem:[%s920 + $0x99] sm:$0xff]
      %v1095 = vld [vmem:[%s920 + $0xa9] sm:$0xff]
      %v1096 = vld [vmem:[%s920 + $0xb1] sm:$0xff]
      %v1097 = vld [vmem:[%s920 + $0xc1] sm:$0xff]
      %v1098 = vld [vmem:[%s920 + $0xc9] sm:$0xff]
      %v1099 = vld [vmem:[%s920 + $0xd9] sm:$0xff]
      %v1100 = vld [vmem:[%s920 + $0xe1] sm:$0xff]
      %v1101 = vld [vmem:[%s920 + $0xf1] sm:$0xff]
      %v1102 = vld [vmem:[%s920 + $0xf9] sm:$0xff]
      %v1103 = vld [vmem:[%s920 + $0x109] sm:$0xff]
      %v1104 = vld [vmem:[%s920 + $0x111] sm:$0xff]
      %v1105 = vld [vmem:[%s920 + $0x121] sm:$0xff]
      %v1106 = vld [vmem:[%s920 + $0x129] sm:$0xff]
      %v1107 = vld [vmem:[%s920 + $0x139] sm:$0xff]
      %v1108 = vld [vmem:[%s920 + $0x141] sm:$0xff]
      %v1109 = vld [vmem:[%s920 + $0x151] sm:$0xff]
      %v1110 = vld [vmem:[%s920 + $0x159] sm:$0xff]
      %v1111 = vld [vmem:[%s920 + $0x169] sm:$0xff]
      %v1112 = vld [vmem:[%s920 + $0x171] sm:$0xff]
      %v1113 = vld [vmem:[%s920 + $0x2] sm:$0xff]
      %v1114 = vld [vmem:[%s920 + $0xa] sm:$0xff]
      %v1115 = vld [vmem:[%s920 + $0x1a] sm:$0xff]
      %v1116 = vld [vmem:[%s920 + $0x22] sm:$0xff]
      %v1117 = vld [vmem:[%s920 + $0x32] sm:$0xff]
      %v1118 = vld [vmem:[%s920 + $0x3a] sm:$0xff]
      %v1119 = vld [vmem:[%s920 + $0x4a] sm:$0xff]
      %v1120 = vld [vmem:[%s920 + $0x52] sm:$0xff]
      %v1121 = vld [vmem:[%s920 + $0x62] sm:$0xff]
      %v1122 = vld [vmem:[%s920 + $0x6a] sm:$0xff]
      %v1123 = vld [vmem:[%s920 + $0x7a] sm:$0xff]
      %v1124 = vld [vmem:[%s920 + $0x82] sm:$0xff]
      %v1125 = vld [vmem:[%s920 + $0x92] sm:$0xff]
      %v1126 = vld [vmem:[%s920 + $0x9a] sm:$0xff]
      %v1127 = vld [vmem:[%s920 + $0xaa] sm:$0xff]
      %v1128 = vld [vmem:[%s920 + $0xb2] sm:$0xff]
      %v1129 = vld [vmem:[%s920 + $0xc2] sm:$0xff]
      %v1130 = vld [vmem:[%s920 + $0xca] sm:$0xff]
      %v1131 = vld [vmem:[%s920 + $0xda] sm:$0xff]
      %v1132 = vld [vmem:[%s920 + $0xe2] sm:$0xff]
      %v1133 = vld [vmem:[%s920 + $0xf2] sm:$0xff]
      %v1134 = vld [vmem:[%s920 + $0xfa] sm:$0xff]
      %v1135 = vld [vmem:[%s920 + $0x10a] sm:$0xff]
      %v1136 = vld [vmem:[%s920 + $0x112] sm:$0xff]
      %v1137 = vld [vmem:[%s920 + $0x122] sm:$0xff]
      %v1138 = vld [vmem:[%s920 + $0x12a] sm:$0xff]
      %v1139 = vld [vmem:[%s920 + $0x13a] sm:$0xff]
      %v1140 = vld [vmem:[%s920 + $0x142] sm:$0xff]
      %v1141 = vld [vmem:[%s920 + $0x152] sm:$0xff]
      %v1142 = vld [vmem:[%s920 + $0x15a] sm:$0xff]
      %v1143 = vld [vmem:[%s920 + $0x16a] sm:$0xff]
      %v1144 = vld [vmem:[%s920 + $0x172] sm:$0xff]
      %s1145 = scalar_lea.vmem [#allocation2], 48
      %v1146 = vld [vmem:[%s1145] sm:$0xff]
      %v1147 = vld [vmem:[%s1145 + $0x8] sm:$0xff]
      %v1148 = vld [vmem:[%s1145 + $0x18] sm:$0xff]
      %v1149 = vld [vmem:[%s1145 + $0x20] sm:$0xff]
      %v1150 = vld [vmem:[%s1145 + $0x30] sm:$0xff]
      %v1151 = vld [vmem:[%s1145 + $0x38] sm:$0xff]
      %v1152 = vld [vmem:[%s1145 + $0x48] sm:$0xff]
      %v1153 = vld [vmem:[%s1145 + $0x50] sm:$0xff]
      %v1154 = vld [vmem:[%s1145 + $0x60] sm:$0xff]
      %v1155 = vld [vmem:[%s1145 + $0x68] sm:$0xff]
      %v1156 = vld [vmem:[%s1145 + $0x78] sm:$0xff]
      %v1157 = vld [vmem:[%s1145 + $0x80] sm:$0xff]
      %v1158 = vld [vmem:[%s1145 + $0x90] sm:$0xff]
      %v1159 = vld [vmem:[%s1145 + $0x98] sm:$0xff]
      %v1160 = vld [vmem:[%s1145 + $0xa8] sm:$0xff]
      %v1161 = vld [vmem:[%s1145 + $0xb0] sm:$0xff]
      %v1162 = vld [vmem:[%s1145 + $0xc0] sm:$0xff]
      %v1163 = vld [vmem:[%s1145 + $0xc8] sm:$0xff]
      %v1164 = vld [vmem:[%s1145 + $0xd8] sm:$0xff]
      %v1165 = vld [vmem:[%s1145 + $0xe0] sm:$0xff]
      %v1166 = vld [vmem:[%s1145 + $0xf0] sm:$0xff]
      %v1167 = vld [vmem:[%s1145 + $0xf8] sm:$0xff]
      %v1168 = vld [vmem:[%s1145 + $0x108] sm:$0xff]
      %v1169 = vld [vmem:[%s1145 + $0x110] sm:$0xff]
      %v1170 = vld [vmem:[%s1145 + $0x120] sm:$0xff]
      %v1171 = vld [vmem:[%s1145 + $0x128] sm:$0xff]
      %v1172 = vld [vmem:[%s1145 + $0x138] sm:$0xff]
      %v1173 = vld [vmem:[%s1145 + $0x140] sm:$0xff]
      %v1174 = vld [vmem:[%s1145 + $0x150] sm:$0xff]
      %v1175 = vld [vmem:[%s1145 + $0x158] sm:$0xff]
      %v1176 = vld [vmem:[%s1145 + $0x168] sm:$0xff]
      %v1177 = vld [vmem:[%s1145 + $0x170] sm:$0xff]
      %v1178 = vld [vmem:[%s1145 + $0x1] sm:$0xff]
      %v1179 = vld [vmem:[%s1145 + $0x9] sm:$0xff]
      %v1180 = vld [vmem:[%s1145 + $0x19] sm:$0xff]
      %v1181 = vld [vmem:[%s1145 + $0x21] sm:$0xff]
      %v1182 = vld [vmem:[%s1145 + $0x31] sm:$0xff]
      %v1183 = vld [vmem:[%s1145 + $0x39] sm:$0xff]
      %v1184 = vld [vmem:[%s1145 + $0x49] sm:$0xff]
      %v1185 = vld [vmem:[%s1145 + $0x51] sm:$0xff]
      %v1186 = vld [vmem:[%s1145 + $0x61] sm:$0xff]
      %v1187 = vld [vmem:[%s1145 + $0x69] sm:$0xff]
      %v1188 = vld [vmem:[%s1145 + $0x79] sm:$0xff]
      %v1189 = vld [vmem:[%s1145 + $0x81] sm:$0xff]
      %v1190 = vld [vmem:[%s1145 + $0x91] sm:$0xff]
      %v1191 = vld [vmem:[%s1145 + $0x99] sm:$0xff]
      %v1192 = vld [vmem:[%s1145 + $0xa9] sm:$0xff]
      %v1193 = vld [vmem:[%s1145 + $0xb1] sm:$0xff]
      %v1194 = vld [vmem:[%s1145 + $0xc1] sm:$0xff]
      %v1195 = vld [vmem:[%s1145 + $0xc9] sm:$0xff]
      %v1196 = vld [vmem:[%s1145 + $0xd9] sm:$0xff]
      %v1197 = vld [vmem:[%s1145 + $0xe1] sm:$0xff]
      %v1198 = vld [vmem:[%s1145 + $0xf1] sm:$0xff]
      %v1199 = vld [vmem:[%s1145 + $0xf9] sm:$0xff]
      %v1200 = vld [vmem:[%s1145 + $0x109] sm:$0xff]
      %v1201 = vld [vmem:[%s1145 + $0x111] sm:$0xff]
      %v1202 = vld [vmem:[%s1145 + $0x121] sm:$0xff]
      %v1203 = vld [vmem:[%s1145 + $0x129] sm:$0xff]
      %v1204 = vld [vmem:[%s1145 + $0x139] sm:$0xff]
      %v1205 = vld [vmem:[%s1145 + $0x141] sm:$0xff]
      %v1206 = vld [vmem:[%s1145 + $0x151] sm:$0xff]
      %v1207 = vld [vmem:[%s1145 + $0x159] sm:$0xff]
      %v1208 = vld [vmem:[%s1145 + $0x169] sm:$0xff]
      %v1209 = vld [vmem:[%s1145 + $0x171] sm:$0xff]
      %v1210 = vld [vmem:[%s1145 + $0x2] sm:$0xff]
      %v1211 = vld [vmem:[%s1145 + $0xa] sm:$0xff]
      %v1212 = vld [vmem:[%s1145 + $0x1a] sm:$0xff]
      %v1213 = vld [vmem:[%s1145 + $0x22] sm:$0xff]
      %v1214 = vld [vmem:[%s1145 + $0x32] sm:$0xff]
      %v1215 = vld [vmem:[%s1145 + $0x3a] sm:$0xff]
      %v1216 = vld [vmem:[%s1145 + $0x4a] sm:$0xff]
      %v1217 = vld [vmem:[%s1145 + $0x52] sm:$0xff]
      %v1218 = vld [vmem:[%s1145 + $0x62] sm:$0xff]
      %v1219 = vld [vmem:[%s1145 + $0x6a] sm:$0xff]
      %v1220 = vld [vmem:[%s1145 + $0x7a] sm:$0xff]
      %v1221 = vld [vmem:[%s1145 + $0x82] sm:$0xff]
      %v1222 = vld [vmem:[%s1145 + $0x92] sm:$0xff]
      %v1223 = vld [vmem:[%s1145 + $0x9a] sm:$0xff]
      %v1224 = vld [vmem:[%s1145 + $0xaa] sm:$0xff]
      %v1225 = vld [vmem:[%s1145 + $0xb2] sm:$0xff]
      %v1226 = vld [vmem:[%s1145 + $0xc2] sm:$0xff]
      %v1227 = vld [vmem:[%s1145 + $0xca] sm:$0xff]
      %v1228 = vld [vmem:[%s1145 + $0xda] sm:$0xff]
      %v1229 = vld [vmem:[%s1145 + $0xe2] sm:$0xff]
      %v1230 = vld [vmem:[%s1145 + $0xf2] sm:$0xff]
      %v1231 = vld [vmem:[%s1145 + $0xfa] sm:$0xff]
      %v1232 = vld [vmem:[%s1145 + $0x10a] sm:$0xff]
      %v1233 = vld [vmem:[%s1145 + $0x112] sm:$0xff]
      %v1234 = vld [vmem:[%s1145 + $0x122] sm:$0xff]
      %v1235 = vld [vmem:[%s1145 + $0x12a] sm:$0xff]
      %v1236 = vld [vmem:[%s1145 + $0x13a] sm:$0xff]
      %v1237 = vld [vmem:[%s1145 + $0x142] sm:$0xff]
      %v1238 = vld [vmem:[%s1145 + $0x152] sm:$0xff]
      %v1239 = vld [vmem:[%s1145 + $0x15a] sm:$0xff]
      %v1240 = vld [vmem:[%s1145 + $0x16a] sm:$0xff]
      %v1241 = vld [vmem:[%s1145 + $0x172] sm:$0xff]
      %1274 = vrot.lane.b32.xlu0 %v985, 8
      %v1275 = vpop.permute.xlu0 %1274
      %1276 = vrot.lane.b32.xlu0 %v986, 8
      %v1277 = vpop.permute.xlu0 %1276
      %1278 = vrot.lane.b32.xlu0 %v987, 8
      %v1279 = vpop.permute.xlu0 %1278
      %1280 = vrot.lane.b32.xlu0 %v988, 8
      %v1281 = vpop.permute.xlu0 %1280
      %1282 = vrot.lane.b32.xlu0 %v989, 8
      %v1283 = vpop.permute.xlu0 %1282
      %1284 = vrot.lane.b32.xlu0 %v990, 8
      %v1285 = vpop.permute.xlu0 %1284
      %1286 = vrot.lane.b32.xlu0 %v991, 8
      %v1287 = vpop.permute.xlu0 %1286
      %1288 = vrot.lane.b32.xlu0 %v992, 8
      %v1289 = vpop.permute.xlu0 %1288
      %1290 = vrot.lane.b32.xlu0 %v993, 8
      %v1291 = vpop.permute.xlu0 %1290
      %1292 = vrot.lane.b32.xlu0 %v994, 8
      %v1293 = vpop.permute.xlu0 %1292
      %1294 = vrot.lane.b32.xlu0 %v995, 8
      %v1295 = vpop.permute.xlu0 %1294
      %1296 = vrot.lane.b32.xlu0 %v996, 8
      %v1297 = vpop.permute.xlu0 %1296
      %1298 = vrot.lane.b32.xlu0 %v997, 8
      %v1299 = vpop.permute.xlu0 %1298
      %1300 = vrot.lane.b32.xlu0 %v998, 8
      %v1301 = vpop.permute.xlu0 %1300
      %1302 = vrot.lane.b32.xlu0 %v999, 8
      %v1303 = vpop.permute.xlu0 %1302
      %1304 = vrot.lane.b32.xlu0 %v1000, 8
      %v1305 = vpop.permute.xlu0 %1304
      %1306 = vrot.lane.b32.xlu0 %v1001, 8
      %v1307 = vpop.permute.xlu0 %1306
      %1308 = vrot.lane.b32.xlu0 %v1002, 8
      %v1309 = vpop.permute.xlu0 %1308
      %1310 = vrot.lane.b32.xlu0 %v1003, 8
      %v1311 = vpop.permute.xlu0 %1310
      %1312 = vrot.lane.b32.xlu0 %v1004, 8
      %v1313 = vpop.permute.xlu0 %1312
      %1314 = vrot.lane.b32.xlu0 %v1005, 8
      %v1315 = vpop.permute.xlu0 %1314
      %1316 = vrot.lane.b32.xlu0 %v1006, 8
      %v1317 = vpop.permute.xlu0 %1316
      %1318 = vrot.lane.b32.xlu0 %v1007, 8
      %v1319 = vpop.permute.xlu0 %1318
      %1320 = vrot.lane.b32.xlu0 %v1008, 8
      %v1321 = vpop.permute.xlu0 %1320
      %1322 = vrot.lane.b32.xlu0 %v1009, 8
      %v1323 = vpop.permute.xlu0 %1322
      %1324 = vrot.lane.b32.xlu0 %v1010, 8
      %v1325 = vpop.permute.xlu0 %1324
      %1326 = vrot.lane.b32.xlu0 %v1011, 8
      %v1327 = vpop.permute.xlu0 %1326
      %1328 = vrot.lane.b32.xlu0 %v1012, 8
      %v1329 = vpop.permute.xlu0 %1328
      %1330 = vrot.lane.b32.xlu0 %v1013, 8
      %v1331 = vpop.permute.xlu0 %1330
      %1332 = vrot.lane.b32.xlu0 %v1014, 8
      %v1333 = vpop.permute.xlu0 %1332
      %1334 = vrot.lane.b32.xlu0 %v1015, 8
      %v1335 = vpop.permute.xlu0 %1334
      %1336 = vrot.lane.b32.xlu0 %v1016, 8
      %v1337 = vpop.permute.xlu0 %1336
      %1402 = vrot.lane.b32.xlu0 %v1017, 16
      %v1403 = vpop.permute.xlu0 %1402
      %1404 = vrot.lane.b32.xlu0 %v1018, 16
      %v1405 = vpop.permute.xlu0 %1404
      %1406 = vrot.lane.b32.xlu0 %v1019, 16
      %v1407 = vpop.permute.xlu0 %1406
      %1408 = vrot.lane.b32.xlu0 %v1020, 16
      %v1409 = vpop.permute.xlu0 %1408
      %1410 = vrot.lane.b32.xlu0 %v1021, 16
      %v1411 = vpop.permute.xlu0 %1410
      %1412 = vrot.lane.b32.xlu0 %v1022, 16
      %v1413 = vpop.permute.xlu0 %1412
      %1414 = vrot.lane.b32.xlu0 %v1023, 16
      %v1415 = vpop.permute.xlu0 %1414
      %1416 = vrot.lane.b32.xlu0 %v1024, 16
      %v1417 = vpop.permute.xlu0 %1416
      %1418 = vrot.lane.b32.xlu0 %v1025, 16
      %v1419 = vpop.permute.xlu0 %1418
      %1420 = vrot.lane.b32.xlu0 %v1026, 16
      %v1421 = vpop.permute.xlu0 %1420
      %1422 = vrot.lane.b32.xlu0 %v1027, 16
      %v1423 = vpop.permute.xlu0 %1422
      %1424 = vrot.lane.b32.xlu0 %v1028, 16
      %v1425 = vpop.permute.xlu0 %1424
      %1426 = vrot.lane.b32.xlu0 %v1029, 16
      %v1427 = vpop.permute.xlu0 %1426
      %1428 = vrot.lane.b32.xlu0 %v1030, 16
      %v1429 = vpop.permute.xlu0 %1428
      %1430 = vrot.lane.b32.xlu0 %v1031, 16
      %v1431 = vpop.permute.xlu0 %1430
      %1432 = vrot.lane.b32.xlu0 %v1032, 16
      %v1433 = vpop.permute.xlu0 %1432
      %1434 = vrot.lane.b32.xlu0 %v1033, 16
      %v1435 = vpop.permute.xlu0 %1434
      %1436 = vrot.lane.b32.xlu0 %v1034, 16
      %v1437 = vpop.permute.xlu0 %1436
      %1438 = vrot.lane.b32.xlu0 %v1035, 16
      %v1439 = vpop.permute.xlu0 %1438
      %1440 = vrot.lane.b32.xlu0 %v1036, 16
      %v1441 = vpop.permute.xlu0 %1440
      %1442 = vrot.lane.b32.xlu0 %v1037, 16
      %v1443 = vpop.permute.xlu0 %1442
      %1444 = vrot.lane.b32.xlu0 %v1038, 16
      %v1445 = vpop.permute.xlu0 %1444
      %1446 = vrot.lane.b32.xlu0 %v1039, 16
      %v1447 = vpop.permute.xlu0 %1446
      %1448 = vrot.lane.b32.xlu0 %v1040, 16
      %v1449 = vpop.permute.xlu0 %1448
      %1450 = vrot.lane.b32.xlu0 %v1041, 16
      %v1451 = vpop.permute.xlu0 %1450
      %1452 = vrot.lane.b32.xlu0 %v1042, 16
      %v1453 = vpop.permute.xlu0 %1452
      %1454 = vrot.lane.b32.xlu0 %v1043, 16
      %v1455 = vpop.permute.xlu0 %1454
      %1456 = vrot.lane.b32.xlu0 %v1044, 16
      %v1457 = vpop.permute.xlu0 %1456
      %1458 = vrot.lane.b32.xlu0 %v1045, 16
      %v1459 = vpop.permute.xlu0 %1458
      %1460 = vrot.lane.b32.xlu0 %v1046, 16
      %v1461 = vpop.permute.xlu0 %1460
      %1462 = vrot.lane.b32.xlu0 %v1047, 16
      %v1463 = vpop.permute.xlu0 %1462
      %1464 = vrot.lane.b32.xlu0 %v1048, 16
      %v1465 = vpop.permute.xlu0 %1464
      %1530 = vrot.lane.b32.xlu0 %v1049, 24
      %v1531 = vpop.permute.xlu0 %1530
      %1532 = vrot.lane.b32.xlu0 %v1050, 24
      %v1533 = vpop.permute.xlu0 %1532
      %1534 = vrot.lane.b32.xlu0 %v1051, 24
      %v1535 = vpop.permute.xlu0 %1534
      %1536 = vrot.lane.b32.xlu0 %v1052, 24
      %v1537 = vpop.permute.xlu0 %1536
      %1538 = vrot.lane.b32.xlu0 %v1053, 24
      %v1539 = vpop.permute.xlu0 %1538
      %1540 = vrot.lane.b32.xlu0 %v1054, 24
      %v1541 = vpop.permute.xlu0 %1540
      %1542 = vrot.lane.b32.xlu0 %v1055, 24
      %v1543 = vpop.permute.xlu0 %1542
      %1544 = vrot.lane.b32.xlu0 %v1056, 24
      %v1545 = vpop.permute.xlu0 %1544
      %1546 = vrot.lane.b32.xlu0 %v1057, 24
      %v1547 = vpop.permute.xlu0 %1546
      %1548 = vrot.lane.b32.xlu0 %v1058, 24
      %v1549 = vpop.permute.xlu0 %1548
      %1550 = vrot.lane.b32.xlu0 %v1059, 24
      %v1551 = vpop.permute.xlu0 %1550
      %1552 = vrot.lane.b32.xlu0 %v1060, 24
      %v1553 = vpop.permute.xlu0 %1552
      %1554 = vrot.lane.b32.xlu0 %v1061, 24
      %v1555 = vpop.permute.xlu0 %1554
      %1556 = vrot.lane.b32.xlu0 %v1062, 24
      %v1557 = vpop.permute.xlu0 %1556
      %1558 = vrot.lane.b32.xlu0 %v1063, 24
      %v1559 = vpop.permute.xlu0 %1558
      %1560 = vrot.lane.b32.xlu0 %v1064, 24
      %v1561 = vpop.permute.xlu0 %1560
      %1562 = vrot.lane.b32.xlu0 %v1065, 24
      %v1563 = vpop.permute.xlu0 %1562
      %1564 = vrot.lane.b32.xlu0 %v1066, 24
      %v1565 = vpop.permute.xlu0 %1564
      %1566 = vrot.lane.b32.xlu0 %v1067, 24
      %v1567 = vpop.permute.xlu0 %1566
      %1568 = vrot.lane.b32.xlu0 %v1068, 24
      %v1569 = vpop.permute.xlu0 %1568
      %1570 = vrot.lane.b32.xlu0 %v1069, 24
      %v1571 = vpop.permute.xlu0 %1570
      %1572 = vrot.lane.b32.xlu0 %v1070, 24
      %v1573 = vpop.permute.xlu0 %1572
      %1574 = vrot.lane.b32.xlu0 %v1071, 24
      %v1575 = vpop.permute.xlu0 %1574
      %1576 = vrot.lane.b32.xlu0 %v1072, 24
      %v1577 = vpop.permute.xlu0 %1576
      %1578 = vrot.lane.b32.xlu0 %v1073, 24
      %v1579 = vpop.permute.xlu0 %1578
      %1580 = vrot.lane.b32.xlu0 %v1074, 24
      %v1581 = vpop.permute.xlu0 %1580
      %1582 = vrot.lane.b32.xlu0 %v1075, 24
      %v1583 = vpop.permute.xlu0 %1582
      %1584 = vrot.lane.b32.xlu0 %v1076, 24
      %v1585 = vpop.permute.xlu0 %1584
      %1586 = vrot.lane.b32.xlu0 %v1077, 24
      %v1587 = vpop.permute.xlu0 %1586
      %1588 = vrot.lane.b32.xlu0 %v1078, 24
      %v1589 = vpop.permute.xlu0 %1588
      %1590 = vrot.lane.b32.xlu0 %v1079, 24
      %v1591 = vpop.permute.xlu0 %1590
      %1592 = vrot.lane.b32.xlu0 %v1080, 24
      %v1593 = vpop.permute.xlu0 %1592
      %1658 = vrot.lane.b32.xlu0 %v1081, 32
      %v1659 = vpop.permute.xlu0 %1658
      %1660 = vrot.lane.b32.xlu0 %v1082, 32
      %v1661 = vpop.permute.xlu0 %1660
      %1662 = vrot.lane.b32.xlu0 %v1083, 32
      %v1663 = vpop.permute.xlu0 %1662
      %1664 = vrot.lane.b32.xlu0 %v1084, 32
      %v1665 = vpop.permute.xlu0 %1664
      %1666 = vrot.lane.b32.xlu0 %v1085, 32
      %v1667 = vpop.permute.xlu0 %1666
      %1668 = vrot.lane.b32.xlu0 %v1086, 32
      %v1669 = vpop.permute.xlu0 %1668
      %1670 = vrot.lane.b32.xlu0 %v1087, 32
      %v1671 = vpop.permute.xlu0 %1670
      %1672 = vrot.lane.b32.xlu0 %v1088, 32
      %v1673 = vpop.permute.xlu0 %1672
      %1674 = vrot.lane.b32.xlu0 %v1089, 32
      %v1675 = vpop.permute.xlu0 %1674
      %1676 = vrot.lane.b32.xlu0 %v1090, 32
      %v1677 = vpop.permute.xlu0 %1676
      %1678 = vrot.lane.b32.xlu0 %v1091, 32
      %v1679 = vpop.permute.xlu0 %1678
      %1680 = vrot.lane.b32.xlu0 %v1092, 32
      %v1681 = vpop.permute.xlu0 %1680
      %1682 = vrot.lane.b32.xlu0 %v1093, 32
      %v1683 = vpop.permute.xlu0 %1682
      %1684 = vrot.lane.b32.xlu0 %v1094, 32
      %v1685 = vpop.permute.xlu0 %1684
      %1686 = vrot.lane.b32.xlu0 %v1095, 32
      %v1687 = vpop.permute.xlu0 %1686
      %1688 = vrot.lane.b32.xlu0 %v1096, 32
      %v1689 = vpop.permute.xlu0 %1688
      %1690 = vrot.lane.b32.xlu0 %v1097, 32
      %v1691 = vpop.permute.xlu0 %1690
      %1692 = vrot.lane.b32.xlu0 %v1098, 32
      %v1693 = vpop.permute.xlu0 %1692
      %1694 = vrot.lane.b32.xlu0 %v1099, 32
      %v1695 = vpop.permute.xlu0 %1694
      %1696 = vrot.lane.b32.xlu0 %v1100, 32
      %v1697 = vpop.permute.xlu0 %1696
      %1698 = vrot.lane.b32.xlu0 %v1101, 32
      %v1699 = vpop.permute.xlu0 %1698
      %1700 = vrot.lane.b32.xlu0 %v1102, 32
      %v1701 = vpop.permute.xlu0 %1700
      %1702 = vrot.lane.b32.xlu0 %v1103, 32
      %v1703 = vpop.permute.xlu0 %1702
      %1704 = vrot.lane.b32.xlu0 %v1104, 32
      %v1705 = vpop.permute.xlu0 %1704
      %1706 = vrot.lane.b32.xlu0 %v1105, 32
      %v1707 = vpop.permute.xlu0 %1706
      %1708 = vrot.lane.b32.xlu0 %v1106, 32
      %v1709 = vpop.permute.xlu0 %1708
      %1710 = vrot.lane.b32.xlu0 %v1107, 32
      %v1711 = vpop.permute.xlu0 %1710
      %1712 = vrot.lane.b32.xlu0 %v1108, 32
      %v1713 = vpop.permute.xlu0 %1712
      %1714 = vrot.lane.b32.xlu0 %v1109, 32
      %v1715 = vpop.permute.xlu0 %1714
      %1716 = vrot.lane.b32.xlu0 %v1110, 32
      %v1717 = vpop.permute.xlu0 %1716
      %1718 = vrot.lane.b32.xlu0 %v1111, 32
      %v1719 = vpop.permute.xlu0 %1718
      %1720 = vrot.lane.b32.xlu0 %v1112, 32
      %v1721 = vpop.permute.xlu0 %1720
      %1786 = vrot.lane.b32.xlu0 %v1113, 40
      %v1787 = vpop.permute.xlu0 %1786
      %1788 = vrot.lane.b32.xlu0 %v1114, 40
      %v1789 = vpop.permute.xlu0 %1788
      %1790 = vrot.lane.b32.xlu0 %v1115, 40
      %v1791 = vpop.permute.xlu0 %1790
      %1792 = vrot.lane.b32.xlu0 %v1116, 40
      %v1793 = vpop.permute.xlu0 %1792
      %1794 = vrot.lane.b32.xlu0 %v1117, 40
      %v1795 = vpop.permute.xlu0 %1794
      %1796 = vrot.lane.b32.xlu0 %v1118, 40
      %v1797 = vpop.permute.xlu0 %1796
      %1798 = vrot.lane.b32.xlu0 %v1119, 40
      %v1799 = vpop.permute.xlu0 %1798
      %1800 = vrot.lane.b32.xlu0 %v1120, 40
      %v1801 = vpop.permute.xlu0 %1800
      %1802 = vrot.lane.b32.xlu0 %v1121, 40
      %v1803 = vpop.permute.xlu0 %1802
      %1804 = vrot.lane.b32.xlu0 %v1122, 40
      %v1805 = vpop.permute.xlu0 %1804
      %1806 = vrot.lane.b32.xlu0 %v1123, 40
      %v1807 = vpop.permute.xlu0 %1806
      %1808 = vrot.lane.b32.xlu0 %v1124, 40
      %v1809 = vpop.permute.xlu0 %1808
      %1810 = vrot.lane.b32.xlu0 %v1125, 40
      %v1811 = vpop.permute.xlu0 %1810
      %1812 = vrot.lane.b32.xlu0 %v1126, 40
      %v1813 = vpop.permute.xlu0 %1812
      %1814 = vrot.lane.b32.xlu0 %v1127, 40
      %v1815 = vpop.permute.xlu0 %1814
      %1816 = vrot.lane.b32.xlu0 %v1128, 40
      %v1817 = vpop.permute.xlu0 %1816
      %1818 = vrot.lane.b32.xlu0 %v1129, 40
      %v1819 = vpop.permute.xlu0 %1818
      %1820 = vrot.lane.b32.xlu0 %v1130, 40
      %v1821 = vpop.permute.xlu0 %1820
      %1822 = vrot.lane.b32.xlu0 %v1131, 40
      %v1823 = vpop.permute.xlu0 %1822
      %1824 = vrot.lane.b32.xlu0 %v1132, 40
      %v1825 = vpop.permute.xlu0 %1824
      %1826 = vrot.lane.b32.xlu0 %v1133, 40
      %v1827 = vpop.permute.xlu0 %1826
      %1828 = vrot.lane.b32.xlu0 %v1134, 40
      %v1829 = vpop.permute.xlu0 %1828
      %1830 = vrot.lane.b32.xlu0 %v1135, 40
      %v1831 = vpop.permute.xlu0 %1830
      %1832 = vrot.lane.b32.xlu0 %v1136, 40
      %v1833 = vpop.permute.xlu0 %1832
      %1834 = vrot.lane.b32.xlu0 %v1137, 40
      %v1835 = vpop.permute.xlu0 %1834
      %1836 = vrot.lane.b32.xlu0 %v1138, 40
      %v1837 = vpop.permute.xlu0 %1836
      %1838 = vrot.lane.b32.xlu0 %v1139, 40
      %v1839 = vpop.permute.xlu0 %1838
      %1840 = vrot.lane.b32.xlu0 %v1140, 40
      %v1841 = vpop.permute.xlu0 %1840
      %1842 = vrot.lane.b32.xlu0 %v1141, 40
      %v1843 = vpop.permute.xlu0 %1842
      %1844 = vrot.lane.b32.xlu0 %v1142, 40
      %v1845 = vpop.permute.xlu0 %1844
      %1846 = vrot.lane.b32.xlu0 %v1143, 40
      %v1847 = vpop.permute.xlu0 %1846
      %1848 = vrot.lane.b32.xlu0 %v1144, 40
      %v1849 = vpop.permute.xlu0 %1848
      %1914 = vrot.lane.b32.xlu0 %v1146, 48
      %v1915 = vpop.permute.xlu0 %1914
      %1916 = vrot.lane.b32.xlu0 %v1147, 48
      %v1917 = vpop.permute.xlu0 %1916
      %1918 = vrot.lane.b32.xlu0 %v1148, 48
      %v1919 = vpop.permute.xlu0 %1918
      %1920 = vrot.lane.b32.xlu0 %v1149, 48
      %v1921 = vpop.permute.xlu0 %1920
      %1922 = vrot.lane.b32.xlu0 %v1150, 48
      %v1923 = vpop.permute.xlu0 %1922
      %1924 = vrot.lane.b32.xlu0 %v1151, 48
      %v1925 = vpop.permute.xlu0 %1924
      %1926 = vrot.lane.b32.xlu0 %v1152, 48
      %v1927 = vpop.permute.xlu0 %1926
      %1928 = vrot.lane.b32.xlu0 %v1153, 48
      %v1929 = vpop.permute.xlu0 %1928
      %1930 = vrot.lane.b32.xlu0 %v1154, 48
      %v1931 = vpop.permute.xlu0 %1930
      %1932 = vrot.lane.b32.xlu0 %v1155, 48
      %v1933 = vpop.permute.xlu0 %1932
      %1934 = vrot.lane.b32.xlu0 %v1156, 48
      %v1935 = vpop.permute.xlu0 %1934
      %1936 = vrot.lane.b32.xlu0 %v1157, 48
      %v1937 = vpop.permute.xlu0 %1936
      %1938 = vrot.lane.b32.xlu0 %v1158, 48
      %v1939 = vpop.permute.xlu0 %1938
      %1940 = vrot.lane.b32.xlu0 %v1159, 48
      %v1941 = vpop.permute.xlu0 %1940
      %1942 = vrot.lane.b32.xlu0 %v1160, 48
      %v1943 = vpop.permute.xlu0 %1942
      %1944 = vrot.lane.b32.xlu0 %v1161, 48
      %v1945 = vpop.permute.xlu0 %1944
      %1946 = vrot.lane.b32.xlu0 %v1162, 48
      %v1947 = vpop.permute.xlu0 %1946
      %1948 = vrot.lane.b32.xlu0 %v1163, 48
      %v1949 = vpop.permute.xlu0 %1948
      %1950 = vrot.lane.b32.xlu0 %v1164, 48
      %v1951 = vpop.permute.xlu0 %1950
      %1952 = vrot.lane.b32.xlu0 %v1165, 48
      %v1953 = vpop.permute.xlu0 %1952
      %1954 = vrot.lane.b32.xlu0 %v1166, 48
      %v1955 = vpop.permute.xlu0 %1954
      %1956 = vrot.lane.b32.xlu0 %v1167, 48
      %v1957 = vpop.permute.xlu0 %1956
      %1958 = vrot.lane.b32.xlu0 %v1168, 48
      %v1959 = vpop.permute.xlu0 %1958
      %1960 = vrot.lane.b32.xlu0 %v1169, 48
      %v1961 = vpop.permute.xlu0 %1960
      %1962 = vrot.lane.b32.xlu0 %v1170, 48
      %v1963 = vpop.permute.xlu0 %1962
      %1964 = vrot.lane.b32.xlu0 %v1171, 48
      %v1965 = vpop.permute.xlu0 %1964
      %1966 = vrot.lane.b32.xlu0 %v1172, 48
      %v1967 = vpop.permute.xlu0 %1966
      %1968 = vrot.lane.b32.xlu0 %v1173, 48
      %v1969 = vpop.permute.xlu0 %1968
      %1970 = vrot.lane.b32.xlu0 %v1174, 48
      %v1971 = vpop.permute.xlu0 %1970
      %1972 = vrot.lane.b32.xlu0 %v1175, 48
      %v1973 = vpop.permute.xlu0 %1972
      %1974 = vrot.lane.b32.xlu0 %v1176, 48
      %v1975 = vpop.permute.xlu0 %1974
      %1976 = vrot.lane.b32.xlu0 %v1177, 48
      %v1977 = vpop.permute.xlu0 %1976
      %2042 = vrot.lane.b32.xlu0 %v1178, 56
      %v2043 = vpop.permute.xlu0 %2042
      %2044 = vrot.lane.b32.xlu0 %v1179, 56
      %v2045 = vpop.permute.xlu0 %2044
      %2046 = vrot.lane.b32.xlu0 %v1180, 56
      %v2047 = vpop.permute.xlu0 %2046
      %2048 = vrot.lane.b32.xlu0 %v1181, 56
      %v2049 = vpop.permute.xlu0 %2048
      %2050 = vrot.lane.b32.xlu0 %v1182, 56
      %v2051 = vpop.permute.xlu0 %2050
      %2052 = vrot.lane.b32.xlu0 %v1183, 56
      %v2053 = vpop.permute.xlu0 %2052
      %2054 = vrot.lane.b32.xlu0 %v1184, 56
      %v2055 = vpop.permute.xlu0 %2054
      %2056 = vrot.lane.b32.xlu0 %v1185, 56
      %v2057 = vpop.permute.xlu0 %2056
      %2058 = vrot.lane.b32.xlu0 %v1186, 56
      %v2059 = vpop.permute.xlu0 %2058
      %2060 = vrot.lane.b32.xlu0 %v1187, 56
      %v2061 = vpop.permute.xlu0 %2060
      %2062 = vrot.lane.b32.xlu0 %v1188, 56
      %v2063 = vpop.permute.xlu0 %2062
      %2064 = vrot.lane.b32.xlu0 %v1189, 56
      %v2065 = vpop.permute.xlu0 %2064
      %2066 = vrot.lane.b32.xlu0 %v1190, 56
      %v2067 = vpop.permute.xlu0 %2066
      %2068 = vrot.lane.b32.xlu0 %v1191, 56
      %v2069 = vpop.permute.xlu0 %2068
      %2070 = vrot.lane.b32.xlu0 %v1192, 56
      %v2071 = vpop.permute.xlu0 %2070
      %2072 = vrot.lane.b32.xlu0 %v1193, 56
      %v2073 = vpop.permute.xlu0 %2072
      %2074 = vrot.lane.b32.xlu0 %v1194, 56
      %v2075 = vpop.permute.xlu0 %2074
      %2076 = vrot.lane.b32.xlu0 %v1195, 56
      %v2077 = vpop.permute.xlu0 %2076
      %2078 = vrot.lane.b32.xlu0 %v1196, 56
      %v2079 = vpop.permute.xlu0 %2078
      %2080 = vrot.lane.b32.xlu0 %v1197, 56
      %v2081 = vpop.permute.xlu0 %2080
      %2082 = vrot.lane.b32.xlu0 %v1198, 56
      %v2083 = vpop.permute.xlu0 %2082
      %2084 = vrot.lane.b32.xlu0 %v1199, 56
      %v2085 = vpop.permute.xlu0 %2084
      %2086 = vrot.lane.b32.xlu0 %v1200, 56
      %v2087 = vpop.permute.xlu0 %2086
      %2088 = vrot.lane.b32.xlu0 %v1201, 56
      %v2089 = vpop.permute.xlu0 %2088
      %2090 = vrot.lane.b32.xlu0 %v1202, 56
      %v2091 = vpop.permute.xlu0 %2090
      %2092 = vrot.lane.b32.xlu0 %v1203, 56
      %v2093 = vpop.permute.xlu0 %2092
      %2094 = vrot.lane.b32.xlu0 %v1204, 56
      %v2095 = vpop.permute.xlu0 %2094
      %2096 = vrot.lane.b32.xlu0 %v1205, 56
      %v2097 = vpop.permute.xlu0 %2096
      %2098 = vrot.lane.b32.xlu0 %v1206, 56
      %v2099 = vpop.permute.xlu0 %2098
      %2100 = vrot.lane.b32.xlu0 %v1207, 56
      %v2101 = vpop.permute.xlu0 %2100
      %2102 = vrot.lane.b32.xlu0 %v1208, 56
      %v2103 = vpop.permute.xlu0 %2102
      %2104 = vrot.lane.b32.xlu0 %v1209, 56
      %v2105 = vpop.permute.xlu0 %2104
      %2170 = vrot.lane.b32.xlu0 %v1210, 64
      %v2171 = vpop.permute.xlu0 %2170
      %2172 = vrot.lane.b32.xlu0 %v1211, 64
      %v2173 = vpop.permute.xlu0 %2172
      %2174 = vrot.lane.b32.xlu0 %v1212, 64
      %v2175 = vpop.permute.xlu0 %2174
      %2176 = vrot.lane.b32.xlu0 %v1213, 64
      %v2177 = vpop.permute.xlu0 %2176
      %2178 = vrot.lane.b32.xlu0 %v1214, 64
      %v2179 = vpop.permute.xlu0 %2178
      %2180 = vrot.lane.b32.xlu0 %v1215, 64
      %v2181 = vpop.permute.xlu0 %2180
      %2182 = vrot.lane.b32.xlu0 %v1216, 64
      %v2183 = vpop.permute.xlu0 %2182
      %2184 = vrot.lane.b32.xlu0 %v1217, 64
      %v2185 = vpop.permute.xlu0 %2184
      %2186 = vrot.lane.b32.xlu0 %v1218, 64
      %v2187 = vpop.permute.xlu0 %2186
      %2188 = vrot.lane.b32.xlu0 %v1219, 64
      %v2189 = vpop.permute.xlu0 %2188
      %2190 = vrot.lane.b32.xlu0 %v1220, 64
      %v2191 = vpop.permute.xlu0 %2190
      %2192 = vrot.lane.b32.xlu0 %v1221, 64
      %v2193 = vpop.permute.xlu0 %2192
      %2194 = vrot.lane.b32.xlu0 %v1222, 64
      %v2195 = vpop.permute.xlu0 %2194
      %2196 = vrot.lane.b32.xlu0 %v1223, 64
      %v2197 = vpop.permute.xlu0 %2196
      %2198 = vrot.lane.b32.xlu0 %v1224, 64
      %v2199 = vpop.permute.xlu0 %2198
      %2200 = vrot.lane.b32.xlu0 %v1225, 64
      %v2201 = vpop.permute.xlu0 %2200
      %2202 = vrot.lane.b32.xlu0 %v1226, 64
      %v2203 = vpop.permute.xlu0 %2202
      %2204 = vrot.lane.b32.xlu0 %v1227, 64
      %v2205 = vpop.permute.xlu0 %2204
      %2206 = vrot.lane.b32.xlu0 %v1228, 64
      %v2207 = vpop.permute.xlu0 %2206
      %2208 = vrot.lane.b32.xlu0 %v1229, 64
      %v2209 = vpop.permute.xlu0 %2208
      %2210 = vrot.lane.b32.xlu0 %v1230, 64
      %v2211 = vpop.permute.xlu0 %2210
      %2212 = vrot.lane.b32.xlu0 %v1231, 64
      %v2213 = vpop.permute.xlu0 %2212
      %2214 = vrot.lane.b32.xlu0 %v1232, 64
      %v2215 = vpop.permute.xlu0 %2214
      %2216 = vrot.lane.b32.xlu0 %v1233, 64
      %v2217 = vpop.permute.xlu0 %2216
      %2218 = vrot.lane.b32.xlu0 %v1234, 64
      %v2219 = vpop.permute.xlu0 %2218
      %2220 = vrot.lane.b32.xlu0 %v1235, 64
      %v2221 = vpop.permute.xlu0 %2220
      %2222 = vrot.lane.b32.xlu0 %v1236, 64
      %v2223 = vpop.permute.xlu0 %2222
      %2224 = vrot.lane.b32.xlu0 %v1237, 64
      %v2225 = vpop.permute.xlu0 %2224
      %2226 = vrot.lane.b32.xlu0 %v1238, 64
      %v2227 = vpop.permute.xlu0 %2226
      %2228 = vrot.lane.b32.xlu0 %v1239, 64
      %v2229 = vpop.permute.xlu0 %2228
      %2230 = vrot.lane.b32.xlu0 %v1240, 64
      %v2231 = vpop.permute.xlu0 %2230
      %2232 = vrot.lane.b32.xlu0 %v1241, 64
      %v2233 = vpop.permute.xlu0 %2232
      %v2266 = vsel %vm572, %v953, %v1275
      %v2267 = vsel %vm572, %v954, %v1277
      %v2268 = vsel %vm572, %v955, %v1279
      %v2269 = vsel %vm572, %v956, %v1281
      %v2270 = vsel %vm572, %v957, %v1283
      %v2271 = vsel %vm572, %v958, %v1285
      %v2272 = vsel %vm572, %v959, %v1287
      %v2273 = vsel %vm572, %v960, %v1289
      %v2274 = vsel %vm572, %v961, %v1291
      %v2275 = vsel %vm572, %v962, %v1293
      %v2276 = vsel %vm572, %v963, %v1295
      %v2277 = vsel %vm572, %v964, %v1297
      %v2278 = vsel %vm572, %v965, %v1299
      %v2279 = vsel %vm572, %v966, %v1301
      %v2280 = vsel %vm572, %v967, %v1303
      %v2281 = vsel %vm572, %v968, %v1305
      %v2282 = vsel %vm572, %v969, %v1307
      %v2283 = vsel %vm572, %v970, %v1309
      %v2284 = vsel %vm572, %v971, %v1311
      %v2285 = vsel %vm572, %v972, %v1313
      %v2286 = vsel %vm572, %v973, %v1315
      %v2287 = vsel %vm572, %v974, %v1317
      %v2288 = vsel %vm572, %v975, %v1319
      %v2289 = vsel %vm572, %v976, %v1321
      %v2290 = vsel %vm572, %v977, %v1323
      %v2291 = vsel %vm572, %v978, %v1325
      %v2292 = vsel %vm572, %v979, %v1327
      %v2293 = vsel %vm572, %v980, %v1329
      %v2294 = vsel %vm572, %v981, %v1331
      %v2295 = vsel %vm572, %v982, %v1333
      %v2296 = vsel %vm572, %v983, %v1335
      %v2297 = vsel %vm572, %v984, %v1337
      %v2298 = vsel %vm864, %v2266, %v1403
      %v2299 = vsel %vm864, %v2267, %v1405
      %v2300 = vsel %vm864, %v2268, %v1407
      %v2301 = vsel %vm864, %v2269, %v1409
      %v2302 = vsel %vm864, %v2270, %v1411
      %v2303 = vsel %vm864, %v2271, %v1413
      %v2304 = vsel %vm864, %v2272, %v1415
      %v2305 = vsel %vm864, %v2273, %v1417
      %v2306 = vsel %vm864, %v2274, %v1419
      %v2307 = vsel %vm864, %v2275, %v1421
      %v2308 = vsel %vm864, %v2276, %v1423
      %v2309 = vsel %vm864, %v2277, %v1425
      %v2310 = vsel %vm864, %v2278, %v1427
      %v2311 = vsel %vm864, %v2279, %v1429
      %v2312 = vsel %vm864, %v2280, %v1431
      %v2313 = vsel %vm864, %v2281, %v1433
      %v2314 = vsel %vm864, %v2282, %v1435
      %v2315 = vsel %vm864, %v2283, %v1437
      %v2316 = vsel %vm864, %v2284, %v1439
      %v2317 = vsel %vm864, %v2285, %v1441
      %v2318 = vsel %vm864, %v2286, %v1443
      %v2319 = vsel %vm864, %v2287, %v1445
      %v2320 = vsel %vm864, %v2288, %v1447
      %v2321 = vsel %vm864, %v2289, %v1449
      %v2322 = vsel %vm864, %v2290, %v1451
      %v2323 = vsel %vm864, %v2291, %v1453
      %v2324 = vsel %vm864, %v2292, %v1455
      %v2325 = vsel %vm864, %v2293, %v1457
      %v2326 = vsel %vm864, %v2294, %v1459
      %v2327 = vsel %vm864, %v2295, %v1461
      %v2328 = vsel %vm864, %v2296, %v1463
      %v2329 = vsel %vm864, %v2297, %v1465
      %vm2330 = vcmask 195584
      %v2331 = vsel %vm2330, %v2298, %v1531
      %v2332 = vsel %vm2330, %v2299, %v1533
      %v2333 = vsel %vm2330, %v2300, %v1535
      %v2334 = vsel %vm2330, %v2301, %v1537
      %v2335 = vsel %vm2330, %v2302, %v1539
      %v2336 = vsel %vm2330, %v2303, %v1541
      %v2337 = vsel %vm2330, %v2304, %v1543
      %v2338 = vsel %vm2330, %v2305, %v1545
      %v2339 = vsel %vm2330, %v2306, %v1547
      %v2340 = vsel %vm2330, %v2307, %v1549
      %v2341 = vsel %vm2330, %v2308, %v1551
      %v2342 = vsel %vm2330, %v2309, %v1553
      %v2343 = vsel %vm2330, %v2310, %v1555
      %v2344 = vsel %vm2330, %v2311, %v1557
      %v2345 = vsel %vm2330, %v2312, %v1559
      %v2346 = vsel %vm2330, %v2313, %v1561
      %v2347 = vsel %vm2330, %v2314, %v1563
      %v2348 = vsel %vm2330, %v2315, %v1565
      %v2349 = vsel %vm2330, %v2316, %v1567
      %v2350 = vsel %vm2330, %v2317, %v1569
      %v2351 = vsel %vm2330, %v2318, %v1571
      %v2352 = vsel %vm2330, %v2319, %v1573
      %v2353 = vsel %vm2330, %v2320, %v1575
      %v2354 = vsel %vm2330, %v2321, %v1577
      %v2355 = vsel %vm2330, %v2322, %v1579
      %v2356 = vsel %vm2330, %v2323, %v1581
      %v2357 = vsel %vm2330, %v2324, %v1583
      %v2358 = vsel %vm2330, %v2325, %v1585
      %v2359 = vsel %vm2330, %v2326, %v1587
      %v2360 = vsel %vm2330, %v2327, %v1589
      %v2361 = vsel %vm2330, %v2328, %v1591
      %v2362 = vsel %vm2330, %v2329, %v1593
      %vm2363 = vcmask 261120
      %v2364 = vsel %vm2363, %v2331, %v1659
      %v2365 = vsel %vm2363, %v2332, %v1661
      %v2366 = vsel %vm2363, %v2333, %v1663
      %v2367 = vsel %vm2363, %v2334, %v1665
      %v2368 = vsel %vm2363, %v2335, %v1667
      %v2369 = vsel %vm2363, %v2336, %v1669
      %v2370 = vsel %vm2363, %v2337, %v1671
      %v2371 = vsel %vm2363, %v2338, %v1673
      %v2372 = vsel %vm2363, %v2339, %v1675
      %v2373 = vsel %vm2363, %v2340, %v1677
      %v2374 = vsel %vm2363, %v2341, %v1679
      %v2375 = vsel %vm2363, %v2342, %v1681
      %v2376 = vsel %vm2363, %v2343, %v1683
      %v2377 = vsel %vm2363, %v2344, %v1685
      %v2378 = vsel %vm2363, %v2345, %v1687
      %v2379 = vsel %vm2363, %v2346, %v1689
      %v2380 = vsel %vm2363, %v2347, %v1691
      %v2381 = vsel %vm2363, %v2348, %v1693
      %v2382 = vsel %vm2363, %v2349, %v1695
      %v2383 = vsel %vm2363, %v2350, %v1697
      %v2384 = vsel %vm2363, %v2351, %v1699
      %v2385 = vsel %vm2363, %v2352, %v1701
      %v2386 = vsel %vm2363, %v2353, %v1703
      %v2387 = vsel %vm2363, %v2354, %v1705
      %v2388 = vsel %vm2363, %v2355, %v1707
      %v2389 = vsel %vm2363, %v2356, %v1709
      %v2390 = vsel %vm2363, %v2357, %v1711
      %v2391 = vsel %vm2363, %v2358, %v1713
      %v2392 = vsel %vm2363, %v2359, %v1715
      %v2393 = vsel %vm2363, %v2360, %v1717
      %v2394 = vsel %vm2363, %v2361, %v1719
      %v2395 = vsel %vm2363, %v2362, %v1721
      %vm2396 = vcmask 326656
      %v2397 = vsel %vm2396, %v2364, %v1787
      %v2398 = vsel %vm2396, %v2365, %v1789
      %v2399 = vsel %vm2396, %v2366, %v1791
      %v2400 = vsel %vm2396, %v2367, %v1793
      %v2401 = vsel %vm2396, %v2368, %v1795
      %v2402 = vsel %vm2396, %v2369, %v1797
      %v2403 = vsel %vm2396, %v2370, %v1799
      %v2404 = vsel %vm2396, %v2371, %v1801
      %v2405 = vsel %vm2396, %v2372, %v1803
      %v2406 = vsel %vm2396, %v2373, %v1805
      %v2407 = vsel %vm2396, %v2374, %v1807
      %v2408 = vsel %vm2396, %v2375, %v1809
      %v2409 = vsel %vm2396, %v2376, %v1811
      %v2410 = vsel %vm2396, %v2377, %v1813
      %v2411 = vsel %vm2396, %v2378, %v1815
      %v2412 = vsel %vm2396, %v2379, %v1817
      %v2413 = vsel %vm2396, %v2380, %v1819
      %v2414 = vsel %vm2396, %v2381, %v1821
      %v2415 = vsel %vm2396, %v2382, %v1823
      %v2416 = vsel %vm2396, %v2383, %v1825
      %v2417 = vsel %vm2396, %v2384, %v1827
      %v2418 = vsel %vm2396, %v2385, %v1829
      %v2419 = vsel %vm2396, %v2386, %v1831
      %v2420 = vsel %vm2396, %v2387, %v1833
      %v2421 = vsel %vm2396, %v2388, %v1835
      %v2422 = vsel %vm2396, %v2389, %v1837
      %v2423 = vsel %vm2396, %v2390, %v1839
      %v2424 = vsel %vm2396, %v2391, %v1841
      %v2425 = vsel %vm2396, %v2392, %v1843
      %v2426 = vsel %vm2396, %v2393, %v1845
      %v2427 = vsel %vm2396, %v2394, %v1847
      %v2428 = vsel %vm2396, %v2395, %v1849
      %vm2429 = vcmask 392192
      %v2430 = vsel %vm2429, %v2397, %v1915
      %v2431 = vsel %vm2429, %v2398, %v1917
      %v2432 = vsel %vm2429, %v2399, %v1919
      %v2433 = vsel %vm2429, %v2400, %v1921
      %v2434 = vsel %vm2429, %v2401, %v1923
      %v2435 = vsel %vm2429, %v2402, %v1925
      %v2436 = vsel %vm2429, %v2403, %v1927
      %v2437 = vsel %vm2429, %v2404, %v1929
      %v2438 = vsel %vm2429, %v2405, %v1931
      %v2439 = vsel %vm2429, %v2406, %v1933
      %v2440 = vsel %vm2429, %v2407, %v1935
      %v2441 = vsel %vm2429, %v2408, %v1937
      %v2442 = vsel %vm2429, %v2409, %v1939
      %v2443 = vsel %vm2429, %v2410, %v1941
      %v2444 = vsel %vm2429, %v2411, %v1943
      %v2445 = vsel %vm2429, %v2412, %v1945
      %v2446 = vsel %vm2429, %v2413, %v1947
      %v2447 = vsel %vm2429, %v2414, %v1949
      %v2448 = vsel %vm2429, %v2415, %v1951
      %v2449 = vsel %vm2429, %v2416, %v1953
      %v2450 = vsel %vm2429, %v2417, %v1955
      %v2451 = vsel %vm2429, %v2418, %v1957
      %v2452 = vsel %vm2429, %v2419, %v1959
      %v2453 = vsel %vm2429, %v2420, %v1961
      %v2454 = vsel %vm2429, %v2421, %v1963
      %v2455 = vsel %vm2429, %v2422, %v1965
      %v2456 = vsel %vm2429, %v2423, %v1967
      %v2457 = vsel %vm2429, %v2424, %v1969
      %v2458 = vsel %vm2429, %v2425, %v1971
      %v2459 = vsel %vm2429, %v2426, %v1973
      %v2460 = vsel %vm2429, %v2427, %v1975
      %v2461 = vsel %vm2429, %v2428, %v1977
      %vm2462 = vcmask 457728
      %v2463 = vsel %vm2462, %v2430, %v2043
      %v2464 = vsel %vm2462, %v2431, %v2045
      %v2465 = vsel %vm2462, %v2432, %v2047
      %v2466 = vsel %vm2462, %v2433, %v2049
      %v2467 = vsel %vm2462, %v2434, %v2051
      %v2468 = vsel %vm2462, %v2435, %v2053
      %v2469 = vsel %vm2462, %v2436, %v2055
      %v2470 = vsel %vm2462, %v2437, %v2057
      %v2471 = vsel %vm2462, %v2438, %v2059
      %v2472 = vsel %vm2462, %v2439, %v2061
      %v2473 = vsel %vm2462, %v2440, %v2063
      %v2474 = vsel %vm2462, %v2441, %v2065
      %v2475 = vsel %vm2462, %v2442, %v2067
      %v2476 = vsel %vm2462, %v2443, %v2069
      %v2477 = vsel %vm2462, %v2444, %v2071
      %v2478 = vsel %vm2462, %v2445, %v2073
      %v2479 = vsel %vm2462, %v2446, %v2075
      %v2480 = vsel %vm2462, %v2447, %v2077
      %v2481 = vsel %vm2462, %v2448, %v2079
      %v2482 = vsel %vm2462, %v2449, %v2081
      %v2483 = vsel %vm2462, %v2450, %v2083
      %v2484 = vsel %vm2462, %v2451, %v2085
      %v2485 = vsel %vm2462, %v2452, %v2087
      %v2486 = vsel %vm2462, %v2453, %v2089
      %v2487 = vsel %vm2462, %v2454, %v2091
      %v2488 = vsel %vm2462, %v2455, %v2093
      %v2489 = vsel %vm2462, %v2456, %v2095
      %v2490 = vsel %vm2462, %v2457, %v2097
      %v2491 = vsel %vm2462, %v2458, %v2099
      %v2492 = vsel %vm2462, %v2459, %v2101
      %v2493 = vsel %vm2462, %v2460, %v2103
      %v2494 = vsel %vm2462, %v2461, %v2105
      %vm2495 = vcmask 523264
      %v2496 = vsel %vm2495, %v2463, %v2171
      %v2497 = vsel %vm2495, %v2464, %v2173
      %v2498 = vsel %vm2495, %v2465, %v2175
      %v2499 = vsel %vm2495, %v2466, %v2177
      %v2500 = vsel %vm2495, %v2467, %v2179
      %v2501 = vsel %vm2495, %v2468, %v2181
      %v2502 = vsel %vm2495, %v2469, %v2183
      %v2503 = vsel %vm2495, %v2470, %v2185
      %v2504 = vsel %vm2495, %v2471, %v2187
      %v2505 = vsel %vm2495, %v2472, %v2189
      %v2506 = vsel %vm2495, %v2473, %v2191
      %v2507 = vsel %vm2495, %v2474, %v2193
      %v2508 = vsel %vm2495, %v2475, %v2195
      %v2509 = vsel %vm2495, %v2476, %v2197
      %v2510 = vsel %vm2495, %v2477, %v2199
      %v2511 = vsel %vm2495, %v2478, %v2201
      %v2512 = vsel %vm2495, %v2479, %v2203
      %v2513 = vsel %vm2495, %v2480, %v2205
      %v2514 = vsel %vm2495, %v2481, %v2207
      %v2515 = vsel %vm2495, %v2482, %v2209
      %v2516 = vsel %vm2495, %v2483, %v2211
      %v2517 = vsel %vm2495, %v2484, %v2213
      %v2518 = vsel %vm2495, %v2485, %v2215
      %v2519 = vsel %vm2495, %v2486, %v2217
      %v2520 = vsel %vm2495, %v2487, %v2219
      %v2521 = vsel %vm2495, %v2488, %v2221
      %v2522 = vsel %vm2495, %v2489, %v2223
      %v2523 = vsel %vm2495, %v2490, %v2225
      %v2524 = vsel %vm2495, %v2491, %v2227
      %v2525 = vsel %vm2495, %v2492, %v2229
      %v2526 = vsel %vm2495, %v2493, %v2231
      %v2527 = vsel %vm2495, %v2494, %v2233
      %v2528 = vpack.c.bf16 %v2497, %v2496
      %v2529 = vpack.c.bf16 %v2499, %v2498
      %v2530 = vpack.c.bf16 %v2501, %v2500
      %v2531 = vpack.c.bf16 %v2503, %v2502
      %v2532 = vpack.c.bf16 %v2505, %v2504
      %v2533 = vpack.c.bf16 %v2507, %v2506
      %v2534 = vpack.c.bf16 %v2509, %v2508
      %v2535 = vpack.c.bf16 %v2511, %v2510
      %v2536 = vpack.c.bf16 %v2513, %v2512
      %v2537 = vpack.c.bf16 %v2515, %v2514
      %v2538 = vpack.c.bf16 %v2517, %v2516
      %v2539 = vpack.c.bf16 %v2519, %v2518
      %v2540 = vpack.c.bf16 %v2521, %v2520
      %v2541 = vpack.c.bf16 %v2523, %v2522
      %v2542 = vpack.c.bf16 %v2525, %v2524
      %v2543 = vpack.c.bf16 %v2527, %v2526
      %v2544 = vld [vmem:[%s1] sm:$0xf]
      %v2545 = vld [vmem:[%s1 + $0x4] sm:$0xf]
      %v2546 = vld [vmem:[%s1 + $0x8] sm:$0xf]
      %v2547 = vld [vmem:[%s1 + $0xc] sm:$0xf]
      %v2548 = vld [vmem:[%s1 + $0x10] sm:$0xf]
      %v2549 = vld [vmem:[%s1 + $0x14] sm:$0xf]
      %v2550 = vld [vmem:[%s1 + $0x18] sm:$0xf]
      %v2551 = vld [vmem:[%s1 + $0x1c] sm:$0xf]
      %v2552 = vld [vmem:[%s1 + $0x20] sm:$0xf]
      %v2562 = vunpack.c.l.b16 %v2544
      %v2563 = vunpack.c.l.b16 %v2545
      %v2564 = vunpack.c.l.b16 %v2546
      %v2565 = vunpack.c.l.b16 %v2547
      %v2566 = vunpack.c.l.b16 %v2548
      %v2567 = vunpack.c.l.b16 %v2549
      %v2568 = vunpack.c.l.b16 %v2550
      %v2569 = vunpack.c.l.b16 %v2551
      %v2570 = vunpack.c.l.b16 %v2552
      %v2571 = vpack.c.b16 %v2563, %v2562
      %v2572 = vpack.c.b16 %v2565, %v2564
      %v2573 = vpack.c.b16 %v2567, %v2566
      %v2574 = vpack.c.b16 %v2569, %v2568
      %v2575 = vpack.c.b16 %v2570, %v2570
      %vm2580 = vcmask 588800
      %v2582 = vsel %vm2580, %v2528, 0
      %v2585 = vsel %vm2580, %v2529, 0
      %v2588 = vsel %vm2580, %v2530, 0
      %v2591 = vsel %vm2580, %v2531, 0
      %v2594 = vsel %vm2580, %v2532, 0
      %v2597 = vsel %vm2580, %v2533, 0
      %v2600 = vsel %vm2580, %v2534, 0
      %v2603 = vsel %vm2580, %v2535, 0
      %v2606 = vsel %vm2580, %v2536, 0
      %v2609 = vsel %vm2580, %v2537, 0
      %v2612 = vsel %vm2580, %v2538, 0
      %v2615 = vsel %vm2580, %v2539, 0
      %v2618 = vsel %vm2580, %v2540, 0
      %v2621 = vsel %vm2580, %v2541, 0
      %v2624 = vsel %vm2580, %v2542, 0
      %v2627 = vsel %vm2580, %v2543, 0
      %v2630 = vsel %vm621, %v2575, 0
      %2632 = vmatprep.subr.bf16.mxu0 0
      %2633 = vmatpush1.bf16.msra.mxu0 0
      %2634 = vmatprep.subr.bf16.mxu0 0
      %2635 = vmatpush1.bf16.msra.mxu0 0
      %2636 = vmatprep.subr.bf16.mxu0 0
      %2637 = vmatpush1.bf16.msra.mxu0 0
      %2638 = vmatprep.subr.bf16.mxu0 0
      %2639 = vmatpush1.bf16.msra.mxu0 %v2630
      %2640 = vmatprep.subr.bf16.mxu0 0
      %2641 = vmatpush1.bf16.msra.mxu0 %v2574
      %2642 = vmatprep.subr.bf16.mxu0 0
      %2643 = vmatpush1.bf16.msra.mxu0 %v2573
      %2644 = vmatprep.subr.bf16.mxu0 0
      %2645 = vmatpush1.bf16.msra.mxu0 %v2572
      %2646 = vmatprep.subr.bf16.mxu0 0
      %2647 = vmatpush1.bf16.msra.mxu0 %v2571
      %2648 = vmatprep.subr.bf16.mxu0 0
      %2649 = vmatpush2.bf16.msra.mxu0 0
      %2650 = vmatprep.subr.bf16.mxu0 0
      %2651 = vmatpush2.bf16.msra.mxu0 0
      %2652 = vmatprep.subr.bf16.mxu0 0
      %2653 = vmatpush2.bf16.msra.mxu0 0
      %2654 = vmatprep.subr.bf16.mxu0 0
      %2655 = vmatpush2.bf16.msra.mxu0 0
      %2656 = vmatprep.subr.bf16.mxu0 0
      %2657 = vmatpush2.bf16.msra.mxu0 0
      %2658 = vmatprep.subr.bf16.mxu0 0
      %2659 = vmatpush2.bf16.msra.mxu0 0
      %2660 = vmatprep.subr.bf16.mxu0 0
      %2661 = vmatpush2.bf16.msra.mxu0 0
      %2662 = vmatprep.subr.bf16.mxu0 0
      %2663 = vmatpush2.bf16.msra.mxu0 0
      %2664 = vmatprep.mubr.bf16.mxu0 0
      %2665 = vmatmul.mubr.bf16.gmra.mxu0 %v2582
      %v2666 = vpop.f32.mrf.mxu0
      %v2667 = vadd.f32 0.0, %v2666
      %v2668 = vpop.f32.mrf.mxu0
      %v2669 = vpop.f32.mrf.mxu0
      %v2670 = vadd.f32 0.0, %v2669
      %v2671 = vpop.f32.mrf.mxu0
      %2672 = vmatprep.mubr.bf16.mxu0 0
      %2673 = vmatmul.mubr.bf16.gmra.mxu0 %v2585
      %v2674 = vpop.f32.mrf.mxu0
      %v2675 = vadd.f32 0.0, %v2674
      %v2676 = vpop.f32.mrf.mxu0
      %v2677 = vpop.f32.mrf.mxu0
      %v2678 = vadd.f32 0.0, %v2677
      %v2679 = vpop.f32.mrf.mxu0
      %2680 = vmatprep.mubr.bf16.mxu0 0
      %2681 = vmatmul.mubr.bf16.gmra.mxu0 %v2588
      %v2682 = vpop.f32.mrf.mxu0
      %v2683 = vadd.f32 0.0, %v2682
      %v2684 = vpop.f32.mrf.mxu0
      %v2685 = vpop.f32.mrf.mxu0
      %v2686 = vadd.f32 0.0, %v2685
      %v2687 = vpop.f32.mrf.mxu0
      %2688 = vmatprep.mubr.bf16.mxu0 0
      %2689 = vmatmul.mubr.bf16.gmra.mxu0 %v2591
      %v2690 = vpop.f32.mrf.mxu0
      %v2691 = vadd.f32 0.0, %v2690
      %v2692 = vpop.f32.mrf.mxu0
      %v2693 = vpop.f32.mrf.mxu0
      %v2694 = vadd.f32 0.0, %v2693
      %v2695 = vpop.f32.mrf.mxu0
      %2696 = vmatprep.mubr.bf16.mxu0 0
      %2697 = vmatmul.mubr.bf16.gmra.mxu0 %v2594
      %v2698 = vpop.f32.mrf.mxu0
      %v2699 = vadd.f32 0.0, %v2698
      %v2700 = vpop.f32.mrf.mxu0
      %v2701 = vpop.f32.mrf.mxu0
      %v2702 = vadd.f32 0.0, %v2701
      %v2703 = vpop.f32.mrf.mxu0
      %2704 = vmatprep.mubr.bf16.mxu0 0
      %2705 = vmatmul.mubr.bf16.gmra.mxu0 %v2597
      %v2706 = vpop.f32.mrf.mxu0
      %v2707 = vadd.f32 0.0, %v2706
      %v2708 = vpop.f32.mrf.mxu0
      %v2709 = vpop.f32.mrf.mxu0
      %v2710 = vadd.f32 0.0, %v2709
      %v2711 = vpop.f32.mrf.mxu0
      %2712 = vmatprep.mubr.bf16.mxu0 0
      %2713 = vmatmul.mubr.bf16.gmra.mxu0 %v2600
      %v2714 = vpop.f32.mrf.mxu0
      %v2715 = vadd.f32 0.0, %v2714
      %v2716 = vpop.f32.mrf.mxu0
      %v2717 = vpop.f32.mrf.mxu0
      %v2718 = vadd.f32 0.0, %v2717
      %v2719 = vpop.f32.mrf.mxu0
      %2720 = vmatprep.mubr.bf16.mxu0 0
      %2721 = vmatmul.mubr.bf16.gmra.mxu0 %v2603
      %v2722 = vpop.f32.mrf.mxu0
      %v2723 = vadd.f32 0.0, %v2722
      %v2724 = vpop.f32.mrf.mxu0
      %v2725 = vpop.f32.mrf.mxu0
      %v2726 = vadd.f32 0.0, %v2725
      %v2727 = vpop.f32.mrf.mxu0
      %2728 = vmatprep.mubr.bf16.mxu0 0
      %2729 = vmatmul.mubr.bf16.gmra.mxu0 %v2606
      %v2730 = vpop.f32.mrf.mxu0
      %v2731 = vadd.f32 0.0, %v2730
      %v2732 = vpop.f32.mrf.mxu0
      %v2733 = vpop.f32.mrf.mxu0
      %v2734 = vadd.f32 0.0, %v2733
      %v2735 = vpop.f32.mrf.mxu0
      %2736 = vmatprep.mubr.bf16.mxu0 0
      %2737 = vmatmul.mubr.bf16.gmra.mxu0 %v2609
      %v2738 = vpop.f32.mrf.mxu0
      %v2739 = vadd.f32 0.0, %v2738
      %v2740 = vpop.f32.mrf.mxu0
      %v2741 = vpop.f32.mrf.mxu0
      %v2742 = vadd.f32 0.0, %v2741
      %v2743 = vpop.f32.mrf.mxu0
      %2744 = vmatprep.mubr.bf16.mxu0 0
      %2745 = vmatmul.mubr.bf16.gmra.mxu0 %v2612
      %v2746 = vpop.f32.mrf.mxu0
      %v2747 = vadd.f32 0.0, %v2746
      %v2748 = vpop.f32.mrf.mxu0
      %v2749 = vpop.f32.mrf.mxu0
      %v2750 = vadd.f32 0.0, %v2749
      %v2751 = vpop.f32.mrf.mxu0
      %2752 = vmatprep.mubr.bf16.mxu0 0
      %2753 = vmatmul.mubr.bf16.gmra.mxu0 %v2615
      %v2754 = vpop.f32.mrf.mxu0
      %v2755 = vadd.f32 0.0, %v2754
      %v2756 = vpop.f32.mrf.mxu0
      %v2757 = vpop.f32.mrf.mxu0
      %v2758 = vadd.f32 0.0, %v2757
      %v2759 = vpop.f32.mrf.mxu0
      %2760 = vmatprep.mubr.bf16.mxu0 0
      %2761 = vmatmul.mubr.bf16.gmra.mxu0 %v2618
      %v2762 = vpop.f32.mrf.mxu0
      %v2763 = vadd.f32 0.0, %v2762
      %v2764 = vpop.f32.mrf.mxu0
      %v2765 = vpop.f32.mrf.mxu0
      %v2766 = vadd.f32 0.0, %v2765
      %v2767 = vpop.f32.mrf.mxu0
      %2768 = vmatprep.mubr.bf16.mxu0 0
      %2769 = vmatmul.mubr.bf16.gmra.mxu0 %v2621
      %v2770 = vpop.f32.mrf.mxu0
      %v2771 = vadd.f32 0.0, %v2770
      %v2772 = vpop.f32.mrf.mxu0
      %v2773 = vpop.f32.mrf.mxu0
      %v2774 = vadd.f32 0.0, %v2773
      %v2775 = vpop.f32.mrf.mxu0
      %2776 = vmatprep.mubr.bf16.mxu0 0
      %2777 = vmatmul.mubr.bf16.gmra.mxu0 %v2624
      %v2778 = vpop.f32.mrf.mxu0
      %v2779 = vadd.f32 0.0, %v2778
      %v2780 = vpop.f32.mrf.mxu0
      %v2781 = vpop.f32.mrf.mxu0
      %v2782 = vadd.f32 0.0, %v2781
      %v2783 = vpop.f32.mrf.mxu0
      %2784 = vmatprep.mubr.bf16.mxu0 0
      %2785 = vmatmul.mubr.bf16.gmra.mxu0 %v2627
      %v2786 = vpop.f32.mrf.mxu0
      %v2787 = vadd.f32 0.0, %v2786
      %v2788 = vpop.f32.mrf.mxu0
      %v2789 = vpop.f32.mrf.mxu0
      %v2790 = vadd.f32 0.0, %v2789
      %v2791 = vpop.f32.mrf.mxu0
      %2792 = vdwg.mxu0
      %v2793 = vld [vmem:[%s2] sm:$0x1]
      %v2795 = vlaneseq
      %v2796 = vshrl.u32 %v2795, 7
      %v2797 = vsub.s32 0, %v2796
      %v2798 = vrot.slane %v2793, %v2797
      %v2800 = vmul.f32 %v2667, %v2798
      %v2801 = vmul.f32 %v2670, %v2798
      %v2802 = vmul.f32 %v2675, %v2798
      %v2803 = vmul.f32 %v2678, %v2798
      %v2804 = vmul.f32 %v2683, %v2798
      %v2805 = vmul.f32 %v2686, %v2798
      %v2806 = vmul.f32 %v2691, %v2798
      %v2807 = vmul.f32 %v2694, %v2798
      %v2808 = vmul.f32 %v2699, %v2798
      %v2809 = vmul.f32 %v2702, %v2798
      %v2810 = vmul.f32 %v2707, %v2798
      %v2811 = vmul.f32 %v2710, %v2798
      %v2812 = vmul.f32 %v2715, %v2798
      %v2813 = vmul.f32 %v2718, %v2798
      %v2814 = vmul.f32 %v2723, %v2798
      %v2815 = vmul.f32 %v2726, %v2798
      %v2816 = vmul.f32 %v2731, %v2798
      %v2817 = vmul.f32 %v2734, %v2798
      %v2818 = vmul.f32 %v2739, %v2798
      %v2819 = vmul.f32 %v2742, %v2798
      %v2820 = vmul.f32 %v2747, %v2798
      %v2821 = vmul.f32 %v2750, %v2798
      %v2822 = vmul.f32 %v2755, %v2798
      %v2823 = vmul.f32 %v2758, %v2798
      %v2824 = vmul.f32 %v2763, %v2798
      %v2825 = vmul.f32 %v2766, %v2798
      %v2826 = vmul.f32 %v2771, %v2798
      %v2827 = vmul.f32 %v2774, %v2798
      %v2828 = vmul.f32 %v2779, %v2798
      %v2829 = vmul.f32 %v2782, %v2798
      %v2830 = vmul.f32 %v2787, %v2798
      %v2831 = vmul.f32 %v2790, %v2798
      %v2832 = vld [vmem:[%s3] sm:$0x1]
      %v2834 = vlaneseq
      %v2835 = vshrl.u32 %v2834, 7
      %v2836 = vsub.s32 0, %v2835
      %v2837 = vrot.slane %v2832, %v2836
      %v2839 = vadd.f32 %v2800, %v2837
      %v2840 = vadd.f32 %v2801, %v2837
      %v2841 = vadd.f32 %v2802, %v2837
      %v2842 = vadd.f32 %v2803, %v2837
      %v2843 = vadd.f32 %v2804, %v2837
      %v2844 = vadd.f32 %v2805, %v2837
      %v2845 = vadd.f32 %v2806, %v2837
      %v2846 = vadd.f32 %v2807, %v2837
      %v2847 = vadd.f32 %v2808, %v2837
      %v2848 = vadd.f32 %v2809, %v2837
      %v2849 = vadd.f32 %v2810, %v2837
      %v2850 = vadd.f32 %v2811, %v2837
      %v2851 = vadd.f32 %v2812, %v2837
      %v2852 = vadd.f32 %v2813, %v2837
      %v2853 = vadd.f32 %v2814, %v2837
      %v2854 = vadd.f32 %v2815, %v2837
      %v2855 = vadd.f32 %v2816, %v2837
      %v2856 = vadd.f32 %v2817, %v2837
      %v2857 = vadd.f32 %v2818, %v2837
      %v2858 = vadd.f32 %v2819, %v2837
      %v2859 = vadd.f32 %v2820, %v2837
      %v2860 = vadd.f32 %v2821, %v2837
      %v2861 = vadd.f32 %v2822, %v2837
      %v2862 = vadd.f32 %v2823, %v2837
      %v2863 = vadd.f32 %v2824, %v2837
      %v2864 = vadd.f32 %v2825, %v2837
      %v2865 = vadd.f32 %v2826, %v2837
      %v2866 = vadd.f32 %v2827, %v2837
      %v2867 = vadd.f32 %v2828, %v2837
      %v2868 = vadd.f32 %v2829, %v2837
      %v2869 = vadd.f32 %v2830, %v2837
      %v2870 = vadd.f32 %v2831, %v2837
      %v2871 = vmax.f32 %v2839, 0.0
      %v2872 = vmax.f32 %v2840, 0.0
      %v2873 = vmax.f32 %v2841, 0.0
      %v2874 = vmax.f32 %v2842, 0.0
      %v2875 = vmax.f32 %v2843, 0.0
      %v2876 = vmax.f32 %v2844, 0.0
      %v2877 = vmax.f32 %v2845, 0.0
      %v2878 = vmax.f32 %v2846, 0.0
      %v2879 = vmax.f32 %v2847, 0.0
      %v2880 = vmax.f32 %v2848, 0.0
      %v2881 = vmax.f32 %v2849, 0.0
      %v2882 = vmax.f32 %v2850, 0.0
      %v2883 = vmax.f32 %v2851, 0.0
      %v2884 = vmax.f32 %v2852, 0.0
      %v2885 = vmax.f32 %v2853, 0.0
      %v2886 = vmax.f32 %v2854, 0.0
      %v2887 = vmax.f32 %v2855, 0.0
      %v2888 = vmax.f32 %v2856, 0.0
      %v2889 = vmax.f32 %v2857, 0.0
      %v2890 = vmax.f32 %v2858, 0.0
      %v2891 = vmax.f32 %v2859, 0.0
      %v2892 = vmax.f32 %v2860, 0.0
      %v2893 = vmax.f32 %v2861, 0.0
      %v2894 = vmax.f32 %v2862, 0.0
      %v2895 = vmax.f32 %v2863, 0.0
      %v2896 = vmax.f32 %v2864, 0.0
      %v2897 = vmax.f32 %v2865, 0.0
      %v2898 = vmax.f32 %v2866, 0.0
      %v2899 = vmax.f32 %v2867, 0.0
      %v2900 = vmax.f32 %v2868, 0.0
      %v2901 = vmax.f32 %v2869, 0.0
      %v2902 = vmax.f32 %v2870, 0.0
      %2903 = vst.msk [vmem:[%s920 + $0x1] sm:$0xff] %vm864, %v2871
      %2904 = vst.msk [vmem:[%s920 + $0x9] sm:$0xff] %vm864, %v2872
      %2905 = vst.msk [vmem:[%s920 + $0x19] sm:$0xff] %vm864, %v2873
      %2906 = vst.msk [vmem:[%s920 + $0x21] sm:$0xff] %vm864, %v2874
      %2907 = vst.msk [vmem:[%s920 + $0x31] sm:$0xff] %vm864, %v2875
      %2908 = vst.msk [vmem:[%s920 + $0x39] sm:$0xff] %vm864, %v2876
      %2909 = vst.msk [vmem:[%s920 + $0x49] sm:$0xff] %vm864, %v2877
      %2910 = vst.msk [vmem:[%s920 + $0x51] sm:$0xff] %vm864, %v2878
      %2911 = vst.msk [vmem:[%s920 + $0x61] sm:$0xff] %vm864, %v2879
      %2912 = vst.msk [vmem:[%s920 + $0x69] sm:$0xff] %vm864, %v2880
      %2913 = vst.msk [vmem:[%s920 + $0x79] sm:$0xff] %vm864, %v2881
      %2914 = vst.msk [vmem:[%s920 + $0x81] sm:$0xff] %vm864, %v2882
      %2915 = vst.msk [vmem:[%s920 + $0x91] sm:$0xff] %vm864, %v2883
      %2916 = vst.msk [vmem:[%s920 + $0x99] sm:$0xff] %vm864, %v2884
      %2917 = vst.msk [vmem:[%s920 + $0xa9] sm:$0xff] %vm864, %v2885
      %2918 = vst.msk [vmem:[%s920 + $0xb1] sm:$0xff] %vm864, %v2886
      %2919 = vst.msk [vmem:[%s920 + $0xc1] sm:$0xff] %vm864, %v2887
      %2920 = vst.msk [vmem:[%s920 + $0xc9] sm:$0xff] %vm864, %v2888
      %2921 = vst.msk [vmem:[%s920 + $0xd9] sm:$0xff] %vm864, %v2889
      %2922 = vst.msk [vmem:[%s920 + $0xe1] sm:$0xff] %vm864, %v2890
      %2923 = vst.msk [vmem:[%s920 + $0xf1] sm:$0xff] %vm864, %v2891
      %2924 = vst.msk [vmem:[%s920 + $0xf9] sm:$0xff] %vm864, %v2892
      %2925 = vst.msk [vmem:[%s920 + $0x109] sm:$0xff] %vm864, %v2893
      %2926 = vst.msk [vmem:[%s920 + $0x111] sm:$0xff] %vm864, %v2894
      %2927 = vst.msk [vmem:[%s920 + $0x121] sm:$0xff] %vm864, %v2895
      %2928 = vst.msk [vmem:[%s920 + $0x129] sm:$0xff] %vm864, %v2896
      %2929 = vst.msk [vmem:[%s920 + $0x139] sm:$0xff] %vm864, %v2897
      %2930 = vst.msk [vmem:[%s920 + $0x141] sm:$0xff] %vm864, %v2898
      %2931 = vst.msk [vmem:[%s920 + $0x151] sm:$0xff] %vm864, %v2899
      %2932 = vst.msk [vmem:[%s920 + $0x159] sm:$0xff] %vm864, %v2900
      %2933 = vst.msk [vmem:[%s920 + $0x169] sm:$0xff] %vm864, %v2901
      %2934 = vst.msk [vmem:[%s920 + $0x171] sm:$0xff] %vm864, %v2902
      %v2935 = vld [vmem:[#allocation2] sm:$0xff]
      %v2936 = vld [vmem:[#allocation2 + $0x8] sm:$0xff]
      %v2937 = vld [vmem:[#allocation2 + $0x18] sm:$0xff]
      %v2938 = vld [vmem:[#allocation2 + $0x20] sm:$0xff]
      %v2939 = vld [vmem:[#allocation2 + $0x30] sm:$0xff]
      %v2940 = vld [vmem:[#allocation2 + $0x38] sm:$0xff]
      %v2941 = vld [vmem:[#allocation2 + $0x48] sm:$0xff]
      %v2942 = vld [vmem:[#allocation2 + $0x50] sm:$0xff]
      %v2943 = vld [vmem:[#allocation2 + $0x60] sm:$0xff]
      %v2944 = vld [vmem:[#allocation2 + $0x68] sm:$0xff]
      %v2945 = vld [vmem:[#allocation2 + $0x78] sm:$0xff]
      %v2946 = vld [vmem:[#allocation2 + $0x80] sm:$0xff]
      %v2947 = vld [vmem:[#allocation2 + $0x90] sm:$0xff]
      %v2948 = vld [vmem:[#allocation2 + $0x98] sm:$0xff]
      %v2949 = vld [vmem:[#allocation2 + $0xa8] sm:$0xff]
      %v2950 = vld [vmem:[#allocation2 + $0xb0] sm:$0xff]
      %v2951 = vld [vmem:[#allocation2 + $0xc0] sm:$0xff]
      %v2952 = vld [vmem:[#allocation2 + $0xc8] sm:$0xff]
      %v2953 = vld [vmem:[#allocation2 + $0xd8] sm:$0xff]
      %v2954 = vld [vmem:[#allocation2 + $0xe0] sm:$0xff]
      %v2955 = vld [vmem:[#allocation2 + $0xf0] sm:$0xff]
      %v2956 = vld [vmem:[#allocation2 + $0xf8] sm:$0xff]
      %v2957 = vld [vmem:[#allocation2 + $0x108] sm:$0xff]
      %v2958 = vld [vmem:[#allocation2 + $0x110] sm:$0xff]
      %v2959 = vld [vmem:[#allocation2 + $0x120] sm:$0xff]
      %v2960 = vld [vmem:[#allocation2 + $0x128] sm:$0xff]
      %v2961 = vld [vmem:[#allocation2 + $0x138] sm:$0xff]
      %v2962 = vld [vmem:[#allocation2 + $0x140] sm:$0xff]
      %v2963 = vld [vmem:[#allocation2 + $0x150] sm:$0xff]
      %v2964 = vld [vmem:[#allocation2 + $0x158] sm:$0xff]
      %v2965 = vld [vmem:[#allocation2 + $0x168] sm:$0xff]
      %v2966 = vld [vmem:[#allocation2 + $0x170] sm:$0xff]
      %v2967 = vld [vmem:[#allocation2 + $0x1] sm:$0xff]
      %v2968 = vld [vmem:[#allocation2 + $0x9] sm:$0xff]
      %v2969 = vld [vmem:[#allocation2 + $0x19] sm:$0xff]
      %v2970 = vld [vmem:[#allocation2 + $0x21] sm:$0xff]
      %v2971 = vld [vmem:[#allocation2 + $0x31] sm:$0xff]
      %v2972 = vld [vmem:[#allocation2 + $0x39] sm:$0xff]
      %v2973 = vld [vmem:[#allocation2 + $0x49] sm:$0xff]
      %v2974 = vld [vmem:[#allocation2 + $0x51] sm:$0xff]
      %v2975 = vld [vmem:[#allocation2 + $0x61] sm:$0xff]
      %v2976 = vld [vmem:[#allocation2 + $0x69] sm:$0xff]
      %v2977 = vld [vmem:[#allocation2 + $0x79] sm:$0xff]
      %v2978 = vld [vmem:[#allocation2 + $0x81] sm:$0xff]
      %v2979 = vld [vmem:[#allocation2 + $0x91] sm:$0xff]
      %v2980 = vld [vmem:[#allocation2 + $0x99] sm:$0xff]
      %v2981 = vld [vmem:[#allocation2 + $0xa9] sm:$0xff]
      %v2982 = vld [vmem:[#allocation2 + $0xb1] sm:$0xff]
      %v2983 = vld [vmem:[#allocation2 + $0xc1] sm:$0xff]
      %v2984 = vld [vmem:[#allocation2 + $0xc9] sm:$0xff]
      %v2985 = vld [vmem:[#allocation2 + $0xd9] sm:$0xff]
      %v2986 = vld [vmem:[#allocation2 + $0xe1] sm:$0xff]
      %v2987 = vld [vmem:[#allocation2 + $0xf1] sm:$0xff]
      %v2988 = vld [vmem:[#allocation2 + $0xf9] sm:$0xff]
      %v2989 = vld [vmem:[#allocation2 + $0x109] sm:$0xff]
      %v2990 = vld [vmem:[#allocation2 + $0x111] sm:$0xff]
      %v2991 = vld [vmem:[#allocation2 + $0x121] sm:$0xff]
      %v2992 = vld [vmem:[#allocation2 + $0x129] sm:$0xff]
      %v2993 = vld [vmem:[#allocation2 + $0x139] sm:$0xff]
      %v2994 = vld [vmem:[#allocation2 + $0x141] sm:$0xff]
      %v2995 = vld [vmem:[#allocation2 + $0x151] sm:$0xff]
      %v2996 = vld [vmem:[#allocation2 + $0x159] sm:$0xff]
      %v2997 = vld [vmem:[#allocation2 + $0x169] sm:$0xff]
      %v2998 = vld [vmem:[#allocation2 + $0x171] sm:$0xff]
      %v2999 = vld [vmem:[#allocation2 + $0x2] sm:$0xff]
      %v3000 = vld [vmem:[#allocation2 + $0xa] sm:$0xff]
      %v3001 = vld [vmem:[#allocation2 + $0x1a] sm:$0xff]
      %v3002 = vld [vmem:[#allocation2 + $0x22] sm:$0xff]
      %v3003 = vld [vmem:[#allocation2 + $0x32] sm:$0xff]
      %v3004 = vld [vmem:[#allocation2 + $0x3a] sm:$0xff]
      %v3005 = vld [vmem:[#allocation2 + $0x4a] sm:$0xff]
      %v3006 = vld [vmem:[#allocation2 + $0x52] sm:$0xff]
      %v3007 = vld [vmem:[#allocation2 + $0x62] sm:$0xff]
      %v3008 = vld [vmem:[#allocation2 + $0x6a] sm:$0xff]
      %v3009 = vld [vmem:[#allocation2 + $0x7a] sm:$0xff]
      %v3010 = vld [vmem:[#allocation2 + $0x82] sm:$0xff]
      %v3011 = vld [vmem:[#allocation2 + $0x92] sm:$0xff]
      %v3012 = vld [vmem:[#allocation2 + $0x9a] sm:$0xff]
      %v3013 = vld [vmem:[#allocation2 + $0xaa] sm:$0xff]
      %v3014 = vld [vmem:[#allocation2 + $0xb2] sm:$0xff]
      %v3015 = vld [vmem:[#allocation2 + $0xc2] sm:$0xff]
      %v3016 = vld [vmem:[#allocation2 + $0xca] sm:$0xff]
      %v3017 = vld [vmem:[#allocation2 + $0xda] sm:$0xff]
      %v3018 = vld [vmem:[#allocation2 + $0xe2] sm:$0xff]
      %v3019 = vld [vmem:[#allocation2 + $0xf2] sm:$0xff]
      %v3020 = vld [vmem:[#allocation2 + $0xfa] sm:$0xff]
      %v3021 = vld [vmem:[#allocation2 + $0x10a] sm:$0xff]
      %v3022 = vld [vmem:[#allocation2 + $0x112] sm:$0xff]
      %v3023 = vld [vmem:[#allocation2 + $0x122] sm:$0xff]
      %v3024 = vld [vmem:[#allocation2 + $0x12a] sm:$0xff]
      %v3025 = vld [vmem:[#allocation2 + $0x13a] sm:$0xff]
      %v3026 = vld [vmem:[#allocation2 + $0x142] sm:$0xff]
      %v3027 = vld [vmem:[#allocation2 + $0x152] sm:$0xff]
      %v3028 = vld [vmem:[#allocation2 + $0x15a] sm:$0xff]
      %v3029 = vld [vmem:[#allocation2 + $0x16a] sm:$0xff]
      %v3030 = vld [vmem:[#allocation2 + $0x172] sm:$0xff]
      %v3031 = vld [vmem:[%s920] sm:$0xff]
      %v3032 = vld [vmem:[%s920 + $0x8] sm:$0xff]
      %v3033 = vld [vmem:[%s920 + $0x18] sm:$0xff]
      %v3034 = vld [vmem:[%s920 + $0x20] sm:$0xff]
      %v3035 = vld [vmem:[%s920 + $0x30] sm:$0xff]
      %v3036 = vld [vmem:[%s920 + $0x38] sm:$0xff]
      %v3037 = vld [vmem:[%s920 + $0x48] sm:$0xff]
      %v3038 = vld [vmem:[%s920 + $0x50] sm:$0xff]
      %v3039 = vld [vmem:[%s920 + $0x60] sm:$0xff]
      %v3040 = vld [vmem:[%s920 + $0x68] sm:$0xff]
      %v3041 = vld [vmem:[%s920 + $0x78] sm:$0xff]
      %v3042 = vld [vmem:[%s920 + $0x80] sm:$0xff]
      %v3043 = vld [vmem:[%s920 + $0x90] sm:$0xff]
      %v3044 = vld [vmem:[%s920 + $0x98] sm:$0xff]
      %v3045 = vld [vmem:[%s920 + $0xa8] sm:$0xff]
      %v3046 = vld [vmem:[%s920 + $0xb0] sm:$0xff]
      %v3047 = vld [vmem:[%s920 + $0xc0] sm:$0xff]
      %v3048 = vld [vmem:[%s920 + $0xc8] sm:$0xff]
      %v3049 = vld [vmem:[%s920 + $0xd8] sm:$0xff]
      %v3050 = vld [vmem:[%s920 + $0xe0] sm:$0xff]
      %v3051 = vld [vmem:[%s920 + $0xf0] sm:$0xff]
      %v3052 = vld [vmem:[%s920 + $0xf8] sm:$0xff]
      %v3053 = vld [vmem:[%s920 + $0x108] sm:$0xff]
      %v3054 = vld [vmem:[%s920 + $0x110] sm:$0xff]
      %v3055 = vld [vmem:[%s920 + $0x120] sm:$0xff]
      %v3056 = vld [vmem:[%s920 + $0x128] sm:$0xff]
      %v3057 = vld [vmem:[%s920 + $0x138] sm:$0xff]
      %v3058 = vld [vmem:[%s920 + $0x140] sm:$0xff]
      %v3059 = vld [vmem:[%s920 + $0x150] sm:$0xff]
      %v3060 = vld [vmem:[%s920 + $0x158] sm:$0xff]
      %v3061 = vld [vmem:[%s920 + $0x168] sm:$0xff]
      %v3062 = vld [vmem:[%s920 + $0x170] sm:$0xff]
      %v3063 = vld [vmem:[%s920 + $0x1] sm:$0xff]
      %v3064 = vld [vmem:[%s920 + $0x9] sm:$0xff]
      %v3065 = vld [vmem:[%s920 + $0x19] sm:$0xff]
      %v3066 = vld [vmem:[%s920 + $0x21] sm:$0xff]
      %v3067 = vld [vmem:[%s920 + $0x31] sm:$0xff]
      %v3068 = vld [vmem:[%s920 + $0x39] sm:$0xff]
      %v3069 = vld [vmem:[%s920 + $0x49] sm:$0xff]
      %v3070 = vld [vmem:[%s920 + $0x51] sm:$0xff]
      %v3071 = vld [vmem:[%s920 + $0x61] sm:$0xff]
      %v3072 = vld [vmem:[%s920 + $0x69] sm:$0xff]
      %v3073 = vld [vmem:[%s920 + $0x79] sm:$0xff]
      %v3074 = vld [vmem:[%s920 + $0x81] sm:$0xff]
      %v3075 = vld [vmem:[%s920 + $0x91] sm:$0xff]
      %v3076 = vld [vmem:[%s920 + $0x99] sm:$0xff]
      %v3077 = vld [vmem:[%s920 + $0xa9] sm:$0xff]
      %v3078 = vld [vmem:[%s920 + $0xb1] sm:$0xff]
      %v3079 = vld [vmem:[%s920 + $0xc1] sm:$0xff]
      %v3080 = vld [vmem:[%s920 + $0xc9] sm:$0xff]
      %v3081 = vld [vmem:[%s920 + $0xd9] sm:$0xff]
      %v3082 = vld [vmem:[%s920 + $0xe1] sm:$0xff]
      %v3083 = vld [vmem:[%s920 + $0xf1] sm:$0xff]
      %v3084 = vld [vmem:[%s920 + $0xf9] sm:$0xff]
      %v3085 = vld [vmem:[%s920 + $0x109] sm:$0xff]
      %v3086 = vld [vmem:[%s920 + $0x111] sm:$0xff]
      %v3087 = vld [vmem:[%s920 + $0x121] sm:$0xff]
      %v3088 = vld [vmem:[%s920 + $0x129] sm:$0xff]
      %v3089 = vld [vmem:[%s920 + $0x139] sm:$0xff]
      %v3090 = vld [vmem:[%s920 + $0x141] sm:$0xff]
      %v3091 = vld [vmem:[%s920 + $0x151] sm:$0xff]
      %v3092 = vld [vmem:[%s920 + $0x159] sm:$0xff]
      %v3093 = vld [vmem:[%s920 + $0x169] sm:$0xff]
      %v3094 = vld [vmem:[%s920 + $0x171] sm:$0xff]
      %v3095 = vld [vmem:[%s920 + $0x2] sm:$0xff]
      %v3096 = vld [vmem:[%s920 + $0xa] sm:$0xff]
      %v3097 = vld [vmem:[%s920 + $0x1a] sm:$0xff]
      %v3098 = vld [vmem:[%s920 + $0x22] sm:$0xff]
      %v3099 = vld [vmem:[%s920 + $0x32] sm:$0xff]
      %v3100 = vld [vmem:[%s920 + $0x3a] sm:$0xff]
      %v3101 = vld [vmem:[%s920 + $0x4a] sm:$0xff]
      %v3102 = vld [vmem:[%s920 + $0x52] sm:$0xff]
      %v3103 = vld [vmem:[%s920 + $0x62] sm:$0xff]
      %v3104 = vld [vmem:[%s920 + $0x6a] sm:$0xff]
      %v3105 = vld [vmem:[%s920 + $0x7a] sm:$0xff]
      %v3106 = vld [vmem:[%s920 + $0x82] sm:$0xff]
      %v3107 = vld [vmem:[%s920 + $0x92] sm:$0xff]
      %v3108 = vld [vmem:[%s920 + $0x9a] sm:$0xff]
      %v3109 = vld [vmem:[%s920 + $0xaa] sm:$0xff]
      %v3110 = vld [vmem:[%s920 + $0xb2] sm:$0xff]
      %v3111 = vld [vmem:[%s920 + $0xc2] sm:$0xff]
      %v3112 = vld [vmem:[%s920 + $0xca] sm:$0xff]
      %v3113 = vld [vmem:[%s920 + $0xda] sm:$0xff]
      %v3114 = vld [vmem:[%s920 + $0xe2] sm:$0xff]
      %v3115 = vld [vmem:[%s920 + $0xf2] sm:$0xff]
      %v3116 = vld [vmem:[%s920 + $0xfa] sm:$0xff]
      %v3117 = vld [vmem:[%s920 + $0x10a] sm:$0xff]
      %v3118 = vld [vmem:[%s920 + $0x112] sm:$0xff]
      %v3119 = vld [vmem:[%s920 + $0x122] sm:$0xff]
      %v3120 = vld [vmem:[%s920 + $0x12a] sm:$0xff]
      %v3121 = vld [vmem:[%s920 + $0x13a] sm:$0xff]
      %v3122 = vld [vmem:[%s920 + $0x142] sm:$0xff]
      %v3123 = vld [vmem:[%s920 + $0x152] sm:$0xff]
      %v3124 = vld [vmem:[%s920 + $0x15a] sm:$0xff]
      %v3125 = vld [vmem:[%s920 + $0x16a] sm:$0xff]
      %v3126 = vld [vmem:[%s920 + $0x172] sm:$0xff]
      %v3127 = vld [vmem:[%s1145] sm:$0xff]
      %v3128 = vld [vmem:[%s1145 + $0x8] sm:$0xff]
      %v3129 = vld [vmem:[%s1145 + $0x18] sm:$0xff]
      %v3130 = vld [vmem:[%s1145 + $0x20] sm:$0xff]
      %v3131 = vld [vmem:[%s1145 + $0x30] sm:$0xff]
      %v3132 = vld [vmem:[%s1145 + $0x38] sm:$0xff]
      %v3133 = vld [vmem:[%s1145 + $0x48] sm:$0xff]
      %v3134 = vld [vmem:[%s1145 + $0x50] sm:$0xff]
      %v3135 = vld [vmem:[%s1145 + $0x60] sm:$0xff]
      %v3136 = vld [vmem:[%s1145 + $0x68] sm:$0xff]
      %v3137 = vld [vmem:[%s1145 + $0x78] sm:$0xff]
      %v3138 = vld [vmem:[%s1145 + $0x80] sm:$0xff]
      %v3139 = vld [vmem:[%s1145 + $0x90] sm:$0xff]
      %v3140 = vld [vmem:[%s1145 + $0x98] sm:$0xff]
      %v3141 = vld [vmem:[%s1145 + $0xa8] sm:$0xff]
      %v3142 = vld [vmem:[%s1145 + $0xb0] sm:$0xff]
      %v3143 = vld [vmem:[%s1145 + $0xc0] sm:$0xff]
      %v3144 = vld [vmem:[%s1145 + $0xc8] sm:$0xff]
      %v3145 = vld [vmem:[%s1145 + $0xd8] sm:$0xff]
      %v3146 = vld [vmem:[%s1145 + $0xe0] sm:$0xff]
      %v3147 = vld [vmem:[%s1145 + $0xf0] sm:$0xff]
      %v3148 = vld [vmem:[%s1145 + $0xf8] sm:$0xff]
      %v3149 = vld [vmem:[%s1145 + $0x108] sm:$0xff]
      %v3150 = vld [vmem:[%s1145 + $0x110] sm:$0xff]
      %v3151 = vld [vmem:[%s1145 + $0x120] sm:$0xff]
      %v3152 = vld [vmem:[%s1145 + $0x128] sm:$0xff]
      %v3153 = vld [vmem:[%s1145 + $0x138] sm:$0xff]
      %v3154 = vld [vmem:[%s1145 + $0x140] sm:$0xff]
      %v3155 = vld [vmem:[%s1145 + $0x150] sm:$0xff]
      %v3156 = vld [vmem:[%s1145 + $0x158] sm:$0xff]
      %v3157 = vld [vmem:[%s1145 + $0x168] sm:$0xff]
      %v3158 = vld [vmem:[%s1145 + $0x170] sm:$0xff]
      %v3159 = vld [vmem:[%s1145 + $0x1] sm:$0xff]
      %v3160 = vld [vmem:[%s1145 + $0x9] sm:$0xff]
      %v3161 = vld [vmem:[%s1145 + $0x19] sm:$0xff]
      %v3162 = vld [vmem:[%s1145 + $0x21] sm:$0xff]
      %v3163 = vld [vmem:[%s1145 + $0x31] sm:$0xff]
      %v3164 = vld [vmem:[%s1145 + $0x39] sm:$0xff]
      %v3165 = vld [vmem:[%s1145 + $0x49] sm:$0xff]
      %v3166 = vld [vmem:[%s1145 + $0x51] sm:$0xff]
      %v3167 = vld [vmem:[%s1145 + $0x61] sm:$0xff]
      %v3168 = vld [vmem:[%s1145 + $0x69] sm:$0xff]
      %v3169 = vld [vmem:[%s1145 + $0x79] sm:$0xff]
      %v3170 = vld [vmem:[%s1145 + $0x81] sm:$0xff]
      %v3171 = vld [vmem:[%s1145 + $0x91] sm:$0xff]
      %v3172 = vld [vmem:[%s1145 + $0x99] sm:$0xff]
      %v3173 = vld [vmem:[%s1145 + $0xa9] sm:$0xff]
      %v3174 = vld [vmem:[%s1145 + $0xb1] sm:$0xff]
      %v3175 = vld [vmem:[%s1145 + $0xc1] sm:$0xff]
      %v3176 = vld [vmem:[%s1145 + $0xc9] sm:$0xff]
      %v3177 = vld [vmem:[%s1145 + $0xd9] sm:$0xff]
      %v3178 = vld [vmem:[%s1145 + $0xe1] sm:$0xff]
      %v3179 = vld [vmem:[%s1145 + $0xf1] sm:$0xff]
      %v3180 = vld [vmem:[%s1145 + $0xf9] sm:$0xff]
      %v3181 = vld [vmem:[%s1145 + $0x109] sm:$0xff]
      %v3182 = vld [vmem:[%s1145 + $0x111] sm:$0xff]
      %v3183 = vld [vmem:[%s1145 + $0x121] sm:$0xff]
      %v3184 = vld [vmem:[%s1145 + $0x129] sm:$0xff]
      %v3185 = vld [vmem:[%s1145 + $0x139] sm:$0xff]
      %v3186 = vld [vmem:[%s1145 + $0x141] sm:$0xff]
      %v3187 = vld [vmem:[%s1145 + $0x151] sm:$0xff]
      %v3188 = vld [vmem:[%s1145 + $0x159] sm:$0xff]
      %v3189 = vld [vmem:[%s1145 + $0x169] sm:$0xff]
      %v3190 = vld [vmem:[%s1145 + $0x171] sm:$0xff]
      %v3191 = vld [vmem:[%s1145 + $0x2] sm:$0xff]
      %v3192 = vld [vmem:[%s1145 + $0xa] sm:$0xff]
      %v3193 = vld [vmem:[%s1145 + $0x1a] sm:$0xff]
      %v3194 = vld [vmem:[%s1145 + $0x22] sm:$0xff]
      %v3195 = vld [vmem:[%s1145 + $0x32] sm:$0xff]
      %v3196 = vld [vmem:[%s1145 + $0x3a] sm:$0xff]
      %v3197 = vld [vmem:[%s1145 + $0x4a] sm:$0xff]
      %v3198 = vld [vmem:[%s1145 + $0x52] sm:$0xff]
      %v3199 = vld [vmem:[%s1145 + $0x62] sm:$0xff]
      %v3200 = vld [vmem:[%s1145 + $0x6a] sm:$0xff]
      %v3201 = vld [vmem:[%s1145 + $0x7a] sm:$0xff]
      %v3202 = vld [vmem:[%s1145 + $0x82] sm:$0xff]
      %v3203 = vld [vmem:[%s1145 + $0x92] sm:$0xff]
      %v3204 = vld [vmem:[%s1145 + $0x9a] sm:$0xff]
      %v3205 = vld [vmem:[%s1145 + $0xaa] sm:$0xff]
      %v3206 = vld [vmem:[%s1145 + $0xb2] sm:$0xff]
      %v3207 = vld [vmem:[%s1145 + $0xc2] sm:$0xff]
      %v3208 = vld [vmem:[%s1145 + $0xca] sm:$0xff]
      %v3209 = vld [vmem:[%s1145 + $0xda] sm:$0xff]
      %v3210 = vld [vmem:[%s1145 + $0xe2] sm:$0xff]
      %v3211 = vld [vmem:[%s1145 + $0xf2] sm:$0xff]
      %v3212 = vld [vmem:[%s1145 + $0xfa] sm:$0xff]
      %v3213 = vld [vmem:[%s1145 + $0x10a] sm:$0xff]
      %v3214 = vld [vmem:[%s1145 + $0x112] sm:$0xff]
      %v3215 = vld [vmem:[%s1145 + $0x122] sm:$0xff]
      %v3216 = vld [vmem:[%s1145 + $0x12a] sm:$0xff]
      %v3217 = vld [vmem:[%s1145 + $0x13a] sm:$0xff]
      %v3218 = vld [vmem:[%s1145 + $0x142] sm:$0xff]
      %v3219 = vld [vmem:[%s1145 + $0x152] sm:$0xff]
      %v3220 = vld [vmem:[%s1145 + $0x15a] sm:$0xff]
      %v3221 = vld [vmem:[%s1145 + $0x16a] sm:$0xff]
      %v3222 = vld [vmem:[%s1145 + $0x172] sm:$0xff]
      %3255 = vrot.lane.b32.xlu0 %v2967, 16
      %v3256 = vpop.permute.xlu0 %3255
      %3257 = vrot.lane.b32.xlu0 %v2968, 16
      %v3258 = vpop.permute.xlu0 %3257
      %3259 = vrot.lane.b32.xlu0 %v2969, 16
      %v3260 = vpop.permute.xlu0 %3259
      %3261 = vrot.lane.b32.xlu0 %v2970, 16
      %v3262 = vpop.permute.xlu0 %3261
      %3263 = vrot.lane.b32.xlu0 %v2971, 16
      %v3264 = vpop.permute.xlu0 %3263
      %3265 = vrot.lane.b32.xlu0 %v2972, 16
      %v3266 = vpop.permute.xlu0 %3265
      %3267 = vrot.lane.b32.xlu0 %v2973, 16
      %v3268 = vpop.permute.xlu0 %3267
      %3269 = vrot.lane.b32.xlu0 %v2974, 16
      %v3270 = vpop.permute.xlu0 %3269
      %3271 = vrot.lane.b32.xlu0 %v2975, 16
      %v3272 = vpop.permute.xlu0 %3271
      %3273 = vrot.lane.b32.xlu0 %v2976, 16
      %v3274 = vpop.permute.xlu0 %3273
      %3275 = vrot.lane.b32.xlu0 %v2977, 16
      %v3276 = vpop.permute.xlu0 %3275
      %3277 = vrot.lane.b32.xlu0 %v2978, 16
      %v3278 = vpop.permute.xlu0 %3277
      %3279 = vrot.lane.b32.xlu0 %v2979, 16
      %v3280 = vpop.permute.xlu0 %3279
      %3281 = vrot.lane.b32.xlu0 %v2980, 16
      %v3282 = vpop.permute.xlu0 %3281
      %3283 = vrot.lane.b32.xlu0 %v2981, 16
      %v3284 = vpop.permute.xlu0 %3283
      %3285 = vrot.lane.b32.xlu0 %v2982, 16
      %v3286 = vpop.permute.xlu0 %3285
      %3287 = vrot.lane.b32.xlu0 %v2983, 16
      %v3288 = vpop.permute.xlu0 %3287
      %3289 = vrot.lane.b32.xlu0 %v2984, 16
      %v3290 = vpop.permute.xlu0 %3289
      %3291 = vrot.lane.b32.xlu0 %v2985, 16
      %v3292 = vpop.permute.xlu0 %3291
      %3293 = vrot.lane.b32.xlu0 %v2986, 16
      %v3294 = vpop.permute.xlu0 %3293
      %3295 = vrot.lane.b32.xlu0 %v2987, 16
      %v3296 = vpop.permute.xlu0 %3295
      %3297 = vrot.lane.b32.xlu0 %v2988, 16
      %v3298 = vpop.permute.xlu0 %3297
      %3299 = vrot.lane.b32.xlu0 %v2989, 16
      %v3300 = vpop.permute.xlu0 %3299
      %3301 = vrot.lane.b32.xlu0 %v2990, 16
      %v3302 = vpop.permute.xlu0 %3301
      %3303 = vrot.lane.b32.xlu0 %v2991, 16
      %v3304 = vpop.permute.xlu0 %3303
      %3305 = vrot.lane.b32.xlu0 %v2992, 16
      %v3306 = vpop.permute.xlu0 %3305
      %3307 = vrot.lane.b32.xlu0 %v2993, 16
      %v3308 = vpop.permute.xlu0 %3307
      %3309 = vrot.lane.b32.xlu0 %v2994, 16
      %v3310 = vpop.permute.xlu0 %3309
      %3311 = vrot.lane.b32.xlu0 %v2995, 16
      %v3312 = vpop.permute.xlu0 %3311
      %3313 = vrot.lane.b32.xlu0 %v2996, 16
      %v3314 = vpop.permute.xlu0 %3313
      %3315 = vrot.lane.b32.xlu0 %v2997, 16
      %v3316 = vpop.permute.xlu0 %3315
      %3317 = vrot.lane.b32.xlu0 %v2998, 16
      %v3318 = vpop.permute.xlu0 %3317
      %3383 = vrot.lane.b32.xlu0 %v2999, 32
      %v3384 = vpop.permute.xlu0 %3383
      %3385 = vrot.lane.b32.xlu0 %v3000, 32
      %v3386 = vpop.permute.xlu0 %3385
      %3387 = vrot.lane.b32.xlu0 %v3001, 32
      %v3388 = vpop.permute.xlu0 %3387
      %3389 = vrot.lane.b32.xlu0 %v3002, 32
      %v3390 = vpop.permute.xlu0 %3389
      %3391 = vrot.lane.b32.xlu0 %v3003, 32
      %v3392 = vpop.permute.xlu0 %3391
      %3393 = vrot.lane.b32.xlu0 %v3004, 32
      %v3394 = vpop.permute.xlu0 %3393
      %3395 = vrot.lane.b32.xlu0 %v3005, 32
      %v3396 = vpop.permute.xlu0 %3395
      %3397 = vrot.lane.b32.xlu0 %v3006, 32
      %v3398 = vpop.permute.xlu0 %3397
      %3399 = vrot.lane.b32.xlu0 %v3007, 32
      %v3400 = vpop.permute.xlu0 %3399
      %3401 = vrot.lane.b32.xlu0 %v3008, 32
      %v3402 = vpop.permute.xlu0 %3401
      %3403 = vrot.lane.b32.xlu0 %v3009, 32
      %v3404 = vpop.permute.xlu0 %3403
      %3405 = vrot.lane.b32.xlu0 %v3010, 32
      %v3406 = vpop.permute.xlu0 %3405
      %3407 = vrot.lane.b32.xlu0 %v3011, 32
      %v3408 = vpop.permute.xlu0 %3407
      %3409 = vrot.lane.b32.xlu0 %v3012, 32
      %v3410 = vpop.permute.xlu0 %3409
      %3411 = vrot.lane.b32.xlu0 %v3013, 32
      %v3412 = vpop.permute.xlu0 %3411
      %3413 = vrot.lane.b32.xlu0 %v3014, 32
      %v3414 = vpop.permute.xlu0 %3413
      %3415 = vrot.lane.b32.xlu0 %v3015, 32
      %v3416 = vpop.permute.xlu0 %3415
      %3417 = vrot.lane.b32.xlu0 %v3016, 32
      %v3418 = vpop.permute.xlu0 %3417
      %3419 = vrot.lane.b32.xlu0 %v3017, 32
      %v3420 = vpop.permute.xlu0 %3419
      %3421 = vrot.lane.b32.xlu0 %v3018, 32
      %v3422 = vpop.permute.xlu0 %3421
      %3423 = vrot.lane.b32.xlu0 %v3019, 32
      %v3424 = vpop.permute.xlu0 %3423
      %3425 = vrot.lane.b32.xlu0 %v3020, 32
      %v3426 = vpop.permute.xlu0 %3425
      %3427 = vrot.lane.b32.xlu0 %v3021, 32
      %v3428 = vpop.permute.xlu0 %3427
      %3429 = vrot.lane.b32.xlu0 %v3022, 32
      %v3430 = vpop.permute.xlu0 %3429
      %3431 = vrot.lane.b32.xlu0 %v3023, 32
      %v3432 = vpop.permute.xlu0 %3431
      %3433 = vrot.lane.b32.xlu0 %v3024, 32
      %v3434 = vpop.permute.xlu0 %3433
      %3435 = vrot.lane.b32.xlu0 %v3025, 32
      %v3436 = vpop.permute.xlu0 %3435
      %3437 = vrot.lane.b32.xlu0 %v3026, 32
      %v3438 = vpop.permute.xlu0 %3437
      %3439 = vrot.lane.b32.xlu0 %v3027, 32
      %v3440 = vpop.permute.xlu0 %3439
      %3441 = vrot.lane.b32.xlu0 %v3028, 32
      %v3442 = vpop.permute.xlu0 %3441
      %3443 = vrot.lane.b32.xlu0 %v3029, 32
      %v3444 = vpop.permute.xlu0 %3443
      %3445 = vrot.lane.b32.xlu0 %v3030, 32
      %v3446 = vpop.permute.xlu0 %3445
      %3511 = vrot.lane.b32.xlu0 %v3031, 48
      %v3512 = vpop.permute.xlu0 %3511
      %3513 = vrot.lane.b32.xlu0 %v3032, 48
      %v3514 = vpop.permute.xlu0 %3513
      %3515 = vrot.lane.b32.xlu0 %v3033, 48
      %v3516 = vpop.permute.xlu0 %3515
      %3517 = vrot.lane.b32.xlu0 %v3034, 48
      %v3518 = vpop.permute.xlu0 %3517
      %3519 = vrot.lane.b32.xlu0 %v3035, 48
      %v3520 = vpop.permute.xlu0 %3519
      %3521 = vrot.lane.b32.xlu0 %v3036, 48
      %v3522 = vpop.permute.xlu0 %3521
      %3523 = vrot.lane.b32.xlu0 %v3037, 48
      %v3524 = vpop.permute.xlu0 %3523
      %3525 = vrot.lane.b32.xlu0 %v3038, 48
      %v3526 = vpop.permute.xlu0 %3525
      %3527 = vrot.lane.b32.xlu0 %v3039, 48
      %v3528 = vpop.permute.xlu0 %3527
      %3529 = vrot.lane.b32.xlu0 %v3040, 48
      %v3530 = vpop.permute.xlu0 %3529
      %3531 = vrot.lane.b32.xlu0 %v3041, 48
      %v3532 = vpop.permute.xlu0 %3531
      %3533 = vrot.lane.b32.xlu0 %v3042, 48
      %v3534 = vpop.permute.xlu0 %3533
      %3535 = vrot.lane.b32.xlu0 %v3043, 48
      %v3536 = vpop.permute.xlu0 %3535
      %3537 = vrot.lane.b32.xlu0 %v3044, 48
      %v3538 = vpop.permute.xlu0 %3537
      %3539 = vrot.lane.b32.xlu0 %v3045, 48
      %v3540 = vpop.permute.xlu0 %3539
      %3541 = vrot.lane.b32.xlu0 %v3046, 48
      %v3542 = vpop.permute.xlu0 %3541
      %3543 = vrot.lane.b32.xlu0 %v3047, 48
      %v3544 = vpop.permute.xlu0 %3543
      %3545 = vrot.lane.b32.xlu0 %v3048, 48
      %v3546 = vpop.permute.xlu0 %3545
      %3547 = vrot.lane.b32.xlu0 %v3049, 48
      %v3548 = vpop.permute.xlu0 %3547
      %3549 = vrot.lane.b32.xlu0 %v3050, 48
      %v3550 = vpop.permute.xlu0 %3549
      %3551 = vrot.lane.b32.xlu0 %v3051, 48
      %v3552 = vpop.permute.xlu0 %3551
      %3553 = vrot.lane.b32.xlu0 %v3052, 48
      %v3554 = vpop.permute.xlu0 %3553
      %3555 = vrot.lane.b32.xlu0 %v3053, 48
      %v3556 = vpop.permute.xlu0 %3555
      %3557 = vrot.lane.b32.xlu0 %v3054, 48
      %v3558 = vpop.permute.xlu0 %3557
      %3559 = vrot.lane.b32.xlu0 %v3055, 48
      %v3560 = vpop.permute.xlu0 %3559
      %3561 = vrot.lane.b32.xlu0 %v3056, 48
      %v3562 = vpop.permute.xlu0 %3561
      %3563 = vrot.lane.b32.xlu0 %v3057, 48
      %v3564 = vpop.permute.xlu0 %3563
      %3565 = vrot.lane.b32.xlu0 %v3058, 48
      %v3566 = vpop.permute.xlu0 %3565
      %3567 = vrot.lane.b32.xlu0 %v3059, 48
      %v3568 = vpop.permute.xlu0 %3567
      %3569 = vrot.lane.b32.xlu0 %v3060, 48
      %v3570 = vpop.permute.xlu0 %3569
      %3571 = vrot.lane.b32.xlu0 %v3061, 48
      %v3572 = vpop.permute.xlu0 %3571
      %3573 = vrot.lane.b32.xlu0 %v3062, 48
      %v3574 = vpop.permute.xlu0 %3573
      %3639 = vrot.lane.b32.xlu0 %v3063, 64
      %v3640 = vpop.permute.xlu0 %3639
      %3641 = vrot.lane.b32.xlu0 %v3064, 64
      %v3642 = vpop.permute.xlu0 %3641
      %3643 = vrot.lane.b32.xlu0 %v3065, 64
      %v3644 = vpop.permute.xlu0 %3643
      %3645 = vrot.lane.b32.xlu0 %v3066, 64
      %v3646 = vpop.permute.xlu0 %3645
      %3647 = vrot.lane.b32.xlu0 %v3067, 64
      %v3648 = vpop.permute.xlu0 %3647
      %3649 = vrot.lane.b32.xlu0 %v3068, 64
      %v3650 = vpop.permute.xlu0 %3649
      %3651 = vrot.lane.b32.xlu0 %v3069, 64
      %v3652 = vpop.permute.xlu0 %3651
      %3653 = vrot.lane.b32.xlu0 %v3070, 64
      %v3654 = vpop.permute.xlu0 %3653
      %3655 = vrot.lane.b32.xlu0 %v3071, 64
      %v3656 = vpop.permute.xlu0 %3655
      %3657 = vrot.lane.b32.xlu0 %v3072, 64
      %v3658 = vpop.permute.xlu0 %3657
      %3659 = vrot.lane.b32.xlu0 %v3073, 64
      %v3660 = vpop.permute.xlu0 %3659
      %3661 = vrot.lane.b32.xlu0 %v3074, 64
      %v3662 = vpop.permute.xlu0 %3661
      %3663 = vrot.lane.b32.xlu0 %v3075, 64
      %v3664 = vpop.permute.xlu0 %3663
      %3665 = vrot.lane.b32.xlu0 %v3076, 64
      %v3666 = vpop.permute.xlu0 %3665
      %3667 = vrot.lane.b32.xlu0 %v3077, 64
      %v3668 = vpop.permute.xlu0 %3667
      %3669 = vrot.lane.b32.xlu0 %v3078, 64
      %v3670 = vpop.permute.xlu0 %3669
      %3671 = vrot.lane.b32.xlu0 %v3079, 64
      %v3672 = vpop.permute.xlu0 %3671
      %3673 = vrot.lane.b32.xlu0 %v3080, 64
      %v3674 = vpop.permute.xlu0 %3673
      %3675 = vrot.lane.b32.xlu0 %v3081, 64
      %v3676 = vpop.permute.xlu0 %3675
      %3677 = vrot.lane.b32.xlu0 %v3082, 64
      %v3678 = vpop.permute.xlu0 %3677
      %3679 = vrot.lane.b32.xlu0 %v3083, 64
      %v3680 = vpop.permute.xlu0 %3679
      %3681 = vrot.lane.b32.xlu0 %v3084, 64
      %v3682 = vpop.permute.xlu0 %3681
      %3683 = vrot.lane.b32.xlu0 %v3085, 64
      %v3684 = vpop.permute.xlu0 %3683
      %3685 = vrot.lane.b32.xlu0 %v3086, 64
      %v3686 = vpop.permute.xlu0 %3685
      %3687 = vrot.lane.b32.xlu0 %v3087, 64
      %v3688 = vpop.permute.xlu0 %3687
      %3689 = vrot.lane.b32.xlu0 %v3088, 64
      %v3690 = vpop.permute.xlu0 %3689
      %3691 = vrot.lane.b32.xlu0 %v3089, 64
      %v3692 = vpop.permute.xlu0 %3691
      %3693 = vrot.lane.b32.xlu0 %v3090, 64
      %v3694 = vpop.permute.xlu0 %3693
      %3695 = vrot.lane.b32.xlu0 %v3091, 64
      %v3696 = vpop.permute.xlu0 %3695
      %3697 = vrot.lane.b32.xlu0 %v3092, 64
      %v3698 = vpop.permute.xlu0 %3697
      %3699 = vrot.lane.b32.xlu0 %v3093, 64
      %v3700 = vpop.permute.xlu0 %3699
      %3701 = vrot.lane.b32.xlu0 %v3094, 64
      %v3702 = vpop.permute.xlu0 %3701
      %3767 = vrot.lane.b32.xlu0 %v3095, 80
      %v3768 = vpop.permute.xlu0 %3767
      %3769 = vrot.lane.b32.xlu0 %v3096, 80
      %v3770 = vpop.permute.xlu0 %3769
      %3771 = vrot.lane.b32.xlu0 %v3097, 80
      %v3772 = vpop.permute.xlu0 %3771
      %3773 = vrot.lane.b32.xlu0 %v3098, 80
      %v3774 = vpop.permute.xlu0 %3773
      %3775 = vrot.lane.b32.xlu0 %v3099, 80
      %v3776 = vpop.permute.xlu0 %3775
      %3777 = vrot.lane.b32.xlu0 %v3100, 80
      %v3778 = vpop.permute.xlu0 %3777
      %3779 = vrot.lane.b32.xlu0 %v3101, 80
      %v3780 = vpop.permute.xlu0 %3779
      %3781 = vrot.lane.b32.xlu0 %v3102, 80
      %v3782 = vpop.permute.xlu0 %3781
      %3783 = vrot.lane.b32.xlu0 %v3103, 80
      %v3784 = vpop.permute.xlu0 %3783
      %3785 = vrot.lane.b32.xlu0 %v3104, 80
      %v3786 = vpop.permute.xlu0 %3785
      %3787 = vrot.lane.b32.xlu0 %v3105, 80
      %v3788 = vpop.permute.xlu0 %3787
      %3789 = vrot.lane.b32.xlu0 %v3106, 80
      %v3790 = vpop.permute.xlu0 %3789
      %3791 = vrot.lane.b32.xlu0 %v3107, 80
      %v3792 = vpop.permute.xlu0 %3791
      %3793 = vrot.lane.b32.xlu0 %v3108, 80
      %v3794 = vpop.permute.xlu0 %3793
      %3795 = vrot.lane.b32.xlu0 %v3109, 80
      %v3796 = vpop.permute.xlu0 %3795
      %3797 = vrot.lane.b32.xlu0 %v3110, 80
      %v3798 = vpop.permute.xlu0 %3797
      %3799 = vrot.lane.b32.xlu0 %v3111, 80
      %v3800 = vpop.permute.xlu0 %3799
      %3801 = vrot.lane.b32.xlu0 %v3112, 80
      %v3802 = vpop.permute.xlu0 %3801
      %3803 = vrot.lane.b32.xlu0 %v3113, 80
      %v3804 = vpop.permute.xlu0 %3803
      %3805 = vrot.lane.b32.xlu0 %v3114, 80
      %v3806 = vpop.permute.xlu0 %3805
      %3807 = vrot.lane.b32.xlu0 %v3115, 80
      %v3808 = vpop.permute.xlu0 %3807
      %3809 = vrot.lane.b32.xlu0 %v3116, 80
      %v3810 = vpop.permute.xlu0 %3809
      %3811 = vrot.lane.b32.xlu0 %v3117, 80
      %v3812 = vpop.permute.xlu0 %3811
      %3813 = vrot.lane.b32.xlu0 %v3118, 80
      %v3814 = vpop.permute.xlu0 %3813
      %3815 = vrot.lane.b32.xlu0 %v3119, 80
      %v3816 = vpop.permute.xlu0 %3815
      %3817 = vrot.lane.b32.xlu0 %v3120, 80
      %v3818 = vpop.permute.xlu0 %3817
      %3819 = vrot.lane.b32.xlu0 %v3121, 80
      %v3820 = vpop.permute.xlu0 %3819
      %3821 = vrot.lane.b32.xlu0 %v3122, 80
      %v3822 = vpop.permute.xlu0 %3821
      %3823 = vrot.lane.b32.xlu0 %v3123, 80
      %v3824 = vpop.permute.xlu0 %3823
      %3825 = vrot.lane.b32.xlu0 %v3124, 80
      %v3826 = vpop.permute.xlu0 %3825
      %3827 = vrot.lane.b32.xlu0 %v3125, 80
      %v3828 = vpop.permute.xlu0 %3827
      %3829 = vrot.lane.b32.xlu0 %v3126, 80
      %v3830 = vpop.permute.xlu0 %3829
      %3895 = vrot.lane.b32.xlu0 %v3127, 96
      %v3896 = vpop.permute.xlu0 %3895
      %3897 = vrot.lane.b32.xlu0 %v3128, 96
      %v3898 = vpop.permute.xlu0 %3897
      %3899 = vrot.lane.b32.xlu0 %v3129, 96
      %v3900 = vpop.permute.xlu0 %3899
      %3901 = vrot.lane.b32.xlu0 %v3130, 96
      %v3902 = vpop.permute.xlu0 %3901
      %3903 = vrot.lane.b32.xlu0 %v3131, 96
      %v3904 = vpop.permute.xlu0 %3903
      %3905 = vrot.lane.b32.xlu0 %v3132, 96
      %v3906 = vpop.permute.xlu0 %3905
      %3907 = vrot.lane.b32.xlu0 %v3133, 96
      %v3908 = vpop.permute.xlu0 %3907
      %3909 = vrot.lane.b32.xlu0 %v3134, 96
      %v3910 = vpop.permute.xlu0 %3909
      %3911 = vrot.lane.b32.xlu0 %v3135, 96
      %v3912 = vpop.permute.xlu0 %3911
      %3913 = vrot.lane.b32.xlu0 %v3136, 96
      %v3914 = vpop.permute.xlu0 %3913
      %3915 = vrot.lane.b32.xlu0 %v3137, 96
      %v3916 = vpop.permute.xlu0 %3915
      %3917 = vrot.lane.b32.xlu0 %v3138, 96
      %v3918 = vpop.permute.xlu0 %3917
      %3919 = vrot.lane.b32.xlu0 %v3139, 96
      %v3920 = vpop.permute.xlu0 %3919
      %3921 = vrot.lane.b32.xlu0 %v3140, 96
      %v3922 = vpop.permute.xlu0 %3921
      %3923 = vrot.lane.b32.xlu0 %v3141, 96
      %v3924 = vpop.permute.xlu0 %3923
      %3925 = vrot.lane.b32.xlu0 %v3142, 96
      %v3926 = vpop.permute.xlu0 %3925
      %3927 = vrot.lane.b32.xlu0 %v3143, 96
      %v3928 = vpop.permute.xlu0 %3927
      %3929 = vrot.lane.b32.xlu0 %v3144, 96
      %v3930 = vpop.permute.xlu0 %3929
      %3931 = vrot.lane.b32.xlu0 %v3145, 96
      %v3932 = vpop.permute.xlu0 %3931
      %3933 = vrot.lane.b32.xlu0 %v3146, 96
      %v3934 = vpop.permute.xlu0 %3933
      %3935 = vrot.lane.b32.xlu0 %v3147, 96
      %v3936 = vpop.permute.xlu0 %3935
      %3937 = vrot.lane.b32.xlu0 %v3148, 96
      %v3938 = vpop.permute.xlu0 %3937
      %3939 = vrot.lane.b32.xlu0 %v3149, 96
      %v3940 = vpop.permute.xlu0 %3939
      %3941 = vrot.lane.b32.xlu0 %v3150, 96
      %v3942 = vpop.permute.xlu0 %3941
      %3943 = vrot.lane.b32.xlu0 %v3151, 96
      %v3944 = vpop.permute.xlu0 %3943
      %3945 = vrot.lane.b32.xlu0 %v3152, 96
      %v3946 = vpop.permute.xlu0 %3945
      %3947 = vrot.lane.b32.xlu0 %v3153, 96
      %v3948 = vpop.permute.xlu0 %3947
      %3949 = vrot.lane.b32.xlu0 %v3154, 96
      %v3950 = vpop.permute.xlu0 %3949
      %3951 = vrot.lane.b32.xlu0 %v3155, 96
      %v3952 = vpop.permute.xlu0 %3951
      %3953 = vrot.lane.b32.xlu0 %v3156, 96
      %v3954 = vpop.permute.xlu0 %3953
      %3955 = vrot.lane.b32.xlu0 %v3157, 96
      %v3956 = vpop.permute.xlu0 %3955
      %3957 = vrot.lane.b32.xlu0 %v3158, 96
      %v3958 = vpop.permute.xlu0 %3957
      %4023 = vrot.lane.b32.xlu0 %v3159, 112
      %v4024 = vpop.permute.xlu0 %4023
      %4025 = vrot.lane.b32.xlu0 %v3160, 112
      %v4026 = vpop.permute.xlu0 %4025
      %4027 = vrot.lane.b32.xlu0 %v3161, 112
      %v4028 = vpop.permute.xlu0 %4027
      %4029 = vrot.lane.b32.xlu0 %v3162, 112
      %v4030 = vpop.permute.xlu0 %4029
      %4031 = vrot.lane.b32.xlu0 %v3163, 112
      %v4032 = vpop.permute.xlu0 %4031
      %4033 = vrot.lane.b32.xlu0 %v3164, 112
      %v4034 = vpop.permute.xlu0 %4033
      %4035 = vrot.lane.b32.xlu0 %v3165, 112
      %v4036 = vpop.permute.xlu0 %4035
      %4037 = vrot.lane.b32.xlu0 %v3166, 112
      %v4038 = vpop.permute.xlu0 %4037
      %4039 = vrot.lane.b32.xlu0 %v3167, 112
      %v4040 = vpop.permute.xlu0 %4039
      %4041 = vrot.lane.b32.xlu0 %v3168, 112
      %v4042 = vpop.permute.xlu0 %4041
      %4043 = vrot.lane.b32.xlu0 %v3169, 112
      %v4044 = vpop.permute.xlu0 %4043
      %4045 = vrot.lane.b32.xlu0 %v3170, 112
      %v4046 = vpop.permute.xlu0 %4045
      %4047 = vrot.lane.b32.xlu0 %v3171, 112
      %v4048 = vpop.permute.xlu0 %4047
      %4049 = vrot.lane.b32.xlu0 %v3172, 112
      %v4050 = vpop.permute.xlu0 %4049
      %4051 = vrot.lane.b32.xlu0 %v3173, 112
      %v4052 = vpop.permute.xlu0 %4051
      %4053 = vrot.lane.b32.xlu0 %v3174, 112
      %v4054 = vpop.permute.xlu0 %4053
      %4055 = vrot.lane.b32.xlu0 %v3175, 112
      %v4056 = vpop.permute.xlu0 %4055
      %4057 = vrot.lane.b32.xlu0 %v3176, 112
      %v4058 = vpop.permute.xlu0 %4057
      %4059 = vrot.lane.b32.xlu0 %v3177, 112
      %v4060 = vpop.permute.xlu0 %4059
      %4061 = vrot.lane.b32.xlu0 %v3178, 112
      %v4062 = vpop.permute.xlu0 %4061
      %4063 = vrot.lane.b32.xlu0 %v3179, 112
      %v4064 = vpop.permute.xlu0 %4063
      %4065 = vrot.lane.b32.xlu0 %v3180, 112
      %v4066 = vpop.permute.xlu0 %4065
      %4067 = vrot.lane.b32.xlu0 %v3181, 112
      %v4068 = vpop.permute.xlu0 %4067
      %4069 = vrot.lane.b32.xlu0 %v3182, 112
      %v4070 = vpop.permute.xlu0 %4069
      %4071 = vrot.lane.b32.xlu0 %v3183, 112
      %v4072 = vpop.permute.xlu0 %4071
      %4073 = vrot.lane.b32.xlu0 %v3184, 112
      %v4074 = vpop.permute.xlu0 %4073
      %4075 = vrot.lane.b32.xlu0 %v3185, 112
      %v4076 = vpop.permute.xlu0 %4075
      %4077 = vrot.lane.b32.xlu0 %v3186, 112
      %v4078 = vpop.permute.xlu0 %4077
      %4079 = vrot.lane.b32.xlu0 %v3187, 112
      %v4080 = vpop.permute.xlu0 %4079
      %4081 = vrot.lane.b32.xlu0 %v3188, 112
      %v4082 = vpop.permute.xlu0 %4081
      %4083 = vrot.lane.b32.xlu0 %v3189, 112
      %v4084 = vpop.permute.xlu0 %4083
      %4085 = vrot.lane.b32.xlu0 %v3190, 112
      %v4086 = vpop.permute.xlu0 %4085
      %v4119 = vsel %vm864, %v2935, %v3256
      %v4120 = vsel %vm864, %v2936, %v3258
      %v4121 = vsel %vm864, %v2937, %v3260
      %v4122 = vsel %vm864, %v2938, %v3262
      %v4123 = vsel %vm864, %v2939, %v3264
      %v4124 = vsel %vm864, %v2940, %v3266
      %v4125 = vsel %vm864, %v2941, %v3268
      %v4126 = vsel %vm864, %v2942, %v3270
      %v4127 = vsel %vm864, %v2943, %v3272
      %v4128 = vsel %vm864, %v2944, %v3274
      %v4129 = vsel %vm864, %v2945, %v3276
      %v4130 = vsel %vm864, %v2946, %v3278
      %v4131 = vsel %vm864, %v2947, %v3280
      %v4132 = vsel %vm864, %v2948, %v3282
      %v4133 = vsel %vm864, %v2949, %v3284
      %v4134 = vsel %vm864, %v2950, %v3286
      %v4135 = vsel %vm864, %v2951, %v3288
      %v4136 = vsel %vm864, %v2952, %v3290
      %v4137 = vsel %vm864, %v2953, %v3292
      %v4138 = vsel %vm864, %v2954, %v3294
      %v4139 = vsel %vm864, %v2955, %v3296
      %v4140 = vsel %vm864, %v2956, %v3298
      %v4141 = vsel %vm864, %v2957, %v3300
      %v4142 = vsel %vm864, %v2958, %v3302
      %v4143 = vsel %vm864, %v2959, %v3304
      %v4144 = vsel %vm864, %v2960, %v3306
      %v4145 = vsel %vm864, %v2961, %v3308
      %v4146 = vsel %vm864, %v2962, %v3310
      %v4147 = vsel %vm864, %v2963, %v3312
      %v4148 = vsel %vm864, %v2964, %v3314
      %v4149 = vsel %vm864, %v2965, %v3316
      %v4150 = vsel %vm864, %v2966, %v3318
      %v4151 = vsel %vm2363, %v4119, %v3384
      %v4152 = vsel %vm2363, %v4120, %v3386
      %v4153 = vsel %vm2363, %v4121, %v3388
      %v4154 = vsel %vm2363, %v4122, %v3390
      %v4155 = vsel %vm2363, %v4123, %v3392
      %v4156 = vsel %vm2363, %v4124, %v3394
      %v4157 = vsel %vm2363, %v4125, %v3396
      %v4158 = vsel %vm2363, %v4126, %v3398
      %v4159 = vsel %vm2363, %v4127, %v3400
      %v4160 = vsel %vm2363, %v4128, %v3402
      %v4161 = vsel %vm2363, %v4129, %v3404
      %v4162 = vsel %vm2363, %v4130, %v3406
      %v4163 = vsel %vm2363, %v4131, %v3408
      %v4164 = vsel %vm2363, %v4132, %v3410
      %v4165 = vsel %vm2363, %v4133, %v3412
      %v4166 = vsel %vm2363, %v4134, %v3414
      %v4167 = vsel %vm2363, %v4135, %v3416
      %v4168 = vsel %vm2363, %v4136, %v3418
      %v4169 = vsel %vm2363, %v4137, %v3420
      %v4170 = vsel %vm2363, %v4138, %v3422
      %v4171 = vsel %vm2363, %v4139, %v3424
      %v4172 = vsel %vm2363, %v4140, %v3426
      %v4173 = vsel %vm2363, %v4141, %v3428
      %v4174 = vsel %vm2363, %v4142, %v3430
      %v4175 = vsel %vm2363, %v4143, %v3432
      %v4176 = vsel %vm2363, %v4144, %v3434
      %v4177 = vsel %vm2363, %v4145, %v3436
      %v4178 = vsel %vm2363, %v4146, %v3438
      %v4179 = vsel %vm2363, %v4147, %v3440
      %v4180 = vsel %vm2363, %v4148, %v3442
      %v4181 = vsel %vm2363, %v4149, %v3444
      %v4182 = vsel %vm2363, %v4150, %v3446
      %v4183 = vsel %vm2429, %v4151, %v3512
      %v4184 = vsel %vm2429, %v4152, %v3514
      %v4185 = vsel %vm2429, %v4153, %v3516
      %v4186 = vsel %vm2429, %v4154, %v3518
      %v4187 = vsel %vm2429, %v4155, %v3520
      %v4188 = vsel %vm2429, %v4156, %v3522
      %v4189 = vsel %vm2429, %v4157, %v3524
      %v4190 = vsel %vm2429, %v4158, %v3526
      %v4191 = vsel %vm2429, %v4159, %v3528
      %v4192 = vsel %vm2429, %v4160, %v3530
      %v4193 = vsel %vm2429, %v4161, %v3532
      %v4194 = vsel %vm2429, %v4162, %v3534
      %v4195 = vsel %vm2429, %v4163, %v3536
      %v4196 = vsel %vm2429, %v4164, %v3538
      %v4197 = vsel %vm2429, %v4165, %v3540
      %v4198 = vsel %vm2429, %v4166, %v3542
      %v4199 = vsel %vm2429, %v4167, %v3544
      %v4200 = vsel %vm2429, %v4168, %v3546
      %v4201 = vsel %vm2429, %v4169, %v3548
      %v4202 = vsel %vm2429, %v4170, %v3550
      %v4203 = vsel %vm2429, %v4171, %v3552
      %v4204 = vsel %vm2429, %v4172, %v3554
      %v4205 = vsel %vm2429, %v4173, %v3556
      %v4206 = vsel %vm2429, %v4174, %v3558
      %v4207 = vsel %vm2429, %v4175, %v3560
      %v4208 = vsel %vm2429, %v4176, %v3562
      %v4209 = vsel %vm2429, %v4177, %v3564
      %v4210 = vsel %vm2429, %v4178, %v3566
      %v4211 = vsel %vm2429, %v4179, %v3568
      %v4212 = vsel %vm2429, %v4180, %v3570
      %v4213 = vsel %vm2429, %v4181, %v3572
      %v4214 = vsel %vm2429, %v4182, %v3574
      %v4215 = vsel %vm2495, %v4183, %v3640
      %v4216 = vsel %vm2495, %v4184, %v3642
      %v4217 = vsel %vm2495, %v4185, %v3644
      %v4218 = vsel %vm2495, %v4186, %v3646
      %v4219 = vsel %vm2495, %v4187, %v3648
      %v4220 = vsel %vm2495, %v4188, %v3650
      %v4221 = vsel %vm2495, %v4189, %v3652
      %v4222 = vsel %vm2495, %v4190, %v3654
      %v4223 = vsel %vm2495, %v4191, %v3656
      %v4224 = vsel %vm2495, %v4192, %v3658
      %v4225 = vsel %vm2495, %v4193, %v3660
      %v4226 = vsel %vm2495, %v4194, %v3662
      %v4227 = vsel %vm2495, %v4195, %v3664
      %v4228 = vsel %vm2495, %v4196, %v3666
      %v4229 = vsel %vm2495, %v4197, %v3668
      %v4230 = vsel %vm2495, %v4198, %v3670
      %v4231 = vsel %vm2495, %v4199, %v3672
      %v4232 = vsel %vm2495, %v4200, %v3674
      %v4233 = vsel %vm2495, %v4201, %v3676
      %v4234 = vsel %vm2495, %v4202, %v3678
      %v4235 = vsel %vm2495, %v4203, %v3680
      %v4236 = vsel %vm2495, %v4204, %v3682
      %v4237 = vsel %vm2495, %v4205, %v3684
      %v4238 = vsel %vm2495, %v4206, %v3686
      %v4239 = vsel %vm2495, %v4207, %v3688
      %v4240 = vsel %vm2495, %v4208, %v3690
      %v4241 = vsel %vm2495, %v4209, %v3692
      %v4242 = vsel %vm2495, %v4210, %v3694
      %v4243 = vsel %vm2495, %v4211, %v3696
      %v4244 = vsel %vm2495, %v4212, %v3698
      %v4245 = vsel %vm2495, %v4213, %v3700
      %v4246 = vsel %vm2495, %v4214, %v3702
      %vm4247 = vcmask 654336
      %v4248 = vsel %vm4247, %v4215, %v3768
      %v4249 = vsel %vm4247, %v4216, %v3770
      %v4250 = vsel %vm4247, %v4217, %v3772
      %v4251 = vsel %vm4247, %v4218, %v3774
      %v4252 = vsel %vm4247, %v4219, %v3776
      %v4253 = vsel %vm4247, %v4220, %v3778
      %v4254 = vsel %vm4247, %v4221, %v3780
      %v4255 = vsel %vm4247, %v4222, %v3782
      %v4256 = vsel %vm4247, %v4223, %v3784
      %v4257 = vsel %vm4247, %v4224, %v3786
      %v4258 = vsel %vm4247, %v4225, %v3788
      %v4259 = vsel %vm4247, %v4226, %v3790
      %v4260 = vsel %vm4247, %v4227, %v3792
      %v4261 = vsel %vm4247, %v4228, %v3794
      %v4262 = vsel %vm4247, %v4229, %v3796
      %v4263 = vsel %vm4247, %v4230, %v3798
      %v4264 = vsel %vm4247, %v4231, %v3800
      %v4265 = vsel %vm4247, %v4232, %v3802
      %v4266 = vsel %vm4247, %v4233, %v3804
      %v4267 = vsel %vm4247, %v4234, %v3806
      %v4268 = vsel %vm4247, %v4235, %v3808
      %v4269 = vsel %vm4247, %v4236, %v3810
      %v4270 = vsel %vm4247, %v4237, %v3812
      %v4271 = vsel %vm4247, %v4238, %v3814
      %v4272 = vsel %vm4247, %v4239, %v3816
      %v4273 = vsel %vm4247, %v4240, %v3818
      %v4274 = vsel %vm4247, %v4241, %v3820
      %v4275 = vsel %vm4247, %v4242, %v3822
      %v4276 = vsel %vm4247, %v4243, %v3824
      %v4277 = vsel %vm4247, %v4244, %v3826
      %v4278 = vsel %vm4247, %v4245, %v3828
      %v4279 = vsel %vm4247, %v4246, %v3830
      %vm4280 = vcmask 785408
      %v4281 = vsel %vm4280, %v4248, %v3896
      %v4282 = vsel %vm4280, %v4249, %v3898
      %v4283 = vsel %vm4280, %v4250, %v3900
      %v4284 = vsel %vm4280, %v4251, %v3902
      %v4285 = vsel %vm4280, %v4252, %v3904
      %v4286 = vsel %vm4280, %v4253, %v3906
      %v4287 = vsel %vm4280, %v4254, %v3908
      %v4288 = vsel %vm4280, %v4255, %v3910
      %v4289 = vsel %vm4280, %v4256, %v3912
      %v4290 = vsel %vm4280, %v4257, %v3914
      %v4291 = vsel %vm4280, %v4258, %v3916
      %v4292 = vsel %vm4280, %v4259, %v3918
      %v4293 = vsel %vm4280, %v4260, %v3920
      %v4294 = vsel %vm4280, %v4261, %v3922
      %v4295 = vsel %vm4280, %v4262, %v3924
      %v4296 = vsel %vm4280, %v4263, %v3926
      %v4297 = vsel %vm4280, %v4264, %v3928
      %v4298 = vsel %vm4280, %v4265, %v3930
      %v4299 = vsel %vm4280, %v4266, %v3932
      %v4300 = vsel %vm4280, %v4267, %v3934
      %v4301 = vsel %vm4280, %v4268, %v3936
      %v4302 = vsel %vm4280, %v4269, %v3938
      %v4303 = vsel %vm4280, %v4270, %v3940
      %v4304 = vsel %vm4280, %v4271, %v3942
      %v4305 = vsel %vm4280, %v4272, %v3944
      %v4306 = vsel %vm4280, %v4273, %v3946
      %v4307 = vsel %vm4280, %v4274, %v3948
      %v4308 = vsel %vm4280, %v4275, %v3950
      %v4309 = vsel %vm4280, %v4276, %v3952
      %v4310 = vsel %vm4280, %v4277, %v3954
      %v4311 = vsel %vm4280, %v4278, %v3956
      %v4312 = vsel %vm4280, %v4279, %v3958
      %vm4313 = vcmask 916480
      %v4314 = vsel %vm4313, %v4281, %v4024
      %v4315 = vsel %vm4313, %v4282, %v4026
      %v4316 = vsel %vm4313, %v4283, %v4028
      %v4317 = vsel %vm4313, %v4284, %v4030
      %v4318 = vsel %vm4313, %v4285, %v4032
      %v4319 = vsel %vm4313, %v4286, %v4034
      %v4320 = vsel %vm4313, %v4287, %v4036
      %v4321 = vsel %vm4313, %v4288, %v4038
      %v4322 = vsel %vm4313, %v4289, %v4040
      %v4323 = vsel %vm4313, %v4290, %v4042
      %v4324 = vsel %vm4313, %v4291, %v4044
      %v4325 = vsel %vm4313, %v4292, %v4046
      %v4326 = vsel %vm4313, %v4293, %v4048
      %v4327 = vsel %vm4313, %v4294, %v4050
      %v4328 = vsel %vm4313, %v4295, %v4052
      %v4329 = vsel %vm4313, %v4296, %v4054
      %v4330 = vsel %vm4313, %v4297, %v4056
      %v4331 = vsel %vm4313, %v4298, %v4058
      %v4332 = vsel %vm4313, %v4299, %v4060
      %v4333 = vsel %vm4313, %v4300, %v4062
      %v4334 = vsel %vm4313, %v4301, %v4064
      %v4335 = vsel %vm4313, %v4302, %v4066
      %v4336 = vsel %vm4313, %v4303, %v4068
      %v4337 = vsel %vm4313, %v4304, %v4070
      %v4338 = vsel %vm4313, %v4305, %v4072
      %v4339 = vsel %vm4313, %v4306, %v4074
      %v4340 = vsel %vm4313, %v4307, %v4076
      %v4341 = vsel %vm4313, %v4308, %v4078
      %v4342 = vsel %vm4313, %v4309, %v4080
      %v4343 = vsel %vm4313, %v4310, %v4082
      %v4344 = vsel %vm4313, %v4311, %v4084
      %v4345 = vsel %vm4313, %v4312, %v4086
      %v4346 = vpack.c.bf16 %v4315, %v4314
      %v4347 = vpack.c.bf16 %v3192, %v3191
      %v4348 = vpack.c.bf16 %v4317, %v4316
      %v4349 = vpack.c.bf16 %v3194, %v3193
      %v4350 = vpack.c.bf16 %v4319, %v4318
      %v4351 = vpack.c.bf16 %v3196, %v3195
      %v4352 = vpack.c.bf16 %v4321, %v4320
      %v4353 = vpack.c.bf16 %v3198, %v3197
      %v4354 = vpack.c.bf16 %v4323, %v4322
      %v4355 = vpack.c.bf16 %v3200, %v3199
      %v4356 = vpack.c.bf16 %v4325, %v4324
      %v4357 = vpack.c.bf16 %v3202, %v3201
      %v4358 = vpack.c.bf16 %v4327, %v4326
      %v4359 = vpack.c.bf16 %v3204, %v3203
      %v4360 = vpack.c.bf16 %v4329, %v4328
      %v4361 = vpack.c.bf16 %v3206, %v3205
      %v4362 = vpack.c.bf16 %v4331, %v4330
      %v4363 = vpack.c.bf16 %v3208, %v3207
      %v4364 = vpack.c.bf16 %v4333, %v4332
      %v4365 = vpack.c.bf16 %v3210, %v3209
      %v4366 = vpack.c.bf16 %v4335, %v4334
      %v4367 = vpack.c.bf16 %v3212, %v3211
      %v4368 = vpack.c.bf16 %v4337, %v4336
      %v4369 = vpack.c.bf16 %v3214, %v3213
      %v4370 = vpack.c.bf16 %v4339, %v4338
      %v4371 = vpack.c.bf16 %v3216, %v3215
      %v4372 = vpack.c.bf16 %v4341, %v4340
      %v4373 = vpack.c.bf16 %v3218, %v3217
      %v4374 = vpack.c.bf16 %v4343, %v4342
      %v4375 = vpack.c.bf16 %v3220, %v3219
      %v4376 = vpack.c.bf16 %v4345, %v4344
      %v4377 = vpack.c.bf16 %v3222, %v3221
      %v4378 = vld [vmem:[%s4] sm:$0xf]
      %v4379 = vld [vmem:[%s4 + $0x4] sm:$0xf]
      %v4380 = vld [vmem:[%s4 + $0x8] sm:$0xf]
      %v4381 = vld [vmem:[%s4 + $0xc] sm:$0xf]
      %v4382 = vld [vmem:[%s4 + $0x10] sm:$0xf]
      %v4383 = vld [vmem:[%s4 + $0x14] sm:$0xf]
      %v4384 = vld [vmem:[%s4 + $0x18] sm:$0xf]
      %v4385 = vld [vmem:[%s4 + $0x1c] sm:$0xf]
      %v4386 = vld [vmem:[%s4 + $0x20] sm:$0xf]
      %v4387 = vld [vmem:[%s4 + $0x24] sm:$0xf]
      %v4388 = vld [vmem:[%s4 + $0x28] sm:$0xf]
      %v4389 = vld [vmem:[%s4 + $0x2c] sm:$0xf]
      %v4390 = vld [vmem:[%s4 + $0x30] sm:$0xf]
      %v4391 = vld [vmem:[%s4 + $0x34] sm:$0xf]
      %v4392 = vld [vmem:[%s4 + $0x38] sm:$0xf]
      %v4393 = vld [vmem:[%s4 + $0x3c] sm:$0xf]
      %v4394 = vld [vmem:[%s4 + $0x40] sm:$0xf]
      %v4395 = vld [vmem:[%s4 + $0x44] sm:$0xf]
      %v4414 = vunpack.c.l.b16 %v4378
      %v4415 = vunpack.c.l.b16 %v4379
      %v4416 = vunpack.c.l.b16 %v4380
      %v4417 = vunpack.c.l.b16 %v4381
      %v4418 = vunpack.c.l.b16 %v4382
      %v4419 = vunpack.c.l.b16 %v4383
      %v4420 = vunpack.c.l.b16 %v4384
      %v4421 = vunpack.c.l.b16 %v4385
      %v4422 = vunpack.c.l.b16 %v4386
      %v4423 = vunpack.c.l.b16 %v4387
      %v4424 = vunpack.c.l.b16 %v4388
      %v4425 = vunpack.c.l.b16 %v4389
      %v4426 = vunpack.c.l.b16 %v4390
      %v4427 = vunpack.c.l.b16 %v4391
      %v4428 = vunpack.c.l.b16 %v4392
      %v4429 = vunpack.c.l.b16 %v4393
      %v4430 = vunpack.c.l.b16 %v4394
      %v4431 = vunpack.c.l.b16 %v4395
      %v4432 = vpack.c.b16 %v4415, %v4414
      %v4433 = vpack.c.b16 %v4417, %v4416
      %v4434 = vpack.c.b16 %v4419, %v4418
      %v4435 = vpack.c.b16 %v4421, %v4420
      %v4436 = vpack.c.b16 %v4423, %v4422
      %v4437 = vpack.c.b16 %v4425, %v4424
      %v4438 = vpack.c.b16 %v4427, %v4426
      %v4439 = vpack.c.b16 %v4429, %v4428
      %v4440 = vpack.c.b16 %v4431, %v4430
      %v4451 = vsel %vm864, %v4347, 0
      %v4454 = vsel %vm864, %v4349, 0
      %v4457 = vsel %vm864, %v4351, 0
      %v4460 = vsel %vm864, %v4353, 0
      %v4463 = vsel %vm864, %v4355, 0
      %v4466 = vsel %vm864, %v4357, 0
      %v4469 = vsel %vm864, %v4359, 0
      %v4472 = vsel %vm864, %v4361, 0
      %v4475 = vsel %vm864, %v4363, 0
      %v4478 = vsel %vm864, %v4365, 0
      %v4481 = vsel %vm864, %v4367, 0
      %v4484 = vsel %vm864, %v4369, 0
      %v4487 = vsel %vm864, %v4371, 0
      %v4490 = vsel %vm864, %v4373, 0
      %v4493 = vsel %vm864, %v4375, 0
      %v4496 = vsel %vm864, %v4377, 0
      %4498 = vmatprep.subr.bf16.mxu0 0
      %4499 = vmatpush1.bf16.msra.mxu0 %v4439
      %4500 = vmatprep.subr.bf16.mxu0 0
      %4501 = vmatpush1.bf16.msra.mxu0 %v4438
      %4502 = vmatprep.subr.bf16.mxu0 0
      %4503 = vmatpush1.bf16.msra.mxu0 %v4437
      %4504 = vmatprep.subr.bf16.mxu0 0
      %4505 = vmatpush1.bf16.msra.mxu0 %v4436
      %4506 = vmatprep.subr.bf16.mxu0 0
      %4507 = vmatpush1.bf16.msra.mxu0 %v4435
      %4508 = vmatprep.subr.bf16.mxu0 0
      %4509 = vmatpush1.bf16.msra.mxu0 %v4434
      %4510 = vmatprep.subr.bf16.mxu0 0
      %4511 = vmatpush1.bf16.msra.mxu0 %v4433
      %4512 = vmatprep.subr.bf16.mxu0 0
      %4513 = vmatpush1.bf16.msra.mxu0 %v4432
      %4514 = vmatprep.subr.bf16.mxu0 0
      %4515 = vmatpush2.bf16.msra.mxu0 0
      %4516 = vmatprep.subr.bf16.mxu0 0
      %4517 = vmatpush2.bf16.msra.mxu0 0
      %4518 = vmatprep.subr.bf16.mxu0 0
      %4519 = vmatpush2.bf16.msra.mxu0 0
      %4520 = vmatprep.subr.bf16.mxu0 0
      %4521 = vmatpush2.bf16.msra.mxu0 0
      %4522 = vmatprep.subr.bf16.mxu0 0
      %4523 = vmatpush2.bf16.msra.mxu0 0
      %4524 = vmatprep.subr.bf16.mxu0 0
      %4525 = vmatpush2.bf16.msra.mxu0 0
      %4526 = vmatprep.subr.bf16.mxu0 0
      %4527 = vmatpush2.bf16.msra.mxu0 0
      %4528 = vmatprep.subr.bf16.mxu0 0
      %4529 = vmatpush2.bf16.msra.mxu0 %v4440
      %4530 = vmatprep.mubr.bf16.mxu0 %v4451
      %4531 = vmatmul.mubr.bf16.gmra.mxu0 %v4346
      %v4532 = vpop.f32.mrf.mxu0
      %v4533 = vadd.f32 0.0, %v4532
      %v4534 = vpop.f32.mrf.mxu0
      %v4535 = vpop.f32.mrf.mxu0
      %v4536 = vadd.f32 0.0, %v4535
      %v4537 = vpop.f32.mrf.mxu0
      %4538 = vmatprep.mubr.bf16.mxu0 %v4454
      %4539 = vmatmul.mubr.bf16.gmra.mxu0 %v4348
      %v4540 = vpop.f32.mrf.mxu0
      %v4541 = vadd.f32 0.0, %v4540
      %v4542 = vpop.f32.mrf.mxu0
      %v4543 = vpop.f32.mrf.mxu0
      %v4544 = vadd.f32 0.0, %v4543
      %v4545 = vpop.f32.mrf.mxu0
      %4546 = vmatprep.mubr.bf16.mxu0 %v4457
      %4547 = vmatmul.mubr.bf16.gmra.mxu0 %v4350
      %v4548 = vpop.f32.mrf.mxu0
      %v4549 = vadd.f32 0.0, %v4548
      %v4550 = vpop.f32.mrf.mxu0
      %v4551 = vpop.f32.mrf.mxu0
      %v4552 = vadd.f32 0.0, %v4551
      %v4553 = vpop.f32.mrf.mxu0
      %4554 = vmatprep.mubr.bf16.mxu0 %v4460
      %4555 = vmatmul.mubr.bf16.gmra.mxu0 %v4352
      %v4556 = vpop.f32.mrf.mxu0
      %v4557 = vadd.f32 0.0, %v4556
      %v4558 = vpop.f32.mrf.mxu0
      %v4559 = vpop.f32.mrf.mxu0
      %v4560 = vadd.f32 0.0, %v4559
      %v4561 = vpop.f32.mrf.mxu0
      %4562 = vmatprep.mubr.bf16.mxu0 %v4463
      %4563 = vmatmul.mubr.bf16.gmra.mxu0 %v4354
      %v4564 = vpop.f32.mrf.mxu0
      %v4565 = vadd.f32 0.0, %v4564
      %v4566 = vpop.f32.mrf.mxu0
      %v4567 = vpop.f32.mrf.mxu0
      %v4568 = vadd.f32 0.0, %v4567
      %v4569 = vpop.f32.mrf.mxu0
      %4570 = vmatprep.mubr.bf16.mxu0 %v4466
      %4571 = vmatmul.mubr.bf16.gmra.mxu0 %v4356
      %v4572 = vpop.f32.mrf.mxu0
      %v4573 = vadd.f32 0.0, %v4572
      %v4574 = vpop.f32.mrf.mxu0
      %v4575 = vpop.f32.mrf.mxu0
      %v4576 = vadd.f32 0.0, %v4575
      %v4577 = vpop.f32.mrf.mxu0
      %4578 = vmatprep.mubr.bf16.mxu0 %v4469
      %4579 = vmatmul.mubr.bf16.gmra.mxu0 %v4358
      %v4580 = vpop.f32.mrf.mxu0
      %v4581 = vadd.f32 0.0, %v4580
      %v4582 = vpop.f32.mrf.mxu0
      %v4583 = vpop.f32.mrf.mxu0
      %v4584 = vadd.f32 0.0, %v4583
      %v4585 = vpop.f32.mrf.mxu0
      %4586 = vmatprep.mubr.bf16.mxu0 %v4472
      %4587 = vmatmul.mubr.bf16.gmra.mxu0 %v4360
      %v4588 = vpop.f32.mrf.mxu0
      %v4589 = vadd.f32 0.0, %v4588
      %v4590 = vpop.f32.mrf.mxu0
      %v4591 = vpop.f32.mrf.mxu0
      %v4592 = vadd.f32 0.0, %v4591
      %v4593 = vpop.f32.mrf.mxu0
      %4594 = vmatprep.mubr.bf16.mxu0 %v4475
      %4595 = vmatmul.mubr.bf16.gmra.mxu0 %v4362
      %v4596 = vpop.f32.mrf.mxu0
      %v4597 = vadd.f32 0.0, %v4596
      %v4598 = vpop.f32.mrf.mxu0
      %v4599 = vpop.f32.mrf.mxu0
      %v4600 = vadd.f32 0.0, %v4599
      %v4601 = vpop.f32.mrf.mxu0
      %4602 = vmatprep.mubr.bf16.mxu0 %v4478
      %4603 = vmatmul.mubr.bf16.gmra.mxu0 %v4364
      %v4604 = vpop.f32.mrf.mxu0
      %v4605 = vadd.f32 0.0, %v4604
      %v4606 = vpop.f32.mrf.mxu0
      %v4607 = vpop.f32.mrf.mxu0
      %v4608 = vadd.f32 0.0, %v4607
      %v4609 = vpop.f32.mrf.mxu0
      %4610 = vmatprep.mubr.bf16.mxu0 %v4481
      %4611 = vmatmul.mubr.bf16.gmra.mxu0 %v4366
      %v4612 = vpop.f32.mrf.mxu0
      %v4613 = vadd.f32 0.0, %v4612
      %v4614 = vpop.f32.mrf.mxu0
      %v4615 = vpop.f32.mrf.mxu0
      %v4616 = vadd.f32 0.0, %v4615
      %v4617 = vpop.f32.mrf.mxu0
      %4618 = vmatprep.mubr.bf16.mxu0 %v4484
      %4619 = vmatmul.mubr.bf16.gmra.mxu0 %v4368
      %v4620 = vpop.f32.mrf.mxu0
      %v4621 = vadd.f32 0.0, %v4620
      %v4622 = vpop.f32.mrf.mxu0
      %v4623 = vpop.f32.mrf.mxu0
      %v4624 = vadd.f32 0.0, %v4623
      %v4625 = vpop.f32.mrf.mxu0
      %4626 = vmatprep.mubr.bf16.mxu0 %v4487
      %4627 = vmatmul.mubr.bf16.gmra.mxu0 %v4370
      %v4628 = vpop.f32.mrf.mxu0
      %v4629 = vadd.f32 0.0, %v4628
      %v4630 = vpop.f32.mrf.mxu0
      %v4631 = vpop.f32.mrf.mxu0
      %v4632 = vadd.f32 0.0, %v4631
      %v4633 = vpop.f32.mrf.mxu0
      %4634 = vmatprep.mubr.bf16.mxu0 %v4490
      %4635 = vmatmul.mubr.bf16.gmra.mxu0 %v4372
      %v4636 = vpop.f32.mrf.mxu0
      %v4637 = vadd.f32 0.0, %v4636
      %v4638 = vpop.f32.mrf.mxu0
      %v4639 = vpop.f32.mrf.mxu0
      %v4640 = vadd.f32 0.0, %v4639
      %v4641 = vpop.f32.mrf.mxu0
      %4642 = vmatprep.mubr.bf16.mxu0 %v4493
      %4643 = vmatmul.mubr.bf16.gmra.mxu0 %v4374
      %v4644 = vpop.f32.mrf.mxu0
      %v4645 = vadd.f32 0.0, %v4644
      %v4646 = vpop.f32.mrf.mxu0
      %v4647 = vpop.f32.mrf.mxu0
      %v4648 = vadd.f32 0.0, %v4647
      %v4649 = vpop.f32.mrf.mxu0
      %4650 = vmatprep.mubr.bf16.mxu0 %v4496
      %4651 = vmatmul.mubr.bf16.gmra.mxu0 %v4376
      %v4652 = vpop.f32.mrf.mxu0
      %v4653 = vadd.f32 0.0, %v4652
      %v4654 = vpop.f32.mrf.mxu0
      %v4655 = vpop.f32.mrf.mxu0
      %v4656 = vadd.f32 0.0, %v4655
      %v4657 = vpop.f32.mrf.mxu0
      %4658 = vdwg.mxu0
      %v4659 = vld [vmem:[%s5] sm:$0x1]
      %v4661 = vlaneseq
      %v4662 = vshrl.u32 %v4661, 7
      %v4663 = vsub.s32 0, %v4662
      %v4664 = vrot.slane %v4659, %v4663
      %v4666 = vmul.f32 %v4533, %v4664
      %v4667 = vmul.f32 %v4536, %v4664
      %v4668 = vmul.f32 %v4541, %v4664
      %v4669 = vmul.f32 %v4544, %v4664
      %v4670 = vmul.f32 %v4549, %v4664
      %v4671 = vmul.f32 %v4552, %v4664
      %v4672 = vmul.f32 %v4557, %v4664
      %v4673 = vmul.f32 %v4560, %v4664
      %v4674 = vmul.f32 %v4565, %v4664
      %v4675 = vmul.f32 %v4568, %v4664
      %v4676 = vmul.f32 %v4573, %v4664
      %v4677 = vmul.f32 %v4576, %v4664
      %v4678 = vmul.f32 %v4581, %v4664
      %v4679 = vmul.f32 %v4584, %v4664
      %v4680 = vmul.f32 %v4589, %v4664
      %v4681 = vmul.f32 %v4592, %v4664
      %v4682 = vmul.f32 %v4597, %v4664
      %v4683 = vmul.f32 %v4600, %v4664
      %v4684 = vmul.f32 %v4605, %v4664
      %v4685 = vmul.f32 %v4608, %v4664
      %v4686 = vmul.f32 %v4613, %v4664
      %v4687 = vmul.f32 %v4616, %v4664
      %v4688 = vmul.f32 %v4621, %v4664
      %v4689 = vmul.f32 %v4624, %v4664
      %v4690 = vmul.f32 %v4629, %v4664
      %v4691 = vmul.f32 %v4632, %v4664
      %v4692 = vmul.f32 %v4637, %v4664
      %v4693 = vmul.f32 %v4640, %v4664
      %v4694 = vmul.f32 %v4645, %v4664
      %v4695 = vmul.f32 %v4648, %v4664
      %v4696 = vmul.f32 %v4653, %v4664
      %v4697 = vmul.f32 %v4656, %v4664
      %v4698 = vld [vmem:[%s6] sm:$0x1]
      %v4700 = vlaneseq
      %v4701 = vshrl.u32 %v4700, 7
      %v4702 = vsub.s32 0, %v4701
      %v4703 = vrot.slane %v4698, %v4702
      %v4705 = vadd.f32 %v4666, %v4703
      %v4706 = vadd.f32 %v4667, %v4703
      %v4707 = vadd.f32 %v4668, %v4703
      %v4708 = vadd.f32 %v4669, %v4703
      %v4709 = vadd.f32 %v4670, %v4703
      %v4710 = vadd.f32 %v4671, %v4703
      %v4711 = vadd.f32 %v4672, %v4703
      %v4712 = vadd.f32 %v4673, %v4703
      %v4713 = vadd.f32 %v4674, %v4703
      %v4714 = vadd.f32 %v4675, %v4703
      %v4715 = vadd.f32 %v4676, %v4703
      %v4716 = vadd.f32 %v4677, %v4703
      %v4717 = vadd.f32 %v4678, %v4703
      %v4718 = vadd.f32 %v4679, %v4703
      %v4719 = vadd.f32 %v4680, %v4703
      %v4720 = vadd.f32 %v4681, %v4703
      %v4721 = vadd.f32 %v4682, %v4703
      %v4722 = vadd.f32 %v4683, %v4703
      %v4723 = vadd.f32 %v4684, %v4703
      %v4724 = vadd.f32 %v4685, %v4703
      %v4725 = vadd.f32 %v4686, %v4703
      %v4726 = vadd.f32 %v4687, %v4703
      %v4727 = vadd.f32 %v4688, %v4703
      %v4728 = vadd.f32 %v4689, %v4703
      %v4729 = vadd.f32 %v4690, %v4703
      %v4730 = vadd.f32 %v4691, %v4703
      %v4731 = vadd.f32 %v4692, %v4703
      %v4732 = vadd.f32 %v4693, %v4703
      %v4733 = vadd.f32 %v4694, %v4703
      %v4734 = vadd.f32 %v4695, %v4703
      %v4735 = vadd.f32 %v4696, %v4703
      %v4736 = vadd.f32 %v4697, %v4703
      %v4737 = vmax.f32 %v4705, 0.0
      %v4738 = vmax.f32 %v4706, 0.0
      %v4739 = vmax.f32 %v4707, 0.0
      %v4740 = vmax.f32 %v4708, 0.0
      %v4741 = vmax.f32 %v4709, 0.0
      %v4742 = vmax.f32 %v4710, 0.0
      %v4743 = vmax.f32 %v4711, 0.0
      %v4744 = vmax.f32 %v4712, 0.0
      %v4745 = vmax.f32 %v4713, 0.0
      %v4746 = vmax.f32 %v4714, 0.0
      %v4747 = vmax.f32 %v4715, 0.0
      %v4748 = vmax.f32 %v4716, 0.0
      %v4749 = vmax.f32 %v4717, 0.0
      %v4750 = vmax.f32 %v4718, 0.0
      %v4751 = vmax.f32 %v4719, 0.0
      %v4752 = vmax.f32 %v4720, 0.0
      %v4753 = vmax.f32 %v4721, 0.0
      %v4754 = vmax.f32 %v4722, 0.0
      %v4755 = vmax.f32 %v4723, 0.0
      %v4756 = vmax.f32 %v4724, 0.0
      %v4757 = vmax.f32 %v4725, 0.0
      %v4758 = vmax.f32 %v4726, 0.0
      %v4759 = vmax.f32 %v4727, 0.0
      %v4760 = vmax.f32 %v4728, 0.0
      %v4761 = vmax.f32 %v4729, 0.0
      %v4762 = vmax.f32 %v4730, 0.0
      %v4763 = vmax.f32 %v4731, 0.0
      %v4764 = vmax.f32 %v4732, 0.0
      %v4765 = vmax.f32 %v4733, 0.0
      %v4766 = vmax.f32 %v4734, 0.0
      %v4767 = vmax.f32 %v4735, 0.0
      %v4768 = vmax.f32 %v4736, 0.0
      %4769 = vst.msk [vmem:[%s920 + $0x1] sm:$0xff] %vm864, %v4737
      %4770 = vst.msk [vmem:[%s920 + $0x9] sm:$0xff] %vm864, %v4738
      %4771 = vst.msk [vmem:[%s920 + $0x19] sm:$0xff] %vm864, %v4739
      %4772 = vst.msk [vmem:[%s920 + $0x21] sm:$0xff] %vm864, %v4740
      %4773 = vst.msk [vmem:[%s920 + $0x31] sm:$0xff] %vm864, %v4741
      %4774 = vst.msk [vmem:[%s920 + $0x39] sm:$0xff] %vm864, %v4742
      %4775 = vst.msk [vmem:[%s920 + $0x49] sm:$0xff] %vm864, %v4743
      %4776 = vst.msk [vmem:[%s920 + $0x51] sm:$0xff] %vm864, %v4744
      %4777 = vst.msk [vmem:[%s920 + $0x61] sm:$0xff] %vm864, %v4745
      %4778 = vst.msk [vmem:[%s920 + $0x69] sm:$0xff] %vm864, %v4746
      %4779 = vst.msk [vmem:[%s920 + $0x79] sm:$0xff] %vm864, %v4747
      %4780 = vst.msk [vmem:[%s920 + $0x81] sm:$0xff] %vm864, %v4748
      %4781 = vst.msk [vmem:[%s920 + $0x91] sm:$0xff] %vm864, %v4749
      %4782 = vst.msk [vmem:[%s920 + $0x99] sm:$0xff] %vm864, %v4750
      %4783 = vst.msk [vmem:[%s920 + $0xa9] sm:$0xff] %vm864, %v4751
      %4784 = vst.msk [vmem:[%s920 + $0xb1] sm:$0xff] %vm864, %v4752
      %4785 = vst.msk [vmem:[%s920 + $0xc1] sm:$0xff] %vm864, %v4753
      %4786 = vst.msk [vmem:[%s920 + $0xc9] sm:$0xff] %vm864, %v4754
      %4787 = vst.msk [vmem:[%s920 + $0xd9] sm:$0xff] %vm864, %v4755
      %4788 = vst.msk [vmem:[%s920 + $0xe1] sm:$0xff] %vm864, %v4756
      %4789 = vst.msk [vmem:[%s920 + $0xf1] sm:$0xff] %vm864, %v4757
      %4790 = vst.msk [vmem:[%s920 + $0xf9] sm:$0xff] %vm864, %v4758
      %4791 = vst.msk [vmem:[%s920 + $0x109] sm:$0xff] %vm864, %v4759
      %4792 = vst.msk [vmem:[%s920 + $0x111] sm:$0xff] %vm864, %v4760
      %4793 = vst.msk [vmem:[%s920 + $0x121] sm:$0xff] %vm864, %v4761
      %4794 = vst.msk [vmem:[%s920 + $0x129] sm:$0xff] %vm864, %v4762
      %4795 = vst.msk [vmem:[%s920 + $0x139] sm:$0xff] %vm864, %v4763
      %4796 = vst.msk [vmem:[%s920 + $0x141] sm:$0xff] %vm864, %v4764
      %4797 = vst.msk [vmem:[%s920 + $0x151] sm:$0xff] %vm864, %v4765
      %4798 = vst.msk [vmem:[%s920 + $0x159] sm:$0xff] %vm864, %v4766
      %4799 = vst.msk [vmem:[%s920 + $0x169] sm:$0xff] %vm864, %v4767
      %4800 = vst.msk [vmem:[%s920 + $0x171] sm:$0xff] %vm864, %v4768
      %v4801 = vld [vmem:[#allocation2] sm:$0xff]
      %v4802 = vld [vmem:[#allocation2 + $0x8] sm:$0xff]
      %v4803 = vld [vmem:[#allocation2 + $0x18] sm:$0xff]
      %v4804 = vld [vmem:[#allocation2 + $0x20] sm:$0xff]
      %v4805 = vld [vmem:[#allocation2 + $0x30] sm:$0xff]
      %v4806 = vld [vmem:[#allocation2 + $0x38] sm:$0xff]
      %v4807 = vld [vmem:[#allocation2 + $0x48] sm:$0xff]
      %v4808 = vld [vmem:[#allocation2 + $0x50] sm:$0xff]
      %v4809 = vld [vmem:[#allocation2 + $0x60] sm:$0xff]
      %v4810 = vld [vmem:[#allocation2 + $0x68] sm:$0xff]
      %v4811 = vld [vmem:[#allocation2 + $0x78] sm:$0xff]
      %v4812 = vld [vmem:[#allocation2 + $0x80] sm:$0xff]
      %v4813 = vld [vmem:[#allocation2 + $0x90] sm:$0xff]
      %v4814 = vld [vmem:[#allocation2 + $0x98] sm:$0xff]
      %v4815 = vld [vmem:[#allocation2 + $0xa8] sm:$0xff]
      %v4816 = vld [vmem:[#allocation2 + $0xb0] sm:$0xff]
      %v4817 = vld [vmem:[#allocation2 + $0xc0] sm:$0xff]
      %v4818 = vld [vmem:[#allocation2 + $0xc8] sm:$0xff]
      %v4819 = vld [vmem:[#allocation2 + $0xd8] sm:$0xff]
      %v4820 = vld [vmem:[#allocation2 + $0xe0] sm:$0xff]
      %v4821 = vld [vmem:[#allocation2 + $0xf0] sm:$0xff]
      %v4822 = vld [vmem:[#allocation2 + $0xf8] sm:$0xff]
      %v4823 = vld [vmem:[#allocation2 + $0x108] sm:$0xff]
      %v4824 = vld [vmem:[#allocation2 + $0x110] sm:$0xff]
      %v4825 = vld [vmem:[#allocation2 + $0x120] sm:$0xff]
      %v4826 = vld [vmem:[#allocation2 + $0x128] sm:$0xff]
      %v4827 = vld [vmem:[#allocation2 + $0x138] sm:$0xff]
      %v4828 = vld [vmem:[#allocation2 + $0x140] sm:$0xff]
      %v4829 = vld [vmem:[#allocation2 + $0x150] sm:$0xff]
      %v4830 = vld [vmem:[#allocation2 + $0x158] sm:$0xff]
      %v4831 = vld [vmem:[#allocation2 + $0x168] sm:$0xff]
      %v4832 = vld [vmem:[#allocation2 + $0x170] sm:$0xff]
      %v4833 = vld [vmem:[#allocation2 + $0x1] sm:$0xff]
      %v4834 = vld [vmem:[#allocation2 + $0x9] sm:$0xff]
      %v4835 = vld [vmem:[#allocation2 + $0x19] sm:$0xff]
      %v4836 = vld [vmem:[#allocation2 + $0x21] sm:$0xff]
      %v4837 = vld [vmem:[#allocation2 + $0x31] sm:$0xff]
      %v4838 = vld [vmem:[#allocation2 + $0x39] sm:$0xff]
      %v4839 = vld [vmem:[#allocation2 + $0x49] sm:$0xff]
      %v4840 = vld [vmem:[#allocation2 + $0x51] sm:$0xff]
      %v4841 = vld [vmem:[#allocation2 + $0x61] sm:$0xff]
      %v4842 = vld [vmem:[#allocation2 + $0x69] sm:$0xff]
      %v4843 = vld [vmem:[#allocation2 + $0x79] sm:$0xff]
      %v4844 = vld [vmem:[#allocation2 + $0x81] sm:$0xff]
      %v4845 = vld [vmem:[#allocation2 + $0x91] sm:$0xff]
      %v4846 = vld [vmem:[#allocation2 + $0x99] sm:$0xff]
      %v4847 = vld [vmem:[#allocation2 + $0xa9] sm:$0xff]
      %v4848 = vld [vmem:[#allocation2 + $0xb1] sm:$0xff]
      %v4849 = vld [vmem:[#allocation2 + $0xc1] sm:$0xff]
      %v4850 = vld [vmem:[#allocation2 + $0xc9] sm:$0xff]
      %v4851 = vld [vmem:[#allocation2 + $0xd9] sm:$0xff]
      %v4852 = vld [vmem:[#allocation2 + $0xe1] sm:$0xff]
      %v4853 = vld [vmem:[#allocation2 + $0xf1] sm:$0xff]
      %v4854 = vld [vmem:[#allocation2 + $0xf9] sm:$0xff]
      %v4855 = vld [vmem:[#allocation2 + $0x109] sm:$0xff]
      %v4856 = vld [vmem:[#allocation2 + $0x111] sm:$0xff]
      %v4857 = vld [vmem:[#allocation2 + $0x121] sm:$0xff]
      %v4858 = vld [vmem:[#allocation2 + $0x129] sm:$0xff]
      %v4859 = vld [vmem:[#allocation2 + $0x139] sm:$0xff]
      %v4860 = vld [vmem:[#allocation2 + $0x141] sm:$0xff]
      %v4861 = vld [vmem:[#allocation2 + $0x151] sm:$0xff]
      %v4862 = vld [vmem:[#allocation2 + $0x159] sm:$0xff]
      %v4863 = vld [vmem:[#allocation2 + $0x169] sm:$0xff]
      %v4864 = vld [vmem:[#allocation2 + $0x171] sm:$0xff]
      %v4865 = vld [vmem:[#allocation2 + $0x2] sm:$0xff]
      %v4866 = vld [vmem:[#allocation2 + $0xa] sm:$0xff]
      %v4867 = vld [vmem:[#allocation2 + $0x1a] sm:$0xff]
      %v4868 = vld [vmem:[#allocation2 + $0x22] sm:$0xff]
      %v4869 = vld [vmem:[#allocation2 + $0x32] sm:$0xff]
      %v4870 = vld [vmem:[#allocation2 + $0x3a] sm:$0xff]
      %v4871 = vld [vmem:[#allocation2 + $0x4a] sm:$0xff]
      %v4872 = vld [vmem:[#allocation2 + $0x52] sm:$0xff]
      %v4873 = vld [vmem:[#allocation2 + $0x62] sm:$0xff]
      %v4874 = vld [vmem:[#allocation2 + $0x6a] sm:$0xff]
      %v4875 = vld [vmem:[#allocation2 + $0x7a] sm:$0xff]
      %v4876 = vld [vmem:[#allocation2 + $0x82] sm:$0xff]
      %v4877 = vld [vmem:[#allocation2 + $0x92] sm:$0xff]
      %v4878 = vld [vmem:[#allocation2 + $0x9a] sm:$0xff]
      %v4879 = vld [vmem:[#allocation2 + $0xaa] sm:$0xff]
      %v4880 = vld [vmem:[#allocation2 + $0xb2] sm:$0xff]
      %v4881 = vld [vmem:[#allocation2 + $0xc2] sm:$0xff]
      %v4882 = vld [vmem:[#allocation2 + $0xca] sm:$0xff]
      %v4883 = vld [vmem:[#allocation2 + $0xda] sm:$0xff]
      %v4884 = vld [vmem:[#allocation2 + $0xe2] sm:$0xff]
      %v4885 = vld [vmem:[#allocation2 + $0xf2] sm:$0xff]
      %v4886 = vld [vmem:[#allocation2 + $0xfa] sm:$0xff]
      %v4887 = vld [vmem:[#allocation2 + $0x10a] sm:$0xff]
      %v4888 = vld [vmem:[#allocation2 + $0x112] sm:$0xff]
      %v4889 = vld [vmem:[#allocation2 + $0x122] sm:$0xff]
      %v4890 = vld [vmem:[#allocation2 + $0x12a] sm:$0xff]
      %v4891 = vld [vmem:[#allocation2 + $0x13a] sm:$0xff]
      %v4892 = vld [vmem:[#allocation2 + $0x142] sm:$0xff]
      %v4893 = vld [vmem:[#allocation2 + $0x152] sm:$0xff]
      %v4894 = vld [vmem:[#allocation2 + $0x15a] sm:$0xff]
      %v4895 = vld [vmem:[#allocation2 + $0x16a] sm:$0xff]
      %v4896 = vld [vmem:[#allocation2 + $0x172] sm:$0xff]
      %v4897 = vld [vmem:[%s920] sm:$0xff]
      %v4898 = vld [vmem:[%s920 + $0x8] sm:$0xff]
      %v4899 = vld [vmem:[%s920 + $0x18] sm:$0xff]
      %v4900 = vld [vmem:[%s920 + $0x20] sm:$0xff]
      %v4901 = vld [vmem:[%s920 + $0x30] sm:$0xff]
      %v4902 = vld [vmem:[%s920 + $0x38] sm:$0xff]
      %v4903 = vld [vmem:[%s920 + $0x48] sm:$0xff]
      %v4904 = vld [vmem:[%s920 + $0x50] sm:$0xff]
      %v4905 = vld [vmem:[%s920 + $0x60] sm:$0xff]
      %v4906 = vld [vmem:[%s920 + $0x68] sm:$0xff]
      %v4907 = vld [vmem:[%s920 + $0x78] sm:$0xff]
      %v4908 = vld [vmem:[%s920 + $0x80] sm:$0xff]
      %v4909 = vld [vmem:[%s920 + $0x90] sm:$0xff]
      %v4910 = vld [vmem:[%s920 + $0x98] sm:$0xff]
      %v4911 = vld [vmem:[%s920 + $0xa8] sm:$0xff]
      %v4912 = vld [vmem:[%s920 + $0xb0] sm:$0xff]
      %v4913 = vld [vmem:[%s920 + $0xc0] sm:$0xff]
      %v4914 = vld [vmem:[%s920 + $0xc8] sm:$0xff]
      %v4915 = vld [vmem:[%s920 + $0xd8] sm:$0xff]
      %v4916 = vld [vmem:[%s920 + $0xe0] sm:$0xff]
      %v4917 = vld [vmem:[%s920 + $0xf0] sm:$0xff]
      %v4918 = vld [vmem:[%s920 + $0xf8] sm:$0xff]
      %v4919 = vld [vmem:[%s920 + $0x108] sm:$0xff]
      %v4920 = vld [vmem:[%s920 + $0x110] sm:$0xff]
      %v4921 = vld [vmem:[%s920 + $0x120] sm:$0xff]
      %v4922 = vld [vmem:[%s920 + $0x128] sm:$0xff]
      %v4923 = vld [vmem:[%s920 + $0x138] sm:$0xff]
      %v4924 = vld [vmem:[%s920 + $0x140] sm:$0xff]
      %v4925 = vld [vmem:[%s920 + $0x150] sm:$0xff]
      %v4926 = vld [vmem:[%s920 + $0x158] sm:$0xff]
      %v4927 = vld [vmem:[%s920 + $0x168] sm:$0xff]
      %v4928 = vld [vmem:[%s920 + $0x170] sm:$0xff]
      %v4929 = vld [vmem:[%s920 + $0x1] sm:$0xff]
      %v4930 = vld [vmem:[%s920 + $0x9] sm:$0xff]
      %v4931 = vld [vmem:[%s920 + $0x19] sm:$0xff]
      %v4932 = vld [vmem:[%s920 + $0x21] sm:$0xff]
      %v4933 = vld [vmem:[%s920 + $0x31] sm:$0xff]
      %v4934 = vld [vmem:[%s920 + $0x39] sm:$0xff]
      %v4935 = vld [vmem:[%s920 + $0x49] sm:$0xff]
      %v4936 = vld [vmem:[%s920 + $0x51] sm:$0xff]
      %v4937 = vld [vmem:[%s920 + $0x61] sm:$0xff]
      %v4938 = vld [vmem:[%s920 + $0x69] sm:$0xff]
      %v4939 = vld [vmem:[%s920 + $0x79] sm:$0xff]
      %v4940 = vld [vmem:[%s920 + $0x81] sm:$0xff]
      %v4941 = vld [vmem:[%s920 + $0x91] sm:$0xff]
      %v4942 = vld [vmem:[%s920 + $0x99] sm:$0xff]
      %v4943 = vld [vmem:[%s920 + $0xa9] sm:$0xff]
      %v4944 = vld [vmem:[%s920 + $0xb1] sm:$0xff]
      %v4945 = vld [vmem:[%s920 + $0xc1] sm:$0xff]
      %v4946 = vld [vmem:[%s920 + $0xc9] sm:$0xff]
      %v4947 = vld [vmem:[%s920 + $0xd9] sm:$0xff]
      %v4948 = vld [vmem:[%s920 + $0xe1] sm:$0xff]
      %v4949 = vld [vmem:[%s920 + $0xf1] sm:$0xff]
      %v4950 = vld [vmem:[%s920 + $0xf9] sm:$0xff]
      %v4951 = vld [vmem:[%s920 + $0x109] sm:$0xff]
      %v4952 = vld [vmem:[%s920 + $0x111] sm:$0xff]
      %v4953 = vld [vmem:[%s920 + $0x121] sm:$0xff]
      %v4954 = vld [vmem:[%s920 + $0x129] sm:$0xff]
      %v4955 = vld [vmem:[%s920 + $0x139] sm:$0xff]
      %v4956 = vld [vmem:[%s920 + $0x141] sm:$0xff]
      %v4957 = vld [vmem:[%s920 + $0x151] sm:$0xff]
      %v4958 = vld [vmem:[%s920 + $0x159] sm:$0xff]
      %v4959 = vld [vmem:[%s920 + $0x169] sm:$0xff]
      %v4960 = vld [vmem:[%s920 + $0x171] sm:$0xff]
      %v4961 = vld [vmem:[%s920 + $0x2] sm:$0xff]
      %v4962 = vld [vmem:[%s920 + $0xa] sm:$0xff]
      %v4963 = vld [vmem:[%s920 + $0x1a] sm:$0xff]
      %v4964 = vld [vmem:[%s920 + $0x22] sm:$0xff]
      %v4965 = vld [vmem:[%s920 + $0x32] sm:$0xff]
      %v4966 = vld [vmem:[%s920 + $0x3a] sm:$0xff]
      %v4967 = vld [vmem:[%s920 + $0x4a] sm:$0xff]
      %v4968 = vld [vmem:[%s920 + $0x52] sm:$0xff]
      %v4969 = vld [vmem:[%s920 + $0x62] sm:$0xff]
      %v4970 = vld [vmem:[%s920 + $0x6a] sm:$0xff]
      %v4971 = vld [vmem:[%s920 + $0x7a] sm:$0xff]
      %v4972 = vld [vmem:[%s920 + $0x82] sm:$0xff]
      %v4973 = vld [vmem:[%s920 + $0x92] sm:$0xff]
      %v4974 = vld [vmem:[%s920 + $0x9a] sm:$0xff]
      %v4975 = vld [vmem:[%s920 + $0xaa] sm:$0xff]
      %v4976 = vld [vmem:[%s920 + $0xb2] sm:$0xff]
      %v4977 = vld [vmem:[%s920 + $0xc2] sm:$0xff]
      %v4978 = vld [vmem:[%s920 + $0xca] sm:$0xff]
      %v4979 = vld [vmem:[%s920 + $0xda] sm:$0xff]
      %v4980 = vld [vmem:[%s920 + $0xe2] sm:$0xff]
      %v4981 = vld [vmem:[%s920 + $0xf2] sm:$0xff]
      %v4982 = vld [vmem:[%s920 + $0xfa] sm:$0xff]
      %v4983 = vld [vmem:[%s920 + $0x10a] sm:$0xff]
      %v4984 = vld [vmem:[%s920 + $0x112] sm:$0xff]
      %v4985 = vld [vmem:[%s920 + $0x122] sm:$0xff]
      %v4986 = vld [vmem:[%s920 + $0x12a] sm:$0xff]
      %v4987 = vld [vmem:[%s920 + $0x13a] sm:$0xff]
      %v4988 = vld [vmem:[%s920 + $0x142] sm:$0xff]
      %v4989 = vld [vmem:[%s920 + $0x152] sm:$0xff]
      %v4990 = vld [vmem:[%s920 + $0x15a] sm:$0xff]
      %v4991 = vld [vmem:[%s920 + $0x16a] sm:$0xff]
      %v4992 = vld [vmem:[%s920 + $0x172] sm:$0xff]
      %v4993 = vld [vmem:[%s1145] sm:$0xff]
      %v4994 = vld [vmem:[%s1145 + $0x8] sm:$0xff]
      %v4995 = vld [vmem:[%s1145 + $0x18] sm:$0xff]
      %v4996 = vld [vmem:[%s1145 + $0x20] sm:$0xff]
      %v4997 = vld [vmem:[%s1145 + $0x30] sm:$0xff]
      %v4998 = vld [vmem:[%s1145 + $0x38] sm:$0xff]
      %v4999 = vld [vmem:[%s1145 + $0x48] sm:$0xff]
      %v5000 = vld [vmem:[%s1145 + $0x50] sm:$0xff]
      %v5001 = vld [vmem:[%s1145 + $0x60] sm:$0xff]
      %v5002 = vld [vmem:[%s1145 + $0x68] sm:$0xff]
      %v5003 = vld [vmem:[%s1145 + $0x78] sm:$0xff]
      %v5004 = vld [vmem:[%s1145 + $0x80] sm:$0xff]
      %v5005 = vld [vmem:[%s1145 + $0x90] sm:$0xff]
      %v5006 = vld [vmem:[%s1145 + $0x98] sm:$0xff]
      %v5007 = vld [vmem:[%s1145 + $0xa8] sm:$0xff]
      %v5008 = vld [vmem:[%s1145 + $0xb0] sm:$0xff]
      %v5009 = vld [vmem:[%s1145 + $0xc0] sm:$0xff]
      %v5010 = vld [vmem:[%s1145 + $0xc8] sm:$0xff]
      %v5011 = vld [vmem:[%s1145 + $0xd8] sm:$0xff]
      %v5012 = vld [vmem:[%s1145 + $0xe0] sm:$0xff]
      %v5013 = vld [vmem:[%s1145 + $0xf0] sm:$0xff]
      %v5014 = vld [vmem:[%s1145 + $0xf8] sm:$0xff]
      %v5015 = vld [vmem:[%s1145 + $0x108] sm:$0xff]
      %v5016 = vld [vmem:[%s1145 + $0x110] sm:$0xff]
      %v5017 = vld [vmem:[%s1145 + $0x120] sm:$0xff]
      %v5018 = vld [vmem:[%s1145 + $0x128] sm:$0xff]
      %v5019 = vld [vmem:[%s1145 + $0x138] sm:$0xff]
      %v5020 = vld [vmem:[%s1145 + $0x140] sm:$0xff]
      %v5021 = vld [vmem:[%s1145 + $0x150] sm:$0xff]
      %v5022 = vld [vmem:[%s1145 + $0x158] sm:$0xff]
      %v5023 = vld [vmem:[%s1145 + $0x168] sm:$0xff]
      %v5024 = vld [vmem:[%s1145 + $0x170] sm:$0xff]
      %v5025 = vld [vmem:[%s1145 + $0x1] sm:$0xff]
      %v5026 = vld [vmem:[%s1145 + $0x9] sm:$0xff]
      %v5027 = vld [vmem:[%s1145 + $0x19] sm:$0xff]
      %v5028 = vld [vmem:[%s1145 + $0x21] sm:$0xff]
      %v5029 = vld [vmem:[%s1145 + $0x31] sm:$0xff]
      %v5030 = vld [vmem:[%s1145 + $0x39] sm:$0xff]
      %v5031 = vld [vmem:[%s1145 + $0x49] sm:$0xff]
      %v5032 = vld [vmem:[%s1145 + $0x51] sm:$0xff]
      %v5033 = vld [vmem:[%s1145 + $0x61] sm:$0xff]
      %v5034 = vld [vmem:[%s1145 + $0x69] sm:$0xff]
      %v5035 = vld [vmem:[%s1145 + $0x79] sm:$0xff]
      %v5036 = vld [vmem:[%s1145 + $0x81] sm:$0xff]
      %v5037 = vld [vmem:[%s1145 + $0x91] sm:$0xff]
      %v5038 = vld [vmem:[%s1145 + $0x99] sm:$0xff]
      %v5039 = vld [vmem:[%s1145 + $0xa9] sm:$0xff]
      %v5040 = vld [vmem:[%s1145 + $0xb1] sm:$0xff]
      %v5041 = vld [vmem:[%s1145 + $0xc1] sm:$0xff]
      %v5042 = vld [vmem:[%s1145 + $0xc9] sm:$0xff]
      %v5043 = vld [vmem:[%s1145 + $0xd9] sm:$0xff]
      %v5044 = vld [vmem:[%s1145 + $0xe1] sm:$0xff]
      %v5045 = vld [vmem:[%s1145 + $0xf1] sm:$0xff]
      %v5046 = vld [vmem:[%s1145 + $0xf9] sm:$0xff]
      %v5047 = vld [vmem:[%s1145 + $0x109] sm:$0xff]
      %v5048 = vld [vmem:[%s1145 + $0x111] sm:$0xff]
      %v5049 = vld [vmem:[%s1145 + $0x121] sm:$0xff]
      %v5050 = vld [vmem:[%s1145 + $0x129] sm:$0xff]
      %v5051 = vld [vmem:[%s1145 + $0x139] sm:$0xff]
      %v5052 = vld [vmem:[%s1145 + $0x141] sm:$0xff]
      %v5053 = vld [vmem:[%s1145 + $0x151] sm:$0xff]
      %v5054 = vld [vmem:[%s1145 + $0x159] sm:$0xff]
      %v5055 = vld [vmem:[%s1145 + $0x169] sm:$0xff]
      %v5056 = vld [vmem:[%s1145 + $0x171] sm:$0xff]
      %v5057 = vld [vmem:[%s1145 + $0x2] sm:$0xff]
      %v5058 = vld [vmem:[%s1145 + $0xa] sm:$0xff]
      %v5059 = vld [vmem:[%s1145 + $0x1a] sm:$0xff]
      %v5060 = vld [vmem:[%s1145 + $0x22] sm:$0xff]
      %v5061 = vld [vmem:[%s1145 + $0x32] sm:$0xff]
      %v5062 = vld [vmem:[%s1145 + $0x3a] sm:$0xff]
      %v5063 = vld [vmem:[%s1145 + $0x4a] sm:$0xff]
      %v5064 = vld [vmem:[%s1145 + $0x52] sm:$0xff]
      %v5065 = vld [vmem:[%s1145 + $0x62] sm:$0xff]
      %v5066 = vld [vmem:[%s1145 + $0x6a] sm:$0xff]
      %v5067 = vld [vmem:[%s1145 + $0x7a] sm:$0xff]
      %v5068 = vld [vmem:[%s1145 + $0x82] sm:$0xff]
      %v5069 = vld [vmem:[%s1145 + $0x92] sm:$0xff]
      %v5070 = vld [vmem:[%s1145 + $0x9a] sm:$0xff]
      %v5071 = vld [vmem:[%s1145 + $0xaa] sm:$0xff]
      %v5072 = vld [vmem:[%s1145 + $0xb2] sm:$0xff]
      %v5073 = vld [vmem:[%s1145 + $0xc2] sm:$0xff]
      %v5074 = vld [vmem:[%s1145 + $0xca] sm:$0xff]
      %v5075 = vld [vmem:[%s1145 + $0xda] sm:$0xff]
      %v5076 = vld [vmem:[%s1145 + $0xe2] sm:$0xff]
      %v5077 = vld [vmem:[%s1145 + $0xf2] sm:$0xff]
      %v5078 = vld [vmem:[%s1145 + $0xfa] sm:$0xff]
      %v5079 = vld [vmem:[%s1145 + $0x10a] sm:$0xff]
      %v5080 = vld [vmem:[%s1145 + $0x112] sm:$0xff]
      %v5081 = vld [vmem:[%s1145 + $0x122] sm:$0xff]
      %v5082 = vld [vmem:[%s1145 + $0x12a] sm:$0xff]
      %v5083 = vld [vmem:[%s1145 + $0x13a] sm:$0xff]
      %v5084 = vld [vmem:[%s1145 + $0x142] sm:$0xff]
      %v5085 = vld [vmem:[%s1145 + $0x152] sm:$0xff]
      %v5086 = vld [vmem:[%s1145 + $0x15a] sm:$0xff]
      %v5087 = vld [vmem:[%s1145 + $0x16a] sm:$0xff]
      %v5088 = vld [vmem:[%s1145 + $0x172] sm:$0xff]
      %5121 = vrot.lane.b32.xlu0 %v4833, 16
      %v5122 = vpop.permute.xlu0 %5121
      %5123 = vrot.lane.b32.xlu0 %v4834, 16
      %v5124 = vpop.permute.xlu0 %5123
      %5125 = vrot.lane.b32.xlu0 %v4835, 16
      %v5126 = vpop.permute.xlu0 %5125
      %5127 = vrot.lane.b32.xlu0 %v4836, 16
      %v5128 = vpop.permute.xlu0 %5127
      %5129 = vrot.lane.b32.xlu0 %v4837, 16
      %v5130 = vpop.permute.xlu0 %5129
      %5131 = vrot.lane.b32.xlu0 %v4838, 16
      %v5132 = vpop.permute.xlu0 %5131
      %5133 = vrot.lane.b32.xlu0 %v4839, 16
      %v5134 = vpop.permute.xlu0 %5133
      %5135 = vrot.lane.b32.xlu0 %v4840, 16
      %v5136 = vpop.permute.xlu0 %5135
      %5137 = vrot.lane.b32.xlu0 %v4841, 16
      %v5138 = vpop.permute.xlu0 %5137
      %5139 = vrot.lane.b32.xlu0 %v4842, 16
      %v5140 = vpop.permute.xlu0 %5139
      %5141 = vrot.lane.b32.xlu0 %v4843, 16
      %v5142 = vpop.permute.xlu0 %5141
      %5143 = vrot.lane.b32.xlu0 %v4844, 16
      %v5144 = vpop.permute.xlu0 %5143
      %5145 = vrot.lane.b32.xlu0 %v4845, 16
      %v5146 = vpop.permute.xlu0 %5145
      %5147 = vrot.lane.b32.xlu0 %v4846, 16
      %v5148 = vpop.permute.xlu0 %5147
      %5149 = vrot.lane.b32.xlu0 %v4847, 16
      %v5150 = vpop.permute.xlu0 %5149
      %5151 = vrot.lane.b32.xlu0 %v4848, 16
      %v5152 = vpop.permute.xlu0 %5151
      %5153 = vrot.lane.b32.xlu0 %v4849, 16
      %v5154 = vpop.permute.xlu0 %5153
      %5155 = vrot.lane.b32.xlu0 %v4850, 16
      %v5156 = vpop.permute.xlu0 %5155
      %5157 = vrot.lane.b32.xlu0 %v4851, 16
      %v5158 = vpop.permute.xlu0 %5157
      %5159 = vrot.lane.b32.xlu0 %v4852, 16
      %v5160 = vpop.permute.xlu0 %5159
      %5161 = vrot.lane.b32.xlu0 %v4853, 16
      %v5162 = vpop.permute.xlu0 %5161
      %5163 = vrot.lane.b32.xlu0 %v4854, 16
      %v5164 = vpop.permute.xlu0 %5163
      %5165 = vrot.lane.b32.xlu0 %v4855, 16
      %v5166 = vpop.permute.xlu0 %5165
      %5167 = vrot.lane.b32.xlu0 %v4856, 16
      %v5168 = vpop.permute.xlu0 %5167
      %5169 = vrot.lane.b32.xlu0 %v4857, 16
      %v5170 = vpop.permute.xlu0 %5169
      %5171 = vrot.lane.b32.xlu0 %v4858, 16
      %v5172 = vpop.permute.xlu0 %5171
      %5173 = vrot.lane.b32.xlu0 %v4859, 16
      %v5174 = vpop.permute.xlu0 %5173
      %5175 = vrot.lane.b32.xlu0 %v4860, 16
      %v5176 = vpop.permute.xlu0 %5175
      %5177 = vrot.lane.b32.xlu0 %v4861, 16
      %v5178 = vpop.permute.xlu0 %5177
      %5179 = vrot.lane.b32.xlu0 %v4862, 16
      %v5180 = vpop.permute.xlu0 %5179
      %5181 = vrot.lane.b32.xlu0 %v4863, 16
      %v5182 = vpop.permute.xlu0 %5181
      %5183 = vrot.lane.b32.xlu0 %v4864, 16
      %v5184 = vpop.permute.xlu0 %5183
      %5249 = vrot.lane.b32.xlu0 %v4865, 32
      %v5250 = vpop.permute.xlu0 %5249
      %5251 = vrot.lane.b32.xlu0 %v4866, 32
      %v5252 = vpop.permute.xlu0 %5251
      %5253 = vrot.lane.b32.xlu0 %v4867, 32
      %v5254 = vpop.permute.xlu0 %5253
      %5255 = vrot.lane.b32.xlu0 %v4868, 32
      %v5256 = vpop.permute.xlu0 %5255
      %5257 = vrot.lane.b32.xlu0 %v4869, 32
      %v5258 = vpop.permute.xlu0 %5257
      %5259 = vrot.lane.b32.xlu0 %v4870, 32
      %v5260 = vpop.permute.xlu0 %5259
      %5261 = vrot.lane.b32.xlu0 %v4871, 32
      %v5262 = vpop.permute.xlu0 %5261
      %5263 = vrot.lane.b32.xlu0 %v4872, 32
      %v5264 = vpop.permute.xlu0 %5263
      %5265 = vrot.lane.b32.xlu0 %v4873, 32
      %v5266 = vpop.permute.xlu0 %5265
      %5267 = vrot.lane.b32.xlu0 %v4874, 32
      %v5268 = vpop.permute.xlu0 %5267
      %5269 = vrot.lane.b32.xlu0 %v4875, 32
      %v5270 = vpop.permute.xlu0 %5269
      %5271 = vrot.lane.b32.xlu0 %v4876, 32
      %v5272 = vpop.permute.xlu0 %5271
      %5273 = vrot.lane.b32.xlu0 %v4877, 32
      %v5274 = vpop.permute.xlu0 %5273
      %5275 = vrot.lane.b32.xlu0 %v4878, 32
      %v5276 = vpop.permute.xlu0 %5275
      %5277 = vrot.lane.b32.xlu0 %v4879, 32
      %v5278 = vpop.permute.xlu0 %5277
      %5279 = vrot.lane.b32.xlu0 %v4880, 32
      %v5280 = vpop.permute.xlu0 %5279
      %5281 = vrot.lane.b32.xlu0 %v4881, 32
      %v5282 = vpop.permute.xlu0 %5281
      %5283 = vrot.lane.b32.xlu0 %v4882, 32
      %v5284 = vpop.permute.xlu0 %5283
      %5285 = vrot.lane.b32.xlu0 %v4883, 32
      %v5286 = vpop.permute.xlu0 %5285
      %5287 = vrot.lane.b32.xlu0 %v4884, 32
      %v5288 = vpop.permute.xlu0 %5287
      %5289 = vrot.lane.b32.xlu0 %v4885, 32
      %v5290 = vpop.permute.xlu0 %5289
      %5291 = vrot.lane.b32.xlu0 %v4886, 32
      %v5292 = vpop.permute.xlu0 %5291
      %5293 = vrot.lane.b32.xlu0 %v4887, 32
      %v5294 = vpop.permute.xlu0 %5293
      %5295 = vrot.lane.b32.xlu0 %v4888, 32
      %v5296 = vpop.permute.xlu0 %5295
      %5297 = vrot.lane.b32.xlu0 %v4889, 32
      %v5298 = vpop.permute.xlu0 %5297
      %5299 = vrot.lane.b32.xlu0 %v4890, 32
      %v5300 = vpop.permute.xlu0 %5299
      %5301 = vrot.lane.b32.xlu0 %v4891, 32
      %v5302 = vpop.permute.xlu0 %5301
      %5303 = vrot.lane.b32.xlu0 %v4892, 32
      %v5304 = vpop.permute.xlu0 %5303
      %5305 = vrot.lane.b32.xlu0 %v4893, 32
      %v5306 = vpop.permute.xlu0 %5305
      %5307 = vrot.lane.b32.xlu0 %v4894, 32
      %v5308 = vpop.permute.xlu0 %5307
      %5309 = vrot.lane.b32.xlu0 %v4895, 32
      %v5310 = vpop.permute.xlu0 %5309
      %5311 = vrot.lane.b32.xlu0 %v4896, 32
      %v5312 = vpop.permute.xlu0 %5311
      %5377 = vrot.lane.b32.xlu0 %v4897, 48
      %v5378 = vpop.permute.xlu0 %5377
      %5379 = vrot.lane.b32.xlu0 %v4898, 48
      %v5380 = vpop.permute.xlu0 %5379
      %5381 = vrot.lane.b32.xlu0 %v4899, 48
      %v5382 = vpop.permute.xlu0 %5381
      %5383 = vrot.lane.b32.xlu0 %v4900, 48
      %v5384 = vpop.permute.xlu0 %5383
      %5385 = vrot.lane.b32.xlu0 %v4901, 48
      %v5386 = vpop.permute.xlu0 %5385
      %5387 = vrot.lane.b32.xlu0 %v4902, 48
      %v5388 = vpop.permute.xlu0 %5387
      %5389 = vrot.lane.b32.xlu0 %v4903, 48
      %v5390 = vpop.permute.xlu0 %5389
      %5391 = vrot.lane.b32.xlu0 %v4904, 48
      %v5392 = vpop.permute.xlu0 %5391
      %5393 = vrot.lane.b32.xlu0 %v4905, 48
      %v5394 = vpop.permute.xlu0 %5393
      %5395 = vrot.lane.b32.xlu0 %v4906, 48
      %v5396 = vpop.permute.xlu0 %5395
      %5397 = vrot.lane.b32.xlu0 %v4907, 48
      %v5398 = vpop.permute.xlu0 %5397
      %5399 = vrot.lane.b32.xlu0 %v4908, 48
      %v5400 = vpop.permute.xlu0 %5399
      %5401 = vrot.lane.b32.xlu0 %v4909, 48
      %v5402 = vpop.permute.xlu0 %5401
      %5403 = vrot.lane.b32.xlu0 %v4910, 48
      %v5404 = vpop.permute.xlu0 %5403
      %5405 = vrot.lane.b32.xlu0 %v4911, 48
      %v5406 = vpop.permute.xlu0 %5405
      %5407 = vrot.lane.b32.xlu0 %v4912, 48
      %v5408 = vpop.permute.xlu0 %5407
      %5409 = vrot.lane.b32.xlu0 %v4913, 48
      %v5410 = vpop.permute.xlu0 %5409
      %5411 = vrot.lane.b32.xlu0 %v4914, 48
      %v5412 = vpop.permute.xlu0 %5411
      %5413 = vrot.lane.b32.xlu0 %v4915, 48
      %v5414 = vpop.permute.xlu0 %5413
      %5415 = vrot.lane.b32.xlu0 %v4916, 48
      %v5416 = vpop.permute.xlu0 %5415
      %5417 = vrot.lane.b32.xlu0 %v4917, 48
      %v5418 = vpop.permute.xlu0 %5417
      %5419 = vrot.lane.b32.xlu0 %v4918, 48
      %v5420 = vpop.permute.xlu0 %5419
      %5421 = vrot.lane.b32.xlu0 %v4919, 48
      %v5422 = vpop.permute.xlu0 %5421
      %5423 = vrot.lane.b32.xlu0 %v4920, 48
      %v5424 = vpop.permute.xlu0 %5423
      %5425 = vrot.lane.b32.xlu0 %v4921, 48
      %v5426 = vpop.permute.xlu0 %5425
      %5427 = vrot.lane.b32.xlu0 %v4922, 48
      %v5428 = vpop.permute.xlu0 %5427
      %5429 = vrot.lane.b32.xlu0 %v4923, 48
      %v5430 = vpop.permute.xlu0 %5429
      %5431 = vrot.lane.b32.xlu0 %v4924, 48
      %v5432 = vpop.permute.xlu0 %5431
      %5433 = vrot.lane.b32.xlu0 %v4925, 48
      %v5434 = vpop.permute.xlu0 %5433
      %5435 = vrot.lane.b32.xlu0 %v4926, 48
      %v5436 = vpop.permute.xlu0 %5435
      %5437 = vrot.lane.b32.xlu0 %v4927, 48
      %v5438 = vpop.permute.xlu0 %5437
      %5439 = vrot.lane.b32.xlu0 %v4928, 48
      %v5440 = vpop.permute.xlu0 %5439
      %5505 = vrot.lane.b32.xlu0 %v4929, 64
      %v5506 = vpop.permute.xlu0 %5505
      %5507 = vrot.lane.b32.xlu0 %v4930, 64
      %v5508 = vpop.permute.xlu0 %5507
      %5509 = vrot.lane.b32.xlu0 %v4931, 64
      %v5510 = vpop.permute.xlu0 %5509
      %5511 = vrot.lane.b32.xlu0 %v4932, 64
      %v5512 = vpop.permute.xlu0 %5511
      %5513 = vrot.lane.b32.xlu0 %v4933, 64
      %v5514 = vpop.permute.xlu0 %5513
      %5515 = vrot.lane.b32.xlu0 %v4934, 64
      %v5516 = vpop.permute.xlu0 %5515
      %5517 = vrot.lane.b32.xlu0 %v4935, 64
      %v5518 = vpop.permute.xlu0 %5517
      %5519 = vrot.lane.b32.xlu0 %v4936, 64
      %v5520 = vpop.permute.xlu0 %5519
      %5521 = vrot.lane.b32.xlu0 %v4937, 64
      %v5522 = vpop.permute.xlu0 %5521
      %5523 = vrot.lane.b32.xlu0 %v4938, 64
      %v5524 = vpop.permute.xlu0 %5523
      %5525 = vrot.lane.b32.xlu0 %v4939, 64
      %v5526 = vpop.permute.xlu0 %5525
      %5527 = vrot.lane.b32.xlu0 %v4940, 64
      %v5528 = vpop.permute.xlu0 %5527
      %5529 = vrot.lane.b32.xlu0 %v4941, 64
      %v5530 = vpop.permute.xlu0 %5529
      %5531 = vrot.lane.b32.xlu0 %v4942, 64
      %v5532 = vpop.permute.xlu0 %5531
      %5533 = vrot.lane.b32.xlu0 %v4943, 64
      %v5534 = vpop.permute.xlu0 %5533
      %5535 = vrot.lane.b32.xlu0 %v4944, 64
      %v5536 = vpop.permute.xlu0 %5535
      %5537 = vrot.lane.b32.xlu0 %v4945, 64
      %v5538 = vpop.permute.xlu0 %5537
      %5539 = vrot.lane.b32.xlu0 %v4946, 64
      %v5540 = vpop.permute.xlu0 %5539
      %5541 = vrot.lane.b32.xlu0 %v4947, 64
      %v5542 = vpop.permute.xlu0 %5541
      %5543 = vrot.lane.b32.xlu0 %v4948, 64
      %v5544 = vpop.permute.xlu0 %5543
      %5545 = vrot.lane.b32.xlu0 %v4949, 64
      %v5546 = vpop.permute.xlu0 %5545
      %5547 = vrot.lane.b32.xlu0 %v4950, 64
      %v5548 = vpop.permute.xlu0 %5547
      %5549 = vrot.lane.b32.xlu0 %v4951, 64
      %v5550 = vpop.permute.xlu0 %5549
      %5551 = vrot.lane.b32.xlu0 %v4952, 64
      %v5552 = vpop.permute.xlu0 %5551
      %5553 = vrot.lane.b32.xlu0 %v4953, 64
      %v5554 = vpop.permute.xlu0 %5553
      %5555 = vrot.lane.b32.xlu0 %v4954, 64
      %v5556 = vpop.permute.xlu0 %5555
      %5557 = vrot.lane.b32.xlu0 %v4955, 64
      %v5558 = vpop.permute.xlu0 %5557
      %5559 = vrot.lane.b32.xlu0 %v4956, 64
      %v5560 = vpop.permute.xlu0 %5559
      %5561 = vrot.lane.b32.xlu0 %v4957, 64
      %v5562 = vpop.permute.xlu0 %5561
      %5563 = vrot.lane.b32.xlu0 %v4958, 64
      %v5564 = vpop.permute.xlu0 %5563
      %5565 = vrot.lane.b32.xlu0 %v4959, 64
      %v5566 = vpop.permute.xlu0 %5565
      %5567 = vrot.lane.b32.xlu0 %v4960, 64
      %v5568 = vpop.permute.xlu0 %5567
      %5633 = vrot.lane.b32.xlu0 %v4961, 80
      %v5634 = vpop.permute.xlu0 %5633
      %5635 = vrot.lane.b32.xlu0 %v4962, 80
      %v5636 = vpop.permute.xlu0 %5635
      %5637 = vrot.lane.b32.xlu0 %v4963, 80
      %v5638 = vpop.permute.xlu0 %5637
      %5639 = vrot.lane.b32.xlu0 %v4964, 80
      %v5640 = vpop.permute.xlu0 %5639
      %5641 = vrot.lane.b32.xlu0 %v4965, 80
      %v5642 = vpop.permute.xlu0 %5641
      %5643 = vrot.lane.b32.xlu0 %v4966, 80
      %v5644 = vpop.permute.xlu0 %5643
      %5645 = vrot.lane.b32.xlu0 %v4967, 80
      %v5646 = vpop.permute.xlu0 %5645
      %5647 = vrot.lane.b32.xlu0 %v4968, 80
      %v5648 = vpop.permute.xlu0 %5647
      %5649 = vrot.lane.b32.xlu0 %v4969, 80
      %v5650 = vpop.permute.xlu0 %5649
      %5651 = vrot.lane.b32.xlu0 %v4970, 80
      %v5652 = vpop.permute.xlu0 %5651
      %5653 = vrot.lane.b32.xlu0 %v4971, 80
      %v5654 = vpop.permute.xlu0 %5653
      %5655 = vrot.lane.b32.xlu0 %v4972, 80
      %v5656 = vpop.permute.xlu0 %5655
      %5657 = vrot.lane.b32.xlu0 %v4973, 80
      %v5658 = vpop.permute.xlu0 %5657
      %5659 = vrot.lane.b32.xlu0 %v4974, 80
      %v5660 = vpop.permute.xlu0 %5659
      %5661 = vrot.lane.b32.xlu0 %v4975, 80
      %v5662 = vpop.permute.xlu0 %5661
      %5663 = vrot.lane.b32.xlu0 %v4976, 80
      %v5664 = vpop.permute.xlu0 %5663
      %5665 = vrot.lane.b32.xlu0 %v4977, 80
      %v5666 = vpop.permute.xlu0 %5665
      %5667 = vrot.lane.b32.xlu0 %v4978, 80
      %v5668 = vpop.permute.xlu0 %5667
      %5669 = vrot.lane.b32.xlu0 %v4979, 80
      %v5670 = vpop.permute.xlu0 %5669
      %5671 = vrot.lane.b32.xlu0 %v4980, 80
      %v5672 = vpop.permute.xlu0 %5671
      %5673 = vrot.lane.b32.xlu0 %v4981, 80
      %v5674 = vpop.permute.xlu0 %5673
      %5675 = vrot.lane.b32.xlu0 %v4982, 80
      %v5676 = vpop.permute.xlu0 %5675
      %5677 = vrot.lane.b32.xlu0 %v4983, 80
      %v5678 = vpop.permute.xlu0 %5677
      %5679 = vrot.lane.b32.xlu0 %v4984, 80
      %v5680 = vpop.permute.xlu0 %5679
      %5681 = vrot.lane.b32.xlu0 %v4985, 80
      %v5682 = vpop.permute.xlu0 %5681
      %5683 = vrot.lane.b32.xlu0 %v4986, 80
      %v5684 = vpop.permute.xlu0 %5683
      %5685 = vrot.lane.b32.xlu0 %v4987, 80
      %v5686 = vpop.permute.xlu0 %5685
      %5687 = vrot.lane.b32.xlu0 %v4988, 80
      %v5688 = vpop.permute.xlu0 %5687
      %5689 = vrot.lane.b32.xlu0 %v4989, 80
      %v5690 = vpop.permute.xlu0 %5689
      %5691 = vrot.lane.b32.xlu0 %v4990, 80
      %v5692 = vpop.permute.xlu0 %5691
      %5693 = vrot.lane.b32.xlu0 %v4991, 80
      %v5694 = vpop.permute.xlu0 %5693
      %5695 = vrot.lane.b32.xlu0 %v4992, 80
      %v5696 = vpop.permute.xlu0 %5695
      %5761 = vrot.lane.b32.xlu0 %v4993, 96
      %v5762 = vpop.permute.xlu0 %5761
      %5763 = vrot.lane.b32.xlu0 %v4994, 96
      %v5764 = vpop.permute.xlu0 %5763
      %5765 = vrot.lane.b32.xlu0 %v4995, 96
      %v5766 = vpop.permute.xlu0 %5765
      %5767 = vrot.lane.b32.xlu0 %v4996, 96
      %v5768 = vpop.permute.xlu0 %5767
      %5769 = vrot.lane.b32.xlu0 %v4997, 96
      %v5770 = vpop.permute.xlu0 %5769
      %5771 = vrot.lane.b32.xlu0 %v4998, 96
      %v5772 = vpop.permute.xlu0 %5771
      %5773 = vrot.lane.b32.xlu0 %v4999, 96
      %v5774 = vpop.permute.xlu0 %5773
      %5775 = vrot.lane.b32.xlu0 %v5000, 96
      %v5776 = vpop.permute.xlu0 %5775
      %5777 = vrot.lane.b32.xlu0 %v5001, 96
      %v5778 = vpop.permute.xlu0 %5777
      %5779 = vrot.lane.b32.xlu0 %v5002, 96
      %v5780 = vpop.permute.xlu0 %5779
      %5781 = vrot.lane.b32.xlu0 %v5003, 96
      %v5782 = vpop.permute.xlu0 %5781
      %5783 = vrot.lane.b32.xlu0 %v5004, 96
      %v5784 = vpop.permute.xlu0 %5783
      %5785 = vrot.lane.b32.xlu0 %v5005, 96
      %v5786 = vpop.permute.xlu0 %5785
      %5787 = vrot.lane.b32.xlu0 %v5006, 96
      %v5788 = vpop.permute.xlu0 %5787
      %5789 = vrot.lane.b32.xlu0 %v5007, 96
      %v5790 = vpop.permute.xlu0 %5789
      %5791 = vrot.lane.b32.xlu0 %v5008, 96
      %v5792 = vpop.permute.xlu0 %5791
      %5793 = vrot.lane.b32.xlu0 %v5009, 96
      %v5794 = vpop.permute.xlu0 %5793
      %5795 = vrot.lane.b32.xlu0 %v5010, 96
      %v5796 = vpop.permute.xlu0 %5795
      %5797 = vrot.lane.b32.xlu0 %v5011, 96
      %v5798 = vpop.permute.xlu0 %5797
      %5799 = vrot.lane.b32.xlu0 %v5012, 96
      %v5800 = vpop.permute.xlu0 %5799
      %5801 = vrot.lane.b32.xlu0 %v5013, 96
      %v5802 = vpop.permute.xlu0 %5801
      %5803 = vrot.lane.b32.xlu0 %v5014, 96
      %v5804 = vpop.permute.xlu0 %5803
      %5805 = vrot.lane.b32.xlu0 %v5015, 96
      %v5806 = vpop.permute.xlu0 %5805
      %5807 = vrot.lane.b32.xlu0 %v5016, 96
      %v5808 = vpop.permute.xlu0 %5807
      %5809 = vrot.lane.b32.xlu0 %v5017, 96
      %v5810 = vpop.permute.xlu0 %5809
      %5811 = vrot.lane.b32.xlu0 %v5018, 96
      %v5812 = vpop.permute.xlu0 %5811
      %5813 = vrot.lane.b32.xlu0 %v5019, 96
      %v5814 = vpop.permute.xlu0 %5813
      %5815 = vrot.lane.b32.xlu0 %v5020, 96
      %v5816 = vpop.permute.xlu0 %5815
      %5817 = vrot.lane.b32.xlu0 %v5021, 96
      %v5818 = vpop.permute.xlu0 %5817
      %5819 = vrot.lane.b32.xlu0 %v5022, 96
      %v5820 = vpop.permute.xlu0 %5819
      %5821 = vrot.lane.b32.xlu0 %v5023, 96
      %v5822 = vpop.permute.xlu0 %5821
      %5823 = vrot.lane.b32.xlu0 %v5024, 96
      %v5824 = vpop.permute.xlu0 %5823
      %5889 = vrot.lane.b32.xlu0 %v5025, 112
      %v5890 = vpop.permute.xlu0 %5889
      %5891 = vrot.lane.b32.xlu0 %v5026, 112
      %v5892 = vpop.permute.xlu0 %5891
      %5893 = vrot.lane.b32.xlu0 %v5027, 112
      %v5894 = vpop.permute.xlu0 %5893
      %5895 = vrot.lane.b32.xlu0 %v5028, 112
      %v5896 = vpop.permute.xlu0 %5895
      %5897 = vrot.lane.b32.xlu0 %v5029, 112
      %v5898 = vpop.permute.xlu0 %5897
      %5899 = vrot.lane.b32.xlu0 %v5030, 112
      %v5900 = vpop.permute.xlu0 %5899
      %5901 = vrot.lane.b32.xlu0 %v5031, 112
      %v5902 = vpop.permute.xlu0 %5901
      %5903 = vrot.lane.b32.xlu0 %v5032, 112
      %v5904 = vpop.permute.xlu0 %5903
      %5905 = vrot.lane.b32.xlu0 %v5033, 112
      %v5906 = vpop.permute.xlu0 %5905
      %5907 = vrot.lane.b32.xlu0 %v5034, 112
      %v5908 = vpop.permute.xlu0 %5907
      %5909 = vrot.lane.b32.xlu0 %v5035, 112
      %v5910 = vpop.permute.xlu0 %5909
      %5911 = vrot.lane.b32.xlu0 %v5036, 112
      %v5912 = vpop.permute.xlu0 %5911
      %5913 = vrot.lane.b32.xlu0 %v5037, 112
      %v5914 = vpop.permute.xlu0 %5913
      %5915 = vrot.lane.b32.xlu0 %v5038, 112
      %v5916 = vpop.permute.xlu0 %5915
      %5917 = vrot.lane.b32.xlu0 %v5039, 112
      %v5918 = vpop.permute.xlu0 %5917
      %5919 = vrot.lane.b32.xlu0 %v5040, 112
      %v5920 = vpop.permute.xlu0 %5919
      %5921 = vrot.lane.b32.xlu0 %v5041, 112
      %v5922 = vpop.permute.xlu0 %5921
      %5923 = vrot.lane.b32.xlu0 %v5042, 112
      %v5924 = vpop.permute.xlu0 %5923
      %5925 = vrot.lane.b32.xlu0 %v5043, 112
      %v5926 = vpop.permute.xlu0 %5925
      %5927 = vrot.lane.b32.xlu0 %v5044, 112
      %v5928 = vpop.permute.xlu0 %5927
      %5929 = vrot.lane.b32.xlu0 %v5045, 112
      %v5930 = vpop.permute.xlu0 %5929
      %5931 = vrot.lane.b32.xlu0 %v5046, 112
      %v5932 = vpop.permute.xlu0 %5931
      %5933 = vrot.lane.b32.xlu0 %v5047, 112
      %v5934 = vpop.permute.xlu0 %5933
      %5935 = vrot.lane.b32.xlu0 %v5048, 112
      %v5936 = vpop.permute.xlu0 %5935
      %5937 = vrot.lane.b32.xlu0 %v5049, 112
      %v5938 = vpop.permute.xlu0 %5937
      %5939 = vrot.lane.b32.xlu0 %v5050, 112
      %v5940 = vpop.permute.xlu0 %5939
      %5941 = vrot.lane.b32.xlu0 %v5051, 112
      %v5942 = vpop.permute.xlu0 %5941
      %5943 = vrot.lane.b32.xlu0 %v5052, 112
      %v5944 = vpop.permute.xlu0 %5943
      %5945 = vrot.lane.b32.xlu0 %v5053, 112
      %v5946 = vpop.permute.xlu0 %5945
      %5947 = vrot.lane.b32.xlu0 %v5054, 112
      %v5948 = vpop.permute.xlu0 %5947
      %5949 = vrot.lane.b32.xlu0 %v5055, 112
      %v5950 = vpop.permute.xlu0 %5949
      %5951 = vrot.lane.b32.xlu0 %v5056, 112
      %v5952 = vpop.permute.xlu0 %5951
      %v5985 = vsel %vm864, %v4801, %v5122
      %v5986 = vsel %vm864, %v4802, %v5124
      %v5987 = vsel %vm864, %v4803, %v5126
      %v5988 = vsel %vm864, %v4804, %v5128
      %v5989 = vsel %vm864, %v4805, %v5130
      %v5990 = vsel %vm864, %v4806, %v5132
      %v5991 = vsel %vm864, %v4807, %v5134
      %v5992 = vsel %vm864, %v4808, %v5136
      %v5993 = vsel %vm864, %v4809, %v5138
      %v5994 = vsel %vm864, %v4810, %v5140
      %v5995 = vsel %vm864, %v4811, %v5142
      %v5996 = vsel %vm864, %v4812, %v5144
      %v5997 = vsel %vm864, %v4813, %v5146
      %v5998 = vsel %vm864, %v4814, %v5148
      %v5999 = vsel %vm864, %v4815, %v5150
      %v6000 = vsel %vm864, %v4816, %v5152
      %v6001 = vsel %vm864, %v4817, %v5154
      %v6002 = vsel %vm864, %v4818, %v5156
      %v6003 = vsel %vm864, %v4819, %v5158
      %v6004 = vsel %vm864, %v4820, %v5160
      %v6005 = vsel %vm864, %v4821, %v5162
      %v6006 = vsel %vm864, %v4822, %v5164
      %v6007 = vsel %vm864, %v4823, %v5166
      %v6008 = vsel %vm864, %v4824, %v5168
      %v6009 = vsel %vm864, %v4825, %v5170
      %v6010 = vsel %vm864, %v4826, %v5172
      %v6011 = vsel %vm864, %v4827, %v5174
      %v6012 = vsel %vm864, %v4828, %v5176
      %v6013 = vsel %vm864, %v4829, %v5178
      %v6014 = vsel %vm864, %v4830, %v5180
      %v6015 = vsel %vm864, %v4831, %v5182
      %v6016 = vsel %vm864, %v4832, %v5184
      %v6017 = vsel %vm2363, %v5985, %v5250
      %v6018 = vsel %vm2363, %v5986, %v5252
      %v6019 = vsel %vm2363, %v5987, %v5254
      %v6020 = vsel %vm2363, %v5988, %v5256
      %v6021 = vsel %vm2363, %v5989, %v5258
      %v6022 = vsel %vm2363, %v5990, %v5260
      %v6023 = vsel %vm2363, %v5991, %v5262
      %v6024 = vsel %vm2363, %v5992, %v5264
      %v6025 = vsel %vm2363, %v5993, %v5266
      %v6026 = vsel %vm2363, %v5994, %v5268
      %v6027 = vsel %vm2363, %v5995, %v5270
      %v6028 = vsel %vm2363, %v5996, %v5272
      %v6029 = vsel %vm2363, %v5997, %v5274
      %v6030 = vsel %vm2363, %v5998, %v5276
      %v6031 = vsel %vm2363, %v5999, %v5278
      %v6032 = vsel %vm2363, %v6000, %v5280
      %v6033 = vsel %vm2363, %v6001, %v5282
      %v6034 = vsel %vm2363, %v6002, %v5284
      %v6035 = vsel %vm2363, %v6003, %v5286
      %v6036 = vsel %vm2363, %v6004, %v5288
      %v6037 = vsel %vm2363, %v6005, %v5290
      %v6038 = vsel %vm2363, %v6006, %v5292
      %v6039 = vsel %vm2363, %v6007, %v5294
      %v6040 = vsel %vm2363, %v6008, %v5296
      %v6041 = vsel %vm2363, %v6009, %v5298
      %v6042 = vsel %vm2363, %v6010, %v5300
      %v6043 = vsel %vm2363, %v6011, %v5302
      %v6044 = vsel %vm2363, %v6012, %v5304
      %v6045 = vsel %vm2363, %v6013, %v5306
      %v6046 = vsel %vm2363, %v6014, %v5308
      %v6047 = vsel %vm2363, %v6015, %v5310
      %v6048 = vsel %vm2363, %v6016, %v5312
      %v6049 = vsel %vm2429, %v6017, %v5378
      %v6050 = vsel %vm2429, %v6018, %v5380
      %v6051 = vsel %vm2429, %v6019, %v5382
      %v6052 = vsel %vm2429, %v6020, %v5384
      %v6053 = vsel %vm2429, %v6021, %v5386
      %v6054 = vsel %vm2429, %v6022, %v5388
      %v6055 = vsel %vm2429, %v6023, %v5390
      %v6056 = vsel %vm2429, %v6024, %v5392
      %v6057 = vsel %vm2429, %v6025, %v5394
      %v6058 = vsel %vm2429, %v6026, %v5396
      %v6059 = vsel %vm2429, %v6027, %v5398
      %v6060 = vsel %vm2429, %v6028, %v5400
      %v6061 = vsel %vm2429, %v6029, %v5402
      %v6062 = vsel %vm2429, %v6030, %v5404
      %v6063 = vsel %vm2429, %v6031, %v5406
      %v6064 = vsel %vm2429, %v6032, %v5408
      %v6065 = vsel %vm2429, %v6033, %v5410
      %v6066 = vsel %vm2429, %v6034, %v5412
      %v6067 = vsel %vm2429, %v6035, %v5414
      %v6068 = vsel %vm2429, %v6036, %v5416
      %v6069 = vsel %vm2429, %v6037, %v5418
      %v6070 = vsel %vm2429, %v6038, %v5420
      %v6071 = vsel %vm2429, %v6039, %v5422
      %v6072 = vsel %vm2429, %v6040, %v5424
      %v6073 = vsel %vm2429, %v6041, %v5426
      %v6074 = vsel %vm2429, %v6042, %v5428
      %v6075 = vsel %vm2429, %v6043, %v5430
      %v6076 = vsel %vm2429, %v6044, %v5432
      %v6077 = vsel %vm2429, %v6045, %v5434
      %v6078 = vsel %vm2429, %v6046, %v5436
      %v6079 = vsel %vm2429, %v6047, %v5438
      %v6080 = vsel %vm2429, %v6048, %v5440
      %v6081 = vsel %vm2495, %v6049, %v5506
      %v6082 = vsel %vm2495, %v6050, %v5508
      %v6083 = vsel %vm2495, %v6051, %v5510
      %v6084 = vsel %vm2495, %v6052, %v5512
      %v6085 = vsel %vm2495, %v6053, %v5514
      %v6086 = vsel %vm2495, %v6054, %v5516
      %v6087 = vsel %vm2495, %v6055, %v5518
      %v6088 = vsel %vm2495, %v6056, %v5520
      %v6089 = vsel %vm2495, %v6057, %v5522
      %v6090 = vsel %vm2495, %v6058, %v5524
      %v6091 = vsel %vm2495, %v6059, %v5526
      %v6092 = vsel %vm2495, %v6060, %v5528
      %v6093 = vsel %vm2495, %v6061, %v5530
      %v6094 = vsel %vm2495, %v6062, %v5532
      %v6095 = vsel %vm2495, %v6063, %v5534
      %v6096 = vsel %vm2495, %v6064, %v5536
      %v6097 = vsel %vm2495, %v6065, %v5538
      %v6098 = vsel %vm2495, %v6066, %v5540
      %v6099 = vsel %vm2495, %v6067, %v5542
      %v6100 = vsel %vm2495, %v6068, %v5544
      %v6101 = vsel %vm2495, %v6069, %v5546
      %v6102 = vsel %vm2495, %v6070, %v5548
      %v6103 = vsel %vm2495, %v6071, %v5550
      %v6104 = vsel %vm2495, %v6072, %v5552
      %v6105 = vsel %vm2495, %v6073, %v5554
      %v6106 = vsel %vm2495, %v6074, %v5556
      %v6107 = vsel %vm2495, %v6075, %v5558
      %v6108 = vsel %vm2495, %v6076, %v5560
      %v6109 = vsel %vm2495, %v6077, %v5562
      %v6110 = vsel %vm2495, %v6078, %v5564
      %v6111 = vsel %vm2495, %v6079, %v5566
      %v6112 = vsel %vm2495, %v6080, %v5568
      %v6113 = vsel %vm4247, %v6081, %v5634
      %v6114 = vsel %vm4247, %v6082, %v5636
      %v6115 = vsel %vm4247, %v6083, %v5638
      %v6116 = vsel %vm4247, %v6084, %v5640
      %v6117 = vsel %vm4247, %v6085, %v5642
      %v6118 = vsel %vm4247, %v6086, %v5644
      %v6119 = vsel %vm4247, %v6087, %v5646
      %v6120 = vsel %vm4247, %v6088, %v5648
      %v6121 = vsel %vm4247, %v6089, %v5650
      %v6122 = vsel %vm4247, %v6090, %v5652
      %v6123 = vsel %vm4247, %v6091, %v5654
      %v6124 = vsel %vm4247, %v6092, %v5656
      %v6125 = vsel %vm4247, %v6093, %v5658
      %v6126 = vsel %vm4247, %v6094, %v5660
      %v6127 = vsel %vm4247, %v6095, %v5662
      %v6128 = vsel %vm4247, %v6096, %v5664
      %v6129 = vsel %vm4247, %v6097, %v5666
      %v6130 = vsel %vm4247, %v6098, %v5668
      %v6131 = vsel %vm4247, %v6099, %v5670
      %v6132 = vsel %vm4247, %v6100, %v5672
      %v6133 = vsel %vm4247, %v6101, %v5674
      %v6134 = vsel %vm4247, %v6102, %v5676
      %v6135 = vsel %vm4247, %v6103, %v5678
      %v6136 = vsel %vm4247, %v6104, %v5680
      %v6137 = vsel %vm4247, %v6105, %v5682
      %v6138 = vsel %vm4247, %v6106, %v5684
      %v6139 = vsel %vm4247, %v6107, %v5686
      %v6140 = vsel %vm4247, %v6108, %v5688
      %v6141 = vsel %vm4247, %v6109, %v5690
      %v6142 = vsel %vm4247, %v6110, %v5692
      %v6143 = vsel %vm4247, %v6111, %v5694
      %v6144 = vsel %vm4247, %v6112, %v5696
      %v6145 = vsel %vm4280, %v6113, %v5762
      %v6146 = vsel %vm4280, %v6114, %v5764
      %v6147 = vsel %vm4280, %v6115, %v5766
      %v6148 = vsel %vm4280, %v6116, %v5768
      %v6149 = vsel %vm4280, %v6117, %v5770
      %v6150 = vsel %vm4280, %v6118, %v5772
      %v6151 = vsel %vm4280, %v6119, %v5774
      %v6152 = vsel %vm4280, %v6120, %v5776
      %v6153 = vsel %vm4280, %v6121, %v5778
      %v6154 = vsel %vm4280, %v6122, %v5780
      %v6155 = vsel %vm4280, %v6123, %v5782
      %v6156 = vsel %vm4280, %v6124, %v5784
      %v6157 = vsel %vm4280, %v6125, %v5786
      %v6158 = vsel %vm4280, %v6126, %v5788
      %v6159 = vsel %vm4280, %v6127, %v5790
      %v6160 = vsel %vm4280, %v6128, %v5792
      %v6161 = vsel %vm4280, %v6129, %v5794
      %v6162 = vsel %vm4280, %v6130, %v5796
      %v6163 = vsel %vm4280, %v6131, %v5798
      %v6164 = vsel %vm4280, %v6132, %v5800
      %v6165 = vsel %vm4280, %v6133, %v5802
      %v6166 = vsel %vm4280, %v6134, %v5804
      %v6167 = vsel %vm4280, %v6135, %v5806
      %v6168 = vsel %vm4280, %v6136, %v5808
      %v6169 = vsel %vm4280, %v6137, %v5810
      %v6170 = vsel %vm4280, %v6138, %v5812
      %v6171 = vsel %vm4280, %v6139, %v5814
      %v6172 = vsel %vm4280, %v6140, %v5816
      %v6173 = vsel %vm4280, %v6141, %v5818
      %v6174 = vsel %vm4280, %v6142, %v5820
      %v6175 = vsel %vm4280, %v6143, %v5822
      %v6176 = vsel %vm4280, %v6144, %v5824
      %v6177 = vsel %vm4313, %v6145, %v5890
      %v6178 = vsel %vm4313, %v6146, %v5892
      %v6179 = vsel %vm4313, %v6147, %v5894
      %v6180 = vsel %vm4313, %v6148, %v5896
      %v6181 = vsel %vm4313, %v6149, %v5898
      %v6182 = vsel %vm4313, %v6150, %v5900
      %v6183 = vsel %vm4313, %v6151, %v5902
      %v6184 = vsel %vm4313, %v6152, %v5904
      %v6185 = vsel %vm4313, %v6153, %v5906
      %v6186 = vsel %vm4313, %v6154, %v5908
      %v6187 = vsel %vm4313, %v6155, %v5910
      %v6188 = vsel %vm4313, %v6156, %v5912
      %v6189 = vsel %vm4313, %v6157, %v5914
      %v6190 = vsel %vm4313, %v6158, %v5916
      %v6191 = vsel %vm4313, %v6159, %v5918
      %v6192 = vsel %vm4313, %v6160, %v5920
      %v6193 = vsel %vm4313, %v6161, %v5922
      %v6194 = vsel %vm4313, %v6162, %v5924
      %v6195 = vsel %vm4313, %v6163, %v5926
      %v6196 = vsel %vm4313, %v6164, %v5928
      %v6197 = vsel %vm4313, %v6165, %v5930
      %v6198 = vsel %vm4313, %v6166, %v5932
      %v6199 = vsel %vm4313, %v6167, %v5934
      %v6200 = vsel %vm4313, %v6168, %v5936
      %v6201 = vsel %vm4313, %v6169, %v5938
      %v6202 = vsel %vm4313, %v6170, %v5940
      %v6203 = vsel %vm4313, %v6171, %v5942
      %v6204 = vsel %vm4313, %v6172, %v5944
      %v6205 = vsel %vm4313, %v6173, %v5946
      %v6206 = vsel %vm4313, %v6174, %v5948
      %v6207 = vsel %vm4313, %v6175, %v5950
      %v6208 = vsel %vm4313, %v6176, %v5952
      %v6209 = vpack.c.bf16 %v6178, %v6177
      %v6210 = vpack.c.bf16 %v5058, %v5057
      %v6211 = vpack.c.bf16 %v6180, %v6179
      %v6212 = vpack.c.bf16 %v5060, %v5059
      %v6213 = vpack.c.bf16 %v6182, %v6181
      %v6214 = vpack.c.bf16 %v5062, %v5061
      %v6215 = vpack.c.bf16 %v6184, %v6183
      %v6216 = vpack.c.bf16 %v5064, %v5063
      %v6217 = vpack.c.bf16 %v6186, %v6185
      %v6218 = vpack.c.bf16 %v5066, %v5065
      %v6219 = vpack.c.bf16 %v6188, %v6187
      %v6220 = vpack.c.bf16 %v5068, %v5067
      %v6221 = vpack.c.bf16 %v6190, %v6189
      %v6222 = vpack.c.bf16 %v5070, %v5069
      %v6223 = vpack.c.bf16 %v6192, %v6191
      %v6224 = vpack.c.bf16 %v5072, %v5071
      %v6225 = vpack.c.bf16 %v6194, %v6193
      %v6226 = vpack.c.bf16 %v5074, %v5073
      %v6227 = vpack.c.bf16 %v6196, %v6195
      %v6228 = vpack.c.bf16 %v5076, %v5075
      %v6229 = vpack.c.bf16 %v6198, %v6197
      %v6230 = vpack.c.bf16 %v5078, %v5077
      %v6231 = vpack.c.bf16 %v6200, %v6199
      %v6232 = vpack.c.bf16 %v5080, %v5079
      %v6233 = vpack.c.bf16 %v6202, %v6201
      %v6234 = vpack.c.bf16 %v5082, %v5081
      %v6235 = vpack.c.bf16 %v6204, %v6203
      %v6236 = vpack.c.bf16 %v5084, %v5083
      %v6237 = vpack.c.bf16 %v6206, %v6205
      %v6238 = vpack.c.bf16 %v5086, %v5085
      %v6239 = vpack.c.bf16 %v6208, %v6207
      %v6240 = vpack.c.bf16 %v5088, %v5087
      %v6241 = vld [vmem:[%s7] sm:$0xf]
      %v6242 = vld [vmem:[%s7 + $0x4] sm:$0xf]
      %v6243 = vld [vmem:[%s7 + $0x8] sm:$0xf]
      %v6244 = vld [vmem:[%s7 + $0xc] sm:$0xf]
      %v6245 = vld [vmem:[%s7 + $0x10] sm:$0xf]
      %v6246 = vld [vmem:[%s7 + $0x14] sm:$0xf]
      %v6247 = vld [vmem:[%s7 + $0x18] sm:$0xf]
      %v6248 = vld [vmem:[%s7 + $0x1c] sm:$0xf]
      %v6249 = vld [vmem:[%s7 + $0x20] sm:$0xf]
      %v6250 = vld [vmem:[%s7 + $0x24] sm:$0xf]
      %v6251 = vld [vmem:[%s7 + $0x28] sm:$0xf]
      %v6252 = vld [vmem:[%s7 + $0x2c] sm:$0xf]
      %v6253 = vld [vmem:[%s7 + $0x30] sm:$0xf]
      %v6254 = vld [vmem:[%s7 + $0x34] sm:$0xf]
      %v6255 = vld [vmem:[%s7 + $0x38] sm:$0xf]
      %v6256 = vld [vmem:[%s7 + $0x3c] sm:$0xf]
      %v6257 = vld [vmem:[%s7 + $0x40] sm:$0xf]
      %v6258 = vld [vmem:[%s7 + $0x44] sm:$0xf]
      %v6277 = vunpack.c.l.b16 %v6241
      %v6278 = vunpack.c.l.b16 %v6242
      %v6279 = vunpack.c.l.b16 %v6243
      %v6280 = vunpack.c.l.b16 %v6244
      %v6281 = vunpack.c.l.b16 %v6245
      %v6282 = vunpack.c.l.b16 %v6246
      %v6283 = vunpack.c.l.b16 %v6247
      %v6284 = vunpack.c.l.b16 %v6248
      %v6285 = vunpack.c.l.b16 %v6249
      %v6286 = vunpack.c.l.b16 %v6250
      %v6287 = vunpack.c.l.b16 %v6251
      %v6288 = vunpack.c.l.b16 %v6252
      %v6289 = vunpack.c.l.b16 %v6253
      %v6290 = vunpack.c.l.b16 %v6254
      %v6291 = vunpack.c.l.b16 %v6255
      %v6292 = vunpack.c.l.b16 %v6256
      %v6293 = vunpack.c.l.b16 %v6257
      %v6294 = vunpack.c.l.b16 %v6258
      %v6295 = vpack.c.b16 %v6278, %v6277
      %v6296 = vpack.c.b16 %v6280, %v6279
      %v6297 = vpack.c.b16 %v6282, %v6281
      %v6298 = vpack.c.b16 %v6284, %v6283
      %v6299 = vpack.c.b16 %v6286, %v6285
      %v6300 = vpack.c.b16 %v6288, %v6287
      %v6301 = vpack.c.b16 %v6290, %v6289
      %v6302 = vpack.c.b16 %v6292, %v6291
      %v6303 = vpack.c.b16 %v6294, %v6293
      %v6314 = vsel %vm864, %v6210, 0
      %v6317 = vsel %vm864, %v6212, 0
      %v6320 = vsel %vm864, %v6214, 0
      %v6323 = vsel %vm864, %v6216, 0
      %v6326 = vsel %vm864, %v6218, 0
      %v6329 = vsel %vm864, %v6220, 0
      %v6332 = vsel %vm864, %v6222, 0
      %v6335 = vsel %vm864, %v6224, 0
      %v6338 = vsel %vm864, %v6226, 0
      %v6341 = vsel %vm864, %v6228, 0
      %v6344 = vsel %vm864, %v6230, 0
      %v6347 = vsel %vm864, %v6232, 0
      %v6350 = vsel %vm864, %v6234, 0
      %v6353 = vsel %vm864, %v6236, 0
      %v6356 = vsel %vm864, %v6238, 0
      %v6359 = vsel %vm864, %v6240, 0
      %6361 = vmatprep.subr.bf16.mxu0 0
      %6362 = vmatpush1.bf16.msra.mxu0 %v6302
      %6363 = vmatprep.subr.bf16.mxu0 0
      %6364 = vmatpush1.bf16.msra.mxu0 %v6301
      %6365 = vmatprep.subr.bf16.mxu0 0
      %6366 = vmatpush1.bf16.msra.mxu0 %v6300
      %6367 = vmatprep.subr.bf16.mxu0 0
      %6368 = vmatpush1.bf16.msra.mxu0 %v6299
      %6369 = vmatprep.subr.bf16.mxu0 0
      %6370 = vmatpush1.bf16.msra.mxu0 %v6298
      %6371 = vmatprep.subr.bf16.mxu0 0
      %6372 = vmatpush1.bf16.msra.mxu0 %v6297
      %6373 = vmatprep.subr.bf16.mxu0 0
      %6374 = vmatpush1.bf16.msra.mxu0 %v6296
      %6375 = vmatprep.subr.bf16.mxu0 0
      %6376 = vmatpush1.bf16.msra.mxu0 %v6295
      %6377 = vmatprep.subr.bf16.mxu0 0
      %6378 = vmatpush2.bf16.msra.mxu0 0
      %6379 = vmatprep.subr.bf16.mxu0 0
      %6380 = vmatpush2.bf16.msra.mxu0 0
      %6381 = vmatprep.subr.bf16.mxu0 0
      %6382 = vmatpush2.bf16.msra.mxu0 0
      %6383 = vmatprep.subr.bf16.mxu0 0
      %6384 = vmatpush2.bf16.msra.mxu0 0
      %6385 = vmatprep.subr.bf16.mxu0 0
      %6386 = vmatpush2.bf16.msra.mxu0 0
      %6387 = vmatprep.subr.bf16.mxu0 0
      %6388 = vmatpush2.bf16.msra.mxu0 0
      %6389 = vmatprep.subr.bf16.mxu0 0
      %6390 = vmatpush2.bf16.msra.mxu0 0
      %6391 = vmatprep.subr.bf16.mxu0 0
      %6392 = vmatpush2.bf16.msra.mxu0 %v6303
      %6393 = vmatprep.mubr.bf16.mxu0 %v6314
      %6394 = vmatmul.mubr.bf16.gmra.mxu0 %v6209
      %v6395 = vpop.f32.mrf.mxu0
      %v6396 = vadd.f32 0.0, %v6395
      %v6397 = vpop.f32.mrf.mxu0
      %v6398 = vpop.f32.mrf.mxu0
      %v6399 = vadd.f32 0.0, %v6398
      %v6400 = vpop.f32.mrf.mxu0
      %6401 = vmatprep.mubr.bf16.mxu0 %v6317
      %6402 = vmatmul.mubr.bf16.gmra.mxu0 %v6211
      %v6403 = vpop.f32.mrf.mxu0
      %v6404 = vadd.f32 0.0, %v6403
      %v6405 = vpop.f32.mrf.mxu0
      %v6406 = vpop.f32.mrf.mxu0
      %v6407 = vadd.f32 0.0, %v6406
      %v6408 = vpop.f32.mrf.mxu0
      %6409 = vmatprep.mubr.bf16.mxu0 %v6320
      %6410 = vmatmul.mubr.bf16.gmra.mxu0 %v6213
      %v6411 = vpop.f32.mrf.mxu0
      %v6412 = vadd.f32 0.0, %v6411
      %v6413 = vpop.f32.mrf.mxu0
      %v6414 = vpop.f32.mrf.mxu0
      %v6415 = vadd.f32 0.0, %v6414
      %v6416 = vpop.f32.mrf.mxu0
      %6417 = vmatprep.mubr.bf16.mxu0 %v6323
      %6418 = vmatmul.mubr.bf16.gmra.mxu0 %v6215
      %v6419 = vpop.f32.mrf.mxu0
      %v6420 = vadd.f32 0.0, %v6419
      %v6421 = vpop.f32.mrf.mxu0
      %v6422 = vpop.f32.mrf.mxu0
      %v6423 = vadd.f32 0.0, %v6422
      %v6424 = vpop.f32.mrf.mxu0
      %6425 = vmatprep.mubr.bf16.mxu0 %v6326
      %6426 = vmatmul.mubr.bf16.gmra.mxu0 %v6217
      %v6427 = vpop.f32.mrf.mxu0
      %v6428 = vadd.f32 0.0, %v6427
      %v6429 = vpop.f32.mrf.mxu0
      %v6430 = vpop.f32.mrf.mxu0
      %v6431 = vadd.f32 0.0, %v6430
      %v6432 = vpop.f32.mrf.mxu0
      %6433 = vmatprep.mubr.bf16.mxu0 %v6329
      %6434 = vmatmul.mubr.bf16.gmra.mxu0 %v6219
      %v6435 = vpop.f32.mrf.mxu0
      %v6436 = vadd.f32 0.0, %v6435
      %v6437 = vpop.f32.mrf.mxu0
      %v6438 = vpop.f32.mrf.mxu0
      %v6439 = vadd.f32 0.0, %v6438
      %v6440 = vpop.f32.mrf.mxu0
      %6441 = vmatprep.mubr.bf16.mxu0 %v6332
      %6442 = vmatmul.mubr.bf16.gmra.mxu0 %v6221
      %v6443 = vpop.f32.mrf.mxu0
      %v6444 = vadd.f32 0.0, %v6443
      %v6445 = vpop.f32.mrf.mxu0
      %v6446 = vpop.f32.mrf.mxu0
      %v6447 = vadd.f32 0.0, %v6446
      %v6448 = vpop.f32.mrf.mxu0
      %6449 = vmatprep.mubr.bf16.mxu0 %v6335
      %6450 = vmatmul.mubr.bf16.gmra.mxu0 %v6223
      %v6451 = vpop.f32.mrf.mxu0
      %v6452 = vadd.f32 0.0, %v6451
      %v6453 = vpop.f32.mrf.mxu0
      %v6454 = vpop.f32.mrf.mxu0
      %v6455 = vadd.f32 0.0, %v6454
      %v6456 = vpop.f32.mrf.mxu0
      %6457 = vmatprep.mubr.bf16.mxu0 %v6338
      %6458 = vmatmul.mubr.bf16.gmra.mxu0 %v6225
      %v6459 = vpop.f32.mrf.mxu0
      %v6460 = vadd.f32 0.0, %v6459
      %v6461 = vpop.f32.mrf.mxu0
      %v6462 = vpop.f32.mrf.mxu0
      %v6463 = vadd.f32 0.0, %v6462
      %v6464 = vpop.f32.mrf.mxu0
      %6465 = vmatprep.mubr.bf16.mxu0 %v6341
      %6466 = vmatmul.mubr.bf16.gmra.mxu0 %v6227
      %v6467 = vpop.f32.mrf.mxu0
      %v6468 = vadd.f32 0.0, %v6467
      %v6469 = vpop.f32.mrf.mxu0
      %v6470 = vpop.f32.mrf.mxu0
      %v6471 = vadd.f32 0.0, %v6470
      %v6472 = vpop.f32.mrf.mxu0
      %6473 = vmatprep.mubr.bf16.mxu0 %v6344
      %6474 = vmatmul.mubr.bf16.gmra.mxu0 %v6229
      %v6475 = vpop.f32.mrf.mxu0
      %v6476 = vadd.f32 0.0, %v6475
      %v6477 = vpop.f32.mrf.mxu0
      %v6478 = vpop.f32.mrf.mxu0
      %v6479 = vadd.f32 0.0, %v6478
      %v6480 = vpop.f32.mrf.mxu0
      %6481 = vmatprep.mubr.bf16.mxu0 %v6347
      %6482 = vmatmul.mubr.bf16.gmra.mxu0 %v6231
      %v6483 = vpop.f32.mrf.mxu0
      %v6484 = vadd.f32 0.0, %v6483
      %v6485 = vpop.f32.mrf.mxu0
      %v6486 = vpop.f32.mrf.mxu0
      %v6487 = vadd.f32 0.0, %v6486
      %v6488 = vpop.f32.mrf.mxu0
      %6489 = vmatprep.mubr.bf16.mxu0 %v6350
      %6490 = vmatmul.mubr.bf16.gmra.mxu0 %v6233
      %v6491 = vpop.f32.mrf.mxu0
      %v6492 = vadd.f32 0.0, %v6491
      %v6493 = vpop.f32.mrf.mxu0
      %v6494 = vpop.f32.mrf.mxu0
      %v6495 = vadd.f32 0.0, %v6494
      %v6496 = vpop.f32.mrf.mxu0
      %6497 = vmatprep.mubr.bf16.mxu0 %v6353
      %6498 = vmatmul.mubr.bf16.gmra.mxu0 %v6235
      %v6499 = vpop.f32.mrf.mxu0
      %v6500 = vadd.f32 0.0, %v6499
      %v6501 = vpop.f32.mrf.mxu0
      %v6502 = vpop.f32.mrf.mxu0
      %v6503 = vadd.f32 0.0, %v6502
      %v6504 = vpop.f32.mrf.mxu0
      %6505 = vmatprep.mubr.bf16.mxu0 %v6356
      %6506 = vmatmul.mubr.bf16.gmra.mxu0 %v6237
      %v6507 = vpop.f32.mrf.mxu0
      %v6508 = vadd.f32 0.0, %v6507
      %v6509 = vpop.f32.mrf.mxu0
      %v6510 = vpop.f32.mrf.mxu0
      %v6511 = vadd.f32 0.0, %v6510
      %v6512 = vpop.f32.mrf.mxu0
      %6513 = vmatprep.mubr.bf16.mxu0 %v6359
      %6514 = vmatmul.mubr.bf16.gmra.mxu0 %v6239
      %v6515 = vpop.f32.mrf.mxu0
      %v6516 = vadd.f32 0.0, %v6515
      %v6517 = vpop.f32.mrf.mxu0
      %v6518 = vpop.f32.mrf.mxu0
      %v6519 = vadd.f32 0.0, %v6518
      %v6520 = vpop.f32.mrf.mxu0
      %6521 = vdwg.mxu0
      %v6522 = vld [vmem:[%s8] sm:$0x1]
      %v6524 = vlaneseq
      %v6525 = vshrl.u32 %v6524, 7
      %v6526 = vsub.s32 0, %v6525
      %v6527 = vrot.slane %v6522, %v6526
      %v6529 = vmul.f32 %v6396, %v6527
      %v6530 = vmul.f32 %v6399, %v6527
      %v6531 = vmul.f32 %v6404, %v6527
      %v6532 = vmul.f32 %v6407, %v6527
      %v6533 = vmul.f32 %v6412, %v6527
      %v6534 = vmul.f32 %v6415, %v6527
      %v6535 = vmul.f32 %v6420, %v6527
      %v6536 = vmul.f32 %v6423, %v6527
      %v6537 = vmul.f32 %v6428, %v6527
      %v6538 = vmul.f32 %v6431, %v6527
      %v6539 = vmul.f32 %v6436, %v6527
      %v6540 = vmul.f32 %v6439, %v6527
      %v6541 = vmul.f32 %v6444, %v6527
      %v6542 = vmul.f32 %v6447, %v6527
      %v6543 = vmul.f32 %v6452, %v6527
      %v6544 = vmul.f32 %v6455, %v6527
      %v6545 = vmul.f32 %v6460, %v6527
      %v6546 = vmul.f32 %v6463, %v6527
      %v6547 = vmul.f32 %v6468, %v6527
      %v6548 = vmul.f32 %v6471, %v6527
      %v6549 = vmul.f32 %v6476, %v6527
      %v6550 = vmul.f32 %v6479, %v6527
      %v6551 = vmul.f32 %v6484, %v6527
      %v6552 = vmul.f32 %v6487, %v6527
      %v6553 = vmul.f32 %v6492, %v6527
      %v6554 = vmul.f32 %v6495, %v6527
      %v6555 = vmul.f32 %v6500, %v6527
      %v6556 = vmul.f32 %v6503, %v6527
      %v6557 = vmul.f32 %v6508, %v6527
      %v6558 = vmul.f32 %v6511, %v6527
      %v6559 = vmul.f32 %v6516, %v6527
      %v6560 = vmul.f32 %v6519, %v6527
      %v6561 = vld [vmem:[%s9] sm:$0x1]
      %v6563 = vlaneseq
      %v6564 = vshrl.u32 %v6563, 7
      %v6565 = vsub.s32 0, %v6564
      %v6566 = vrot.slane %v6561, %v6565
      %v6568 = vadd.f32 %v6529, %v6566
      %v6569 = vadd.f32 %v6530, %v6566
      %v6570 = vadd.f32 %v6531, %v6566
      %v6571 = vadd.f32 %v6532, %v6566
      %v6572 = vadd.f32 %v6533, %v6566
      %v6573 = vadd.f32 %v6534, %v6566
      %v6574 = vadd.f32 %v6535, %v6566
      %v6575 = vadd.f32 %v6536, %v6566
      %v6576 = vadd.f32 %v6537, %v6566
      %v6577 = vadd.f32 %v6538, %v6566
      %v6578 = vadd.f32 %v6539, %v6566
      %v6579 = vadd.f32 %v6540, %v6566
      %v6580 = vadd.f32 %v6541, %v6566
      %v6581 = vadd.f32 %v6542, %v6566
      %v6582 = vadd.f32 %v6543, %v6566
      %v6583 = vadd.f32 %v6544, %v6566
      %v6584 = vadd.f32 %v6545, %v6566
      %v6585 = vadd.f32 %v6546, %v6566
      %v6586 = vadd.f32 %v6547, %v6566
      %v6587 = vadd.f32 %v6548, %v6566
      %v6588 = vadd.f32 %v6549, %v6566
      %v6589 = vadd.f32 %v6550, %v6566
      %v6590 = vadd.f32 %v6551, %v6566
      %v6591 = vadd.f32 %v6552, %v6566
      %v6592 = vadd.f32 %v6553, %v6566
      %v6593 = vadd.f32 %v6554, %v6566
      %v6594 = vadd.f32 %v6555, %v6566
      %v6595 = vadd.f32 %v6556, %v6566
      %v6596 = vadd.f32 %v6557, %v6566
      %v6597 = vadd.f32 %v6558, %v6566
      %v6598 = vadd.f32 %v6559, %v6566
      %v6599 = vadd.f32 %v6560, %v6566
      %v6600 = vmax.f32 %v6568, 0.0
      %v6601 = vmax.f32 %v6569, 0.0
      %v6602 = vmax.f32 %v6570, 0.0
      %v6603 = vmax.f32 %v6571, 0.0
      %v6604 = vmax.f32 %v6572, 0.0
      %v6605 = vmax.f32 %v6573, 0.0
      %v6606 = vmax.f32 %v6574, 0.0
      %v6607 = vmax.f32 %v6575, 0.0
      %v6608 = vmax.f32 %v6576, 0.0
      %v6609 = vmax.f32 %v6577, 0.0
      %v6610 = vmax.f32 %v6578, 0.0
      %v6611 = vmax.f32 %v6579, 0.0
      %v6612 = vmax.f32 %v6580, 0.0
      %v6613 = vmax.f32 %v6581, 0.0
      %v6614 = vmax.f32 %v6582, 0.0
      %v6615 = vmax.f32 %v6583, 0.0
      %v6616 = vmax.f32 %v6584, 0.0
      %v6617 = vmax.f32 %v6585, 0.0
      %v6618 = vmax.f32 %v6586, 0.0
      %v6619 = vmax.f32 %v6587, 0.0
      %v6620 = vmax.f32 %v6588, 0.0
      %v6621 = vmax.f32 %v6589, 0.0
      %v6622 = vmax.f32 %v6590, 0.0
      %v6623 = vmax.f32 %v6591, 0.0
      %v6624 = vmax.f32 %v6592, 0.0
      %v6625 = vmax.f32 %v6593, 0.0
      %v6626 = vmax.f32 %v6594, 0.0
      %v6627 = vmax.f32 %v6595, 0.0
      %v6628 = vmax.f32 %v6596, 0.0
      %v6629 = vmax.f32 %v6597, 0.0
      %v6630 = vmax.f32 %v6598, 0.0
      %v6631 = vmax.f32 %v6599, 0.0
      %6632 = vst.msk [vmem:[%s920 + $0x1] sm:$0xff] %vm864, %v6600
      %6633 = vst.msk [vmem:[%s920 + $0x9] sm:$0xff] %vm864, %v6601
      %6634 = vst.msk [vmem:[%s920 + $0x19] sm:$0xff] %vm864, %v6602
      %6635 = vst.msk [vmem:[%s920 + $0x21] sm:$0xff] %vm864, %v6603
      %6636 = vst.msk [vmem:[%s920 + $0x31] sm:$0xff] %vm864, %v6604
      %6637 = vst.msk [vmem:[%s920 + $0x39] sm:$0xff] %vm864, %v6605
      %6638 = vst.msk [vmem:[%s920 + $0x49] sm:$0xff] %vm864, %v6606
      %6639 = vst.msk [vmem:[%s920 + $0x51] sm:$0xff] %vm864, %v6607
      %6640 = vst.msk [vmem:[%s920 + $0x61] sm:$0xff] %vm864, %v6608
      %6641 = vst.msk [vmem:[%s920 + $0x69] sm:$0xff] %vm864, %v6609
      %6642 = vst.msk [vmem:[%s920 + $0x79] sm:$0xff] %vm864, %v6610
      %6643 = vst.msk [vmem:[%s920 + $0x81] sm:$0xff] %vm864, %v6611
      %6644 = vst.msk [vmem:[%s920 + $0x91] sm:$0xff] %vm864, %v6612
      %6645 = vst.msk [vmem:[%s920 + $0x99] sm:$0xff] %vm864, %v6613
      %6646 = vst.msk [vmem:[%s920 + $0xa9] sm:$0xff] %vm864, %v6614
      %6647 = vst.msk [vmem:[%s920 + $0xb1] sm:$0xff] %vm864, %v6615
      %6648 = vst.msk [vmem:[%s920 + $0xc1] sm:$0xff] %vm864, %v6616
      %6649 = vst.msk [vmem:[%s920 + $0xc9] sm:$0xff] %vm864, %v6617
      %6650 = vst.msk [vmem:[%s920 + $0xd9] sm:$0xff] %vm864, %v6618
      %6651 = vst.msk [vmem:[%s920 + $0xe1] sm:$0xff] %vm864, %v6619
      %6652 = vst.msk [vmem:[%s920 + $0xf1] sm:$0xff] %vm864, %v6620
      %6653 = vst.msk [vmem:[%s920 + $0xf9] sm:$0xff] %vm864, %v6621
      %6654 = vst.msk [vmem:[%s920 + $0x109] sm:$0xff] %vm864, %v6622
      %6655 = vst.msk [vmem:[%s920 + $0x111] sm:$0xff] %vm864, %v6623
      %6656 = vst.msk [vmem:[%s920 + $0x121] sm:$0xff] %vm864, %v6624
      %6657 = vst.msk [vmem:[%s920 + $0x129] sm:$0xff] %vm864, %v6625
      %6658 = vst.msk [vmem:[%s920 + $0x139] sm:$0xff] %vm864, %v6626
      %6659 = vst.msk [vmem:[%s920 + $0x141] sm:$0xff] %vm864, %v6627
      %6660 = vst.msk [vmem:[%s920 + $0x151] sm:$0xff] %vm864, %v6628
      %6661 = vst.msk [vmem:[%s920 + $0x159] sm:$0xff] %vm864, %v6629
      %6662 = vst.msk [vmem:[%s920 + $0x169] sm:$0xff] %vm864, %v6630
      %6663 = vst.msk [vmem:[%s920 + $0x171] sm:$0xff] %vm864, %v6631
      %v6664 = vld [vmem:[#allocation2] sm:$0xff]
      %v6665 = vld [vmem:[#allocation2 + $0x8] sm:$0xff]
      %v6666 = vld [vmem:[#allocation2 + $0x18] sm:$0xff]
      %v6667 = vld [vmem:[#allocation2 + $0x20] sm:$0xff]
      %v6668 = vld [vmem:[#allocation2 + $0x30] sm:$0xff]
      %v6669 = vld [vmem:[#allocation2 + $0x38] sm:$0xff]
      %v6670 = vld [vmem:[#allocation2 + $0x48] sm:$0xff]
      %v6671 = vld [vmem:[#allocation2 + $0x50] sm:$0xff]
      %v6672 = vld [vmem:[#allocation2 + $0x60] sm:$0xff]
      %v6673 = vld [vmem:[#allocation2 + $0x68] sm:$0xff]
      %v6674 = vld [vmem:[#allocation2 + $0x78] sm:$0xff]
      %v6675 = vld [vmem:[#allocation2 + $0x80] sm:$0xff]
      %v6676 = vld [vmem:[#allocation2 + $0x90] sm:$0xff]
      %v6677 = vld [vmem:[#allocation2 + $0x98] sm:$0xff]
      %v6678 = vld [vmem:[#allocation2 + $0xa8] sm:$0xff]
      %v6679 = vld [vmem:[#allocation2 + $0xb0] sm:$0xff]
      %v6680 = vld [vmem:[#allocation2 + $0xc0] sm:$0xff]
      %v6681 = vld [vmem:[#allocation2 + $0xc8] sm:$0xff]
      %v6682 = vld [vmem:[#allocation2 + $0xd8] sm:$0xff]
      %v6683 = vld [vmem:[#allocation2 + $0xe0] sm:$0xff]
      %v6684 = vld [vmem:[#allocation2 + $0xf0] sm:$0xff]
      %v6685 = vld [vmem:[#allocation2 + $0xf8] sm:$0xff]
      %v6686 = vld [vmem:[#allocation2 + $0x108] sm:$0xff]
      %v6687 = vld [vmem:[#allocation2 + $0x110] sm:$0xff]
      %v6688 = vld [vmem:[#allocation2 + $0x120] sm:$0xff]
      %v6689 = vld [vmem:[#allocation2 + $0x128] sm:$0xff]
      %v6690 = vld [vmem:[#allocation2 + $0x138] sm:$0xff]
      %v6691 = vld [vmem:[#allocation2 + $0x140] sm:$0xff]
      %v6692 = vld [vmem:[#allocation2 + $0x150] sm:$0xff]
      %v6693 = vld [vmem:[#allocation2 + $0x158] sm:$0xff]
      %v6694 = vld [vmem:[#allocation2 + $0x168] sm:$0xff]
      %v6695 = vld [vmem:[#allocation2 + $0x170] sm:$0xff]
      %v6696 = vld [vmem:[#allocation2 + $0x1] sm:$0xff]
      %v6697 = vld [vmem:[#allocation2 + $0x9] sm:$0xff]
      %v6698 = vld [vmem:[#allocation2 + $0x19] sm:$0xff]
      %v6699 = vld [vmem:[#allocation2 + $0x21] sm:$0xff]
      %v6700 = vld [vmem:[#allocation2 + $0x31] sm:$0xff]
      %v6701 = vld [vmem:[#allocation2 + $0x39] sm:$0xff]
      %v6702 = vld [vmem:[#allocation2 + $0x49] sm:$0xff]
      %v6703 = vld [vmem:[#allocation2 + $0x51] sm:$0xff]
      %v6704 = vld [vmem:[#allocation2 + $0x61] sm:$0xff]
      %v6705 = vld [vmem:[#allocation2 + $0x69] sm:$0xff]
      %v6706 = vld [vmem:[#allocation2 + $0x79] sm:$0xff]
      %v6707 = vld [vmem:[#allocation2 + $0x81] sm:$0xff]
      %v6708 = vld [vmem:[#allocation2 + $0x91] sm:$0xff]
      %v6709 = vld [vmem:[#allocation2 + $0x99] sm:$0xff]
      %v6710 = vld [vmem:[#allocation2 + $0xa9] sm:$0xff]
      %v6711 = vld [vmem:[#allocation2 + $0xb1] sm:$0xff]
      %v6712 = vld [vmem:[#allocation2 + $0xc1] sm:$0xff]
      %v6713 = vld [vmem:[#allocation2 + $0xc9] sm:$0xff]
      %v6714 = vld [vmem:[#allocation2 + $0xd9] sm:$0xff]
      %v6715 = vld [vmem:[#allocation2 + $0xe1] sm:$0xff]
      %v6716 = vld [vmem:[#allocation2 + $0xf1] sm:$0xff]
      %v6717 = vld [vmem:[#allocation2 + $0xf9] sm:$0xff]
      %v6718 = vld [vmem:[#allocation2 + $0x109] sm:$0xff]
      %v6719 = vld [vmem:[#allocation2 + $0x111] sm:$0xff]
      %v6720 = vld [vmem:[#allocation2 + $0x121] sm:$0xff]
      %v6721 = vld [vmem:[#allocation2 + $0x129] sm:$0xff]
      %v6722 = vld [vmem:[#allocation2 + $0x139] sm:$0xff]
      %v6723 = vld [vmem:[#allocation2 + $0x141] sm:$0xff]
      %v6724 = vld [vmem:[#allocation2 + $0x151] sm:$0xff]
      %v6725 = vld [vmem:[#allocation2 + $0x159] sm:$0xff]
      %v6726 = vld [vmem:[#allocation2 + $0x169] sm:$0xff]
      %v6727 = vld [vmem:[#allocation2 + $0x171] sm:$0xff]
      %v6728 = vld [vmem:[#allocation2 + $0x2] sm:$0xff]
      %v6729 = vld [vmem:[#allocation2 + $0xa] sm:$0xff]
      %v6730 = vld [vmem:[#allocation2 + $0x1a] sm:$0xff]
      %v6731 = vld [vmem:[#allocation2 + $0x22] sm:$0xff]
      %v6732 = vld [vmem:[#allocation2 + $0x32] sm:$0xff]
      %v6733 = vld [vmem:[#allocation2 + $0x3a] sm:$0xff]
      %v6734 = vld [vmem:[#allocation2 + $0x4a] sm:$0xff]
      %v6735 = vld [vmem:[#allocation2 + $0x52] sm:$0xff]
      %v6736 = vld [vmem:[#allocation2 + $0x62] sm:$0xff]
      %v6737 = vld [vmem:[#allocation2 + $0x6a] sm:$0xff]
      %v6738 = vld [vmem:[#allocation2 + $0x7a] sm:$0xff]
      %v6739 = vld [vmem:[#allocation2 + $0x82] sm:$0xff]
      %v6740 = vld [vmem:[#allocation2 + $0x92] sm:$0xff]
      %v6741 = vld [vmem:[#allocation2 + $0x9a] sm:$0xff]
      %v6742 = vld [vmem:[#allocation2 + $0xaa] sm:$0xff]
      %v6743 = vld [vmem:[#allocation2 + $0xb2] sm:$0xff]
      %v6744 = vld [vmem:[#allocation2 + $0xc2] sm:$0xff]
      %v6745 = vld [vmem:[#allocation2 + $0xca] sm:$0xff]
      %v6746 = vld [vmem:[#allocation2 + $0xda] sm:$0xff]
      %v6747 = vld [vmem:[#allocation2 + $0xe2] sm:$0xff]
      %v6748 = vld [vmem:[#allocation2 + $0xf2] sm:$0xff]
      %v6749 = vld [vmem:[#allocation2 + $0xfa] sm:$0xff]
      %v6750 = vld [vmem:[#allocation2 + $0x10a] sm:$0xff]
      %v6751 = vld [vmem:[#allocation2 + $0x112] sm:$0xff]
      %v6752 = vld [vmem:[#allocation2 + $0x122] sm:$0xff]
      %v6753 = vld [vmem:[#allocation2 + $0x12a] sm:$0xff]
      %v6754 = vld [vmem:[#allocation2 + $0x13a] sm:$0xff]
      %v6755 = vld [vmem:[#allocation2 + $0x142] sm:$0xff]
      %v6756 = vld [vmem:[#allocation2 + $0x152] sm:$0xff]
      %v6757 = vld [vmem:[#allocation2 + $0x15a] sm:$0xff]
      %v6758 = vld [vmem:[#allocation2 + $0x16a] sm:$0xff]
      %v6759 = vld [vmem:[#allocation2 + $0x172] sm:$0xff]
      %v6760 = vld [vmem:[%s920] sm:$0xff]
      %v6761 = vld [vmem:[%s920 + $0x8] sm:$0xff]
      %v6762 = vld [vmem:[%s920 + $0x18] sm:$0xff]
      %v6763 = vld [vmem:[%s920 + $0x20] sm:$0xff]
      %v6764 = vld [vmem:[%s920 + $0x30] sm:$0xff]
      %v6765 = vld [vmem:[%s920 + $0x38] sm:$0xff]
      %v6766 = vld [vmem:[%s920 + $0x48] sm:$0xff]
      %v6767 = vld [vmem:[%s920 + $0x50] sm:$0xff]
      %v6768 = vld [vmem:[%s920 + $0x60] sm:$0xff]
      %v6769 = vld [vmem:[%s920 + $0x68] sm:$0xff]
      %v6770 = vld [vmem:[%s920 + $0x78] sm:$0xff]
      %v6771 = vld [vmem:[%s920 + $0x80] sm:$0xff]
      %v6772 = vld [vmem:[%s920 + $0x90] sm:$0xff]
      %v6773 = vld [vmem:[%s920 + $0x98] sm:$0xff]
      %v6774 = vld [vmem:[%s920 + $0xa8] sm:$0xff]
      %v6775 = vld [vmem:[%s920 + $0xb0] sm:$0xff]
      %v6776 = vld [vmem:[%s920 + $0xc0] sm:$0xff]
      %v6777 = vld [vmem:[%s920 + $0xc8] sm:$0xff]
      %v6778 = vld [vmem:[%s920 + $0xd8] sm:$0xff]
      %v6779 = vld [vmem:[%s920 + $0xe0] sm:$0xff]
      %v6780 = vld [vmem:[%s920 + $0xf0] sm:$0xff]
      %v6781 = vld [vmem:[%s920 + $0xf8] sm:$0xff]
      %v6782 = vld [vmem:[%s920 + $0x108] sm:$0xff]
      %v6783 = vld [vmem:[%s920 + $0x110] sm:$0xff]
      %v6784 = vld [vmem:[%s920 + $0x120] sm:$0xff]
      %v6785 = vld [vmem:[%s920 + $0x128] sm:$0xff]
      %v6786 = vld [vmem:[%s920 + $0x138] sm:$0xff]
      %v6787 = vld [vmem:[%s920 + $0x140] sm:$0xff]
      %v6788 = vld [vmem:[%s920 + $0x150] sm:$0xff]
      %v6789 = vld [vmem:[%s920 + $0x158] sm:$0xff]
      %v6790 = vld [vmem:[%s920 + $0x168] sm:$0xff]
      %v6791 = vld [vmem:[%s920 + $0x170] sm:$0xff]
      %v6792 = vld [vmem:[%s920 + $0x1] sm:$0xff]
      %v6793 = vld [vmem:[%s920 + $0x9] sm:$0xff]
      %v6794 = vld [vmem:[%s920 + $0x19] sm:$0xff]
      %v6795 = vld [vmem:[%s920 + $0x21] sm:$0xff]
      %v6796 = vld [vmem:[%s920 + $0x31] sm:$0xff]
      %v6797 = vld [vmem:[%s920 + $0x39] sm:$0xff]
      %v6798 = vld [vmem:[%s920 + $0x49] sm:$0xff]
      %v6799 = vld [vmem:[%s920 + $0x51] sm:$0xff]
      %v6800 = vld [vmem:[%s920 + $0x61] sm:$0xff]
      %v6801 = vld [vmem:[%s920 + $0x69] sm:$0xff]
      %v6802 = vld [vmem:[%s920 + $0x79] sm:$0xff]
      %v6803 = vld [vmem:[%s920 + $0x81] sm:$0xff]
      %v6804 = vld [vmem:[%s920 + $0x91] sm:$0xff]
      %v6805 = vld [vmem:[%s920 + $0x99] sm:$0xff]
      %v6806 = vld [vmem:[%s920 + $0xa9] sm:$0xff]
      %v6807 = vld [vmem:[%s920 + $0xb1] sm:$0xff]
      %v6808 = vld [vmem:[%s920 + $0xc1] sm:$0xff]
      %v6809 = vld [vmem:[%s920 + $0xc9] sm:$0xff]
      %v6810 = vld [vmem:[%s920 + $0xd9] sm:$0xff]
      %v6811 = vld [vmem:[%s920 + $0xe1] sm:$0xff]
      %v6812 = vld [vmem:[%s920 + $0xf1] sm:$0xff]
      %v6813 = vld [vmem:[%s920 + $0xf9] sm:$0xff]
      %v6814 = vld [vmem:[%s920 + $0x109] sm:$0xff]
      %v6815 = vld [vmem:[%s920 + $0x111] sm:$0xff]
      %v6816 = vld [vmem:[%s920 + $0x121] sm:$0xff]
      %v6817 = vld [vmem:[%s920 + $0x129] sm:$0xff]
      %v6818 = vld [vmem:[%s920 + $0x139] sm:$0xff]
      %v6819 = vld [vmem:[%s920 + $0x141] sm:$0xff]
      %v6820 = vld [vmem:[%s920 + $0x151] sm:$0xff]
      %v6821 = vld [vmem:[%s920 + $0x159] sm:$0xff]
      %v6822 = vld [vmem:[%s920 + $0x169] sm:$0xff]
      %v6823 = vld [vmem:[%s920 + $0x171] sm:$0xff]
      %v6824 = vld [vmem:[%s920 + $0x2] sm:$0xff]
      %v6825 = vld [vmem:[%s920 + $0xa] sm:$0xff]
      %v6826 = vld [vmem:[%s920 + $0x1a] sm:$0xff]
      %v6827 = vld [vmem:[%s920 + $0x22] sm:$0xff]
      %v6828 = vld [vmem:[%s920 + $0x32] sm:$0xff]
      %v6829 = vld [vmem:[%s920 + $0x3a] sm:$0xff]
      %v6830 = vld [vmem:[%s920 + $0x4a] sm:$0xff]
      %v6831 = vld [vmem:[%s920 + $0x52] sm:$0xff]
      %v6832 = vld [vmem:[%s920 + $0x62] sm:$0xff]
      %v6833 = vld [vmem:[%s920 + $0x6a] sm:$0xff]
      %v6834 = vld [vmem:[%s920 + $0x7a] sm:$0xff]
      %v6835 = vld [vmem:[%s920 + $0x82] sm:$0xff]
      %v6836 = vld [vmem:[%s920 + $0x92] sm:$0xff]
      %v6837 = vld [vmem:[%s920 + $0x9a] sm:$0xff]
      %v6838 = vld [vmem:[%s920 + $0xaa] sm:$0xff]
      %v6839 = vld [vmem:[%s920 + $0xb2] sm:$0xff]
      %v6840 = vld [vmem:[%s920 + $0xc2] sm:$0xff]
      %v6841 = vld [vmem:[%s920 + $0xca] sm:$0xff]
      %v6842 = vld [vmem:[%s920 + $0xda] sm:$0xff]
      %v6843 = vld [vmem:[%s920 + $0xe2] sm:$0xff]
      %v6844 = vld [vmem:[%s920 + $0xf2] sm:$0xff]
      %v6845 = vld [vmem:[%s920 + $0xfa] sm:$0xff]
      %v6846 = vld [vmem:[%s920 + $0x10a] sm:$0xff]
      %v6847 = vld [vmem:[%s920 + $0x112] sm:$0xff]
      %v6848 = vld [vmem:[%s920 + $0x122] sm:$0xff]
      %v6849 = vld [vmem:[%s920 + $0x12a] sm:$0xff]
      %v6850 = vld [vmem:[%s920 + $0x13a] sm:$0xff]
      %v6851 = vld [vmem:[%s920 + $0x142] sm:$0xff]
      %v6852 = vld [vmem:[%s920 + $0x152] sm:$0xff]
      %v6853 = vld [vmem:[%s920 + $0x15a] sm:$0xff]
      %v6854 = vld [vmem:[%s920 + $0x16a] sm:$0xff]
      %v6855 = vld [vmem:[%s920 + $0x172] sm:$0xff]
      %v6856 = vld [vmem:[%s1145] sm:$0xff]
      %v6857 = vld [vmem:[%s1145 + $0x8] sm:$0xff]
      %v6858 = vld [vmem:[%s1145 + $0x18] sm:$0xff]
      %v6859 = vld [vmem:[%s1145 + $0x20] sm:$0xff]
      %v6860 = vld [vmem:[%s1145 + $0x30] sm:$0xff]
      %v6861 = vld [vmem:[%s1145 + $0x38] sm:$0xff]
      %v6862 = vld [vmem:[%s1145 + $0x48] sm:$0xff]
      %v6863 = vld [vmem:[%s1145 + $0x50] sm:$0xff]
      %v6864 = vld [vmem:[%s1145 + $0x60] sm:$0xff]
      %v6865 = vld [vmem:[%s1145 + $0x68] sm:$0xff]
      %v6866 = vld [vmem:[%s1145 + $0x78] sm:$0xff]
      %v6867 = vld [vmem:[%s1145 + $0x80] sm:$0xff]
      %v6868 = vld [vmem:[%s1145 + $0x90] sm:$0xff]
      %v6869 = vld [vmem:[%s1145 + $0x98] sm:$0xff]
      %v6870 = vld [vmem:[%s1145 + $0xa8] sm:$0xff]
      %v6871 = vld [vmem:[%s1145 + $0xb0] sm:$0xff]
      %v6872 = vld [vmem:[%s1145 + $0xc0] sm:$0xff]
      %v6873 = vld [vmem:[%s1145 + $0xc8] sm:$0xff]
      %v6874 = vld [vmem:[%s1145 + $0xd8] sm:$0xff]
      %v6875 = vld [vmem:[%s1145 + $0xe0] sm:$0xff]
      %v6876 = vld [vmem:[%s1145 + $0xf0] sm:$0xff]
      %v6877 = vld [vmem:[%s1145 + $0xf8] sm:$0xff]
      %v6878 = vld [vmem:[%s1145 + $0x108] sm:$0xff]
      %v6879 = vld [vmem:[%s1145 + $0x110] sm:$0xff]
      %v6880 = vld [vmem:[%s1145 + $0x120] sm:$0xff]
      %v6881 = vld [vmem:[%s1145 + $0x128] sm:$0xff]
      %v6882 = vld [vmem:[%s1145 + $0x138] sm:$0xff]
      %v6883 = vld [vmem:[%s1145 + $0x140] sm:$0xff]
      %v6884 = vld [vmem:[%s1145 + $0x150] sm:$0xff]
      %v6885 = vld [vmem:[%s1145 + $0x158] sm:$0xff]
      %v6886 = vld [vmem:[%s1145 + $0x168] sm:$0xff]
      %v6887 = vld [vmem:[%s1145 + $0x170] sm:$0xff]
      %v6888 = vld [vmem:[%s1145 + $0x1] sm:$0xff]
      %v6889 = vld [vmem:[%s1145 + $0x9] sm:$0xff]
      %v6890 = vld [vmem:[%s1145 + $0x19] sm:$0xff]
      %v6891 = vld [vmem:[%s1145 + $0x21] sm:$0xff]
      %v6892 = vld [vmem:[%s1145 + $0x31] sm:$0xff]
      %v6893 = vld [vmem:[%s1145 + $0x39] sm:$0xff]
      %v6894 = vld [vmem:[%s1145 + $0x49] sm:$0xff]
      %v6895 = vld [vmem:[%s1145 + $0x51] sm:$0xff]
      %v6896 = vld [vmem:[%s1145 + $0x61] sm:$0xff]
      %v6897 = vld [vmem:[%s1145 + $0x69] sm:$0xff]
      %v6898 = vld [vmem:[%s1145 + $0x79] sm:$0xff]
      %v6899 = vld [vmem:[%s1145 + $0x81] sm:$0xff]
      %v6900 = vld [vmem:[%s1145 + $0x91] sm:$0xff]
      %v6901 = vld [vmem:[%s1145 + $0x99] sm:$0xff]
      %v6902 = vld [vmem:[%s1145 + $0xa9] sm:$0xff]
      %v6903 = vld [vmem:[%s1145 + $0xb1] sm:$0xff]
      %v6904 = vld [vmem:[%s1145 + $0xc1] sm:$0xff]
      %v6905 = vld [vmem:[%s1145 + $0xc9] sm:$0xff]
      %v6906 = vld [vmem:[%s1145 + $0xd9] sm:$0xff]
      %v6907 = vld [vmem:[%s1145 + $0xe1] sm:$0xff]
      %v6908 = vld [vmem:[%s1145 + $0xf1] sm:$0xff]
      %v6909 = vld [vmem:[%s1145 + $0xf9] sm:$0xff]
      %v6910 = vld [vmem:[%s1145 + $0x109] sm:$0xff]
      %v6911 = vld [vmem:[%s1145 + $0x111] sm:$0xff]
      %v6912 = vld [vmem:[%s1145 + $0x121] sm:$0xff]
      %v6913 = vld [vmem:[%s1145 + $0x129] sm:$0xff]
      %v6914 = vld [vmem:[%s1145 + $0x139] sm:$0xff]
      %v6915 = vld [vmem:[%s1145 + $0x141] sm:$0xff]
      %v6916 = vld [vmem:[%s1145 + $0x151] sm:$0xff]
      %v6917 = vld [vmem:[%s1145 + $0x159] sm:$0xff]
      %v6918 = vld [vmem:[%s1145 + $0x169] sm:$0xff]
      %v6919 = vld [vmem:[%s1145 + $0x171] sm:$0xff]
      %v6920 = vld [vmem:[%s1145 + $0x2] sm:$0xff]
      %v6921 = vld [vmem:[%s1145 + $0xa] sm:$0xff]
      %v6922 = vld [vmem:[%s1145 + $0x1a] sm:$0xff]
      %v6923 = vld [vmem:[%s1145 + $0x22] sm:$0xff]
      %v6924 = vld [vmem:[%s1145 + $0x32] sm:$0xff]
      %v6925 = vld [vmem:[%s1145 + $0x3a] sm:$0xff]
      %v6926 = vld [vmem:[%s1145 + $0x4a] sm:$0xff]
      %v6927 = vld [vmem:[%s1145 + $0x52] sm:$0xff]
      %v6928 = vld [vmem:[%s1145 + $0x62] sm:$0xff]
      %v6929 = vld [vmem:[%s1145 + $0x6a] sm:$0xff]
      %v6930 = vld [vmem:[%s1145 + $0x7a] sm:$0xff]
      %v6931 = vld [vmem:[%s1145 + $0x82] sm:$0xff]
      %v6932 = vld [vmem:[%s1145 + $0x92] sm:$0xff]
      %v6933 = vld [vmem:[%s1145 + $0x9a] sm:$0xff]
      %v6934 = vld [vmem:[%s1145 + $0xaa] sm:$0xff]
      %v6935 = vld [vmem:[%s1145 + $0xb2] sm:$0xff]
      %v6936 = vld [vmem:[%s1145 + $0xc2] sm:$0xff]
      %v6937 = vld [vmem:[%s1145 + $0xca] sm:$0xff]
      %v6938 = vld [vmem:[%s1145 + $0xda] sm:$0xff]
      %v6939 = vld [vmem:[%s1145 + $0xe2] sm:$0xff]
      %v6940 = vld [vmem:[%s1145 + $0xf2] sm:$0xff]
      %v6941 = vld [vmem:[%s1145 + $0xfa] sm:$0xff]
      %v6942 = vld [vmem:[%s1145 + $0x10a] sm:$0xff]
      %v6943 = vld [vmem:[%s1145 + $0x112] sm:$0xff]
      %v6944 = vld [vmem:[%s1145 + $0x122] sm:$0xff]
      %v6945 = vld [vmem:[%s1145 + $0x12a] sm:$0xff]
      %v6946 = vld [vmem:[%s1145 + $0x13a] sm:$0xff]
      %v6947 = vld [vmem:[%s1145 + $0x142] sm:$0xff]
      %v6948 = vld [vmem:[%s1145 + $0x152] sm:$0xff]
      %v6949 = vld [vmem:[%s1145 + $0x15a] sm:$0xff]
      %v6950 = vld [vmem:[%s1145 + $0x16a] sm:$0xff]
      %v6951 = vld [vmem:[%s1145 + $0x172] sm:$0xff]
      %6984 = vrot.lane.b32.xlu0 %v6696, 16
      %v6985 = vpop.permute.xlu0 %6984
      %6986 = vrot.lane.b32.xlu0 %v6697, 16
      %v6987 = vpop.permute.xlu0 %6986
      %6988 = vrot.lane.b32.xlu0 %v6698, 16
      %v6989 = vpop.permute.xlu0 %6988
      %6990 = vrot.lane.b32.xlu0 %v6699, 16
      %v6991 = vpop.permute.xlu0 %6990
      %6992 = vrot.lane.b32.xlu0 %v6700, 16
      %v6993 = vpop.permute.xlu0 %6992
      %6994 = vrot.lane.b32.xlu0 %v6701, 16
      %v6995 = vpop.permute.xlu0 %6994
      %6996 = vrot.lane.b32.xlu0 %v6702, 16
      %v6997 = vpop.permute.xlu0 %6996
      %6998 = vrot.lane.b32.xlu0 %v6703, 16
      %v6999 = vpop.permute.xlu0 %6998
      %7000 = vrot.lane.b32.xlu0 %v6704, 16
      %v7001 = vpop.permute.xlu0 %7000
      %7002 = vrot.lane.b32.xlu0 %v6705, 16
      %v7003 = vpop.permute.xlu0 %7002
      %7004 = vrot.lane.b32.xlu0 %v6706, 16
      %v7005 = vpop.permute.xlu0 %7004
      %7006 = vrot.lane.b32.xlu0 %v6707, 16
      %v7007 = vpop.permute.xlu0 %7006
      %7008 = vrot.lane.b32.xlu0 %v6708, 16
      %v7009 = vpop.permute.xlu0 %7008
      %7010 = vrot.lane.b32.xlu0 %v6709, 16
      %v7011 = vpop.permute.xlu0 %7010
      %7012 = vrot.lane.b32.xlu0 %v6710, 16
      %v7013 = vpop.permute.xlu0 %7012
      %7014 = vrot.lane.b32.xlu0 %v6711, 16
      %v7015 = vpop.permute.xlu0 %7014
      %7016 = vrot.lane.b32.xlu0 %v6712, 16
      %v7017 = vpop.permute.xlu0 %7016
      %7018 = vrot.lane.b32.xlu0 %v6713, 16
      %v7019 = vpop.permute.xlu0 %7018
      %7020 = vrot.lane.b32.xlu0 %v6714, 16
      %v7021 = vpop.permute.xlu0 %7020
      %7022 = vrot.lane.b32.xlu0 %v6715, 16
      %v7023 = vpop.permute.xlu0 %7022
      %7024 = vrot.lane.b32.xlu0 %v6716, 16
      %v7025 = vpop.permute.xlu0 %7024
      %7026 = vrot.lane.b32.xlu0 %v6717, 16
      %v7027 = vpop.permute.xlu0 %7026
      %7028 = vrot.lane.b32.xlu0 %v6718, 16
      %v7029 = vpop.permute.xlu0 %7028
      %7030 = vrot.lane.b32.xlu0 %v6719, 16
      %v7031 = vpop.permute.xlu0 %7030
      %7032 = vrot.lane.b32.xlu0 %v6720, 16
      %v7033 = vpop.permute.xlu0 %7032
      %7034 = vrot.lane.b32.xlu0 %v6721, 16
      %v7035 = vpop.permute.xlu0 %7034
      %7036 = vrot.lane.b32.xlu0 %v6722, 16
      %v7037 = vpop.permute.xlu0 %7036
      %7038 = vrot.lane.b32.xlu0 %v6723, 16
      %v7039 = vpop.permute.xlu0 %7038
      %7040 = vrot.lane.b32.xlu0 %v6724, 16
      %v7041 = vpop.permute.xlu0 %7040
      %7042 = vrot.lane.b32.xlu0 %v6725, 16
      %v7043 = vpop.permute.xlu0 %7042
      %7044 = vrot.lane.b32.xlu0 %v6726, 16
      %v7045 = vpop.permute.xlu0 %7044
      %7046 = vrot.lane.b32.xlu0 %v6727, 16
      %v7047 = vpop.permute.xlu0 %7046
      %7112 = vrot.lane.b32.xlu0 %v6728, 32
      %v7113 = vpop.permute.xlu0 %7112
      %7114 = vrot.lane.b32.xlu0 %v6729, 32
      %v7115 = vpop.permute.xlu0 %7114
      %7116 = vrot.lane.b32.xlu0 %v6730, 32
      %v7117 = vpop.permute.xlu0 %7116
      %7118 = vrot.lane.b32.xlu0 %v6731, 32
      %v7119 = vpop.permute.xlu0 %7118
      %7120 = vrot.lane.b32.xlu0 %v6732, 32
      %v7121 = vpop.permute.xlu0 %7120
      %7122 = vrot.lane.b32.xlu0 %v6733, 32
      %v7123 = vpop.permute.xlu0 %7122
      %7124 = vrot.lane.b32.xlu0 %v6734, 32
      %v7125 = vpop.permute.xlu0 %7124
      %7126 = vrot.lane.b32.xlu0 %v6735, 32
      %v7127 = vpop.permute.xlu0 %7126
      %7128 = vrot.lane.b32.xlu0 %v6736, 32
      %v7129 = vpop.permute.xlu0 %7128
      %7130 = vrot.lane.b32.xlu0 %v6737, 32
      %v7131 = vpop.permute.xlu0 %7130
      %7132 = vrot.lane.b32.xlu0 %v6738, 32
      %v7133 = vpop.permute.xlu0 %7132
      %7134 = vrot.lane.b32.xlu0 %v6739, 32
      %v7135 = vpop.permute.xlu0 %7134
      %7136 = vrot.lane.b32.xlu0 %v6740, 32
      %v7137 = vpop.permute.xlu0 %7136
      %7138 = vrot.lane.b32.xlu0 %v6741, 32
      %v7139 = vpop.permute.xlu0 %7138
      %7140 = vrot.lane.b32.xlu0 %v6742, 32
      %v7141 = vpop.permute.xlu0 %7140
      %7142 = vrot.lane.b32.xlu0 %v6743, 32
      %v7143 = vpop.permute.xlu0 %7142
      %7144 = vrot.lane.b32.xlu0 %v6744, 32
      %v7145 = vpop.permute.xlu0 %7144
      %7146 = vrot.lane.b32.xlu0 %v6745, 32
      %v7147 = vpop.permute.xlu0 %7146
      %7148 = vrot.lane.b32.xlu0 %v6746, 32
      %v7149 = vpop.permute.xlu0 %7148
      %7150 = vrot.lane.b32.xlu0 %v6747, 32
      %v7151 = vpop.permute.xlu0 %7150
      %7152 = vrot.lane.b32.xlu0 %v6748, 32
      %v7153 = vpop.permute.xlu0 %7152
      %7154 = vrot.lane.b32.xlu0 %v6749, 32
      %v7155 = vpop.permute.xlu0 %7154
      %7156 = vrot.lane.b32.xlu0 %v6750, 32
      %v7157 = vpop.permute.xlu0 %7156
      %7158 = vrot.lane.b32.xlu0 %v6751, 32
      %v7159 = vpop.permute.xlu0 %7158
      %7160 = vrot.lane.b32.xlu0 %v6752, 32
      %v7161 = vpop.permute.xlu0 %7160
      %7162 = vrot.lane.b32.xlu0 %v6753, 32
      %v7163 = vpop.permute.xlu0 %7162
      %7164 = vrot.lane.b32.xlu0 %v6754, 32
      %v7165 = vpop.permute.xlu0 %7164
      %7166 = vrot.lane.b32.xlu0 %v6755, 32
      %v7167 = vpop.permute.xlu0 %7166
      %7168 = vrot.lane.b32.xlu0 %v6756, 32
      %v7169 = vpop.permute.xlu0 %7168
      %7170 = vrot.lane.b32.xlu0 %v6757, 32
      %v7171 = vpop.permute.xlu0 %7170
      %7172 = vrot.lane.b32.xlu0 %v6758, 32
      %v7173 = vpop.permute.xlu0 %7172
      %7174 = vrot.lane.b32.xlu0 %v6759, 32
      %v7175 = vpop.permute.xlu0 %7174
      %7240 = vrot.lane.b32.xlu0 %v6760, 48
      %v7241 = vpop.permute.xlu0 %7240
      %7242 = vrot.lane.b32.xlu0 %v6761, 48
      %v7243 = vpop.permute.xlu0 %7242
      %7244 = vrot.lane.b32.xlu0 %v6762, 48
      %v7245 = vpop.permute.xlu0 %7244
      %7246 = vrot.lane.b32.xlu0 %v6763, 48
      %v7247 = vpop.permute.xlu0 %7246
      %7248 = vrot.lane.b32.xlu0 %v6764, 48
      %v7249 = vpop.permute.xlu0 %7248
      %7250 = vrot.lane.b32.xlu0 %v6765, 48
      %v7251 = vpop.permute.xlu0 %7250
      %7252 = vrot.lane.b32.xlu0 %v6766, 48
      %v7253 = vpop.permute.xlu0 %7252
      %7254 = vrot.lane.b32.xlu0 %v6767, 48
      %v7255 = vpop.permute.xlu0 %7254
      %7256 = vrot.lane.b32.xlu0 %v6768, 48
      %v7257 = vpop.permute.xlu0 %7256
      %7258 = vrot.lane.b32.xlu0 %v6769, 48
      %v7259 = vpop.permute.xlu0 %7258
      %7260 = vrot.lane.b32.xlu0 %v6770, 48
      %v7261 = vpop.permute.xlu0 %7260
      %7262 = vrot.lane.b32.xlu0 %v6771, 48
      %v7263 = vpop.permute.xlu0 %7262
      %7264 = vrot.lane.b32.xlu0 %v6772, 48
      %v7265 = vpop.permute.xlu0 %7264
      %7266 = vrot.lane.b32.xlu0 %v6773, 48
      %v7267 = vpop.permute.xlu0 %7266
      %7268 = vrot.lane.b32.xlu0 %v6774, 48
      %v7269 = vpop.permute.xlu0 %7268
      %7270 = vrot.lane.b32.xlu0 %v6775, 48
      %v7271 = vpop.permute.xlu0 %7270
      %7272 = vrot.lane.b32.xlu0 %v6776, 48
      %v7273 = vpop.permute.xlu0 %7272
      %7274 = vrot.lane.b32.xlu0 %v6777, 48
      %v7275 = vpop.permute.xlu0 %7274
      %7276 = vrot.lane.b32.xlu0 %v6778, 48
      %v7277 = vpop.permute.xlu0 %7276
      %7278 = vrot.lane.b32.xlu0 %v6779, 48
      %v7279 = vpop.permute.xlu0 %7278
      %7280 = vrot.lane.b32.xlu0 %v6780, 48
      %v7281 = vpop.permute.xlu0 %7280
      %7282 = vrot.lane.b32.xlu0 %v6781, 48
      %v7283 = vpop.permute.xlu0 %7282
      %7284 = vrot.lane.b32.xlu0 %v6782, 48
      %v7285 = vpop.permute.xlu0 %7284
      %7286 = vrot.lane.b32.xlu0 %v6783, 48
      %v7287 = vpop.permute.xlu0 %7286
      %7288 = vrot.lane.b32.xlu0 %v6784, 48
      %v7289 = vpop.permute.xlu0 %7288
      %7290 = vrot.lane.b32.xlu0 %v6785, 48
      %v7291 = vpop.permute.xlu0 %7290
      %7292 = vrot.lane.b32.xlu0 %v6786, 48
      %v7293 = vpop.permute.xlu0 %7292
      %7294 = vrot.lane.b32.xlu0 %v6787, 48
      %v7295 = vpop.permute.xlu0 %7294
      %7296 = vrot.lane.b32.xlu0 %v6788, 48
      %v7297 = vpop.permute.xlu0 %7296
      %7298 = vrot.lane.b32.xlu0 %v6789, 48
      %v7299 = vpop.permute.xlu0 %7298
      %7300 = vrot.lane.b32.xlu0 %v6790, 48
      %v7301 = vpop.permute.xlu0 %7300
      %7302 = vrot.lane.b32.xlu0 %v6791, 48
      %v7303 = vpop.permute.xlu0 %7302
      %7368 = vrot.lane.b32.xlu0 %v6792, 64
      %v7369 = vpop.permute.xlu0 %7368
      %7370 = vrot.lane.b32.xlu0 %v6793, 64
      %v7371 = vpop.permute.xlu0 %7370
      %7372 = vrot.lane.b32.xlu0 %v6794, 64
      %v7373 = vpop.permute.xlu0 %7372
      %7374 = vrot.lane.b32.xlu0 %v6795, 64
      %v7375 = vpop.permute.xlu0 %7374
      %7376 = vrot.lane.b32.xlu0 %v6796, 64
      %v7377 = vpop.permute.xlu0 %7376
      %7378 = vrot.lane.b32.xlu0 %v6797, 64
      %v7379 = vpop.permute.xlu0 %7378
      %7380 = vrot.lane.b32.xlu0 %v6798, 64
      %v7381 = vpop.permute.xlu0 %7380
      %7382 = vrot.lane.b32.xlu0 %v6799, 64
      %v7383 = vpop.permute.xlu0 %7382
      %7384 = vrot.lane.b32.xlu0 %v6800, 64
      %v7385 = vpop.permute.xlu0 %7384
      %7386 = vrot.lane.b32.xlu0 %v6801, 64
      %v7387 = vpop.permute.xlu0 %7386
      %7388 = vrot.lane.b32.xlu0 %v6802, 64
      %v7389 = vpop.permute.xlu0 %7388
      %7390 = vrot.lane.b32.xlu0 %v6803, 64
      %v7391 = vpop.permute.xlu0 %7390
      %7392 = vrot.lane.b32.xlu0 %v6804, 64
      %v7393 = vpop.permute.xlu0 %7392
      %7394 = vrot.lane.b32.xlu0 %v6805, 64
      %v7395 = vpop.permute.xlu0 %7394
      %7396 = vrot.lane.b32.xlu0 %v6806, 64
      %v7397 = vpop.permute.xlu0 %7396
      %7398 = vrot.lane.b32.xlu0 %v6807, 64
      %v7399 = vpop.permute.xlu0 %7398
      %7400 = vrot.lane.b32.xlu0 %v6808, 64
      %v7401 = vpop.permute.xlu0 %7400
      %7402 = vrot.lane.b32.xlu0 %v6809, 64
      %v7403 = vpop.permute.xlu0 %7402
      %7404 = vrot.lane.b32.xlu0 %v6810, 64
      %v7405 = vpop.permute.xlu0 %7404
      %7406 = vrot.lane.b32.xlu0 %v6811, 64
      %v7407 = vpop.permute.xlu0 %7406
      %7408 = vrot.lane.b32.xlu0 %v6812, 64
      %v7409 = vpop.permute.xlu0 %7408
      %7410 = vrot.lane.b32.xlu0 %v6813, 64
      %v7411 = vpop.permute.xlu0 %7410
      %7412 = vrot.lane.b32.xlu0 %v6814, 64
      %v7413 = vpop.permute.xlu0 %7412
      %7414 = vrot.lane.b32.xlu0 %v6815, 64
      %v7415 = vpop.permute.xlu0 %7414
      %7416 = vrot.lane.b32.xlu0 %v6816, 64
      %v7417 = vpop.permute.xlu0 %7416
      %7418 = vrot.lane.b32.xlu0 %v6817, 64
      %v7419 = vpop.permute.xlu0 %7418
      %7420 = vrot.lane.b32.xlu0 %v6818, 64
      %v7421 = vpop.permute.xlu0 %7420
      %7422 = vrot.lane.b32.xlu0 %v6819, 64
      %v7423 = vpop.permute.xlu0 %7422
      %7424 = vrot.lane.b32.xlu0 %v6820, 64
      %v7425 = vpop.permute.xlu0 %7424
      %7426 = vrot.lane.b32.xlu0 %v6821, 64
      %v7427 = vpop.permute.xlu0 %7426
      %7428 = vrot.lane.b32.xlu0 %v6822, 64
      %v7429 = vpop.permute.xlu0 %7428
      %7430 = vrot.lane.b32.xlu0 %v6823, 64
      %v7431 = vpop.permute.xlu0 %7430
      %7496 = vrot.lane.b32.xlu0 %v6824, 80
      %v7497 = vpop.permute.xlu0 %7496
      %7498 = vrot.lane.b32.xlu0 %v6825, 80
      %v7499 = vpop.permute.xlu0 %7498
      %7500 = vrot.lane.b32.xlu0 %v6826, 80
      %v7501 = vpop.permute.xlu0 %7500
      %7502 = vrot.lane.b32.xlu0 %v6827, 80
      %v7503 = vpop.permute.xlu0 %7502
      %7504 = vrot.lane.b32.xlu0 %v6828, 80
      %v7505 = vpop.permute.xlu0 %7504
      %7506 = vrot.lane.b32.xlu0 %v6829, 80
      %v7507 = vpop.permute.xlu0 %7506
      %7508 = vrot.lane.b32.xlu0 %v6830, 80
      %v7509 = vpop.permute.xlu0 %7508
      %7510 = vrot.lane.b32.xlu0 %v6831, 80
      %v7511 = vpop.permute.xlu0 %7510
      %7512 = vrot.lane.b32.xlu0 %v6832, 80
      %v7513 = vpop.permute.xlu0 %7512
      %7514 = vrot.lane.b32.xlu0 %v6833, 80
      %v7515 = vpop.permute.xlu0 %7514
      %7516 = vrot.lane.b32.xlu0 %v6834, 80
      %v7517 = vpop.permute.xlu0 %7516
      %7518 = vrot.lane.b32.xlu0 %v6835, 80
      %v7519 = vpop.permute.xlu0 %7518
      %7520 = vrot.lane.b32.xlu0 %v6836, 80
      %v7521 = vpop.permute.xlu0 %7520
      %7522 = vrot.lane.b32.xlu0 %v6837, 80
      %v7523 = vpop.permute.xlu0 %7522
      %7524 = vrot.lane.b32.xlu0 %v6838, 80
      %v7525 = vpop.permute.xlu0 %7524
      %7526 = vrot.lane.b32.xlu0 %v6839, 80
      %v7527 = vpop.permute.xlu0 %7526
      %7528 = vrot.lane.b32.xlu0 %v6840, 80
      %v7529 = vpop.permute.xlu0 %7528
      %7530 = vrot.lane.b32.xlu0 %v6841, 80
      %v7531 = vpop.permute.xlu0 %7530
      %7532 = vrot.lane.b32.xlu0 %v6842, 80
      %v7533 = vpop.permute.xlu0 %7532
      %7534 = vrot.lane.b32.xlu0 %v6843, 80
      %v7535 = vpop.permute.xlu0 %7534
      %7536 = vrot.lane.b32.xlu0 %v6844, 80
      %v7537 = vpop.permute.xlu0 %7536
      %7538 = vrot.lane.b32.xlu0 %v6845, 80
      %v7539 = vpop.permute.xlu0 %7538
      %7540 = vrot.lane.b32.xlu0 %v6846, 80
      %v7541 = vpop.permute.xlu0 %7540
      %7542 = vrot.lane.b32.xlu0 %v6847, 80
      %v7543 = vpop.permute.xlu0 %7542
      %7544 = vrot.lane.b32.xlu0 %v6848, 80
      %v7545 = vpop.permute.xlu0 %7544
      %7546 = vrot.lane.b32.xlu0 %v6849, 80
      %v7547 = vpop.permute.xlu0 %7546
      %7548 = vrot.lane.b32.xlu0 %v6850, 80
      %v7549 = vpop.permute.xlu0 %7548
      %7550 = vrot.lane.b32.xlu0 %v6851, 80
      %v7551 = vpop.permute.xlu0 %7550
      %7552 = vrot.lane.b32.xlu0 %v6852, 80
      %v7553 = vpop.permute.xlu0 %7552
      %7554 = vrot.lane.b32.xlu0 %v6853, 80
      %v7555 = vpop.permute.xlu0 %7554
      %7556 = vrot.lane.b32.xlu0 %v6854, 80
      %v7557 = vpop.permute.xlu0 %7556
      %7558 = vrot.lane.b32.xlu0 %v6855, 80
      %v7559 = vpop.permute.xlu0 %7558
      %7624 = vrot.lane.b32.xlu0 %v6856, 96
      %v7625 = vpop.permute.xlu0 %7624
      %7626 = vrot.lane.b32.xlu0 %v6857, 96
      %v7627 = vpop.permute.xlu0 %7626
      %7628 = vrot.lane.b32.xlu0 %v6858, 96
      %v7629 = vpop.permute.xlu0 %7628
      %7630 = vrot.lane.b32.xlu0 %v6859, 96
      %v7631 = vpop.permute.xlu0 %7630
      %7632 = vrot.lane.b32.xlu0 %v6860, 96
      %v7633 = vpop.permute.xlu0 %7632
      %7634 = vrot.lane.b32.xlu0 %v6861, 96
      %v7635 = vpop.permute.xlu0 %7634
      %7636 = vrot.lane.b32.xlu0 %v6862, 96
      %v7637 = vpop.permute.xlu0 %7636
      %7638 = vrot.lane.b32.xlu0 %v6863, 96
      %v7639 = vpop.permute.xlu0 %7638
      %7640 = vrot.lane.b32.xlu0 %v6864, 96
      %v7641 = vpop.permute.xlu0 %7640
      %7642 = vrot.lane.b32.xlu0 %v6865, 96
      %v7643 = vpop.permute.xlu0 %7642
      %7644 = vrot.lane.b32.xlu0 %v6866, 96
      %v7645 = vpop.permute.xlu0 %7644
      %7646 = vrot.lane.b32.xlu0 %v6867, 96
      %v7647 = vpop.permute.xlu0 %7646
      %7648 = vrot.lane.b32.xlu0 %v6868, 96
      %v7649 = vpop.permute.xlu0 %7648
      %7650 = vrot.lane.b32.xlu0 %v6869, 96
      %v7651 = vpop.permute.xlu0 %7650
      %7652 = vrot.lane.b32.xlu0 %v6870, 96
      %v7653 = vpop.permute.xlu0 %7652
      %7654 = vrot.lane.b32.xlu0 %v6871, 96
      %v7655 = vpop.permute.xlu0 %7654
      %7656 = vrot.lane.b32.xlu0 %v6872, 96
      %v7657 = vpop.permute.xlu0 %7656
      %7658 = vrot.lane.b32.xlu0 %v6873, 96
      %v7659 = vpop.permute.xlu0 %7658
      %7660 = vrot.lane.b32.xlu0 %v6874, 96
      %v7661 = vpop.permute.xlu0 %7660
      %7662 = vrot.lane.b32.xlu0 %v6875, 96
      %v7663 = vpop.permute.xlu0 %7662
      %7664 = vrot.lane.b32.xlu0 %v6876, 96
      %v7665 = vpop.permute.xlu0 %7664
      %7666 = vrot.lane.b32.xlu0 %v6877, 96
      %v7667 = vpop.permute.xlu0 %7666
      %7668 = vrot.lane.b32.xlu0 %v6878, 96
      %v7669 = vpop.permute.xlu0 %7668
      %7670 = vrot.lane.b32.xlu0 %v6879, 96
      %v7671 = vpop.permute.xlu0 %7670
      %7672 = vrot.lane.b32.xlu0 %v6880, 96
      %v7673 = vpop.permute.xlu0 %7672
      %7674 = vrot.lane.b32.xlu0 %v6881, 96
      %v7675 = vpop.permute.xlu0 %7674
      %7676 = vrot.lane.b32.xlu0 %v6882, 96
      %v7677 = vpop.permute.xlu0 %7676
      %7678 = vrot.lane.b32.xlu0 %v6883, 96
      %v7679 = vpop.permute.xlu0 %7678
      %7680 = vrot.lane.b32.xlu0 %v6884, 96
      %v7681 = vpop.permute.xlu0 %7680
      %7682 = vrot.lane.b32.xlu0 %v6885, 96
      %v7683 = vpop.permute.xlu0 %7682
      %7684 = vrot.lane.b32.xlu0 %v6886, 96
      %v7685 = vpop.permute.xlu0 %7684
      %7686 = vrot.lane.b32.xlu0 %v6887, 96
      %v7687 = vpop.permute.xlu0 %7686
      %7752 = vrot.lane.b32.xlu0 %v6888, 112
      %v7753 = vpop.permute.xlu0 %7752
      %7754 = vrot.lane.b32.xlu0 %v6889, 112
      %v7755 = vpop.permute.xlu0 %7754
      %7756 = vrot.lane.b32.xlu0 %v6890, 112
      %v7757 = vpop.permute.xlu0 %7756
      %7758 = vrot.lane.b32.xlu0 %v6891, 112
      %v7759 = vpop.permute.xlu0 %7758
      %7760 = vrot.lane.b32.xlu0 %v6892, 112
      %v7761 = vpop.permute.xlu0 %7760
      %7762 = vrot.lane.b32.xlu0 %v6893, 112
      %v7763 = vpop.permute.xlu0 %7762
      %7764 = vrot.lane.b32.xlu0 %v6894, 112
      %v7765 = vpop.permute.xlu0 %7764
      %7766 = vrot.lane.b32.xlu0 %v6895, 112
      %v7767 = vpop.permute.xlu0 %7766
      %7768 = vrot.lane.b32.xlu0 %v6896, 112
      %v7769 = vpop.permute.xlu0 %7768
      %7770 = vrot.lane.b32.xlu0 %v6897, 112
      %v7771 = vpop.permute.xlu0 %7770
      %7772 = vrot.lane.b32.xlu0 %v6898, 112
      %v7773 = vpop.permute.xlu0 %7772
      %7774 = vrot.lane.b32.xlu0 %v6899, 112
      %v7775 = vpop.permute.xlu0 %7774
      %7776 = vrot.lane.b32.xlu0 %v6900, 112
      %v7777 = vpop.permute.xlu0 %7776
      %7778 = vrot.lane.b32.xlu0 %v6901, 112
      %v7779 = vpop.permute.xlu0 %7778
      %7780 = vrot.lane.b32.xlu0 %v6902, 112
      %v7781 = vpop.permute.xlu0 %7780
      %7782 = vrot.lane.b32.xlu0 %v6903, 112
      %v7783 = vpop.permute.xlu0 %7782
      %7784 = vrot.lane.b32.xlu0 %v6904, 112
      %v7785 = vpop.permute.xlu0 %7784
      %7786 = vrot.lane.b32.xlu0 %v6905, 112
      %v7787 = vpop.permute.xlu0 %7786
      %7788 = vrot.lane.b32.xlu0 %v6906, 112
      %v7789 = vpop.permute.xlu0 %7788
      %7790 = vrot.lane.b32.xlu0 %v6907, 112
      %v7791 = vpop.permute.xlu0 %7790
      %7792 = vrot.lane.b32.xlu0 %v6908, 112
      %v7793 = vpop.permute.xlu0 %7792
      %7794 = vrot.lane.b32.xlu0 %v6909, 112
      %v7795 = vpop.permute.xlu0 %7794
      %7796 = vrot.lane.b32.xlu0 %v6910, 112
      %v7797 = vpop.permute.xlu0 %7796
      %7798 = vrot.lane.b32.xlu0 %v6911, 112
      %v7799 = vpop.permute.xlu0 %7798
      %7800 = vrot.lane.b32.xlu0 %v6912, 112
      %v7801 = vpop.permute.xlu0 %7800
      %7802 = vrot.lane.b32.xlu0 %v6913, 112
      %v7803 = vpop.permute.xlu0 %7802
      %7804 = vrot.lane.b32.xlu0 %v6914, 112
      %v7805 = vpop.permute.xlu0 %7804
      %7806 = vrot.lane.b32.xlu0 %v6915, 112
      %v7807 = vpop.permute.xlu0 %7806
      %7808 = vrot.lane.b32.xlu0 %v6916, 112
      %v7809 = vpop.permute.xlu0 %7808
      %7810 = vrot.lane.b32.xlu0 %v6917, 112
      %v7811 = vpop.permute.xlu0 %7810
      %7812 = vrot.lane.b32.xlu0 %v6918, 112
      %v7813 = vpop.permute.xlu0 %7812
      %7814 = vrot.lane.b32.xlu0 %v6919, 112
      %v7815 = vpop.permute.xlu0 %7814
      %v7848 = vsel %vm864, %v6664, %v6985
      %v7849 = vsel %vm864, %v6665, %v6987
      %v7850 = vsel %vm864, %v6666, %v6989
      %v7851 = vsel %vm864, %v6667, %v6991
      %v7852 = vsel %vm864, %v6668, %v6993
      %v7853 = vsel %vm864, %v6669, %v6995
      %v7854 = vsel %vm864, %v6670, %v6997
      %v7855 = vsel %vm864, %v6671, %v6999
      %v7856 = vsel %vm864, %v6672, %v7001
      %v7857 = vsel %vm864, %v6673, %v7003
      %v7858 = vsel %vm864, %v6674, %v7005
      %v7859 = vsel %vm864, %v6675, %v7007
      %v7860 = vsel %vm864, %v6676, %v7009
      %v7861 = vsel %vm864, %v6677, %v7011
      %v7862 = vsel %vm864, %v6678, %v7013
      %v7863 = vsel %vm864, %v6679, %v7015
      %v7864 = vsel %vm864, %v6680, %v7017
      %v7865 = vsel %vm864, %v6681, %v7019
      %v7866 = vsel %vm864, %v6682, %v7021
      %v7867 = vsel %vm864, %v6683, %v7023
      %v7868 = vsel %vm864, %v6684, %v7025
      %v7869 = vsel %vm864, %v6685, %v7027
      %v7870 = vsel %vm864, %v6686, %v7029
      %v7871 = vsel %vm864, %v6687, %v7031
      %v7872 = vsel %vm864, %v6688, %v7033
      %v7873 = vsel %vm864, %v6689, %v7035
      %v7874 = vsel %vm864, %v6690, %v7037
      %v7875 = vsel %vm864, %v6691, %v7039
      %v7876 = vsel %vm864, %v6692, %v7041
      %v7877 = vsel %vm864, %v6693, %v7043
      %v7878 = vsel %vm864, %v6694, %v7045
      %v7879 = vsel %vm864, %v6695, %v7047
      %v7880 = vsel %vm2363, %v7848, %v7113
      %v7881 = vsel %vm2363, %v7849, %v7115
      %v7882 = vsel %vm2363, %v7850, %v7117
      %v7883 = vsel %vm2363, %v7851, %v7119
      %v7884 = vsel %vm2363, %v7852, %v7121
      %v7885 = vsel %vm2363, %v7853, %v7123
      %v7886 = vsel %vm2363, %v7854, %v7125
      %v7887 = vsel %vm2363, %v7855, %v7127
      %v7888 = vsel %vm2363, %v7856, %v7129
      %v7889 = vsel %vm2363, %v7857, %v7131
      %v7890 = vsel %vm2363, %v7858, %v7133
      %v7891 = vsel %vm2363, %v7859, %v7135
      %v7892 = vsel %vm2363, %v7860, %v7137
      %v7893 = vsel %vm2363, %v7861, %v7139
      %v7894 = vsel %vm2363, %v7862, %v7141
      %v7895 = vsel %vm2363, %v7863, %v7143
      %v7896 = vsel %vm2363, %v7864, %v7145
      %v7897 = vsel %vm2363, %v7865, %v7147
      %v7898 = vsel %vm2363, %v7866, %v7149
      %v7899 = vsel %vm2363, %v7867, %v7151
      %v7900 = vsel %vm2363, %v7868, %v7153
      %v7901 = vsel %vm2363, %v7869, %v7155
      %v7902 = vsel %vm2363, %v7870, %v7157
      %v7903 = vsel %vm2363, %v7871, %v7159
      %v7904 = vsel %vm2363, %v7872, %v7161
      %v7905 = vsel %vm2363, %v7873, %v7163
      %v7906 = vsel %vm2363, %v7874, %v7165
      %v7907 = vsel %vm2363, %v7875, %v7167
      %v7908 = vsel %vm2363, %v7876, %v7169
      %v7909 = vsel %vm2363, %v7877, %v7171
      %v7910 = vsel %vm2363, %v7878, %v7173
      %v7911 = vsel %vm2363, %v7879, %v7175
      %v7912 = vsel %vm2429, %v7880, %v7241
      %v7913 = vsel %vm2429, %v7881, %v7243
      %v7914 = vsel %vm2429, %v7882, %v7245
      %v7915 = vsel %vm2429, %v7883, %v7247
      %v7916 = vsel %vm2429, %v7884, %v7249
      %v7917 = vsel %vm2429, %v7885, %v7251
      %v7918 = vsel %vm2429, %v7886, %v7253
      %v7919 = vsel %vm2429, %v7887, %v7255
      %v7920 = vsel %vm2429, %v7888, %v7257
      %v7921 = vsel %vm2429, %v7889, %v7259
      %v7922 = vsel %vm2429, %v7890, %v7261
      %v7923 = vsel %vm2429, %v7891, %v7263
      %v7924 = vsel %vm2429, %v7892, %v7265
      %v7925 = vsel %vm2429, %v7893, %v7267
      %v7926 = vsel %vm2429, %v7894, %v7269
      %v7927 = vsel %vm2429, %v7895, %v7271
      %v7928 = vsel %vm2429, %v7896, %v7273
      %v7929 = vsel %vm2429, %v7897, %v7275
      %v7930 = vsel %vm2429, %v7898, %v7277
      %v7931 = vsel %vm2429, %v7899, %v7279
      %v7932 = vsel %vm2429, %v7900, %v7281
      %v7933 = vsel %vm2429, %v7901, %v7283
      %v7934 = vsel %vm2429, %v7902, %v7285
      %v7935 = vsel %vm2429, %v7903, %v7287
      %v7936 = vsel %vm2429, %v7904, %v7289
      %v7937 = vsel %vm2429, %v7905, %v7291
      %v7938 = vsel %vm2429, %v7906, %v7293
      %v7939 = vsel %vm2429, %v7907, %v7295
      %v7940 = vsel %vm2429, %v7908, %v7297
      %v7941 = vsel %vm2429, %v7909, %v7299
      %v7942 = vsel %vm2429, %v7910, %v7301
      %v7943 = vsel %vm2429, %v7911, %v7303
      %v7944 = vsel %vm2495, %v7912, %v7369
      %v7945 = vsel %vm2495, %v7913, %v7371
      %v7946 = vsel %vm2495, %v7914, %v7373
      %v7947 = vsel %vm2495, %v7915, %v7375
      %v7948 = vsel %vm2495, %v7916, %v7377
      %v7949 = vsel %vm2495, %v7917, %v7379
      %v7950 = vsel %vm2495, %v7918, %v7381
      %v7951 = vsel %vm2495, %v7919, %v7383
      %v7952 = vsel %vm2495, %v7920, %v7385
      %v7953 = vsel %vm2495, %v7921, %v7387
      %v7954 = vsel %vm2495, %v7922, %v7389
      %v7955 = vsel %vm2495, %v7923, %v7391
      %v7956 = vsel %vm2495, %v7924, %v7393
      %v7957 = vsel %vm2495, %v7925, %v7395
      %v7958 = vsel %vm2495, %v7926, %v7397
      %v7959 = vsel %vm2495, %v7927, %v7399
      %v7960 = vsel %vm2495, %v7928, %v7401
      %v7961 = vsel %vm2495, %v7929, %v7403
      %v7962 = vsel %vm2495, %v7930, %v7405
      %v7963 = vsel %vm2495, %v7931, %v7407
      %v7964 = vsel %vm2495, %v7932, %v7409
      %v7965 = vsel %vm2495, %v7933, %v7411
      %v7966 = vsel %vm2495, %v7934, %v7413
      %v7967 = vsel %vm2495, %v7935, %v7415
      %v7968 = vsel %vm2495, %v7936, %v7417
      %v7969 = vsel %vm2495, %v7937, %v7419
      %v7970 = vsel %vm2495, %v7938, %v7421
      %v7971 = vsel %vm2495, %v7939, %v7423
      %v7972 = vsel %vm2495, %v7940, %v7425
      %v7973 = vsel %vm2495, %v7941, %v7427
      %v7974 = vsel %vm2495, %v7942, %v7429
      %v7975 = vsel %vm2495, %v7943, %v7431
      %v7976 = vsel %vm4247, %v7944, %v7497
      %v7977 = vsel %vm4247, %v7945, %v7499
      %v7978 = vsel %vm4247, %v7946, %v7501
      %v7979 = vsel %vm4247, %v7947, %v7503
      %v7980 = vsel %vm4247, %v7948, %v7505
      %v7981 = vsel %vm4247, %v7949, %v7507
      %v7982 = vsel %vm4247, %v7950, %v7509
      %v7983 = vsel %vm4247, %v7951, %v7511
      %v7984 = vsel %vm4247, %v7952, %v7513
      %v7985 = vsel %vm4247, %v7953, %v7515
      %v7986 = vsel %vm4247, %v7954, %v7517
      %v7987 = vsel %vm4247, %v7955, %v7519
      %v7988 = vsel %vm4247, %v7956, %v7521
      %v7989 = vsel %vm4247, %v7957, %v7523
      %v7990 = vsel %vm4247, %v7958, %v7525
      %v7991 = vsel %vm4247, %v7959, %v7527
      %v7992 = vsel %vm4247, %v7960, %v7529
      %v7993 = vsel %vm4247, %v7961, %v7531
      %v7994 = vsel %vm4247, %v7962, %v7533
      %v7995 = vsel %vm4247, %v7963, %v7535
      %v7996 = vsel %vm4247, %v7964, %v7537
      %v7997 = vsel %vm4247, %v7965, %v7539
      %v7998 = vsel %vm4247, %v7966, %v7541
      %v7999 = vsel %vm4247, %v7967, %v7543
      %v8000 = vsel %vm4247, %v7968, %v7545
      %v8001 = vsel %vm4247, %v7969, %v7547
      %v8002 = vsel %vm4247, %v7970, %v7549
      %v8003 = vsel %vm4247, %v7971, %v7551
      %v8004 = vsel %vm4247, %v7972, %v7553
      %v8005 = vsel %vm4247, %v7973, %v7555
      %v8006 = vsel %vm4247, %v7974, %v7557
      %v8007 = vsel %vm4247, %v7975, %v7559
      %v8008 = vsel %vm4280, %v7976, %v7625
      %v8009 = vsel %vm4280, %v7977, %v7627
      %v8010 = vsel %vm4280, %v7978, %v7629
      %v8011 = vsel %vm4280, %v7979, %v7631
      %v8012 = vsel %vm4280, %v7980, %v7633
      %v8013 = vsel %vm4280, %v7981, %v7635
      %v8014 = vsel %vm4280, %v7982, %v7637
      %v8015 = vsel %vm4280, %v7983, %v7639
      %v8016 = vsel %vm4280, %v7984, %v7641
      %v8017 = vsel %vm4280, %v7985, %v7643
      %v8018 = vsel %vm4280, %v7986, %v7645
      %v8019 = vsel %vm4280, %v7987, %v7647
      %v8020 = vsel %vm4280, %v7988, %v7649
      %v8021 = vsel %vm4280, %v7989, %v7651
      %v8022 = vsel %vm4280, %v7990, %v7653
      %v8023 = vsel %vm4280, %v7991, %v7655
      %v8024 = vsel %vm4280, %v7992, %v7657
      %v8025 = vsel %vm4280, %v7993, %v7659
      %v8026 = vsel %vm4280, %v7994, %v7661
      %v8027 = vsel %vm4280, %v7995, %v7663
      %v8028 = vsel %vm4280, %v7996, %v7665
      %v8029 = vsel %vm4280, %v7997, %v7667
      %v8030 = vsel %vm4280, %v7998, %v7669
      %v8031 = vsel %vm4280, %v7999, %v7671
      %v8032 = vsel %vm4280, %v8000, %v7673
      %v8033 = vsel %vm4280, %v8001, %v7675
      %v8034 = vsel %vm4280, %v8002, %v7677
      %v8035 = vsel %vm4280, %v8003, %v7679
      %v8036 = vsel %vm4280, %v8004, %v7681
      %v8037 = vsel %vm4280, %v8005, %v7683
      %v8038 = vsel %vm4280, %v8006, %v7685
      %v8039 = vsel %vm4280, %v8007, %v7687
      %v8040 = vsel %vm4313, %v8008, %v7753
      %v8041 = vsel %vm4313, %v8009, %v7755
      %v8042 = vsel %vm4313, %v8010, %v7757
      %v8043 = vsel %vm4313, %v8011, %v7759
      %v8044 = vsel %vm4313, %v8012, %v7761
      %v8045 = vsel %vm4313, %v8013, %v7763
      %v8046 = vsel %vm4313, %v8014, %v7765
      %v8047 = vsel %vm4313, %v8015, %v7767
      %v8048 = vsel %vm4313, %v8016, %v7769
      %v8049 = vsel %vm4313, %v8017, %v7771
      %v8050 = vsel %vm4313, %v8018, %v7773
      %v8051 = vsel %vm4313, %v8019, %v7775
      %v8052 = vsel %vm4313, %v8020, %v7777
      %v8053 = vsel %vm4313, %v8021, %v7779
      %v8054 = vsel %vm4313, %v8022, %v7781
      %v8055 = vsel %vm4313, %v8023, %v7783
      %v8056 = vsel %vm4313, %v8024, %v7785
      %v8057 = vsel %vm4313, %v8025, %v7787
      %v8058 = vsel %vm4313, %v8026, %v7789
      %v8059 = vsel %vm4313, %v8027, %v7791
      %v8060 = vsel %vm4313, %v8028, %v7793
      %v8061 = vsel %vm4313, %v8029, %v7795
      %v8062 = vsel %vm4313, %v8030, %v7797
      %v8063 = vsel %vm4313, %v8031, %v7799
      %v8064 = vsel %vm4313, %v8032, %v7801
      %v8065 = vsel %vm4313, %v8033, %v7803
      %v8066 = vsel %vm4313, %v8034, %v7805
      %v8067 = vsel %vm4313, %v8035, %v7807
      %v8068 = vsel %vm4313, %v8036, %v7809
      %v8069 = vsel %vm4313, %v8037, %v7811
      %v8070 = vsel %vm4313, %v8038, %v7813
      %v8071 = vsel %vm4313, %v8039, %v7815
      %v8072 = vpack.c.bf16 %v8041, %v8040
      %v8073 = vpack.c.bf16 %v6921, %v6920
      %v8074 = vpack.c.bf16 %v8043, %v8042
      %v8075 = vpack.c.bf16 %v6923, %v6922
      %v8076 = vpack.c.bf16 %v8045, %v8044
      %v8077 = vpack.c.bf16 %v6925, %v6924
      %v8078 = vpack.c.bf16 %v8047, %v8046
      %v8079 = vpack.c.bf16 %v6927, %v6926
      %v8080 = vpack.c.bf16 %v8049, %v8048
      %v8081 = vpack.c.bf16 %v6929, %v6928
      %v8082 = vpack.c.bf16 %v8051, %v8050
      %v8083 = vpack.c.bf16 %v6931, %v6930
      %v8084 = vpack.c.bf16 %v8053, %v8052
      %v8085 = vpack.c.bf16 %v6933, %v6932
      %v8086 = vpack.c.bf16 %v8055, %v8054
      %v8087 = vpack.c.bf16 %v6935, %v6934
      %v8088 = vpack.c.bf16 %v8057, %v8056
      %v8089 = vpack.c.bf16 %v6937, %v6936
      %v8090 = vpack.c.bf16 %v8059, %v8058
      %v8091 = vpack.c.bf16 %v6939, %v6938
      %v8092 = vpack.c.bf16 %v8061, %v8060
      %v8093 = vpack.c.bf16 %v6941, %v6940
      %v8094 = vpack.c.bf16 %v8063, %v8062
      %v8095 = vpack.c.bf16 %v6943, %v6942
      %v8096 = vpack.c.bf16 %v8065, %v8064
      %v8097 = vpack.c.bf16 %v6945, %v6944
      %v8098 = vpack.c.bf16 %v8067, %v8066
      %v8099 = vpack.c.bf16 %v6947, %v6946
      %v8100 = vpack.c.bf16 %v8069, %v8068
      %v8101 = vpack.c.bf16 %v6949, %v6948
      %v8102 = vpack.c.bf16 %v8071, %v8070
      %v8103 = vpack.c.bf16 %v6951, %v6950
      %v8104 = vld [vmem:[%s10] sm:$0xf]
      %v8105 = vld [vmem:[%s10 + $0x4] sm:$0xf]
      %v8106 = vld [vmem:[%s10 + $0x8] sm:$0xf]
      %v8107 = vld [vmem:[%s10 + $0xc] sm:$0xf]
      %v8108 = vld [vmem:[%s10 + $0x10] sm:$0xf]
      %v8109 = vld [vmem:[%s10 + $0x14] sm:$0xf]
      %v8110 = vld [vmem:[%s10 + $0x18] sm:$0xf]
      %v8111 = vld [vmem:[%s10 + $0x1c] sm:$0xf]
      %v8112 = vld [vmem:[%s10 + $0x20] sm:$0xf]
      %v8113 = vld [vmem:[%s10 + $0x24] sm:$0xf]
      %v8114 = vld [vmem:[%s10 + $0x28] sm:$0xf]
      %v8115 = vld [vmem:[%s10 + $0x2c] sm:$0xf]
      %v8116 = vld [vmem:[%s10 + $0x30] sm:$0xf]
      %v8117 = vld [vmem:[%s10 + $0x34] sm:$0xf]
      %v8118 = vld [vmem:[%s10 + $0x38] sm:$0xf]
      %v8119 = vld [vmem:[%s10 + $0x3c] sm:$0xf]
      %v8120 = vld [vmem:[%s10 + $0x40] sm:$0xf]
      %v8121 = vld [vmem:[%s10 + $0x44] sm:$0xf]
      %v8140 = vunpack.c.l.b16 %v8104
      %v8141 = vunpack.c.l.b16 %v8105
      %v8142 = vunpack.c.l.b16 %v8106
      %v8143 = vunpack.c.l.b16 %v8107
      %v8144 = vunpack.c.l.b16 %v8108
      %v8145 = vunpack.c.l.b16 %v8109
      %v8146 = vunpack.c.l.b16 %v8110
      %v8147 = vunpack.c.l.b16 %v8111
      %v8148 = vunpack.c.l.b16 %v8112
      %v8149 = vunpack.c.l.b16 %v8113
      %v8150 = vunpack.c.l.b16 %v8114
      %v8151 = vunpack.c.l.b16 %v8115
      %v8152 = vunpack.c.l.b16 %v8116
      %v8153 = vunpack.c.l.b16 %v8117
      %v8154 = vunpack.c.l.b16 %v8118
      %v8155 = vunpack.c.l.b16 %v8119
      %v8156 = vunpack.c.l.b16 %v8120
      %v8157 = vunpack.c.l.b16 %v8121
      %v8158 = vpack.c.b16 %v8141, %v8140
      %v8159 = vpack.c.b16 %v8143, %v8142
      %v8160 = vpack.c.b16 %v8145, %v8144
      %v8161 = vpack.c.b16 %v8147, %v8146
      %v8162 = vpack.c.b16 %v8149, %v8148
      %v8163 = vpack.c.b16 %v8151, %v8150
      %v8164 = vpack.c.b16 %v8153, %v8152
      %v8165 = vpack.c.b16 %v8155, %v8154
      %v8166 = vpack.c.b16 %v8157, %v8156
      %v8177 = vsel %vm864, %v8073, 0
      %v8180 = vsel %vm864, %v8075, 0
      %v8183 = vsel %vm864, %v8077, 0
      %v8186 = vsel %vm864, %v8079, 0
      %v8189 = vsel %vm864, %v8081, 0
      %v8192 = vsel %vm864, %v8083, 0
      %v8195 = vsel %vm864, %v8085, 0
      %v8198 = vsel %vm864, %v8087, 0
      %v8201 = vsel %vm864, %v8089, 0
      %v8204 = vsel %vm864, %v8091, 0
      %v8207 = vsel %vm864, %v8093, 0
      %v8210 = vsel %vm864, %v8095, 0
      %v8213 = vsel %vm864, %v8097, 0
      %v8216 = vsel %vm864, %v8099, 0
      %v8219 = vsel %vm864, %v8101, 0
      %v8222 = vsel %vm864, %v8103, 0
      %8224 = vmatprep.subr.bf16.mxu0 0
      %8225 = vmatpush1.bf16.msra.mxu0 %v8165
      %8226 = vmatprep.subr.bf16.mxu0 0
      %8227 = vmatpush1.bf16.msra.mxu0 %v8164
      %8228 = vmatprep.subr.bf16.mxu0 0
      %8229 = vmatpush1.bf16.msra.mxu0 %v8163
      %8230 = vmatprep.subr.bf16.mxu0 0
      %8231 = vmatpush1.bf16.msra.mxu0 %v8162
      %8232 = vmatprep.subr.bf16.mxu0 0
      %8233 = vmatpush1.bf16.msra.mxu0 %v8161
      %8234 = vmatprep.subr.bf16.mxu0 0
      %8235 = vmatpush1.bf16.msra.mxu0 %v8160
      %8236 = vmatprep.subr.bf16.mxu0 0
      %8237 = vmatpush1.bf16.msra.mxu0 %v8159
      %8238 = vmatprep.subr.bf16.mxu0 0
      %8239 = vmatpush1.bf16.msra.mxu0 %v8158
      %8240 = vmatprep.subr.bf16.mxu0 0
      %8241 = vmatpush2.bf16.msra.mxu0 0
      %8242 = vmatprep.subr.bf16.mxu0 0
      %8243 = vmatpush2.bf16.msra.mxu0 0
      %8244 = vmatprep.subr.bf16.mxu0 0
      %8245 = vmatpush2.bf16.msra.mxu0 0
      %8246 = vmatprep.subr.bf16.mxu0 0
      %8247 = vmatpush2.bf16.msra.mxu0 0
      %8248 = vmatprep.subr.bf16.mxu0 0
      %8249 = vmatpush2.bf16.msra.mxu0 0
      %8250 = vmatprep.subr.bf16.mxu0 0
      %8251 = vmatpush2.bf16.msra.mxu0 0
      %8252 = vmatprep.subr.bf16.mxu0 0
      %8253 = vmatpush2.bf16.msra.mxu0 0
      %8254 = vmatprep.subr.bf16.mxu0 0
      %8255 = vmatpush2.bf16.msra.mxu0 %v8166
      %8256 = vmatprep.mubr.bf16.mxu0 %v8177
      %8257 = vmatmul.mubr.bf16.gmra.mxu0 %v8072
      %v8258 = vpop.f32.mrf.mxu0
      %v8259 = vadd.f32 0.0, %v8258
      %v8260 = vpop.f32.mrf.mxu0
      %v8261 = vpop.f32.mrf.mxu0
      %v8262 = vadd.f32 0.0, %v8261
      %v8263 = vpop.f32.mrf.mxu0
      %8264 = vmatprep.mubr.bf16.mxu0 %v8180
      %8265 = vmatmul.mubr.bf16.gmra.mxu0 %v8074
      %v8266 = vpop.f32.mrf.mxu0
      %v8267 = vadd.f32 0.0, %v8266
      %v8268 = vpop.f32.mrf.mxu0
      %v8269 = vpop.f32.mrf.mxu0
      %v8270 = vadd.f32 0.0, %v8269
      %v8271 = vpop.f32.mrf.mxu0
      %8272 = vmatprep.mubr.bf16.mxu0 %v8183
      %8273 = vmatmul.mubr.bf16.gmra.mxu0 %v8076
      %v8274 = vpop.f32.mrf.mxu0
      %v8275 = vadd.f32 0.0, %v8274
      %v8276 = vpop.f32.mrf.mxu0
      %v8277 = vpop.f32.mrf.mxu0
      %v8278 = vadd.f32 0.0, %v8277
      %v8279 = vpop.f32.mrf.mxu0
      %8280 = vmatprep.mubr.bf16.mxu0 %v8186
      %8281 = vmatmul.mubr.bf16.gmra.mxu0 %v8078
      %v8282 = vpop.f32.mrf.mxu0
      %v8283 = vadd.f32 0.0, %v8282
      %v8284 = vpop.f32.mrf.mxu0
      %v8285 = vpop.f32.mrf.mxu0
      %v8286 = vadd.f32 0.0, %v8285
      %v8287 = vpop.f32.mrf.mxu0
      %8288 = vmatprep.mubr.bf16.mxu0 %v8189
      %8289 = vmatmul.mubr.bf16.gmra.mxu0 %v8080
      %v8290 = vpop.f32.mrf.mxu0
      %v8291 = vadd.f32 0.0, %v8290
      %v8292 = vpop.f32.mrf.mxu0
      %v8293 = vpop.f32.mrf.mxu0
      %v8294 = vadd.f32 0.0, %v8293
      %v8295 = vpop.f32.mrf.mxu0
      %8296 = vmatprep.mubr.bf16.mxu0 %v8192
      %8297 = vmatmul.mubr.bf16.gmra.mxu0 %v8082
      %v8298 = vpop.f32.mrf.mxu0
      %v8299 = vadd.f32 0.0, %v8298
      %v8300 = vpop.f32.mrf.mxu0
      %v8301 = vpop.f32.mrf.mxu0
      %v8302 = vadd.f32 0.0, %v8301
      %v8303 = vpop.f32.mrf.mxu0
      %8304 = vmatprep.mubr.bf16.mxu0 %v8195
      %8305 = vmatmul.mubr.bf16.gmra.mxu0 %v8084
      %v8306 = vpop.f32.mrf.mxu0
      %v8307 = vadd.f32 0.0, %v8306
      %v8308 = vpop.f32.mrf.mxu0
      %v8309 = vpop.f32.mrf.mxu0
      %v8310 = vadd.f32 0.0, %v8309
      %v8311 = vpop.f32.mrf.mxu0
      %8312 = vmatprep.mubr.bf16.mxu0 %v8198
      %8313 = vmatmul.mubr.bf16.gmra.mxu0 %v8086
      %v8314 = vpop.f32.mrf.mxu0
      %v8315 = vadd.f32 0.0, %v8314
      %v8316 = vpop.f32.mrf.mxu0
      %v8317 = vpop.f32.mrf.mxu0
      %v8318 = vadd.f32 0.0, %v8317
      %v8319 = vpop.f32.mrf.mxu0
      %8320 = vmatprep.mubr.bf16.mxu0 %v8201
      %8321 = vmatmul.mubr.bf16.gmra.mxu0 %v8088
      %v8322 = vpop.f32.mrf.mxu0
      %v8323 = vadd.f32 0.0, %v8322
      %v8324 = vpop.f32.mrf.mxu0
      %v8325 = vpop.f32.mrf.mxu0
      %v8326 = vadd.f32 0.0, %v8325
      %v8327 = vpop.f32.mrf.mxu0
      %8328 = vmatprep.mubr.bf16.mxu0 %v8204
      %8329 = vmatmul.mubr.bf16.gmra.mxu0 %v8090
      %v8330 = vpop.f32.mrf.mxu0
      %v8331 = vadd.f32 0.0, %v8330
      %v8332 = vpop.f32.mrf.mxu0
      %v8333 = vpop.f32.mrf.mxu0
      %v8334 = vadd.f32 0.0, %v8333
      %v8335 = vpop.f32.mrf.mxu0
      %8336 = vmatprep.mubr.bf16.mxu0 %v8207
      %8337 = vmatmul.mubr.bf16.gmra.mxu0 %v8092
      %v8338 = vpop.f32.mrf.mxu0
      %v8339 = vadd.f32 0.0, %v8338
      %v8340 = vpop.f32.mrf.mxu0
      %v8341 = vpop.f32.mrf.mxu0
      %v8342 = vadd.f32 0.0, %v8341
      %v8343 = vpop.f32.mrf.mxu0
      %8344 = vmatprep.mubr.bf16.mxu0 %v8210
      %8345 = vmatmul.mubr.bf16.gmra.mxu0 %v8094
      %v8346 = vpop.f32.mrf.mxu0
      %v8347 = vadd.f32 0.0, %v8346
      %v8348 = vpop.f32.mrf.mxu0
      %v8349 = vpop.f32.mrf.mxu0
      %v8350 = vadd.f32 0.0, %v8349
      %v8351 = vpop.f32.mrf.mxu0
      %8352 = vmatprep.mubr.bf16.mxu0 %v8213
      %8353 = vmatmul.mubr.bf16.gmra.mxu0 %v8096
      %v8354 = vpop.f32.mrf.mxu0
      %v8355 = vadd.f32 0.0, %v8354
      %v8356 = vpop.f32.mrf.mxu0
      %v8357 = vpop.f32.mrf.mxu0
      %v8358 = vadd.f32 0.0, %v8357
      %v8359 = vpop.f32.mrf.mxu0
      %8360 = vmatprep.mubr.bf16.mxu0 %v8216
      %8361 = vmatmul.mubr.bf16.gmra.mxu0 %v8098
      %v8362 = vpop.f32.mrf.mxu0
      %v8363 = vadd.f32 0.0, %v8362
      %v8364 = vpop.f32.mrf.mxu0
      %v8365 = vpop.f32.mrf.mxu0
      %v8366 = vadd.f32 0.0, %v8365
      %v8367 = vpop.f32.mrf.mxu0
      %8368 = vmatprep.mubr.bf16.mxu0 %v8219
      %8369 = vmatmul.mubr.bf16.gmra.mxu0 %v8100
      %v8370 = vpop.f32.mrf.mxu0
      %v8371 = vadd.f32 0.0, %v8370
      %v8372 = vpop.f32.mrf.mxu0
      %v8373 = vpop.f32.mrf.mxu0
      %v8374 = vadd.f32 0.0, %v8373
      %v8375 = vpop.f32.mrf.mxu0
      %8376 = vmatprep.mubr.bf16.mxu0 %v8222
      %8377 = vmatmul.mubr.bf16.gmra.mxu0 %v8102
      %v8378 = vpop.f32.mrf.mxu0
      %v8379 = vadd.f32 0.0, %v8378
      %v8380 = vpop.f32.mrf.mxu0
      %v8381 = vpop.f32.mrf.mxu0
      %v8382 = vadd.f32 0.0, %v8381
      %v8383 = vpop.f32.mrf.mxu0
      %8384 = vdwg.mxu0
      %v8385 = vld [vmem:[%s11] sm:$0x1]
      %v8387 = vlaneseq
      %v8388 = vshrl.u32 %v8387, 7
      %v8389 = vsub.s32 0, %v8388
      %v8390 = vrot.slane %v8385, %v8389
      %v8392 = vmul.f32 %v8259, %v8390
      %v8393 = vmul.f32 %v8262, %v8390
      %v8394 = vmul.f32 %v8267, %v8390
      %v8395 = vmul.f32 %v8270, %v8390
      %v8396 = vmul.f32 %v8275, %v8390
      %v8397 = vmul.f32 %v8278, %v8390
      %v8398 = vmul.f32 %v8283, %v8390
      %v8399 = vmul.f32 %v8286, %v8390
      %v8400 = vmul.f32 %v8291, %v8390
      %v8401 = vmul.f32 %v8294, %v8390
      %v8402 = vmul.f32 %v8299, %v8390
      %v8403 = vmul.f32 %v8302, %v8390
      %v8404 = vmul.f32 %v8307, %v8390
      %v8405 = vmul.f32 %v8310, %v8390
      %v8406 = vmul.f32 %v8315, %v8390
      %v8407 = vmul.f32 %v8318, %v8390
      %v8408 = vmul.f32 %v8323, %v8390
      %v8409 = vmul.f32 %v8326, %v8390
      %v8410 = vmul.f32 %v8331, %v8390
      %v8411 = vmul.f32 %v8334, %v8390
      %v8412 = vmul.f32 %v8339, %v8390
      %v8413 = vmul.f32 %v8342, %v8390
      %v8414 = vmul.f32 %v8347, %v8390
      %v8415 = vmul.f32 %v8350, %v8390
      %v8416 = vmul.f32 %v8355, %v8390
      %v8417 = vmul.f32 %v8358, %v8390
      %v8418 = vmul.f32 %v8363, %v8390
      %v8419 = vmul.f32 %v8366, %v8390
      %v8420 = vmul.f32 %v8371, %v8390
      %v8421 = vmul.f32 %v8374, %v8390
      %v8422 = vmul.f32 %v8379, %v8390
      %v8423 = vmul.f32 %v8382, %v8390
      %v8424 = vld [vmem:[%s12] sm:$0x1]
      %v8426 = vlaneseq
      %v8427 = vshrl.u32 %v8426, 7
      %v8428 = vsub.s32 0, %v8427
      %v8429 = vrot.slane %v8424, %v8428
      %v8431 = vadd.f32 %v8392, %v8429
      %v8432 = vadd.f32 %v8393, %v8429
      %v8433 = vadd.f32 %v8394, %v8429
      %v8434 = vadd.f32 %v8395, %v8429
      %v8435 = vadd.f32 %v8396, %v8429
      %v8436 = vadd.f32 %v8397, %v8429
      %v8437 = vadd.f32 %v8398, %v8429
      %v8438 = vadd.f32 %v8399, %v8429
      %v8439 = vadd.f32 %v8400, %v8429
      %v8440 = vadd.f32 %v8401, %v8429
      %v8441 = vadd.f32 %v8402, %v8429
      %v8442 = vadd.f32 %v8403, %v8429
      %v8443 = vadd.f32 %v8404, %v8429
      %v8444 = vadd.f32 %v8405, %v8429
      %v8445 = vadd.f32 %v8406, %v8429
      %v8446 = vadd.f32 %v8407, %v8429
      %v8447 = vadd.f32 %v8408, %v8429
      %v8448 = vadd.f32 %v8409, %v8429
      %v8449 = vadd.f32 %v8410, %v8429
      %v8450 = vadd.f32 %v8411, %v8429
      %v8451 = vadd.f32 %v8412, %v8429
      %v8452 = vadd.f32 %v8413, %v8429
      %v8453 = vadd.f32 %v8414, %v8429
      %v8454 = vadd.f32 %v8415, %v8429
      %v8455 = vadd.f32 %v8416, %v8429
      %v8456 = vadd.f32 %v8417, %v8429
      %v8457 = vadd.f32 %v8418, %v8429
      %v8458 = vadd.f32 %v8419, %v8429
      %v8459 = vadd.f32 %v8420, %v8429
      %v8460 = vadd.f32 %v8421, %v8429
      %v8461 = vadd.f32 %v8422, %v8429
      %v8462 = vadd.f32 %v8423, %v8429
      %v8463 = vadd.f32 %v8431, %v832
      %v8464 = vadd.f32 %v8432, %v833
      %v8465 = vadd.f32 %v8433, %v834
      %v8466 = vadd.f32 %v8434, %v835
      %v8467 = vadd.f32 %v8435, %v836
      %v8468 = vadd.f32 %v8436, %v837
      %v8469 = vadd.f32 %v8437, %v838
      %v8470 = vadd.f32 %v8438, %v839
      %v8471 = vadd.f32 %v8439, %v840
      %v8472 = vadd.f32 %v8440, %v841
      %v8473 = vadd.f32 %v8441, %v842
      %v8474 = vadd.f32 %v8442, %v843
      %v8475 = vadd.f32 %v8443, %v844
      %v8476 = vadd.f32 %v8444, %v845
      %v8477 = vadd.f32 %v8445, %v846
      %v8478 = vadd.f32 %v8446, %v847
      %v8479 = vadd.f32 %v8447, %v848
      %v8480 = vadd.f32 %v8448, %v849
      %v8481 = vadd.f32 %v8449, %v850
      %v8482 = vadd.f32 %v8450, %v851
      %v8483 = vadd.f32 %v8451, %v852
      %v8484 = vadd.f32 %v8452, %v853
      %v8485 = vadd.f32 %v8453, %v854
      %v8486 = vadd.f32 %v8454, %v855
      %v8487 = vadd.f32 %v8455, %v856
      %v8488 = vadd.f32 %v8456, %v857
      %v8489 = vadd.f32 %v8457, %v858
      %v8490 = vadd.f32 %v8458, %v859
      %v8491 = vadd.f32 %v8459, %v860
      %v8492 = vadd.f32 %v8460, %v861
      %v8493 = vadd.f32 %v8461, %v862
      %v8494 = vadd.f32 %v8462, %v863
      %v8495 = vmax.f32 %v8463, 0.0
      %v8496 = vmax.f32 %v8464, 0.0
      %v8497 = vmax.f32 %v8465, 0.0
      %v8498 = vmax.f32 %v8466, 0.0
      %v8499 = vmax.f32 %v8467, 0.0
      %v8500 = vmax.f32 %v8468, 0.0
      %v8501 = vmax.f32 %v8469, 0.0
      %v8502 = vmax.f32 %v8470, 0.0
      %v8503 = vmax.f32 %v8471, 0.0
      %v8504 = vmax.f32 %v8472, 0.0
      %v8505 = vmax.f32 %v8473, 0.0
      %v8506 = vmax.f32 %v8474, 0.0
      %v8507 = vmax.f32 %v8475, 0.0
      %v8508 = vmax.f32 %v8476, 0.0
      %v8509 = vmax.f32 %v8477, 0.0
      %v8510 = vmax.f32 %v8478, 0.0
      %v8511 = vmax.f32 %v8479, 0.0
      %v8512 = vmax.f32 %v8480, 0.0
      %v8513 = vmax.f32 %v8481, 0.0
      %v8514 = vmax.f32 %v8482, 0.0
      %v8515 = vmax.f32 %v8483, 0.0
      %v8516 = vmax.f32 %v8484, 0.0
      %v8517 = vmax.f32 %v8485, 0.0
      %v8518 = vmax.f32 %v8486, 0.0
      %v8519 = vmax.f32 %v8487, 0.0
      %v8520 = vmax.f32 %v8488, 0.0
      %v8521 = vmax.f32 %v8489, 0.0
      %v8522 = vmax.f32 %v8490, 0.0
      %v8523 = vmax.f32 %v8491, 0.0
      %v8524 = vmax.f32 %v8492, 0.0
      %v8525 = vmax.f32 %v8493, 0.0
      %v8526 = vmax.f32 %v8494, 0.0
      %8527 = vst.msk [vmem:[%s521] sm:$0xff] %vm864, %v8495
      %8528 = vst.msk [vmem:[%s521 + $0x8] sm:$0xff] %vm864, %v8496
      %8529 = vst.msk [vmem:[%s521 + $0x10] sm:$0xff] %vm864, %v8497
      %8530 = vst.msk [vmem:[%s521 + $0x18] sm:$0xff] %vm864, %v8498
      %8531 = vst.msk [vmem:[%s521 + $0x20] sm:$0xff] %vm864, %v8499
      %8532 = vst.msk [vmem:[%s521 + $0x28] sm:$0xff] %vm864, %v8500
      %8533 = vst.msk [vmem:[%s521 + $0x30] sm:$0xff] %vm864, %v8501
      %8534 = vst.msk [vmem:[%s521 + $0x38] sm:$0xff] %vm864, %v8502
      %8535 = vst.msk [vmem:[%s521 + $0x40] sm:$0xff] %vm864, %v8503
      %8536 = vst.msk [vmem:[%s521 + $0x48] sm:$0xff] %vm864, %v8504
      %8537 = vst.msk [vmem:[%s521 + $0x50] sm:$0xff] %vm864, %v8505
      %8538 = vst.msk [vmem:[%s521 + $0x58] sm:$0xff] %vm864, %v8506
      %8539 = vst.msk [vmem:[%s521 + $0x60] sm:$0xff] %vm864, %v8507
      %8540 = vst.msk [vmem:[%s521 + $0x68] sm:$0xff] %vm864, %v8508
      %8541 = vst.msk [vmem:[%s521 + $0x70] sm:$0xff] %vm864, %v8509
      %8542 = vst.msk [vmem:[%s521 + $0x78] sm:$0xff] %vm864, %v8510
      %8543 = vst.msk [vmem:[%s521 + $0x80] sm:$0xff] %vm864, %v8511
      %8544 = vst.msk [vmem:[%s521 + $0x88] sm:$0xff] %vm864, %v8512
      %8545 = vst.msk [vmem:[%s521 + $0x90] sm:$0xff] %vm864, %v8513
      %8546 = vst.msk [vmem:[%s521 + $0x98] sm:$0xff] %vm864, %v8514
      %8547 = vst.msk [vmem:[%s521 + $0xa0] sm:$0xff] %vm864, %v8515
      %8548 = vst.msk [vmem:[%s521 + $0xa8] sm:$0xff] %vm864, %v8516
      %8549 = vst.msk [vmem:[%s521 + $0xb0] sm:$0xff] %vm864, %v8517
      %8550 = vst.msk [vmem:[%s521 + $0xb8] sm:$0xff] %vm864, %v8518
      %8551 = vst.msk [vmem:[%s521 + $0xc0] sm:$0xff] %vm864, %v8519
      %8552 = vst.msk [vmem:[%s521 + $0xc8] sm:$0xff] %vm864, %v8520
      %8553 = vst.msk [vmem:[%s521 + $0xd0] sm:$0xff] %vm864, %v8521
      %8554 = vst.msk [vmem:[%s521 + $0xd8] sm:$0xff] %vm864, %v8522
      %8555 = vst.msk [vmem:[%s521 + $0xe0] sm:$0xff] %vm864, %v8523
      %8556 = vst.msk [vmem:[%s521 + $0xe8] sm:$0xff] %vm864, %v8524
      %8557 = vst.msk [vmem:[%s521 + $0xf0] sm:$0xff] %vm864, %v8525
      %8558 = vst.msk [vmem:[%s521 + $0xf8] sm:$0xff] %vm864, %v8526
      %p8559 = scmp.lt.s32.totalorder %s27, 1
      %s8560 = scalar_select %p8559, %s27, 1
      %s8561 = smul.addr %s8560, 32
      %s8562 = smul.addr %s8561, 8
      %s8563 = scalar_lea.vmem %s16, %s8562
      // Predicated region
      $region85: #{cat_res_forward.1} parent=83 // pred_check
        %p8564 = pneg %p386
      $region86: #{cat_res_forward.1} parent=83 // pred_check_branch
        %8566 = sbr.rel (%p8564) target = $region88
      $region87: #{cat_res_forward.1} parent=83 // pred_region
        _
      $region88: #{cat_res_forward.1} parent=83 // pred_fallthru
        _
    $region84: #{cat_res_forward.1} parent=5 // pred_fallthru
      _
    %p8567 = scmp.le.s32.totalorder 2, %s22
    // Predicated region
    $region89: #{cat_res_forward.1} parent=5 // pred_check
      %p8568 = pneg %p8567
    $region90: #{cat_res_forward.1} parent=5 // pred_check_branch
      %8570 = sbr.rel (%p8568) target = $region92
    $region91: #{cat_res_forward.1} parent=5 // pred_region
      %s8571 = ssub.s32 %s22, 2
      // Predicated region
      $region93: #{cat_res_forward.1} parent=91 // pred_check
        %p8572 = pneg %p392
      $region94: #{cat_res_forward.1} parent=91 // pred_check_branch
        %8574 = sbr.rel (%p8572) target = $region96
      $region95: #{cat_res_forward.1} parent=91 // pred_region
        %p8575 = scmp.lt.s32.totalorder %s28, 1
        %s8576 = scalar_select %p8575, %s28, 1
        %s8577 = smul.addr %s8576, 32
        %s8578 = smul.addr %s8577, 8
        %s8579 = scalar_lea.vmem %s16, %s8578
      $region96: #{cat_res_forward.1} parent=91 // pred_fallthru
        _
    $region92: #{cat_res_forward.1} parent=5 // pred_fallthru
      _
  $region6: #{cat_res_forward.1} parent=0 // loop_footer
    %s26 = sadd.s32 1, %s22
  $region7: #{cat_res_forward.1} parent=0 // loop_footer_branch
    %21 = sbr.rel target = $region3
  $region8: #{cat_res_forward.1} parent=0 // loop_exit
    _

</llo_original>
